<compile_context>
chip_gen: v5e
topology: v5e:2x2
jax: 0.10.0
libtpu: 0.0.40
codegen_flags: <defaults>
</compile_context>

<pallas_src>
import functools

import jax
import jax.numpy as jnp
from jax.experimental import pallas as pl
from jax.experimental.pallas import tpu as pltpu


# ----------------------------------------------------------------------------- fused kernel

def _resnet_block_kernel(xpad_ref, w1_ref, w2_ref, bn_ref, o_ref, y1p_ref, *,
                         B, H, W, C, eps):
    """Whole ResnetBlock in a single kernel invocation; everything stays resident in VMEM.

    xpad_ref : (B, H+2, W+2, C) f32   reflect-padded input
    w1_ref   : (9, C, C)        bf16  conv1 weight as per-tap (Cin, Cout) matrices
    w2_ref   : (9, C, C)        bf16  conv2 weight as per-tap (Cin, Cout) matrices
    bn_ref   : (4, C)           f32   [gamma1, beta1, gamma2, beta2]
    o_ref    : (B, H, W, C)     f32   output  x + conv_block(x)
    y1p_ref  : (B, H+2, W+2, C) f32   VMEM scratch: reflect-padded intermediate activation
    """
    M = B * H * W

    def conv3x3(src_ref, w_ref):
        # Fused im2col: accumulate 9 per-tap (M,C)@(C,C) matmuls on the MXU.
        # Operands cast to bf16 only at the MXU input; f32 accumulation.
        acc = jnp.zeros((M, C), jnp.float32)
        for t in range(9):
            i, j = t // 3, t % 3
            tap = src_ref[:, i:i + H, j:j + W, :].reshape(M, C)
            acc = acc + jnp.dot(tap.astype(jnp.bfloat16), w_ref[t],
                                preferred_element_type=jnp.float32)
        return acc

    def batchnorm(acc, gamma, beta):
        # PyTorch BatchNorm2d training-mode statistics (per-batch, biased var), all in f32.
        mu = jnp.mean(acc, axis=0, keepdims=True)
        var = jnp.mean(jnp.square(acc - mu), axis=0, keepdims=True)
        return (acc - mu) * jax.lax.rsqrt(var + eps) * gamma + beta

    bn = bn_ref[...]

    # ---- conv1 -> BN1 -> ReLU ------------------------------------------------------------
    y1 = batchnorm(conv3x3(xpad_ref, w1_ref), bn[0:1, :], bn[1:2, :])
    y1 = jnp.maximum(y1, 0.0)

    # ---- reflect-pad the intermediate inside VMEM (no HBM round trip) ----------------------
    y1 = y1.reshape(B, H, W, C)
    y1p_ref[:, 1:H + 1, 1:W + 1, :] = y1
    y1p_ref[:, 0:1, 1:W + 1, :] = y1[:, 1:2]                    # top row     <- row 1
    y1p_ref[:, H + 1:H + 2, 1:W + 1, :] = y1[:, H - 2:H - 1]    # bottom row  <- row H-2
    y1p_ref[:, :, 0:1, :] = y1p_ref[:, :, 2:3, :]               # left col    <- col 1 (corners too)
    y1p_ref[:, :, W + 1:W + 2, :] = y1p_ref[:, :, W - 1:W, :]   # right col   <- col W-2

    # ---- conv2 -> BN2 -> residual add ------------------------------------------------------
    y2 = batchnorm(conv3x3(y1p_ref, w2_ref), bn[2:3, :], bn[3:4, :])
    x_in = xpad_ref[:, 1:H + 1, 1:W + 1, :].reshape(M, C)       # original (unpadded) input
    o_ref[...] = (x_in + y2).reshape(B, H, W, C)


# ----------------------------------------------------------------------------- wrapper

def resnet_block(x_nchw, params, eps=1e-5):
    """PyTorch ResnetBlock forward (reflect padding, BatchNorm2d train-stats, no bias,
    no dropout) as a single fused Pallas call.  NCHW in / NCHW out."""
    B, C, H, W = x_nchw.shape
    assert H >= 2 and W >= 2, "ReflectionPad2d(1) needs H, W >= 2"

    x = jnp.transpose(x_nchw, (0, 2, 3, 1)).astype(jnp.float32)              # -> NHWC
    xpad = jnp.pad(x, ((0, 0), (1, 1), (1, 1), (0, 0)), mode="reflect")      # first ReflectionPad2d

    def per_tap(w_oihw):  # OIHW -> (9, Cin, Cout) bf16 tap matrices (MXU operands)
        return jnp.transpose(w_oihw, (2, 3, 1, 0)).reshape(9, C, C).astype(jnp.bfloat16)

    bn = jnp.stack([params["bn1_g"], params["bn1_b"],
                    params["bn2_g"], params["bn2_b"]]).astype(jnp.float32)   # (4, C)

    # VMEM budget: activations (B*(H+2)*(W+2)*C f32, twice) + two bf16 weight stacks
    # (9*C*C*2 B each) + output  <  4 MiB at the demo shape -- far under v7x's 64 MiB.
    # TODO(synk): BatchNorm couples every row through the batch statistics, so the block runs
    # as one fused step; sharding it over v7x's two TensorCores would need a two-pass
    # partial-sum statistics reduction.
    # TODO(synk): use_dropout=True (nn.Dropout training-mode RNG) and BatchNorm running-stat
    # buffer updates are not modeled (block is used with use_dropout=False).
    out_nhwc = pl.pallas_call(
        functools.partial(_resnet_block_kernel, B=B, H=H, W=W, C=C, eps=eps),
        out_shape=jax.ShapeDtypeStruct((B, H, W, C), jnp.float32),
        scratch_shapes=[pltpu.VMEM((B, H + 2, W + 2, C), jnp.float32)],
    )(xpad, per_tap(params["conv1_w"]), per_tap(params["conv2_w"]), bn)

    return jnp.transpose(out_nhwc, (0, 3, 1, 2))                             # -> NCHW


# ----------------------------------------------------------------------------- pure-JAX reference

def resnet_block_reference(x_nchw, params, eps=1e-5):
    """Non-Pallas reference with identical bf16-operand / f32-accumulate matmul numerics."""
    B, C, H, W = x_nchw.shape
    x = jnp.transpose(x_nchw, (0, 2, 3, 1)).astype(jnp.float32)

    def conv_bn(inp, w_oihw, gamma, beta, relu):
        xp = jnp.pad(inp, ((0, 0), (1, 1), (1, 1), (0, 0)), mode="reflect")
        wt = jnp.transpose(w_oihw, (2, 3, 1, 0)).reshape(9, C, C).astype(jnp.bfloat16)
        acc = jnp.zeros((B * H * W, C), jnp.float32)
        for t in range(9):
            i, j = t // 3, t % 3
            tap = xp[:, i:i + H, j:j + W, :].reshape(B * H * W, C).astype(jnp.bfloat16)
            acc = acc + jnp.dot(tap, wt[t], preferred_element_type=jnp.float32)
        mu = jnp.mean(acc, axis=0, keepdims=True)
        var = jnp.mean(jnp.square(acc - mu), axis=0, keepdims=True)
        y = (acc - mu) * jax.lax.rsqrt(var + eps) * gamma[None, :] + beta[None, :]
        if relu:
            y = jnp.maximum(y, 0.0)
        return y.reshape(B, H, W, C)

    y = conv_bn(x, params["conv1_w"], params["bn1_g"], params["bn1_b"], relu=True)
    y = conv_bn(y, params["conv2_w"], params["bn2_g"], params["bn2_b"], relu=False)
    return jnp.transpose(x + y, (0, 3, 1, 2))


# ----------------------------------------------------------------------------- main

if __name__ == "__main__":
    key = jax.random.PRNGKey(0)
    kw1, kw2, kx = jax.random.split(key, 3)

    # ResnetBlock as instantiated by the Generator: dim=256 channels on an 8x8 grid, batch 2.
    B, dim, H, W = 2, 256, 8, 8
    params = {
        "conv1_w": 0.02 * jax.random.normal(kw1, (dim, dim, 3, 3), jnp.float32),
        "bn1_g": jnp.ones((dim,), jnp.float32),   # PyTorch BatchNorm2d init: weight=1
        "bn1_b": jnp.zeros((dim,), jnp.float32),  #                           bias=0
        "conv2_w": 0.02 * jax.random.normal(kw2, (dim, dim, 3, 3), jnp.float32),
        "bn2_g": jnp.ones((dim,), jnp.float32),
        "bn2_b": jnp.zeros((dim,), jnp.float32),
    }
    x = jax.random.normal(kx, (B, dim, H, W), jnp.float32)

    fwd = jax.jit(resnet_block)
    out = fwd(x, params)
    jax.block_until_ready(out)

    assert out.shape == (B, dim, H, W), out.shape
    assert bool(jnp.all(jnp.isfinite(out)))

    ref = resnet_block_reference(x, params)
    err = float(jnp.max(jnp.abs(out - ref)))
    assert err < 2e-2, f"mismatch vs pure-JAX reference: max|diff|={err}"

    print("KERNEL_OK")
</pallas_src>

<mosaic_0001>
module attributes {stable_mosaic.version = 11 : i64} {
  func.func @_resnet_block_kernel(%arg0: memref<2x10x10x256xf32, #tpu.memory_space<vmem>>, %arg1: memref<9x256x256xbf16, #tpu.memory_space<vmem>>, %arg2: memref<9x256x256xbf16, #tpu.memory_space<vmem>>, %arg3: memref<4x256xf32, #tpu.memory_space<vmem>>, %arg4: memref<2x8x8x256xf32, #tpu.memory_space<vmem>>, %arg5: memref<2x10x10x256xf32, #tpu.memory_space<vmem>>) attributes {dimension_semantics = [], scalar_prefetch = 0 : i64, scratch_operands = 1 : i64, tpu.core_type = #tpu.core_type<tc>} {
    %c0 = arith.constant 0 : index
    %c0_0 = arith.constant 0 : index
    %0 = vector.load %arg3[%c0, %c0_0] : memref<4x256xf32, #tpu.memory_space<vmem>>, vector<4x256xf32>
    %cst = arith.constant 0.000000e+00 : f32
    %1 = vector.broadcast %cst : f32 to vector<128x256xf32>
    %c0_1 = arith.constant 0 : index
    %c0_2 = arith.constant 0 : index
    %c0_3 = arith.constant 0 : index
    %c0_4 = arith.constant 0 : index
    %2 = vector.load %arg0[%c0_1, %c0_2, %c0_3, %c0_4] : memref<2x10x10x256xf32, #tpu.memory_space<vmem>>, vector<2x8x8x256xf32>
    %3 = vector.shape_cast %2 : vector<2x8x8x256xf32> to vector<128x256xf32>
    %4 = arith.truncf %3 : vector<128x256xf32> to vector<128x256xbf16>
    %c0_5 = arith.constant 0 : index
    %c0_6 = arith.constant 0 : index
    %c0_7 = arith.constant 0 : index
    %5 = vector.load %arg1[%c0_5, %c0_6, %c0_7] : memref<9x256x256xbf16, #tpu.memory_space<vmem>>, vector<1x256x256xbf16>
    %6 = vector.shape_cast %5 : vector<1x256x256xbf16> to vector<256x256xbf16>
    %cst_8 = arith.constant dense<0.000000e+00> : vector<128x256xf32>
    %7 = tpu.matmul %4, %6, %cst_8 {dimension_numbers = #tpu.dot_dimension_numbers<[1], [0], [0], [1], [0, 0, 1, 1], [], []>} : vector<128x256xbf16>, vector<256x256xbf16>, vector<128x256xf32> -> vector<128x256xf32>
    %8 = arith.addf %1, %7 : vector<128x256xf32>
    %c0_9 = arith.constant 0 : index
    %c0_10 = arith.constant 0 : index
    %c1 = arith.constant 1 : index
    %c0_11 = arith.constant 0 : index
    %9 = vector.load %arg0[%c0_9, %c0_10, %c1, %c0_11] : memref<2x10x10x256xf32, #tpu.memory_space<vmem>>, vector<2x8x8x256xf32>
    %10 = vector.shape_cast %9 : vector<2x8x8x256xf32> to vector<128x256xf32>
    %11 = arith.truncf %10 : vector<128x256xf32> to vector<128x256xbf16>
    %c1_12 = arith.constant 1 : index
    %c0_13 = arith.constant 0 : index
    %c0_14 = arith.constant 0 : index
    %12 = vector.load %arg1[%c1_12, %c0_13, %c0_14] : memref<9x256x256xbf16, #tpu.memory_space<vmem>>, vector<1x256x256xbf16>
    %13 = vector.shape_cast %12 : vector<1x256x256xbf16> to vector<256x256xbf16>
    %cst_15 = arith.constant dense<0.000000e+00> : vector<128x256xf32>
    %14 = tpu.matmul %11, %13, %cst_15 {dimension_numbers = #tpu.dot_dimension_numbers<[1], [0], [0], [1], [0, 0, 1, 1], [], []>} : vector<128x256xbf16>, vector<256x256xbf16>, vector<128x256xf32> -> vector<128x256xf32>
    %15 = arith.addf %8, %14 : vector<128x256xf32>
    %c0_16 = arith.constant 0 : index
    %c0_17 = arith.constant 0 : index
    %c2 = arith.constant 2 : index
    %c0_18 = arith.constant 0 : index
    %16 = vector.load %arg0[%c0_16, %c0_17, %c2, %c0_18] : memref<2x10x10x256xf32, #tpu.memory_space<vmem>>, vector<2x8x8x256xf32>
    %17 = vector.shape_cast %16 : vector<2x8x8x256xf32> to vector<128x256xf32>
    %18 = arith.truncf %17 : vector<128x256xf32> to vector<128x256xbf16>
    %c2_19 = arith.constant 2 : index
    %c0_20 = arith.constant 0 : index
    %c0_21 = arith.constant 0 : index
    %19 = vector.load %arg1[%c2_19, %c0_20, %c0_21] : memref<9x256x256xbf16, #tpu.memory_space<vmem>>, vector<1x256x256xbf16>
    %20 = vector.shape_cast %19 : vector<1x256x256xbf16> to vector<256x256xbf16>
    %cst_22 = arith.constant dense<0.000000e+00> : vector<128x256xf32>
    %21 = tpu.matmul %18, %20, %cst_22 {dimension_numbers = #tpu.dot_dimension_numbers<[1], [0], [0], [1], [0, 0, 1, 1], [], []>} : vector<128x256xbf16>, vector<256x256xbf16>, vector<128x256xf32> -> vector<128x256xf32>
    %22 = arith.addf %15, %21 : vector<128x256xf32>
    %c0_23 = arith.constant 0 : index
    %c1_24 = arith.constant 1 : index
    %c0_25 = arith.constant 0 : index
    %c0_26 = arith.constant 0 : index
    %23 = vector.load %arg0[%c0_23, %c1_24, %c0_25, %c0_26] : memref<2x10x10x256xf32, #tpu.memory_space<vmem>>, vector<2x8x8x256xf32>
    %24 = vector.shape_cast %23 : vector<2x8x8x256xf32> to vector<128x256xf32>
    %25 = arith.truncf %24 : vector<128x256xf32> to vector<128x256xbf16>
    %c3 = arith.constant 3 : index
    %c0_27 = arith.constant 0 : index
    %c0_28 = arith.constant 0 : index
    %26 = vector.load %arg1[%c3, %c0_27, %c0_28] : memref<9x256x256xbf16, #tpu.memory_space<vmem>>, vector<1x256x256xbf16>
    %27 = vector.shape_cast %26 : vector<1x256x256xbf16> to vector<256x256xbf16>
    %cst_29 = arith.constant dense<0.000000e+00> : vector<128x256xf32>
    %28 = tpu.matmul %25, %27, %cst_29 {dimension_numbers = #tpu.dot_dimension_numbers<[1], [0], [0], [1], [0, 0, 1, 1], [], []>} : vector<128x256xbf16>, vector<256x256xbf16>, vector<128x256xf32> -> vector<128x256xf32>
    %29 = arith.addf %22, %28 : vector<128x256xf32>
    %c0_30 = arith.constant 0 : index
    %c1_31 = arith.constant 1 : index
    %c1_32 = arith.constant 1 : index
    %c0_33 = arith.constant 0 : index
    %30 = vector.load %arg0[%c0_30, %c1_31, %c1_32, %c0_33] : memref<2x10x10x256xf32, #tpu.memory_space<vmem>>, vector<2x8x8x256xf32>
    %31 = vector.shape_cast %30 : vector<2x8x8x256xf32> to vector<128x256xf32>
    %32 = arith.truncf %31 : vector<128x256xf32> to vector<128x256xbf16>
    %c4 = arith.constant 4 : index
    %c0_34 = arith.constant 0 : index
    %c0_35 = arith.constant 0 : index
    %33 = vector.load %arg1[%c4, %c0_34, %c0_35] : memref<9x256x256xbf16, #tpu.memory_space<vmem>>, vector<1x256x256xbf16>
    %34 = vector.shape_cast %33 : vector<1x256x256xbf16> to vector<256x256xbf16>
    %cst_36 = arith.constant dense<0.000000e+00> : vector<128x256xf32>
    %35 = tpu.matmul %32, %34, %cst_36 {dimension_numbers = #tpu.dot_dimension_numbers<[1], [0], [0], [1], [0, 0, 1, 1], [], []>} : vector<128x256xbf16>, vector<256x256xbf16>, vector<128x256xf32> -> vector<128x256xf32>
    %36 = arith.addf %29, %35 : vector<128x256xf32>
    %c0_37 = arith.constant 0 : index
    %c1_38 = arith.constant 1 : index
    %c2_39 = arith.constant 2 : index
    %c0_40 = arith.constant 0 : index
    %37 = vector.load %arg0[%c0_37, %c1_38, %c2_39, %c0_40] : memref<2x10x10x256xf32, #tpu.memory_space<vmem>>, vector<2x8x8x256xf32>
    %38 = vector.shape_cast %37 : vector<2x8x8x256xf32> to vector<128x256xf32>
    %39 = arith.truncf %38 : vector<128x256xf32> to vector<128x256xbf16>
    %c5 = arith.constant 5 : index
    %c0_41 = arith.constant 0 : index
    %c0_42 = arith.constant 0 : index
    %40 = vector.load %arg1[%c5, %c0_41, %c0_42] : memref<9x256x256xbf16, #tpu.memory_space<vmem>>, vector<1x256x256xbf16>
    %41 = vector.shape_cast %40 : vector<1x256x256xbf16> to vector<256x256xbf16>
    %cst_43 = arith.constant dense<0.000000e+00> : vector<128x256xf32>
    %42 = tpu.matmul %39, %41, %cst_43 {dimension_numbers = #tpu.dot_dimension_numbers<[1], [0], [0], [1], [0, 0, 1, 1], [], []>} : vector<128x256xbf16>, vector<256x256xbf16>, vector<128x256xf32> -> vector<128x256xf32>
    %43 = arith.addf %36, %42 : vector<128x256xf32>
    %c0_44 = arith.constant 0 : index
    %c2_45 = arith.constant 2 : index
    %c0_46 = arith.constant 0 : index
    %c0_47 = arith.constant 0 : index
    %44 = vector.load %arg0[%c0_44, %c2_45, %c0_46, %c0_47] : memref<2x10x10x256xf32, #tpu.memory_space<vmem>>, vector<2x8x8x256xf32>
    %45 = vector.shape_cast %44 : vector<2x8x8x256xf32> to vector<128x256xf32>
    %46 = arith.truncf %45 : vector<128x256xf32> to vector<128x256xbf16>
    %c6 = arith.constant 6 : index
    %c0_48 = arith.constant 0 : index
    %c0_49 = arith.constant 0 : index
    %47 = vector.load %arg1[%c6, %c0_48, %c0_49] : memref<9x256x256xbf16, #tpu.memory_space<vmem>>, vector<1x256x256xbf16>
    %48 = vector.shape_cast %47 : vector<1x256x256xbf16> to vector<256x256xbf16>
    %cst_50 = arith.constant dense<0.000000e+00> : vector<128x256xf32>
    %49 = tpu.matmul %46, %48, %cst_50 {dimension_numbers = #tpu.dot_dimension_numbers<[1], [0], [0], [1], [0, 0, 1, 1], [], []>} : vector<128x256xbf16>, vector<256x256xbf16>, vector<128x256xf32> -> vector<128x256xf32>
    %50 = arith.addf %43, %49 : vector<128x256xf32>
    %c0_51 = arith.constant 0 : index
    %c2_52 = arith.constant 2 : index
    %c1_53 = arith.constant 1 : index
    %c0_54 = arith.constant 0 : index
    %51 = vector.load %arg0[%c0_51, %c2_52, %c1_53, %c0_54] : memref<2x10x10x256xf32, #tpu.memory_space<vmem>>, vector<2x8x8x256xf32>
    %52 = vector.shape_cast %51 : vector<2x8x8x256xf32> to vector<128x256xf32>
    %53 = arith.truncf %52 : vector<128x256xf32> to vector<128x256xbf16>
    %c7 = arith.constant 7 : index
    %c0_55 = arith.constant 0 : index
    %c0_56 = arith.constant 0 : index
    %54 = vector.load %arg1[%c7, %c0_55, %c0_56] : memref<9x256x256xbf16, #tpu.memory_space<vmem>>, vector<1x256x256xbf16>
    %55 = vector.shape_cast %54 : vector<1x256x256xbf16> to vector<256x256xbf16>
    %cst_57 = arith.constant dense<0.000000e+00> : vector<128x256xf32>
    %56 = tpu.matmul %53, %55, %cst_57 {dimension_numbers = #tpu.dot_dimension_numbers<[1], [0], [0], [1], [0, 0, 1, 1], [], []>} : vector<128x256xbf16>, vector<256x256xbf16>, vector<128x256xf32> -> vector<128x256xf32>
    %57 = arith.addf %50, %56 : vector<128x256xf32>
    %c0_58 = arith.constant 0 : index
    %c2_59 = arith.constant 2 : index
    %c2_60 = arith.constant 2 : index
    %c0_61 = arith.constant 0 : index
    %58 = vector.load %arg0[%c0_58, %c2_59, %c2_60, %c0_61] : memref<2x10x10x256xf32, #tpu.memory_space<vmem>>, vector<2x8x8x256xf32>
    %59 = vector.shape_cast %58 : vector<2x8x8x256xf32> to vector<128x256xf32>
    %60 = arith.truncf %59 : vector<128x256xf32> to vector<128x256xbf16>
    %c8 = arith.constant 8 : index
    %c0_62 = arith.constant 0 : index
    %c0_63 = arith.constant 0 : index
    %61 = vector.load %arg1[%c8, %c0_62, %c0_63] : memref<9x256x256xbf16, #tpu.memory_space<vmem>>, vector<1x256x256xbf16>
    %62 = vector.shape_cast %61 : vector<1x256x256xbf16> to vector<256x256xbf16>
    %cst_64 = arith.constant dense<0.000000e+00> : vector<128x256xf32>
    %63 = tpu.matmul %60, %62, %cst_64 {dimension_numbers = #tpu.dot_dimension_numbers<[1], [0], [0], [1], [0, 0, 1, 1], [], []>} : vector<128x256xbf16>, vector<256x256xbf16>, vector<128x256xf32> -> vector<128x256xf32>
    %64 = arith.addf %57, %63 : vector<128x256xf32>
    %65 = vector.extract_strided_slice %0 {offsets = [0, 0], sizes = [1, 256], strides = [1, 1]} : vector<4x256xf32> to vector<1x256xf32>
    %66 = vector.extract_strided_slice %0 {offsets = [1, 0], sizes = [1, 256], strides = [1, 1]} : vector<4x256xf32> to vector<1x256xf32>
    %cst_65 = arith.constant dense<0.000000e+00> : vector<256xf32>
    %67 = vector.multi_reduction <add>, %64, %cst_65 [0] : vector<128x256xf32> to vector<256xf32>
    %68 = vector.shape_cast %67 : vector<256xf32> to vector<1x256xf32>
    %cst_66 = arith.constant 1.280000e+02 : f32
    %69 = vector.broadcast %cst_66 : f32 to vector<1x256xf32>
    %70 = arith.divf %68, %69 : vector<1x256xf32>
    %71 = vector.broadcast %70 : vector<1x256xf32> to vector<128x256xf32>
    %72 = arith.subf %64, %71 : vector<128x256xf32>
    %73 = arith.mulf %72, %72 : vector<128x256xf32>
    %cst_67 = arith.constant dense<0.000000e+00> : vector<256xf32>
    %74 = vector.multi_reduction <add>, %73, %cst_67 [0] : vector<128x256xf32> to vector<256xf32>
    %75 = vector.shape_cast %74 : vector<256xf32> to vector<1x256xf32>
    %cst_68 = arith.constant 1.280000e+02 : f32
    %76 = vector.broadcast %cst_68 : f32 to vector<1x256xf32>
    %77 = arith.divf %75, %76 : vector<1x256xf32>
    %78 = vector.broadcast %70 : vector<1x256xf32> to vector<128x256xf32>
    %79 = arith.subf %64, %78 : vector<128x256xf32>
    %cst_69 = arith.constant 9.99999974E-6 : f32
    %80 = vector.broadcast %cst_69 : f32 to vector<1x256xf32>
    %81 = arith.addf %77, %80 : vector<1x256xf32>
    %82 = math.rsqrt %81 : vector<1x256xf32>
    %83 = vector.broadcast %82 : vector<1x256xf32> to vector<128x256xf32>
    %84 = arith.mulf %79, %83 : vector<128x256xf32>
    %85 = vector.broadcast %65 : vector<1x256xf32> to vector<128x256xf32>
    %86 = arith.mulf %84, %85 : vector<128x256xf32>
    %87 = vector.broadcast %66 : vector<1x256xf32> to vector<128x256xf32>
    %88 = arith.addf %86, %87 : vector<128x256xf32>
    %cst_70 = arith.constant 0.000000e+00 : f32
    %89 = vector.broadcast %cst_70 : f32 to vector<128x256xf32>
    %90 = arith.maximumf %88, %89 : vector<128x256xf32>
    %91 = vector.shape_cast %90 : vector<128x256xf32> to vector<2x8x8x256xf32>
    %c0_71 = arith.constant 0 : index
    %c1_72 = arith.constant 1 : index
    %c1_73 = arith.constant 1 : index
    %c0_74 = arith.constant 0 : index
    %92 = vector.load %arg5[%c0_71, %c1_72, %c1_73, %c0_74] : memref<2x10x10x256xf32, #tpu.memory_space<vmem>>, vector<2x8x8x256xf32>
    tpu.vector_store %arg5[%c0_71, %c1_72, %c1_73, %c0_74], %91 {strides = array<i32>} : memref<2x10x10x256xf32, #tpu.memory_space<vmem>>, vector<2x8x8x256xf32>,
    %93 = vector.extract_strided_slice %91 {offsets = [0, 1, 0, 0], sizes = [2, 1, 8, 256], strides = [1, 1, 1, 1]} : vector<2x8x8x256xf32> to vector<2x1x8x256xf32>
    %c0_75 = arith.constant 0 : index
    %c0_76 = arith.constant 0 : index
    %c1_77 = arith.constant 1 : index
    %c0_78 = arith.constant 0 : index
    %94 = vector.load %arg5[%c0_75, %c0_76, %c1_77, %c0_78] : memref<2x10x10x256xf32, #tpu.memory_space<vmem>>, vector<2x1x8x256xf32>
    tpu.vector_store %arg5[%c0_75, %c0_76, %c1_77, %c0_78], %93 {strides = array<i32>} : memref<2x10x10x256xf32, #tpu.memory_space<vmem>>, vector<2x1x8x256xf32>,
    %95 = vector.extract_strided_slice %91 {offsets = [0, 6, 0, 0], sizes = [2, 1, 8, 256], strides = [1, 1, 1, 1]} : vector<2x8x8x256xf32> to vector<2x1x8x256xf32>
    %c0_79 = arith.constant 0 : index
    %c9 = arith.constant 9 : index
    %c1_80 = arith.constant 1 : index
    %c0_81 = arith.constant 0 : index
    %96 = vector.load %arg5[%c0_79, %c9, %c1_80, %c0_81] : memref<2x10x10x256xf32, #tpu.memory_space<vmem>>, vector<2x1x8x256xf32>
    tpu.vector_store %arg5[%c0_79, %c9, %c1_80, %c0_81], %95 {strides = array<i32>} : memref<2x10x10x256xf32, #tpu.memory_space<vmem>>, vector<2x1x8x256xf32>,
    %c0_82 = arith.constant 0 : index
    %c0_83 = arith.constant 0 : index
    %c2_84 = arith.constant 2 : index
    %c0_85 = arith.constant 0 : index
    %97 = vector.load %arg5[%c0_82, %c0_83, %c2_84, %c0_85] : memref<2x10x10x256xf32, #tpu.memory_space<vmem>>, vector<2x10x1x256xf32>
    %c0_86 = arith.constant 0 : index
    %c0_87 = arith.constant 0 : index
    %c0_88 = arith.constant 0 : index
    %c0_89 = arith.constant 0 : index
    %98 = vector.load %arg5[%c0_86, %c0_87, %c0_88, %c0_89] : memref<2x10x10x256xf32, #tpu.memory_space<vmem>>, vector<2x10x1x256xf32>
    tpu.vector_store %arg5[%c0_86, %c0_87, %c0_88, %c0_89], %97 {strides = array<i32>} : memref<2x10x10x256xf32, #tpu.memory_space<vmem>>, vector<2x10x1x256xf32>,
    %c0_90 = arith.constant 0 : index
    %c0_91 = arith.constant 0 : index
    %c7_92 = arith.constant 7 : index
    %c0_93 = arith.constant 0 : index
    %99 = vector.load %arg5[%c0_90, %c0_91, %c7_92, %c0_93] : memref<2x10x10x256xf32, #tpu.memory_space<vmem>>, vector<2x10x1x256xf32>
    %c0_94 = arith.constant 0 : index
    %c0_95 = arith.constant 0 : index
    %c9_96 = arith.constant 9 : index
    %c0_97 = arith.constant 0 : index
    %100 = vector.load %arg5[%c0_94, %c0_95, %c9_96, %c0_97] : memref<2x10x10x256xf32, #tpu.memory_space<vmem>>, vector<2x10x1x256xf32>
    tpu.vector_store %arg5[%c0_94, %c0_95, %c9_96, %c0_97], %99 {strides = array<i32>} : memref<2x10x10x256xf32, #tpu.memory_space<vmem>>, vector<2x10x1x256xf32>,
    %cst_98 = arith.constant 0.000000e+00 : f32
    %101 = vector.broadcast %cst_98 : f32 to vector<128x256xf32>
    %c0_99 = arith.constant 0 : index
    %c0_100 = arith.constant 0 : index
    %c0_101 = arith.constant 0 : index
    %c0_102 = arith.constant 0 : index
    %102 = vector.load %arg5[%c0_99, %c0_100, %c0_101, %c0_102] : memref<2x10x10x256xf32, #tpu.memory_space<vmem>>, vector<2x8x8x256xf32>
    %103 = vector.shape_cast %102 : vector<2x8x8x256xf32> to vector<128x256xf32>
    %104 = arith.truncf %103 : vector<128x256xf32> to vector<128x256xbf16>
    %c0_103 = arith.constant 0 : index
    %c0_104 = arith.constant 0 : index
    %c0_105 = arith.constant 0 : index
    %105 = vector.load %arg2[%c0_103, %c0_104, %c0_105] : memref<9x256x256xbf16, #tpu.memory_space<vmem>>, vector<1x256x256xbf16>
    %106 = vector.shape_cast %105 : vector<1x256x256xbf16> to vector<256x256xbf16>
    %cst_106 = arith.constant dense<0.000000e+00> : vector<128x256xf32>
    %107 = tpu.matmul %104, %106, %cst_106 {dimension_numbers = #tpu.dot_dimension_numbers<[1], [0], [0], [1], [0, 0, 1, 1], [], []>} : vector<128x256xbf16>, vector<256x256xbf16>, vector<128x256xf32> -> vector<128x256xf32>
    %108 = arith.addf %101, %107 : vector<128x256xf32>
    %c0_107 = arith.constant 0 : index
    %c0_108 = arith.constant 0 : index
    %c1_109 = arith.constant 1 : index
    %c0_110 = arith.constant 0 : index
    %109 = vector.load %arg5[%c0_107, %c0_108, %c1_109, %c0_110] : memref<2x10x10x256xf32, #tpu.memory_space<vmem>>, vector<2x8x8x256xf32>
    %110 = vector.shape_cast %109 : vector<2x8x8x256xf32> to vector<128x256xf32>
    %111 = arith.truncf %110 : vector<128x256xf32> to vector<128x256xbf16>
    %c1_111 = arith.constant 1 : index
    %c0_112 = arith.constant 0 : index
    %c0_113 = arith.constant 0 : index
    %112 = vector.load %arg2[%c1_111, %c0_112, %c0_113] : memref<9x256x256xbf16, #tpu.memory_space<vmem>>, vector<1x256x256xbf16>
    %113 = vector.shape_cast %112 : vector<1x256x256xbf16> to vector<256x256xbf16>
    %cst_114 = arith.constant dense<0.000000e+00> : vector<128x256xf32>
    %114 = tpu.matmul %111, %113, %cst_114 {dimension_numbers = #tpu.dot_dimension_numbers<[1], [0], [0], [1], [0, 0, 1, 1], [], []>} : vector<128x256xbf16>, vector<256x256xbf16>, vector<128x256xf32> -> vector<128x256xf32>
    %115 = arith.addf %108, %114 : vector<128x256xf32>
    %c0_115 = arith.constant 0 : index
    %c0_116 = arith.constant 0 : index
    %c2_117 = arith.constant 2 : index
    %c0_118 = arith.constant 0 : index
    %116 = vector.load %arg5[%c0_115, %c0_116, %c2_117, %c0_118] : memref<2x10x10x256xf32, #tpu.memory_space<vmem>>, vector<2x8x8x256xf32>
    %117 = vector.shape_cast %116 : vector<2x8x8x256xf32> to vector<128x256xf32>
    %118 = arith.truncf %117 : vector<128x256xf32> to vector<128x256xbf16>
    %c2_119 = arith.constant 2 : index
    %c0_120 = arith.constant 0 : index
    %c0_121 = arith.constant 0 : index
    %119 = vector.load %arg2[%c2_119, %c0_120, %c0_121] : memref<9x256x256xbf16, #tpu.memory_space<vmem>>, vector<1x256x256xbf16>
    %120 = vector.shape_cast %119 : vector<1x256x256xbf16> to vector<256x256xbf16>
    %cst_122 = arith.constant dense<0.000000e+00> : vector<128x256xf32>
    %121 = tpu.matmul %118, %120, %cst_122 {dimension_numbers = #tpu.dot_dimension_numbers<[1], [0], [0], [1], [0, 0, 1, 1], [], []>} : vector<128x256xbf16>, vector<256x256xbf16>, vector<128x256xf32> -> vector<128x256xf32>
    %122 = arith.addf %115, %121 : vector<128x256xf32>
    %c0_123 = arith.constant 0 : index
    %c1_124 = arith.constant 1 : index
    %c0_125 = arith.constant 0 : index
    %c0_126 = arith.constant 0 : index
    %123 = vector.load %arg5[%c0_123, %c1_124, %c0_125, %c0_126] : memref<2x10x10x256xf32, #tpu.memory_space<vmem>>, vector<2x8x8x256xf32>
    %124 = vector.shape_cast %123 : vector<2x8x8x256xf32> to vector<128x256xf32>
    %125 = arith.truncf %124 : vector<128x256xf32> to vector<128x256xbf16>
    %c3_127 = arith.constant 3 : index
    %c0_128 = arith.constant 0 : index
    %c0_129 = arith.constant 0 : index
    %126 = vector.load %arg2[%c3_127, %c0_128, %c0_129] : memref<9x256x256xbf16, #tpu.memory_space<vmem>>, vector<1x256x256xbf16>
    %127 = vector.shape_cast %126 : vector<1x256x256xbf16> to vector<256x256xbf16>
    %cst_130 = arith.constant dense<0.000000e+00> : vector<128x256xf32>
    %128 = tpu.matmul %125, %127, %cst_130 {dimension_numbers = #tpu.dot_dimension_numbers<[1], [0], [0], [1], [0, 0, 1, 1], [], []>} : vector<128x256xbf16>, vector<256x256xbf16>, vector<128x256xf32> -> vector<128x256xf32>
    %129 = arith.addf %122, %128 : vector<128x256xf32>
    %c0_131 = arith.constant 0 : index
    %c1_132 = arith.constant 1 : index
    %c1_133 = arith.constant 1 : index
    %c0_134 = arith.constant 0 : index
    %130 = vector.load %arg5[%c0_131, %c1_132, %c1_133, %c0_134] : memref<2x10x10x256xf32, #tpu.memory_space<vmem>>, vector<2x8x8x256xf32>
    %131 = vector.shape_cast %130 : vector<2x8x8x256xf32> to vector<128x256xf32>
    %132 = arith.truncf %131 : vector<128x256xf32> to vector<128x256xbf16>
    %c4_135 = arith.constant 4 : index
    %c0_136 = arith.constant 0 : index
    %c0_137 = arith.constant 0 : index
    %133 = vector.load %arg2[%c4_135, %c0_136, %c0_137] : memref<9x256x256xbf16, #tpu.memory_space<vmem>>, vector<1x256x256xbf16>
    %134 = vector.shape_cast %133 : vector<1x256x256xbf16> to vector<256x256xbf16>
    %cst_138 = arith.constant dense<0.000000e+00> : vector<128x256xf32>
    %135 = tpu.matmul %132, %134, %cst_138 {dimension_numbers = #tpu.dot_dimension_numbers<[1], [0], [0], [1], [0, 0, 1, 1], [], []>} : vector<128x256xbf16>, vector<256x256xbf16>, vector<128x256xf32> -> vector<128x256xf32>
    %136 = arith.addf %129, %135 : vector<128x256xf32>
    %c0_139 = arith.constant 0 : index
    %c1_140 = arith.constant 1 : index
    %c2_141 = arith.constant 2 : index
    %c0_142 = arith.constant 0 : index
    %137 = vector.load %arg5[%c0_139, %c1_140, %c2_141, %c0_142] : memref<2x10x10x256xf32, #tpu.memory_space<vmem>>, vector<2x8x8x256xf32>
    %138 = vector.shape_cast %137 : vector<2x8x8x256xf32> to vector<128x256xf32>
    %139 = arith.truncf %138 : vector<128x256xf32> to vector<128x256xbf16>
    %c5_143 = arith.constant 5 : index
    %c0_144 = arith.constant 0 : index
    %c0_145 = arith.constant 0 : index
    %140 = vector.load %arg2[%c5_143, %c0_144, %c0_145] : memref<9x256x256xbf16, #tpu.memory_space<vmem>>, vector<1x256x256xbf16>
    %141 = vector.shape_cast %140 : vector<1x256x256xbf16> to vector<256x256xbf16>
    %cst_146 = arith.constant dense<0.000000e+00> : vector<128x256xf32>
    %142 = tpu.matmul %139, %141, %cst_146 {dimension_numbers = #tpu.dot_dimension_numbers<[1], [0], [0], [1], [0, 0, 1, 1], [], []>} : vector<128x256xbf16>, vector<256x256xbf16>, vector<128x256xf32> -> vector<128x256xf32>
    %143 = arith.addf %136, %142 : vector<128x256xf32>
    %c0_147 = arith.constant 0 : index
    %c2_148 = arith.constant 2 : index
    %c0_149 = arith.constant 0 : index
    %c0_150 = arith.constant 0 : index
    %144 = vector.load %arg5[%c0_147, %c2_148, %c0_149, %c0_150] : memref<2x10x10x256xf32, #tpu.memory_space<vmem>>, vector<2x8x8x256xf32>
    %145 = vector.shape_cast %144 : vector<2x8x8x256xf32> to vector<128x256xf32>
    %146 = arith.truncf %145 : vector<128x256xf32> to vector<128x256xbf16>
    %c6_151 = arith.constant 6 : index
    %c0_152 = arith.constant 0 : index
    %c0_153 = arith.constant 0 : index
    %147 = vector.load %arg2[%c6_151, %c0_152, %c0_153] : memref<9x256x256xbf16, #tpu.memory_space<vmem>>, vector<1x256x256xbf16>
    %148 = vector.shape_cast %147 : vector<1x256x256xbf16> to vector<256x256xbf16>
    %cst_154 = arith.constant dense<0.000000e+00> : vector<128x256xf32>
    %149 = tpu.matmul %146, %148, %cst_154 {dimension_numbers = #tpu.dot_dimension_numbers<[1], [0], [0], [1], [0, 0, 1, 1], [], []>} : vector<128x256xbf16>, vector<256x256xbf16>, vector<128x256xf32> -> vector<128x256xf32>
    %150 = arith.addf %143, %149 : vector<128x256xf32>
    %c0_155 = arith.constant 0 : index
    %c2_156 = arith.constant 2 : index
    %c1_157 = arith.constant 1 : index
    %c0_158 = arith.constant 0 : index
    %151 = vector.load %arg5[%c0_155, %c2_156, %c1_157, %c0_158] : memref<2x10x10x256xf32, #tpu.memory_space<vmem>>, vector<2x8x8x256xf32>
    %152 = vector.shape_cast %151 : vector<2x8x8x256xf32> to vector<128x256xf32>
    %153 = arith.truncf %152 : vector<128x256xf32> to vector<128x256xbf16>
    %c7_159 = arith.constant 7 : index
    %c0_160 = arith.constant 0 : index
    %c0_161 = arith.constant 0 : index
    %154 = vector.load %arg2[%c7_159, %c0_160, %c0_161] : memref<9x256x256xbf16, #tpu.memory_space<vmem>>, vector<1x256x256xbf16>
    %155 = vector.shape_cast %154 : vector<1x256x256xbf16> to vector<256x256xbf16>
    %cst_162 = arith.constant dense<0.000000e+00> : vector<128x256xf32>
    %156 = tpu.matmul %153, %155, %cst_162 {dimension_numbers = #tpu.dot_dimension_numbers<[1], [0], [0], [1], [0, 0, 1, 1], [], []>} : vector<128x256xbf16>, vector<256x256xbf16>, vector<128x256xf32> -> vector<128x256xf32>
    %157 = arith.addf %150, %156 : vector<128x256xf32>
    %c0_163 = arith.constant 0 : index
    %c2_164 = arith.constant 2 : index
    %c2_165 = arith.constant 2 : index
    %c0_166 = arith.constant 0 : index
    %158 = vector.load %arg5[%c0_163, %c2_164, %c2_165, %c0_166] : memref<2x10x10x256xf32, #tpu.memory_space<vmem>>, vector<2x8x8x256xf32>
    %159 = vector.shape_cast %158 : vector<2x8x8x256xf32> to vector<128x256xf32>
    %160 = arith.truncf %159 : vector<128x256xf32> to vector<128x256xbf16>
    %c8_167 = arith.constant 8 : index
    %c0_168 = arith.constant 0 : index
    %c0_169 = arith.constant 0 : index
    %161 = vector.load %arg2[%c8_167, %c0_168, %c0_169] : memref<9x256x256xbf16, #tpu.memory_space<vmem>>, vector<1x256x256xbf16>
    %162 = vector.shape_cast %161 : vector<1x256x256xbf16> to vector<256x256xbf16>
    %cst_170 = arith.constant dense<0.000000e+00> : vector<128x256xf32>
    %163 = tpu.matmul %160, %162, %cst_170 {dimension_numbers = #tpu.dot_dimension_numbers<[1], [0], [0], [1], [0, 0, 1, 1], [], []>} : vector<128x256xbf16>, vector<256x256xbf16>, vector<128x256xf32> -> vector<128x256xf32>
    %164 = arith.addf %157, %163 : vector<128x256xf32>
    %165 = vector.extract_strided_slice %0 {offsets = [2, 0], sizes = [1, 256], strides = [1, 1]} : vector<4x256xf32> to vector<1x256xf32>
    %166 = vector.extract_strided_slice %0 {offsets = [3, 0], sizes = [1, 256], strides = [1, 1]} : vector<4x256xf32> to vector<1x256xf32>
    %cst_171 = arith.constant dense<0.000000e+00> : vector<256xf32>
    %167 = vector.multi_reduction <add>, %164, %cst_171 [0] : vector<128x256xf32> to vector<256xf32>
    %168 = vector.shape_cast %167 : vector<256xf32> to vector<1x256xf32>
    %cst_172 = arith.constant 1.280000e+02 : f32
    %169 = vector.broadcast %cst_172 : f32 to vector<1x256xf32>
    %170 = arith.divf %168, %169 : vector<1x256xf32>
    %171 = vector.broadcast %170 : vector<1x256xf32> to vector<128x256xf32>
    %172 = arith.subf %164, %171 : vector<128x256xf32>
    %173 = arith.mulf %172, %172 : vector<128x256xf32>
    %cst_173 = arith.constant dense<0.000000e+00> : vector<256xf32>
    %174 = vector.multi_reduction <add>, %173, %cst_173 [0] : vector<128x256xf32> to vector<256xf32>
    %175 = vector.shape_cast %174 : vector<256xf32> to vector<1x256xf32>
    %cst_174 = arith.constant 1.280000e+02 : f32
    %176 = vector.broadcast %cst_174 : f32 to vector<1x256xf32>
    %177 = arith.divf %175, %176 : vector<1x256xf32>
    %178 = vector.broadcast %170 : vector<1x256xf32> to vector<128x256xf32>
    %179 = arith.subf %164, %178 : vector<128x256xf32>
    %cst_175 = arith.constant 9.99999974E-6 : f32
    %180 = vector.broadcast %cst_175 : f32 to vector<1x256xf32>
    %181 = arith.addf %177, %180 : vector<1x256xf32>
    %182 = math.rsqrt %181 : vector<1x256xf32>
    %183 = vector.broadcast %182 : vector<1x256xf32> to vector<128x256xf32>
    %184 = arith.mulf %179, %183 : vector<128x256xf32>
    %185 = vector.broadcast %165 : vector<1x256xf32> to vector<128x256xf32>
    %186 = arith.mulf %184, %185 : vector<128x256xf32>
    %187 = vector.broadcast %166 : vector<1x256xf32> to vector<128x256xf32>
    %188 = arith.addf %186, %187 : vector<128x256xf32>
    %c0_176 = arith.constant 0 : index
    %c1_177 = arith.constant 1 : index
    %c1_178 = arith.constant 1 : index
    %c0_179 = arith.constant 0 : index
    %189 = vector.load %arg0[%c0_176, %c1_177, %c1_178, %c0_179] : memref<2x10x10x256xf32, #tpu.memory_space<vmem>>, vector<2x8x8x256xf32>
    %190 = vector.shape_cast %189 : vector<2x8x8x256xf32> to vector<128x256xf32>
    %191 = arith.addf %190, %188 : vector<128x256xf32>
    %192 = vector.shape_cast %191 : vector<128x256xf32> to vector<2x8x8x256xf32>
    %c0_180 = arith.constant 0 : index
    %c0_181 = arith.constant 0 : index
    %c0_182 = arith.constant 0 : index
    %c0_183 = arith.constant 0 : index
    %193 = vector.load %arg4[%c0_180, %c0_181, %c0_182, %c0_183] : memref<2x8x8x256xf32, #tpu.memory_space<vmem>>, vector<2x8x8x256xf32>
    tpu.vector_store %arg4[%c0_180, %c0_181, %c0_182, %c0_183], %192 {strides = array<i32>} : memref<2x8x8x256xf32, #tpu.memory_space<vmem>>, vector<2x8x8x256xf32>,
    return
  }
}

</mosaic_0001>

<llo_original>
// kernel: resnet_block.1
$region0: #{resnet_block.1}
  #allocation0 [shape = 'u32[]', space=smem, size = 0x4, offset = 0x4, fixed_abs, tag = 'smem constant byte address 0x4 - core index']
  #allocation1 [shape = 'u32[72,128]{1,0:T(1,128)}', space=vmem, size = 0x9000, scoped, tag = 'internal scratch']
  #allocation2 [shape = 'f32[2,10,10,256]{3,2,1,0:T(8,128)}', space=vmem, size = 0x50000, scoped, tag = 'scratch operand']
  %s0 = inlined_call_operand.vmem [shape: f32[2,10,10,256], index: 0, kind: input, shape index: {}]
  %s1 = inlined_call_operand.vmem [shape: bf16[9,256,256], index: 1, kind: input, shape index: {}]
  %s2 = inlined_call_operand.vmem [shape: bf16[9,256,256], index: 2, kind: input, shape index: {}]
  %s3 = inlined_call_operand.vmem [shape: f32[4,256], index: 3, kind: input, shape index: {}]
  %s4 = inlined_call_operand.hbm [shape: f32[2,8,8,256], index: 4, kind: output, shape index: {}]
  %s5 = sld [smem:[#allocation0]]
  $region26: #{resnet_block.1} parent=0
    _
  %s7 = ssub.s32 1, %s5
  %s8 = scalar_select 0, %s7, %s5
  $region1: #{resnet_block.1} parent=0
    #allocation3 [shape = 'u8[131072]{0}', space=vmem, size = 0x20000, scoped, tag = 'output window, operand 0, single buffered']
    #allocation4 [shape = 's32[1]{0}', space=sflag, size = 0x4, scoped, tag = 'scoped memory for resnet_block.1']
    %9 = vsyncpa [#allocation4], 0
    // Predicated region
    $region2: #{resnet_block.1} parent=1 // pred_check
      _
    $region3: #{resnet_block.1} parent=1 // pred_check_branch
      %11 = sbr.rel (0) target = $region5
    $region4: #{resnet_block.1} parent=1 // pred_region
      _
    $region5: #{resnet_block.1} parent=1 // pred_fallthru
      _
    // Predicated region
    $region6: #{resnet_block.1} parent=1 // pred_check
      _
    $region7: #{resnet_block.1} parent=1 // pred_check_branch
      %13 = sbr.rel (0) target = $region9
    $region8: #{resnet_block.1} parent=1 // pred_region
      _
    $region9: #{resnet_block.1} parent=1 // pred_fallthru
      _
    // Predicated region
    $region10: #{resnet_block.1} parent=1 // pred_check
      _
    $region11: #{resnet_block.1} parent=1 // pred_check_branch
      %15 = sbr.rel (0) target = $region13
    $region12: #{resnet_block.1} parent=1 // pred_region
      _
    $region13: #{resnet_block.1} parent=1 // pred_fallthru
      _
    // Predicated region
    $region14: #{resnet_block.1} parent=1 // pred_check
      _
    $region15: #{resnet_block.1} parent=1 // pred_check_branch
      %17 = sbr.rel (0) target = $region17
    $region16: #{resnet_block.1} parent=1 // pred_region
      _
    $region17: #{resnet_block.1} parent=1 // pred_fallthru
      _
    %v18 = vld [vmem:[%s3] sm:$0xff]
    %v19 = vld [vmem:[%s0] sm:$0xff]
    %v20 = vld [vmem:[%s0 + $0x8] sm:$0xff]
    %v21 = vld [vmem:[%s0 + $0x20] sm:$0xff]
    %v22 = vld [vmem:[%s0 + $0x28] sm:$0xff]
    %v23 = vld [vmem:[%s0 + $0x40] sm:$0xff]
    %v24 = vld [vmem:[%s0 + $0x48] sm:$0xff]
    %v25 = vld [vmem:[%s0 + $0x60] sm:$0xff]
    %v26 = vld [vmem:[%s0 + $0x68] sm:$0xff]
    %v27 = vld [vmem:[%s0 + $0x80] sm:$0xff]
    %v28 = vld [vmem:[%s0 + $0x88] sm:$0xff]
    %v29 = vld [vmem:[%s0 + $0xa0] sm:$0xff]
    %v30 = vld [vmem:[%s0 + $0xa8] sm:$0xff]
    %v31 = vld [vmem:[%s0 + $0xc0] sm:$0xff]
    %v32 = vld [vmem:[%s0 + $0xc8] sm:$0xff]
    %v33 = vld [vmem:[%s0 + $0xe0] sm:$0xff]
    %v34 = vld [vmem:[%s0 + $0xe8] sm:$0xff]
    %v35 = vld [vmem:[%s0 + $0x140] sm:$0xff]
    %v36 = vld [vmem:[%s0 + $0x148] sm:$0xff]
    %v37 = vld [vmem:[%s0 + $0x160] sm:$0xff]
    %v38 = vld [vmem:[%s0 + $0x168] sm:$0xff]
    %v39 = vld [vmem:[%s0 + $0x180] sm:$0xff]
    %v40 = vld [vmem:[%s0 + $0x188] sm:$0xff]
    %v41 = vld [vmem:[%s0 + $0x1a0] sm:$0xff]
    %v42 = vld [vmem:[%s0 + $0x1a8] sm:$0xff]
    %v43 = vld [vmem:[%s0 + $0x1c0] sm:$0xff]
    %v44 = vld [vmem:[%s0 + $0x1c8] sm:$0xff]
    %v45 = vld [vmem:[%s0 + $0x1e0] sm:$0xff]
    %v46 = vld [vmem:[%s0 + $0x1e8] sm:$0xff]
    %v47 = vld [vmem:[%s0 + $0x200] sm:$0xff]
    %v48 = vld [vmem:[%s0 + $0x208] sm:$0xff]
    %v49 = vld [vmem:[%s0 + $0x220] sm:$0xff]
    %v50 = vld [vmem:[%s0 + $0x228] sm:$0xff]
    %v51 = vpack.c.bf16 %v21, %v19
    %v52 = vpack.c.bf16 %v22, %v20
    %v53 = vpack.c.bf16 %v25, %v23
    %v54 = vpack.c.bf16 %v26, %v24
    %v55 = vpack.c.bf16 %v29, %v27
    %v56 = vpack.c.bf16 %v30, %v28
    %v57 = vpack.c.bf16 %v33, %v31
    %v58 = vpack.c.bf16 %v34, %v32
    %v59 = vpack.c.bf16 %v37, %v35
    %v60 = vpack.c.bf16 %v38, %v36
    %v61 = vpack.c.bf16 %v41, %v39
    %v62 = vpack.c.bf16 %v42, %v40
    %v63 = vpack.c.bf16 %v45, %v43
    %v64 = vpack.c.bf16 %v46, %v44
    %v65 = vpack.c.bf16 %v49, %v47
    %v66 = vpack.c.bf16 %v50, %v48
    %v67 = vld [vmem:[%s1] sm:$0xff]
    %v68 = vld [vmem:[%s1 + $0x8] sm:$0xff]
    %v69 = vld [vmem:[%s1 + $0x10] sm:$0xff]
    %v70 = vld [vmem:[%s1 + $0x18] sm:$0xff]
    %v71 = vld [vmem:[%s1 + $0x20] sm:$0xff]
    %v72 = vld [vmem:[%s1 + $0x28] sm:$0xff]
    %v73 = vld [vmem:[%s1 + $0x30] sm:$0xff]
    %v74 = vld [vmem:[%s1 + $0x38] sm:$0xff]
    %v75 = vld [vmem:[%s1 + $0x40] sm:$0xff]
    %v76 = vld [vmem:[%s1 + $0x48] sm:$0xff]
    %v77 = vld [vmem:[%s1 + $0x50] sm:$0xff]
    %v78 = vld [vmem:[%s1 + $0x58] sm:$0xff]
    %v79 = vld [vmem:[%s1 + $0x60] sm:$0xff]
    %v80 = vld [vmem:[%s1 + $0x68] sm:$0xff]
    %v81 = vld [vmem:[%s1 + $0x70] sm:$0xff]
    %v82 = vld [vmem:[%s1 + $0x78] sm:$0xff]
    %v83 = vld [vmem:[%s1 + $0x80] sm:$0xff]
    %v84 = vld [vmem:[%s1 + $0x88] sm:$0xff]
    %v85 = vld [vmem:[%s1 + $0x90] sm:$0xff]
    %v86 = vld [vmem:[%s1 + $0x98] sm:$0xff]
    %v87 = vld [vmem:[%s1 + $0xa0] sm:$0xff]
    %v88 = vld [vmem:[%s1 + $0xa8] sm:$0xff]
    %v89 = vld [vmem:[%s1 + $0xb0] sm:$0xff]
    %v90 = vld [vmem:[%s1 + $0xb8] sm:$0xff]
    %v91 = vld [vmem:[%s1 + $0xc0] sm:$0xff]
    %v92 = vld [vmem:[%s1 + $0xc8] sm:$0xff]
    %v93 = vld [vmem:[%s1 + $0xd0] sm:$0xff]
    %v94 = vld [vmem:[%s1 + $0xd8] sm:$0xff]
    %v95 = vld [vmem:[%s1 + $0xe0] sm:$0xff]
    %v96 = vld [vmem:[%s1 + $0xe8] sm:$0xff]
    %v97 = vld [vmem:[%s1 + $0xf0] sm:$0xff]
    %v98 = vld [vmem:[%s1 + $0xf8] sm:$0xff]
    %v99 = vld [vmem:[%s0] sm:$0xfe]
    %v100 = vld [vmem:[%s0 + $0x8] sm:$0xfe]
    %v101 = vld [vmem:[%s0 + $0x10] sm:$0x1]
    %v102 = vld [vmem:[%s0 + $0x18] sm:$0x1]
    %v103 = vld [vmem:[%s0 + $0x20] sm:$0xfe]
    %v104 = vld [vmem:[%s0 + $0x28] sm:$0xfe]
    %v105 = vld [vmem:[%s0 + $0x30] sm:$0x1]
    %v106 = vld [vmem:[%s0 + $0x38] sm:$0x1]
    %v107 = vld [vmem:[%s0 + $0x40] sm:$0xfe]
    %v108 = vld [vmem:[%s0 + $0x48] sm:$0xfe]
    %v109 = vld [vmem:[%s0 + $0x50] sm:$0x1]
    %v110 = vld [vmem:[%s0 + $0x58] sm:$0x1]
    %v111 = vld [vmem:[%s0 + $0x60] sm:$0xfe]
    %v112 = vld [vmem:[%s0 + $0x68] sm:$0xfe]
    %v113 = vld [vmem:[%s0 + $0x70] sm:$0x1]
    %v114 = vld [vmem:[%s0 + $0x78] sm:$0x1]
    %v115 = vld [vmem:[%s0 + $0x80] sm:$0xfe]
    %v116 = vld [vmem:[%s0 + $0x88] sm:$0xfe]
    %v117 = vld [vmem:[%s0 + $0x90] sm:$0x1]
    %v118 = vld [vmem:[%s0 + $0x98] sm:$0x1]
    %v119 = vld [vmem:[%s0 + $0xa0] sm:$0xfe]
    %v120 = vld [vmem:[%s0 + $0xa8] sm:$0xfe]
    %v121 = vld [vmem:[%s0 + $0xb0] sm:$0x1]
    %v122 = vld [vmem:[%s0 + $0xb8] sm:$0x1]
    %v123 = vld [vmem:[%s0 + $0xc0] sm:$0xfe]
    %v124 = vld [vmem:[%s0 + $0xc8] sm:$0xfe]
    %v125 = vld [vmem:[%s0 + $0xd0] sm:$0x1]
    %v126 = vld [vmem:[%s0 + $0xd8] sm:$0x1]
    %v127 = vld [vmem:[%s0 + $0xe0] sm:$0xfe]
    %v128 = vld [vmem:[%s0 + $0xe8] sm:$0xfe]
    %v129 = vld [vmem:[%s0 + $0xf0] sm:$0x1]
    %v130 = vld [vmem:[%s0 + $0xf8] sm:$0x1]
    %v131 = vld [vmem:[%s0 + $0x140] sm:$0xfe]
    %v132 = vld [vmem:[%s0 + $0x148] sm:$0xfe]
    %v133 = vld [vmem:[%s0 + $0x150] sm:$0x1]
    %v134 = vld [vmem:[%s0 + $0x158] sm:$0x1]
    %v135 = vld [vmem:[%s0 + $0x160] sm:$0xfe]
    %v136 = vld [vmem:[%s0 + $0x168] sm:$0xfe]
    %v137 = vld [vmem:[%s0 + $0x170] sm:$0x1]
    %v138 = vld [vmem:[%s0 + $0x178] sm:$0x1]
    %v139 = vld [vmem:[%s0 + $0x180] sm:$0xfe]
    %v140 = vld [vmem:[%s0 + $0x188] sm:$0xfe]
    %v141 = vld [vmem:[%s0 + $0x190] sm:$0x1]
    %v142 = vld [vmem:[%s0 + $0x198] sm:$0x1]
    %v143 = vld [vmem:[%s0 + $0x1a0] sm:$0xfe]
    %v144 = vld [vmem:[%s0 + $0x1a8] sm:$0xfe]
    %v145 = vld [vmem:[%s0 + $0x1b0] sm:$0x1]
    %v146 = vld [vmem:[%s0 + $0x1b8] sm:$0x1]
    %v147 = vld [vmem:[%s0 + $0x1c0] sm:$0xfe]
    %v148 = vld [vmem:[%s0 + $0x1c8] sm:$0xfe]
    %v149 = vld [vmem:[%s0 + $0x1d0] sm:$0x1]
    %v150 = vld [vmem:[%s0 + $0x1d8] sm:$0x1]
    %v151 = vld [vmem:[%s0 + $0x1e0] sm:$0xfe]
    %v152 = vld [vmem:[%s0 + $0x1e8] sm:$0xfe]
    %v153 = vld [vmem:[%s0 + $0x1f0] sm:$0x1]
    %v154 = vld [vmem:[%s0 + $0x1f8] sm:$0x1]
    %v155 = vld [vmem:[%s0 + $0x200] sm:$0xfe]
    %v156 = vld [vmem:[%s0 + $0x208] sm:$0xfe]
    %v157 = vld [vmem:[%s0 + $0x210] sm:$0x1]
    %v158 = vld [vmem:[%s0 + $0x218] sm:$0x1]
    %v159 = vld [vmem:[%s0 + $0x220] sm:$0xfe]
    %v160 = vld [vmem:[%s0 + $0x228] sm:$0xfe]
    %v161 = vld [vmem:[%s0 + $0x230] sm:$0x1]
    %v162 = vld [vmem:[%s0 + $0x238] sm:$0x1]
    %vm227 = vcmask 1046528
    %v228 = vrot.slane %v99, 1
    %v229 = vrot.slane %v101, 1
    %v230 = vsel %vm227, %v228, %v229
    %v231 = vrot.slane %v100, 1
    %v232 = vrot.slane %v102, 1
    %v233 = vsel %vm227, %v231, %v232
    %v234 = vrot.slane %v103, 1
    %v235 = vrot.slane %v105, 1
    %v236 = vsel %vm227, %v234, %v235
    %v237 = vrot.slane %v104, 1
    %v238 = vrot.slane %v106, 1
    %v239 = vsel %vm227, %v237, %v238
    %v240 = vrot.slane %v107, 1
    %v241 = vrot.slane %v109, 1
    %v242 = vsel %vm227, %v240, %v241
    %v243 = vrot.slane %v108, 1
    %v244 = vrot.slane %v110, 1
    %v245 = vsel %vm227, %v243, %v244
    %v246 = vrot.slane %v111, 1
    %v247 = vrot.slane %v113, 1
    %v248 = vsel %vm227, %v246, %v247
    %v249 = vrot.slane %v112, 1
    %v250 = vrot.slane %v114, 1
    %v251 = vsel %vm227, %v249, %v250
    %v252 = vrot.slane %v115, 1
    %v253 = vrot.slane %v117, 1
    %v254 = vsel %vm227, %v252, %v253
    %v255 = vrot.slane %v116, 1
    %v256 = vrot.slane %v118, 1
    %v257 = vsel %vm227, %v255, %v256
    %v258 = vrot.slane %v119, 1
    %v259 = vrot.slane %v121, 1
    %v260 = vsel %vm227, %v258, %v259
    %v261 = vrot.slane %v120, 1
    %v262 = vrot.slane %v122, 1
    %v263 = vsel %vm227, %v261, %v262
    %v264 = vrot.slane %v123, 1
    %v265 = vrot.slane %v125, 1
    %v266 = vsel %vm227, %v264, %v265
    %v267 = vrot.slane %v124, 1
    %v268 = vrot.slane %v126, 1
    %v269 = vsel %vm227, %v267, %v268
    %v270 = vrot.slane %v127, 1
    %v271 = vrot.slane %v129, 1
    %v272 = vsel %vm227, %v270, %v271
    %v273 = vrot.slane %v128, 1
    %v274 = vrot.slane %v130, 1
    %v275 = vsel %vm227, %v273, %v274
    %v276 = vrot.slane %v131, 1
    %v277 = vrot.slane %v133, 1
    %v278 = vsel %vm227, %v276, %v277
    %v279 = vrot.slane %v132, 1
    %v280 = vrot.slane %v134, 1
    %v281 = vsel %vm227, %v279, %v280
    %v282 = vrot.slane %v135, 1
    %v283 = vrot.slane %v137, 1
    %v284 = vsel %vm227, %v282, %v283
    %v285 = vrot.slane %v136, 1
    %v286 = vrot.slane %v138, 1
    %v287 = vsel %vm227, %v285, %v286
    %v288 = vrot.slane %v139, 1
    %v289 = vrot.slane %v141, 1
    %v290 = vsel %vm227, %v288, %v289
    %v291 = vrot.slane %v140, 1
    %v292 = vrot.slane %v142, 1
    %v293 = vsel %vm227, %v291, %v292
    %v294 = vrot.slane %v143, 1
    %v295 = vrot.slane %v145, 1
    %v296 = vsel %vm227, %v294, %v295
    %v297 = vrot.slane %v144, 1
    %v298 = vrot.slane %v146, 1
    %v299 = vsel %vm227, %v297, %v298
    %v300 = vrot.slane %v147, 1
    %v301 = vrot.slane %v149, 1
    %v302 = vsel %vm227, %v300, %v301
    %v303 = vrot.slane %v148, 1
    %v304 = vrot.slane %v150, 1
    %v305 = vsel %vm227, %v303, %v304
    %v306 = vrot.slane %v151, 1
    %v307 = vrot.slane %v153, 1
    %v308 = vsel %vm227, %v306, %v307
    %v309 = vrot.slane %v152, 1
    %v310 = vrot.slane %v154, 1
    %v311 = vsel %vm227, %v309, %v310
    %v312 = vrot.slane %v155, 1
    %v313 = vrot.slane %v157, 1
    %v314 = vsel %vm227, %v312, %v313
    %v315 = vrot.slane %v156, 1
    %v316 = vrot.slane %v158, 1
    %v317 = vsel %vm227, %v315, %v316
    %v318 = vrot.slane %v159, 1
    %v319 = vrot.slane %v161, 1
    %v320 = vsel %vm227, %v318, %v319
    %v321 = vrot.slane %v160, 1
    %v322 = vrot.slane %v162, 1
    %v323 = vsel %vm227, %v321, %v322
    %v356 = vpack.c.bf16 %v236, %v230
    %v357 = vpack.c.bf16 %v239, %v233
    %v358 = vpack.c.bf16 %v248, %v242
    %v359 = vpack.c.bf16 %v251, %v245
    %v360 = vpack.c.bf16 %v260, %v254
    %v361 = vpack.c.bf16 %v263, %v257
    %v362 = vpack.c.bf16 %v272, %v266
    %v363 = vpack.c.bf16 %v275, %v269
    %v364 = vpack.c.bf16 %v284, %v278
    %v365 = vpack.c.bf16 %v287, %v281
    %v366 = vpack.c.bf16 %v296, %v290
    %v367 = vpack.c.bf16 %v299, %v293
    %v368 = vpack.c.bf16 %v308, %v302
    %v369 = vpack.c.bf16 %v311, %v305
    %v370 = vpack.c.bf16 %v320, %v314
    %v371 = vpack.c.bf16 %v323, %v317
    %s372 = scalar_lea.vmem %s1, 256
    %v373 = vld [vmem:[%s372] sm:$0xff]
    %v374 = vld [vmem:[%s372 + $0x8] sm:$0xff]
    %v375 = vld [vmem:[%s372 + $0x10] sm:$0xff]
    %v376 = vld [vmem:[%s372 + $0x18] sm:$0xff]
    %v377 = vld [vmem:[%s372 + $0x20] sm:$0xff]
    %v378 = vld [vmem:[%s372 + $0x28] sm:$0xff]
    %v379 = vld [vmem:[%s372 + $0x30] sm:$0xff]
    %v380 = vld [vmem:[%s372 + $0x38] sm:$0xff]
    %v381 = vld [vmem:[%s372 + $0x40] sm:$0xff]
    %v382 = vld [vmem:[%s372 + $0x48] sm:$0xff]
    %v383 = vld [vmem:[%s372 + $0x50] sm:$0xff]
    %v384 = vld [vmem:[%s372 + $0x58] sm:$0xff]
    %v385 = vld [vmem:[%s372 + $0x60] sm:$0xff]
    %v386 = vld [vmem:[%s372 + $0x68] sm:$0xff]
    %v387 = vld [vmem:[%s372 + $0x70] sm:$0xff]
    %v388 = vld [vmem:[%s372 + $0x78] sm:$0xff]
    %v389 = vld [vmem:[%s372 + $0x80] sm:$0xff]
    %v390 = vld [vmem:[%s372 + $0x88] sm:$0xff]
    %v391 = vld [vmem:[%s372 + $0x90] sm:$0xff]
    %v392 = vld [vmem:[%s372 + $0x98] sm:$0xff]
    %v393 = vld [vmem:[%s372 + $0xa0] sm:$0xff]
    %v394 = vld [vmem:[%s372 + $0xa8] sm:$0xff]
    %v395 = vld [vmem:[%s372 + $0xb0] sm:$0xff]
    %v396 = vld [vmem:[%s372 + $0xb8] sm:$0xff]
    %v397 = vld [vmem:[%s372 + $0xc0] sm:$0xff]
    %v398 = vld [vmem:[%s372 + $0xc8] sm:$0xff]
    %v399 = vld [vmem:[%s372 + $0xd0] sm:$0xff]
    %v400 = vld [vmem:[%s372 + $0xd8] sm:$0xff]
    %v401 = vld [vmem:[%s372 + $0xe0] sm:$0xff]
    %v402 = vld [vmem:[%s372 + $0xe8] sm:$0xff]
    %v403 = vld [vmem:[%s372 + $0xf0] sm:$0xff]
    %v404 = vld [vmem:[%s372 + $0xf8] sm:$0xff]
    %v437 = vunpack.c.l.b16 %v373
    %v438 = vunpack.c.h.b16 %v373
    %v439 = vunpack.c.l.b16 %v374
    %v440 = vunpack.c.h.b16 %v374
    %v441 = vunpack.c.l.b16 %v375
    %v442 = vunpack.c.h.b16 %v375
    %v443 = vunpack.c.l.b16 %v376
    %v444 = vunpack.c.h.b16 %v376
    %v445 = vunpack.c.l.b16 %v377
    %v446 = vunpack.c.h.b16 %v377
    %v447 = vunpack.c.l.b16 %v378
    %v448 = vunpack.c.h.b16 %v378
    %v449 = vunpack.c.l.b16 %v379
    %v450 = vunpack.c.h.b16 %v379
    %v451 = vunpack.c.l.b16 %v380
    %v452 = vunpack.c.h.b16 %v380
    %v453 = vunpack.c.l.b16 %v381
    %v454 = vunpack.c.h.b16 %v381
    %v455 = vunpack.c.l.b16 %v382
    %v456 = vunpack.c.h.b16 %v382
    %v457 = vunpack.c.l.b16 %v383
    %v458 = vunpack.c.h.b16 %v383
    %v459 = vunpack.c.l.b16 %v384
    %v460 = vunpack.c.h.b16 %v384
    %v461 = vunpack.c.l.b16 %v385
    %v462 = vunpack.c.h.b16 %v385
    %v463 = vunpack.c.l.b16 %v386
    %v464 = vunpack.c.h.b16 %v386
    %v465 = vunpack.c.l.b16 %v387
    %v466 = vunpack.c.h.b16 %v387
    %v467 = vunpack.c.l.b16 %v388
    %v468 = vunpack.c.h.b16 %v388
    %v469 = vunpack.c.l.b16 %v389
    %v470 = vunpack.c.h.b16 %v389
    %v471 = vunpack.c.l.b16 %v390
    %v472 = vunpack.c.h.b16 %v390
    %v473 = vunpack.c.l.b16 %v391
    %v474 = vunpack.c.h.b16 %v391
    %v475 = vunpack.c.l.b16 %v392
    %v476 = vunpack.c.h.b16 %v392
    %v477 = vunpack.c.l.b16 %v393
    %v478 = vunpack.c.h.b16 %v393
    %v479 = vunpack.c.l.b16 %v394
    %v480 = vunpack.c.h.b16 %v394
    %v481 = vunpack.c.l.b16 %v395
    %v482 = vunpack.c.h.b16 %v395
    %v483 = vunpack.c.l.b16 %v396
    %v484 = vunpack.c.h.b16 %v396
    %v485 = vunpack.c.l.b16 %v397
    %v486 = vunpack.c.h.b16 %v397
    %v487 = vunpack.c.l.b16 %v398
    %v488 = vunpack.c.h.b16 %v398
    %v489 = vunpack.c.l.b16 %v399
    %v490 = vunpack.c.h.b16 %v399
    %v491 = vunpack.c.l.b16 %v400
    %v492 = vunpack.c.h.b16 %v400
    %v493 = vunpack.c.l.b16 %v401
    %v494 = vunpack.c.h.b16 %v401
    %v495 = vunpack.c.l.b16 %v402
    %v496 = vunpack.c.h.b16 %v402
    %v497 = vunpack.c.l.b16 %v403
    %v498 = vunpack.c.h.b16 %v403
    %v499 = vunpack.c.l.b16 %v404
    %v500 = vunpack.c.h.b16 %v404
    %v501 = vpack.c.b16 %v439, %v437
    %v502 = vpack.c.b16 %v440, %v438
    %v503 = vpack.c.b16 %v443, %v441
    %v504 = vpack.c.b16 %v444, %v442
    %v505 = vpack.c.b16 %v447, %v445
    %v506 = vpack.c.b16 %v448, %v446
    %v507 = vpack.c.b16 %v451, %v449
    %v508 = vpack.c.b16 %v452, %v450
    %v509 = vpack.c.b16 %v455, %v453
    %v510 = vpack.c.b16 %v456, %v454
    %v511 = vpack.c.b16 %v459, %v457
    %v512 = vpack.c.b16 %v460, %v458
    %v513 = vpack.c.b16 %v463, %v461
    %v514 = vpack.c.b16 %v464, %v462
    %v515 = vpack.c.b16 %v467, %v465
    %v516 = vpack.c.b16 %v468, %v466
    %v517 = vpack.c.b16 %v471, %v469
    %v518 = vpack.c.b16 %v472, %v470
    %v519 = vpack.c.b16 %v475, %v473
    %v520 = vpack.c.b16 %v476, %v474
    %v521 = vpack.c.b16 %v479, %v477
    %v522 = vpack.c.b16 %v480, %v478
    %v523 = vpack.c.b16 %v483, %v481
    %v524 = vpack.c.b16 %v484, %v482
    %v525 = vpack.c.b16 %v487, %v485
    %v526 = vpack.c.b16 %v488, %v486
    %v527 = vpack.c.b16 %v491, %v489
    %v528 = vpack.c.b16 %v492, %v490
    %v529 = vpack.c.b16 %v495, %v493
    %v530 = vpack.c.b16 %v496, %v494
    %v531 = vpack.c.b16 %v499, %v497
    %v532 = vpack.c.b16 %v500, %v498
    %565 = vmatpush.bf16.msra.mxu0 %v515
    %566 = vmatpush.bf16.msra.mxu0 %v513
    %567 = vmatpush.bf16.msra.mxu0 %v511
    %568 = vmatpush.bf16.msra.mxu0 %v509
    %569 = vmatpush.bf16.msra.mxu0 %v507
    %570 = vmatpush.bf16.msra.mxu0 %v505
    %571 = vmatpush.bf16.msra.mxu0 %v503
    %572 = vmatpush.bf16.msra.mxu0 %v501
    %573 = vmatmul.bf16.gmra.mxu0 %v356
    %v574 = vpop.f32.mrf.mxu0
    %v575 = vadd.f32 0.0, %v574
    %v576 = vpop.f32.mrf.mxu0
    %v577 = vadd.f32 0.0, %v576
    %578 = vmatmul.bf16.gmra.mxu0 %v358
    %v579 = vpop.f32.mrf.mxu0
    %v580 = vadd.f32 0.0, %v579
    %v581 = vpop.f32.mrf.mxu0
    %v582 = vadd.f32 0.0, %v581
    %583 = vmatmul.bf16.gmra.mxu0 %v360
    %v584 = vpop.f32.mrf.mxu0
    %v585 = vadd.f32 0.0, %v584
    %v586 = vpop.f32.mrf.mxu0
    %v587 = vadd.f32 0.0, %v586
    %588 = vmatmul.bf16.gmra.mxu0 %v362
    %v589 = vpop.f32.mrf.mxu0
    %v590 = vadd.f32 0.0, %v589
    %v591 = vpop.f32.mrf.mxu0
    %v592 = vadd.f32 0.0, %v591
    %593 = vmatmul.bf16.gmra.mxu0 %v364
    %v594 = vpop.f32.mrf.mxu0
    %v595 = vadd.f32 0.0, %v594
    %v596 = vpop.f32.mrf.mxu0
    %v597 = vadd.f32 0.0, %v596
    %598 = vmatmul.bf16.gmra.mxu0 %v366
    %v599 = vpop.f32.mrf.mxu0
    %v600 = vadd.f32 0.0, %v599
    %v601 = vpop.f32.mrf.mxu0
    %v602 = vadd.f32 0.0, %v601
    %603 = vmatmul.bf16.gmra.mxu0 %v368
    %v604 = vpop.f32.mrf.mxu0
    %v605 = vadd.f32 0.0, %v604
    %v606 = vpop.f32.mrf.mxu0
    %v607 = vadd.f32 0.0, %v606
    %608 = vmatmul.bf16.gmra.mxu0 %v370
    %v609 = vpop.f32.mrf.mxu0
    %v610 = vadd.f32 0.0, %v609
    %v611 = vpop.f32.mrf.mxu0
    %v612 = vadd.f32 0.0, %v611
    %613 = vdwg.mxu0
    %614 = vmatpush.bf16.msra.mxu0 %v531
    %615 = vmatpush.bf16.msra.mxu0 %v529
    %616 = vmatpush.bf16.msra.mxu0 %v527
    %617 = vmatpush.bf16.msra.mxu0 %v525
    %618 = vmatpush.bf16.msra.mxu0 %v523
    %619 = vmatpush.bf16.msra.mxu0 %v521
    %620 = vmatpush.bf16.msra.mxu0 %v519
    %621 = vmatpush.bf16.msra.mxu0 %v517
    %622 = vmatmul.bf16.gmra.mxu0 %v357
    %v623 = vpop.f32.mrf.mxu0
    %v624 = vadd.f32 %v575, %v623
    %v625 = vpop.f32.mrf.mxu0
    %v626 = vadd.f32 %v577, %v625
    %627 = vmatmul.bf16.gmra.mxu0 %v359
    %v628 = vpop.f32.mrf.mxu0
    %v629 = vadd.f32 %v580, %v628
    %v630 = vpop.f32.mrf.mxu0
    %v631 = vadd.f32 %v582, %v630
    %632 = vmatmul.bf16.gmra.mxu0 %v361
    %v633 = vpop.f32.mrf.mxu0
    %v634 = vadd.f32 %v585, %v633
    %v635 = vpop.f32.mrf.mxu0
    %v636 = vadd.f32 %v587, %v635
    %637 = vmatmul.bf16.gmra.mxu0 %v363
    %v638 = vpop.f32.mrf.mxu0
    %v639 = vadd.f32 %v590, %v638
    %v640 = vpop.f32.mrf.mxu0
    %v641 = vadd.f32 %v592, %v640
    %642 = vmatmul.bf16.gmra.mxu0 %v365
    %v643 = vpop.f32.mrf.mxu0
    %v644 = vadd.f32 %v595, %v643
    %v645 = vpop.f32.mrf.mxu0
    %v646 = vadd.f32 %v597, %v645
    %647 = vmatmul.bf16.gmra.mxu0 %v367
    %v648 = vpop.f32.mrf.mxu0
    %v649 = vadd.f32 %v600, %v648
    %v650 = vpop.f32.mrf.mxu0
    %v651 = vadd.f32 %v602, %v650
    %652 = vmatmul.bf16.gmra.mxu0 %v369
    %v653 = vpop.f32.mrf.mxu0
    %v654 = vadd.f32 %v605, %v653
    %v655 = vpop.f32.mrf.mxu0
    %v656 = vadd.f32 %v607, %v655
    %657 = vmatmul.bf16.gmra.mxu0 %v371
    %v658 = vpop.f32.mrf.mxu0
    %v659 = vadd.f32 %v610, %v658
    %v660 = vpop.f32.mrf.mxu0
    %v661 = vadd.f32 %v612, %v660
    %662 = vdwg.mxu0
    %663 = vmatpush.bf16.msra.mxu0 %v516
    %664 = vmatpush.bf16.msra.mxu0 %v514
    %665 = vmatpush.bf16.msra.mxu0 %v512
    %666 = vmatpush.bf16.msra.mxu0 %v510
    %667 = vmatpush.bf16.msra.mxu0 %v508
    %668 = vmatpush.bf16.msra.mxu0 %v506
    %669 = vmatpush.bf16.msra.mxu0 %v504
    %670 = vmatpush.bf16.msra.mxu0 %v502
    %671 = vmatmul.bf16.gmra.mxu0 %v356
    %v672 = vpop.f32.mrf.mxu0
    %v673 = vadd.f32 0.0, %v672
    %v674 = vpop.f32.mrf.mxu0
    %v675 = vadd.f32 0.0, %v674
    %676 = vmatmul.bf16.gmra.mxu0 %v358
    %v677 = vpop.f32.mrf.mxu0
    %v678 = vadd.f32 0.0, %v677
    %v679 = vpop.f32.mrf.mxu0
    %v680 = vadd.f32 0.0, %v679
    %681 = vmatmul.bf16.gmra.mxu0 %v360
    %v682 = vpop.f32.mrf.mxu0
    %v683 = vadd.f32 0.0, %v682
    %v684 = vpop.f32.mrf.mxu0
    %v685 = vadd.f32 0.0, %v684
    %686 = vmatmul.bf16.gmra.mxu0 %v362
    %v687 = vpop.f32.mrf.mxu0
    %v688 = vadd.f32 0.0, %v687
    %v689 = vpop.f32.mrf.mxu0
    %v690 = vadd.f32 0.0, %v689
    %691 = vmatmul.bf16.gmra.mxu0 %v364
    %v692 = vpop.f32.mrf.mxu0
    %v693 = vadd.f32 0.0, %v692
    %v694 = vpop.f32.mrf.mxu0
    %v695 = vadd.f32 0.0, %v694
    %696 = vmatmul.bf16.gmra.mxu0 %v366
    %v697 = vpop.f32.mrf.mxu0
    %v698 = vadd.f32 0.0, %v697
    %v699 = vpop.f32.mrf.mxu0
    %v700 = vadd.f32 0.0, %v699
    %701 = vmatmul.bf16.gmra.mxu0 %v368
    %v702 = vpop.f32.mrf.mxu0
    %v703 = vadd.f32 0.0, %v702
    %v704 = vpop.f32.mrf.mxu0
    %v705 = vadd.f32 0.0, %v704
    %706 = vmatmul.bf16.gmra.mxu0 %v370
    %v707 = vpop.f32.mrf.mxu0
    %v708 = vadd.f32 0.0, %v707
    %v709 = vpop.f32.mrf.mxu0
    %v710 = vadd.f32 0.0, %v709
    %711 = vdwg.mxu0
    %712 = vmatpush.bf16.msra.mxu0 %v532
    %713 = vmatpush.bf16.msra.mxu0 %v530
    %714 = vmatpush.bf16.msra.mxu0 %v528
    %715 = vmatpush.bf16.msra.mxu0 %v526
    %716 = vmatpush.bf16.msra.mxu0 %v524
    %717 = vmatpush.bf16.msra.mxu0 %v522
    %718 = vmatpush.bf16.msra.mxu0 %v520
    %719 = vmatpush.bf16.msra.mxu0 %v518
    %720 = vmatmul.bf16.gmra.mxu0 %v357
    %v721 = vpop.f32.mrf.mxu0
    %v722 = vadd.f32 %v673, %v721
    %v723 = vpop.f32.mrf.mxu0
    %v724 = vadd.f32 %v675, %v723
    %725 = vmatmul.bf16.gmra.mxu0 %v359
    %v726 = vpop.f32.mrf.mxu0
    %v727 = vadd.f32 %v678, %v726
    %v728 = vpop.f32.mrf.mxu0
    %v729 = vadd.f32 %v680, %v728
    %730 = vmatmul.bf16.gmra.mxu0 %v361
    %v731 = vpop.f32.mrf.mxu0
    %v732 = vadd.f32 %v683, %v731
    %v733 = vpop.f32.mrf.mxu0
    %v734 = vadd.f32 %v685, %v733
    %735 = vmatmul.bf16.gmra.mxu0 %v363
    %v736 = vpop.f32.mrf.mxu0
    %v737 = vadd.f32 %v688, %v736
    %v738 = vpop.f32.mrf.mxu0
    %v739 = vadd.f32 %v690, %v738
    %740 = vmatmul.bf16.gmra.mxu0 %v365
    %v741 = vpop.f32.mrf.mxu0
    %v742 = vadd.f32 %v693, %v741
    %v743 = vpop.f32.mrf.mxu0
    %v744 = vadd.f32 %v695, %v743
    %745 = vmatmul.bf16.gmra.mxu0 %v367
    %v746 = vpop.f32.mrf.mxu0
    %v747 = vadd.f32 %v698, %v746
    %v748 = vpop.f32.mrf.mxu0
    %v749 = vadd.f32 %v700, %v748
    %750 = vmatmul.bf16.gmra.mxu0 %v369
    %v751 = vpop.f32.mrf.mxu0
    %v752 = vadd.f32 %v703, %v751
    %v753 = vpop.f32.mrf.mxu0
    %v754 = vadd.f32 %v705, %v753
    %755 = vmatmul.bf16.gmra.mxu0 %v371
    %v756 = vpop.f32.mrf.mxu0
    %v757 = vadd.f32 %v708, %v756
    %v758 = vpop.f32.mrf.mxu0
    %v759 = vadd.f32 %v710, %v758
    %760 = vdwg.mxu0
    %v793 = vunpack.c.l.b16 %v67
    %v794 = vunpack.c.h.b16 %v67
    %v795 = vunpack.c.l.b16 %v68
    %v796 = vunpack.c.h.b16 %v68
    %v797 = vunpack.c.l.b16 %v69
    %v798 = vunpack.c.h.b16 %v69
    %v799 = vunpack.c.l.b16 %v70
    %v800 = vunpack.c.h.b16 %v70
    %v801 = vunpack.c.l.b16 %v71
    %v802 = vunpack.c.h.b16 %v71
    %v803 = vunpack.c.l.b16 %v72
    %v804 = vunpack.c.h.b16 %v72
    %v805 = vunpack.c.l.b16 %v73
    %v806 = vunpack.c.h.b16 %v73
    %v807 = vunpack.c.l.b16 %v74
    %v808 = vunpack.c.h.b16 %v74
    %v809 = vunpack.c.l.b16 %v75
    %v810 = vunpack.c.h.b16 %v75
    %v811 = vunpack.c.l.b16 %v76
    %v812 = vunpack.c.h.b16 %v76
    %v813 = vunpack.c.l.b16 %v77
    %v814 = vunpack.c.h.b16 %v77
    %v815 = vunpack.c.l.b16 %v78
    %v816 = vunpack.c.h.b16 %v78
    %v817 = vunpack.c.l.b16 %v79
    %v818 = vunpack.c.h.b16 %v79
    %v819 = vunpack.c.l.b16 %v80
    %v820 = vunpack.c.h.b16 %v80
    %v821 = vunpack.c.l.b16 %v81
    %v822 = vunpack.c.h.b16 %v81
    %v823 = vunpack.c.l.b16 %v82
    %v824 = vunpack.c.h.b16 %v82
    %v825 = vunpack.c.l.b16 %v83
    %v826 = vunpack.c.h.b16 %v83
    %v827 = vunpack.c.l.b16 %v84
    %v828 = vunpack.c.h.b16 %v84
    %v829 = vunpack.c.l.b16 %v85
    %v830 = vunpack.c.h.b16 %v85
    %v831 = vunpack.c.l.b16 %v86
    %v832 = vunpack.c.h.b16 %v86
    %v833 = vunpack.c.l.b16 %v87
    %v834 = vunpack.c.h.b16 %v87
    %v835 = vunpack.c.l.b16 %v88
    %v836 = vunpack.c.h.b16 %v88
    %v837 = vunpack.c.l.b16 %v89
    %v838 = vunpack.c.h.b16 %v89
    %v839 = vunpack.c.l.b16 %v90
    %v840 = vunpack.c.h.b16 %v90
    %v841 = vunpack.c.l.b16 %v91
    %v842 = vunpack.c.h.b16 %v91
    %v843 = vunpack.c.l.b16 %v92
    %v844 = vunpack.c.h.b16 %v92
    %v845 = vunpack.c.l.b16 %v93
    %v846 = vunpack.c.h.b16 %v93
    %v847 = vunpack.c.l.b16 %v94
    %v848 = vunpack.c.h.b16 %v94
    %v849 = vunpack.c.l.b16 %v95
    %v850 = vunpack.c.h.b16 %v95
    %v851 = vunpack.c.l.b16 %v96
    %v852 = vunpack.c.h.b16 %v96
    %v853 = vunpack.c.l.b16 %v97
    %v854 = vunpack.c.h.b16 %v97
    %v855 = vunpack.c.l.b16 %v98
    %v856 = vunpack.c.h.b16 %v98
    %v857 = vpack.c.b16 %v795, %v793
    %v858 = vpack.c.b16 %v796, %v794
    %v859 = vpack.c.b16 %v799, %v797
    %v860 = vpack.c.b16 %v800, %v798
    %v861 = vpack.c.b16 %v803, %v801
    %v862 = vpack.c.b16 %v804, %v802
    %v863 = vpack.c.b16 %v807, %v805
    %v864 = vpack.c.b16 %v808, %v806
    %v865 = vpack.c.b16 %v811, %v809
    %v866 = vpack.c.b16 %v812, %v810
    %v867 = vpack.c.b16 %v815, %v813
    %v868 = vpack.c.b16 %v816, %v814
    %v869 = vpack.c.b16 %v819, %v817
    %v870 = vpack.c.b16 %v820, %v818
    %v871 = vpack.c.b16 %v823, %v821
    %v872 = vpack.c.b16 %v824, %v822
    %v873 = vpack.c.b16 %v827, %v825
    %v874 = vpack.c.b16 %v828, %v826
    %v875 = vpack.c.b16 %v831, %v829
    %v876 = vpack.c.b16 %v832, %v830
    %v877 = vpack.c.b16 %v835, %v833
    %v878 = vpack.c.b16 %v836, %v834
    %v879 = vpack.c.b16 %v839, %v837
    %v880 = vpack.c.b16 %v840, %v838
    %v881 = vpack.c.b16 %v843, %v841
    %v882 = vpack.c.b16 %v844, %v842
    %v883 = vpack.c.b16 %v847, %v845
    %v884 = vpack.c.b16 %v848, %v846
    %v885 = vpack.c.b16 %v851, %v849
    %v886 = vpack.c.b16 %v852, %v850
    %v887 = vpack.c.b16 %v855, %v853
    %v888 = vpack.c.b16 %v856, %v854
    %921 = vmatpush.bf16.msra.mxu0 %v871
    %922 = vmatpush.bf16.msra.mxu0 %v869
    %923 = vmatpush.bf16.msra.mxu0 %v867
    %924 = vmatpush.bf16.msra.mxu0 %v865
    %925 = vmatpush.bf16.msra.mxu0 %v863
    %926 = vmatpush.bf16.msra.mxu0 %v861
    %927 = vmatpush.bf16.msra.mxu0 %v859
    %928 = vmatpush.bf16.msra.mxu0 %v857
    %929 = vmatmul.bf16.gmra.mxu0 %v51
    %v930 = vpop.f32.mrf.mxu0
    %v931 = vadd.f32 %v624, %v930
    %v932 = vpop.f32.mrf.mxu0
    %v933 = vadd.f32 %v626, %v932
    %934 = vmatmul.bf16.gmra.mxu0 %v53
    %v935 = vpop.f32.mrf.mxu0
    %v936 = vadd.f32 %v629, %v935
    %v937 = vpop.f32.mrf.mxu0
    %v938 = vadd.f32 %v631, %v937
    %939 = vmatmul.bf16.gmra.mxu0 %v55
    %v940 = vpop.f32.mrf.mxu0
    %v941 = vadd.f32 %v634, %v940
    %v942 = vpop.f32.mrf.mxu0
    %v943 = vadd.f32 %v636, %v942
    %944 = vmatmul.bf16.gmra.mxu0 %v57
    %v945 = vpop.f32.mrf.mxu0
    %v946 = vadd.f32 %v639, %v945
    %v947 = vpop.f32.mrf.mxu0
    %v948 = vadd.f32 %v641, %v947
    %949 = vmatmul.bf16.gmra.mxu0 %v59
    %v950 = vpop.f32.mrf.mxu0
    %v951 = vadd.f32 %v644, %v950
    %v952 = vpop.f32.mrf.mxu0
    %v953 = vadd.f32 %v646, %v952
    %954 = vmatmul.bf16.gmra.mxu0 %v61
    %v955 = vpop.f32.mrf.mxu0
    %v956 = vadd.f32 %v649, %v955
    %v957 = vpop.f32.mrf.mxu0
    %v958 = vadd.f32 %v651, %v957
    %959 = vmatmul.bf16.gmra.mxu0 %v63
    %v960 = vpop.f32.mrf.mxu0
    %v961 = vadd.f32 %v654, %v960
    %v962 = vpop.f32.mrf.mxu0
    %v963 = vadd.f32 %v656, %v962
    %964 = vmatmul.bf16.gmra.mxu0 %v65
    %v965 = vpop.f32.mrf.mxu0
    %v966 = vadd.f32 %v659, %v965
    %v967 = vpop.f32.mrf.mxu0
    %v968 = vadd.f32 %v661, %v967
    %969 = vdwg.mxu0
    %970 = vmatpush.bf16.msra.mxu0 %v887
    %971 = vmatpush.bf16.msra.mxu0 %v885
    %972 = vmatpush.bf16.msra.mxu0 %v883
    %973 = vmatpush.bf16.msra.mxu0 %v881
    %974 = vmatpush.bf16.msra.mxu0 %v879
    %975 = vmatpush.bf16.msra.mxu0 %v877
    %976 = vmatpush.bf16.msra.mxu0 %v875
    %977 = vmatpush.bf16.msra.mxu0 %v873
    %978 = vmatmul.bf16.gmra.mxu0 %v52
    %v979 = vpop.f32.mrf.mxu0
    %v980 = vadd.f32 %v931, %v979
    %v981 = vpop.f32.mrf.mxu0
    %v982 = vadd.f32 %v933, %v981
    %983 = vmatmul.bf16.gmra.mxu0 %v54
    %v984 = vpop.f32.mrf.mxu0
    %v985 = vadd.f32 %v936, %v984
    %v986 = vpop.f32.mrf.mxu0
    %v987 = vadd.f32 %v938, %v986
    %988 = vmatmul.bf16.gmra.mxu0 %v56
    %v989 = vpop.f32.mrf.mxu0
    %v990 = vadd.f32 %v941, %v989
    %v991 = vpop.f32.mrf.mxu0
    %v992 = vadd.f32 %v943, %v991
    %993 = vmatmul.bf16.gmra.mxu0 %v58
    %v994 = vpop.f32.mrf.mxu0
    %v995 = vadd.f32 %v946, %v994
    %v996 = vpop.f32.mrf.mxu0
    %v997 = vadd.f32 %v948, %v996
    %998 = vmatmul.bf16.gmra.mxu0 %v60
    %v999 = vpop.f32.mrf.mxu0
    %v1000 = vadd.f32 %v951, %v999
    %v1001 = vpop.f32.mrf.mxu0
    %v1002 = vadd.f32 %v953, %v1001
    %1003 = vmatmul.bf16.gmra.mxu0 %v62
    %v1004 = vpop.f32.mrf.mxu0
    %v1005 = vadd.f32 %v956, %v1004
    %v1006 = vpop.f32.mrf.mxu0
    %v1007 = vadd.f32 %v958, %v1006
    %1008 = vmatmul.bf16.gmra.mxu0 %v64
    %v1009 = vpop.f32.mrf.mxu0
    %v1010 = vadd.f32 %v961, %v1009
    %v1011 = vpop.f32.mrf.mxu0
    %v1012 = vadd.f32 %v963, %v1011
    %1013 = vmatmul.bf16.gmra.mxu0 %v66
    %v1014 = vpop.f32.mrf.mxu0
    %v1015 = vadd.f32 %v966, %v1014
    %v1016 = vpop.f32.mrf.mxu0
    %v1017 = vadd.f32 %v968, %v1016
    %1018 = vdwg.mxu0
    %1019 = vmatpush.bf16.msra.mxu0 %v872
    %1020 = vmatpush.bf16.msra.mxu0 %v870
    %1021 = vmatpush.bf16.msra.mxu0 %v868
    %1022 = vmatpush.bf16.msra.mxu0 %v866
    %1023 = vmatpush.bf16.msra.mxu0 %v864
    %1024 = vmatpush.bf16.msra.mxu0 %v862
    %1025 = vmatpush.bf16.msra.mxu0 %v860
    %1026 = vmatpush.bf16.msra.mxu0 %v858
    %1027 = vmatmul.bf16.gmra.mxu0 %v51
    %v1028 = vpop.f32.mrf.mxu0
    %v1029 = vadd.f32 %v722, %v1028
    %v1030 = vpop.f32.mrf.mxu0
    %v1031 = vadd.f32 %v724, %v1030
    %1032 = vmatmul.bf16.gmra.mxu0 %v53
    %v1033 = vpop.f32.mrf.mxu0
    %v1034 = vadd.f32 %v727, %v1033
    %v1035 = vpop.f32.mrf.mxu0
    %v1036 = vadd.f32 %v729, %v1035
    %1037 = vmatmul.bf16.gmra.mxu0 %v55
    %v1038 = vpop.f32.mrf.mxu0
    %v1039 = vadd.f32 %v732, %v1038
    %v1040 = vpop.f32.mrf.mxu0
    %v1041 = vadd.f32 %v734, %v1040
    %1042 = vmatmul.bf16.gmra.mxu0 %v57
    %v1043 = vpop.f32.mrf.mxu0
    %v1044 = vadd.f32 %v737, %v1043
    %v1045 = vpop.f32.mrf.mxu0
    %v1046 = vadd.f32 %v739, %v1045
    %1047 = vmatmul.bf16.gmra.mxu0 %v59
    %v1048 = vpop.f32.mrf.mxu0
    %v1049 = vadd.f32 %v742, %v1048
    %v1050 = vpop.f32.mrf.mxu0
    %v1051 = vadd.f32 %v744, %v1050
    %1052 = vmatmul.bf16.gmra.mxu0 %v61
    %v1053 = vpop.f32.mrf.mxu0
    %v1054 = vadd.f32 %v747, %v1053
    %v1055 = vpop.f32.mrf.mxu0
    %v1056 = vadd.f32 %v749, %v1055
    %1057 = vmatmul.bf16.gmra.mxu0 %v63
    %v1058 = vpop.f32.mrf.mxu0
    %v1059 = vadd.f32 %v752, %v1058
    %v1060 = vpop.f32.mrf.mxu0
    %v1061 = vadd.f32 %v754, %v1060
    %1062 = vmatmul.bf16.gmra.mxu0 %v65
    %v1063 = vpop.f32.mrf.mxu0
    %v1064 = vadd.f32 %v757, %v1063
    %v1065 = vpop.f32.mrf.mxu0
    %v1066 = vadd.f32 %v759, %v1065
    %1067 = vdwg.mxu0
    %1068 = vmatpush.bf16.msra.mxu0 %v888
    %1069 = vmatpush.bf16.msra.mxu0 %v886
    %1070 = vmatpush.bf16.msra.mxu0 %v884
    %1071 = vmatpush.bf16.msra.mxu0 %v882
    %1072 = vmatpush.bf16.msra.mxu0 %v880
    %1073 = vmatpush.bf16.msra.mxu0 %v878
    %1074 = vmatpush.bf16.msra.mxu0 %v876
    %1075 = vmatpush.bf16.msra.mxu0 %v874
    %1076 = vmatmul.bf16.gmra.mxu0 %v52
    %v1077 = vpop.f32.mrf.mxu0
    %v1078 = vadd.f32 %v1029, %v1077
    %v1079 = vpop.f32.mrf.mxu0
    %v1080 = vadd.f32 %v1031, %v1079
    %1081 = vmatmul.bf16.gmra.mxu0 %v54
    %v1082 = vpop.f32.mrf.mxu0
    %v1083 = vadd.f32 %v1034, %v1082
    %v1084 = vpop.f32.mrf.mxu0
    %v1085 = vadd.f32 %v1036, %v1084
    %1086 = vmatmul.bf16.gmra.mxu0 %v56
    %v1087 = vpop.f32.mrf.mxu0
    %v1088 = vadd.f32 %v1039, %v1087
    %v1089 = vpop.f32.mrf.mxu0
    %v1090 = vadd.f32 %v1041, %v1089
    %1091 = vmatmul.bf16.gmra.mxu0 %v58
    %v1092 = vpop.f32.mrf.mxu0
    %v1093 = vadd.f32 %v1044, %v1092
    %v1094 = vpop.f32.mrf.mxu0
    %v1095 = vadd.f32 %v1046, %v1094
    %1096 = vmatmul.bf16.gmra.mxu0 %v60
    %v1097 = vpop.f32.mrf.mxu0
    %v1098 = vadd.f32 %v1049, %v1097
    %v1099 = vpop.f32.mrf.mxu0
    %v1100 = vadd.f32 %v1051, %v1099
    %1101 = vmatmul.bf16.gmra.mxu0 %v62
    %v1102 = vpop.f32.mrf.mxu0
    %v1103 = vadd.f32 %v1054, %v1102
    %v1104 = vpop.f32.mrf.mxu0
    %v1105 = vadd.f32 %v1056, %v1104
    %1106 = vmatmul.bf16.gmra.mxu0 %v64
    %v1107 = vpop.f32.mrf.mxu0
    %v1108 = vadd.f32 %v1059, %v1107
    %v1109 = vpop.f32.mrf.mxu0
    %v1110 = vadd.f32 %v1061, %v1109
    %1111 = vmatmul.bf16.gmra.mxu0 %v66
    %v1112 = vpop.f32.mrf.mxu0
    %v1113 = vadd.f32 %v1064, %v1112
    %v1114 = vpop.f32.mrf.mxu0
    %v1115 = vadd.f32 %v1066, %v1114
    %1116 = vdwg.mxu0
    %v1117 = vld [vmem:[%s0] sm:$0xfc]
    %v1118 = vld [vmem:[%s0 + $0x8] sm:$0xfc]
    %v1119 = vld [vmem:[%s0 + $0x10] sm:$0x3]
    %v1120 = vld [vmem:[%s0 + $0x18] sm:$0x3]
    %v1121 = vld [vmem:[%s0 + $0x20] sm:$0xfc]
    %v1122 = vld [vmem:[%s0 + $0x28] sm:$0xfc]
    %v1123 = vld [vmem:[%s0 + $0x30] sm:$0x3]
    %v1124 = vld [vmem:[%s0 + $0x38] sm:$0x3]
    %v1125 = vld [vmem:[%s0 + $0x40] sm:$0xfc]
    %v1126 = vld [vmem:[%s0 + $0x48] sm:$0xfc]
    %v1127 = vld [vmem:[%s0 + $0x50] sm:$0x3]
    %v1128 = vld [vmem:[%s0 + $0x58] sm:$0x3]
    %v1129 = vld [vmem:[%s0 + $0x60] sm:$0xfc]
    %v1130 = vld [vmem:[%s0 + $0x68] sm:$0xfc]
    %v1131 = vld [vmem:[%s0 + $0x70] sm:$0x3]
    %v1132 = vld [vmem:[%s0 + $0x78] sm:$0x3]
    %v1133 = vld [vmem:[%s0 + $0x80] sm:$0xfc]
    %v1134 = vld [vmem:[%s0 + $0x88] sm:$0xfc]
    %v1135 = vld [vmem:[%s0 + $0x90] sm:$0x3]
    %v1136 = vld [vmem:[%s0 + $0x98] sm:$0x3]
    %v1137 = vld [vmem:[%s0 + $0xa0] sm:$0xfc]
    %v1138 = vld [vmem:[%s0 + $0xa8] sm:$0xfc]
    %v1139 = vld [vmem:[%s0 + $0xb0] sm:$0x3]
    %v1140 = vld [vmem:[%s0 + $0xb8] sm:$0x3]
    %v1141 = vld [vmem:[%s0 + $0xc0] sm:$0xfc]
    %v1142 = vld [vmem:[%s0 + $0xc8] sm:$0xfc]
    %v1143 = vld [vmem:[%s0 + $0xd0] sm:$0x3]
    %v1144 = vld [vmem:[%s0 + $0xd8] sm:$0x3]
    %v1145 = vld [vmem:[%s0 + $0xe0] sm:$0xfc]
    %v1146 = vld [vmem:[%s0 + $0xe8] sm:$0xfc]
    %v1147 = vld [vmem:[%s0 + $0xf0] sm:$0x3]
    %v1148 = vld [vmem:[%s0 + $0xf8] sm:$0x3]
    %v1149 = vld [vmem:[%s0 + $0x140] sm:$0xfc]
    %v1150 = vld [vmem:[%s0 + $0x148] sm:$0xfc]
    %v1151 = vld [vmem:[%s0 + $0x150] sm:$0x3]
    %v1152 = vld [vmem:[%s0 + $0x158] sm:$0x3]
    %v1153 = vld [vmem:[%s0 + $0x160] sm:$0xfc]
    %v1154 = vld [vmem:[%s0 + $0x168] sm:$0xfc]
    %v1155 = vld [vmem:[%s0 + $0x170] sm:$0x3]
    %v1156 = vld [vmem:[%s0 + $0x178] sm:$0x3]
    %v1157 = vld [vmem:[%s0 + $0x180] sm:$0xfc]
    %v1158 = vld [vmem:[%s0 + $0x188] sm:$0xfc]
    %v1159 = vld [vmem:[%s0 + $0x190] sm:$0x3]
    %v1160 = vld [vmem:[%s0 + $0x198] sm:$0x3]
    %v1161 = vld [vmem:[%s0 + $0x1a0] sm:$0xfc]
    %v1162 = vld [vmem:[%s0 + $0x1a8] sm:$0xfc]
    %v1163 = vld [vmem:[%s0 + $0x1b0] sm:$0x3]
    %v1164 = vld [vmem:[%s0 + $0x1b8] sm:$0x3]
    %v1165 = vld [vmem:[%s0 + $0x1c0] sm:$0xfc]
    %v1166 = vld [vmem:[%s0 + $0x1c8] sm:$0xfc]
    %v1167 = vld [vmem:[%s0 + $0x1d0] sm:$0x3]
    %v1168 = vld [vmem:[%s0 + $0x1d8] sm:$0x3]
    %v1169 = vld [vmem:[%s0 + $0x1e0] sm:$0xfc]
    %v1170 = vld [vmem:[%s0 + $0x1e8] sm:$0xfc]
    %v1171 = vld [vmem:[%s0 + $0x1f0] sm:$0x3]
    %v1172 = vld [vmem:[%s0 + $0x1f8] sm:$0x3]
    %v1173 = vld [vmem:[%s0 + $0x200] sm:$0xfc]
    %v1174 = vld [vmem:[%s0 + $0x208] sm:$0xfc]
    %v1175 = vld [vmem:[%s0 + $0x210] sm:$0x3]
    %v1176 = vld [vmem:[%s0 + $0x218] sm:$0x3]
    %v1177 = vld [vmem:[%s0 + $0x220] sm:$0xfc]
    %v1178 = vld [vmem:[%s0 + $0x228] sm:$0xfc]
    %v1179 = vld [vmem:[%s0 + $0x230] sm:$0x3]
    %v1180 = vld [vmem:[%s0 + $0x238] sm:$0x3]
    %vm1245 = vcmask 1045504
    %v1246 = vrot.slane %v1117, 2
    %v1247 = vrot.slane %v1119, 2
    %v1248 = vsel %vm1245, %v1246, %v1247
    %v1249 = vrot.slane %v1118, 2
    %v1250 = vrot.slane %v1120, 2
    %v1251 = vsel %vm1245, %v1249, %v1250
    %v1252 = vrot.slane %v1121, 2
    %v1253 = vrot.slane %v1123, 2
    %v1254 = vsel %vm1245, %v1252, %v1253
    %v1255 = vrot.slane %v1122, 2
    %v1256 = vrot.slane %v1124, 2
    %v1257 = vsel %vm1245, %v1255, %v1256
    %v1258 = vrot.slane %v1125, 2
    %v1259 = vrot.slane %v1127, 2
    %v1260 = vsel %vm1245, %v1258, %v1259
    %v1261 = vrot.slane %v1126, 2
    %v1262 = vrot.slane %v1128, 2
    %v1263 = vsel %vm1245, %v1261, %v1262
    %v1264 = vrot.slane %v1129, 2
    %v1265 = vrot.slane %v1131, 2
    %v1266 = vsel %vm1245, %v1264, %v1265
    %v1267 = vrot.slane %v1130, 2
    %v1268 = vrot.slane %v1132, 2
    %v1269 = vsel %vm1245, %v1267, %v1268
    %v1270 = vrot.slane %v1133, 2
    %v1271 = vrot.slane %v1135, 2
    %v1272 = vsel %vm1245, %v1270, %v1271
    %v1273 = vrot.slane %v1134, 2
    %v1274 = vrot.slane %v1136, 2
    %v1275 = vsel %vm1245, %v1273, %v1274
    %v1276 = vrot.slane %v1137, 2
    %v1277 = vrot.slane %v1139, 2
    %v1278 = vsel %vm1245, %v1276, %v1277
    %v1279 = vrot.slane %v1138, 2
    %v1280 = vrot.slane %v1140, 2
    %v1281 = vsel %vm1245, %v1279, %v1280
    %v1282 = vrot.slane %v1141, 2
    %v1283 = vrot.slane %v1143, 2
    %v1284 = vsel %vm1245, %v1282, %v1283
    %v1285 = vrot.slane %v1142, 2
    %v1286 = vrot.slane %v1144, 2
    %v1287 = vsel %vm1245, %v1285, %v1286
    %v1288 = vrot.slane %v1145, 2
    %v1289 = vrot.slane %v1147, 2
    %v1290 = vsel %vm1245, %v1288, %v1289
    %v1291 = vrot.slane %v1146, 2
    %v1292 = vrot.slane %v1148, 2
    %v1293 = vsel %vm1245, %v1291, %v1292
    %v1294 = vrot.slane %v1149, 2
    %v1295 = vrot.slane %v1151, 2
    %v1296 = vsel %vm1245, %v1294, %v1295
    %v1297 = vrot.slane %v1150, 2
    %v1298 = vrot.slane %v1152, 2
    %v1299 = vsel %vm1245, %v1297, %v1298
    %v1300 = vrot.slane %v1153, 2
    %v1301 = vrot.slane %v1155, 2
    %v1302 = vsel %vm1245, %v1300, %v1301
    %v1303 = vrot.slane %v1154, 2
    %v1304 = vrot.slane %v1156, 2
    %v1305 = vsel %vm1245, %v1303, %v1304
    %v1306 = vrot.slane %v1157, 2
    %v1307 = vrot.slane %v1159, 2
    %v1308 = vsel %vm1245, %v1306, %v1307
    %v1309 = vrot.slane %v1158, 2
    %v1310 = vrot.slane %v1160, 2
    %v1311 = vsel %vm1245, %v1309, %v1310
    %v1312 = vrot.slane %v1161, 2
    %v1313 = vrot.slane %v1163, 2
    %v1314 = vsel %vm1245, %v1312, %v1313
    %v1315 = vrot.slane %v1162, 2
    %v1316 = vrot.slane %v1164, 2
    %v1317 = vsel %vm1245, %v1315, %v1316
    %v1318 = vrot.slane %v1165, 2
    %v1319 = vrot.slane %v1167, 2
    %v1320 = vsel %vm1245, %v1318, %v1319
    %v1321 = vrot.slane %v1166, 2
    %v1322 = vrot.slane %v1168, 2
    %v1323 = vsel %vm1245, %v1321, %v1322
    %v1324 = vrot.slane %v1169, 2
    %v1325 = vrot.slane %v1171, 2
    %v1326 = vsel %vm1245, %v1324, %v1325
    %v1327 = vrot.slane %v1170, 2
    %v1328 = vrot.slane %v1172, 2
    %v1329 = vsel %vm1245, %v1327, %v1328
    %v1330 = vrot.slane %v1173, 2
    %v1331 = vrot.slane %v1175, 2
    %v1332 = vsel %vm1245, %v1330, %v1331
    %v1333 = vrot.slane %v1174, 2
    %v1334 = vrot.slane %v1176, 2
    %v1335 = vsel %vm1245, %v1333, %v1334
    %v1336 = vrot.slane %v1177, 2
    %v1337 = vrot.slane %v1179, 2
    %v1338 = vsel %vm1245, %v1336, %v1337
    %v1339 = vrot.slane %v1178, 2
    %v1340 = vrot.slane %v1180, 2
    %v1341 = vsel %vm1245, %v1339, %v1340
    %v1374 = vpack.c.bf16 %v1254, %v1248
    %v1375 = vpack.c.bf16 %v1257, %v1251
    %v1376 = vpack.c.bf16 %v1266, %v1260
    %v1377 = vpack.c.bf16 %v1269, %v1263
    %v1378 = vpack.c.bf16 %v1278, %v1272
    %v1379 = vpack.c.bf16 %v1281, %v1275
    %v1380 = vpack.c.bf16 %v1290, %v1284
    %v1381 = vpack.c.bf16 %v1293, %v1287
    %v1382 = vpack.c.bf16 %v1302, %v1296
    %v1383 = vpack.c.bf16 %v1305, %v1299
    %v1384 = vpack.c.bf16 %v1314, %v1308
    %v1385 = vpack.c.bf16 %v1317, %v1311
    %v1386 = vpack.c.bf16 %v1326, %v1320
    %v1387 = vpack.c.bf16 %v1329, %v1323
    %v1388 = vpack.c.bf16 %v1338, %v1332
    %v1389 = vpack.c.bf16 %v1341, %v1335
    %s1390 = scalar_lea.vmem %s1, 512
    %v1391 = vld [vmem:[%s1390] sm:$0xff]
    %v1392 = vld [vmem:[%s1390 + $0x8] sm:$0xff]
    %v1393 = vld [vmem:[%s1390 + $0x10] sm:$0xff]
    %v1394 = vld [vmem:[%s1390 + $0x18] sm:$0xff]
    %v1395 = vld [vmem:[%s1390 + $0x20] sm:$0xff]
    %v1396 = vld [vmem:[%s1390 + $0x28] sm:$0xff]
    %v1397 = vld [vmem:[%s1390 + $0x30] sm:$0xff]
    %v1398 = vld [vmem:[%s1390 + $0x38] sm:$0xff]
    %v1399 = vld [vmem:[%s1390 + $0x40] sm:$0xff]
    %v1400 = vld [vmem:[%s1390 + $0x48] sm:$0xff]
    %v1401 = vld [vmem:[%s1390 + $0x50] sm:$0xff]
    %v1402 = vld [vmem:[%s1390 + $0x58] sm:$0xff]
    %v1403 = vld [vmem:[%s1390 + $0x60] sm:$0xff]
    %v1404 = vld [vmem:[%s1390 + $0x68] sm:$0xff]
    %v1405 = vld [vmem:[%s1390 + $0x70] sm:$0xff]
    %v1406 = vld [vmem:[%s1390 + $0x78] sm:$0xff]
    %v1407 = vld [vmem:[%s1390 + $0x80] sm:$0xff]
    %v1408 = vld [vmem:[%s1390 + $0x88] sm:$0xff]
    %v1409 = vld [vmem:[%s1390 + $0x90] sm:$0xff]
    %v1410 = vld [vmem:[%s1390 + $0x98] sm:$0xff]
    %v1411 = vld [vmem:[%s1390 + $0xa0] sm:$0xff]
    %v1412 = vld [vmem:[%s1390 + $0xa8] sm:$0xff]
    %v1413 = vld [vmem:[%s1390 + $0xb0] sm:$0xff]
    %v1414 = vld [vmem:[%s1390 + $0xb8] sm:$0xff]
    %v1415 = vld [vmem:[%s1390 + $0xc0] sm:$0xff]
    %v1416 = vld [vmem:[%s1390 + $0xc8] sm:$0xff]
    %v1417 = vld [vmem:[%s1390 + $0xd0] sm:$0xff]
    %v1418 = vld [vmem:[%s1390 + $0xd8] sm:$0xff]
    %v1419 = vld [vmem:[%s1390 + $0xe0] sm:$0xff]
    %v1420 = vld [vmem:[%s1390 + $0xe8] sm:$0xff]
    %v1421 = vld [vmem:[%s1390 + $0xf0] sm:$0xff]
    %v1422 = vld [vmem:[%s1390 + $0xf8] sm:$0xff]
    %v1455 = vunpack.c.l.b16 %v1391
    %v1456 = vunpack.c.h.b16 %v1391
    %v1457 = vunpack.c.l.b16 %v1392
    %v1458 = vunpack.c.h.b16 %v1392
    %v1459 = vunpack.c.l.b16 %v1393
    %v1460 = vunpack.c.h.b16 %v1393
    %v1461 = vunpack.c.l.b16 %v1394
    %v1462 = vunpack.c.h.b16 %v1394
    %v1463 = vunpack.c.l.b16 %v1395
    %v1464 = vunpack.c.h.b16 %v1395
    %v1465 = vunpack.c.l.b16 %v1396
    %v1466 = vunpack.c.h.b16 %v1396
    %v1467 = vunpack.c.l.b16 %v1397
    %v1468 = vunpack.c.h.b16 %v1397
    %v1469 = vunpack.c.l.b16 %v1398
    %v1470 = vunpack.c.h.b16 %v1398
    %v1471 = vunpack.c.l.b16 %v1399
    %v1472 = vunpack.c.h.b16 %v1399
    %v1473 = vunpack.c.l.b16 %v1400
    %v1474 = vunpack.c.h.b16 %v1400
    %v1475 = vunpack.c.l.b16 %v1401
    %v1476 = vunpack.c.h.b16 %v1401
    %v1477 = vunpack.c.l.b16 %v1402
    %v1478 = vunpack.c.h.b16 %v1402
    %v1479 = vunpack.c.l.b16 %v1403
    %v1480 = vunpack.c.h.b16 %v1403
    %v1481 = vunpack.c.l.b16 %v1404
    %v1482 = vunpack.c.h.b16 %v1404
    %v1483 = vunpack.c.l.b16 %v1405
    %v1484 = vunpack.c.h.b16 %v1405
    %v1485 = vunpack.c.l.b16 %v1406
    %v1486 = vunpack.c.h.b16 %v1406
    %v1487 = vunpack.c.l.b16 %v1407
    %v1488 = vunpack.c.h.b16 %v1407
    %v1489 = vunpack.c.l.b16 %v1408
    %v1490 = vunpack.c.h.b16 %v1408
    %v1491 = vunpack.c.l.b16 %v1409
    %v1492 = vunpack.c.h.b16 %v1409
    %v1493 = vunpack.c.l.b16 %v1410
    %v1494 = vunpack.c.h.b16 %v1410
    %v1495 = vunpack.c.l.b16 %v1411
    %v1496 = vunpack.c.h.b16 %v1411
    %v1497 = vunpack.c.l.b16 %v1412
    %v1498 = vunpack.c.h.b16 %v1412
    %v1499 = vunpack.c.l.b16 %v1413
    %v1500 = vunpack.c.h.b16 %v1413
    %v1501 = vunpack.c.l.b16 %v1414
    %v1502 = vunpack.c.h.b16 %v1414
    %v1503 = vunpack.c.l.b16 %v1415
    %v1504 = vunpack.c.h.b16 %v1415
    %v1505 = vunpack.c.l.b16 %v1416
    %v1506 = vunpack.c.h.b16 %v1416
    %v1507 = vunpack.c.l.b16 %v1417
    %v1508 = vunpack.c.h.b16 %v1417
    %v1509 = vunpack.c.l.b16 %v1418
    %v1510 = vunpack.c.h.b16 %v1418
    %v1511 = vunpack.c.l.b16 %v1419
    %v1512 = vunpack.c.h.b16 %v1419
    %v1513 = vunpack.c.l.b16 %v1420
    %v1514 = vunpack.c.h.b16 %v1420
    %v1515 = vunpack.c.l.b16 %v1421
    %v1516 = vunpack.c.h.b16 %v1421
    %v1517 = vunpack.c.l.b16 %v1422
    %v1518 = vunpack.c.h.b16 %v1422
    %v1519 = vpack.c.b16 %v1457, %v1455
    %v1520 = vpack.c.b16 %v1458, %v1456
    %v1521 = vpack.c.b16 %v1461, %v1459
    %v1522 = vpack.c.b16 %v1462, %v1460
    %v1523 = vpack.c.b16 %v1465, %v1463
    %v1524 = vpack.c.b16 %v1466, %v1464
    %v1525 = vpack.c.b16 %v1469, %v1467
    %v1526 = vpack.c.b16 %v1470, %v1468
    %v1527 = vpack.c.b16 %v1473, %v1471
    %v1528 = vpack.c.b16 %v1474, %v1472
    %v1529 = vpack.c.b16 %v1477, %v1475
    %v1530 = vpack.c.b16 %v1478, %v1476
    %v1531 = vpack.c.b16 %v1481, %v1479
    %v1532 = vpack.c.b16 %v1482, %v1480
    %v1533 = vpack.c.b16 %v1485, %v1483
    %v1534 = vpack.c.b16 %v1486, %v1484
    %v1535 = vpack.c.b16 %v1489, %v1487
    %v1536 = vpack.c.b16 %v1490, %v1488
    %v1537 = vpack.c.b16 %v1493, %v1491
    %v1538 = vpack.c.b16 %v1494, %v1492
    %v1539 = vpack.c.b16 %v1497, %v1495
    %v1540 = vpack.c.b16 %v1498, %v1496
    %v1541 = vpack.c.b16 %v1501, %v1499
    %v1542 = vpack.c.b16 %v1502, %v1500
    %v1543 = vpack.c.b16 %v1505, %v1503
    %v1544 = vpack.c.b16 %v1506, %v1504
    %v1545 = vpack.c.b16 %v1509, %v1507
    %v1546 = vpack.c.b16 %v1510, %v1508
    %v1547 = vpack.c.b16 %v1513, %v1511
    %v1548 = vpack.c.b16 %v1514, %v1512
    %v1549 = vpack.c.b16 %v1517, %v1515
    %v1550 = vpack.c.b16 %v1518, %v1516
    %1583 = vmatpush.bf16.msra.mxu0 %v1533
    %1584 = vmatpush.bf16.msra.mxu0 %v1531
    %1585 = vmatpush.bf16.msra.mxu0 %v1529
    %1586 = vmatpush.bf16.msra.mxu0 %v1527
    %1587 = vmatpush.bf16.msra.mxu0 %v1525
    %1588 = vmatpush.bf16.msra.mxu0 %v1523
    %1589 = vmatpush.bf16.msra.mxu0 %v1521
    %1590 = vmatpush.bf16.msra.mxu0 %v1519
    %1591 = vmatmul.bf16.gmra.mxu0 %v1374
    %v1592 = vpop.f32.mrf.mxu0
    %v1593 = vadd.f32 0.0, %v1592
    %v1594 = vpop.f32.mrf.mxu0
    %v1595 = vadd.f32 0.0, %v1594
    %1596 = vmatmul.bf16.gmra.mxu0 %v1376
    %v1597 = vpop.f32.mrf.mxu0
    %v1598 = vadd.f32 0.0, %v1597
    %v1599 = vpop.f32.mrf.mxu0
    %v1600 = vadd.f32 0.0, %v1599
    %1601 = vmatmul.bf16.gmra.mxu0 %v1378
    %v1602 = vpop.f32.mrf.mxu0
    %v1603 = vadd.f32 0.0, %v1602
    %v1604 = vpop.f32.mrf.mxu0
    %v1605 = vadd.f32 0.0, %v1604
    %1606 = vmatmul.bf16.gmra.mxu0 %v1380
    %v1607 = vpop.f32.mrf.mxu0
    %v1608 = vadd.f32 0.0, %v1607
    %v1609 = vpop.f32.mrf.mxu0
    %v1610 = vadd.f32 0.0, %v1609
    %1611 = vmatmul.bf16.gmra.mxu0 %v1382
    %v1612 = vpop.f32.mrf.mxu0
    %v1613 = vadd.f32 0.0, %v1612
    %v1614 = vpop.f32.mrf.mxu0
    %v1615 = vadd.f32 0.0, %v1614
    %1616 = vmatmul.bf16.gmra.mxu0 %v1384
    %v1617 = vpop.f32.mrf.mxu0
    %v1618 = vadd.f32 0.0, %v1617
    %v1619 = vpop.f32.mrf.mxu0
    %v1620 = vadd.f32 0.0, %v1619
    %1621 = vmatmul.bf16.gmra.mxu0 %v1386
    %v1622 = vpop.f32.mrf.mxu0
    %v1623 = vadd.f32 0.0, %v1622
    %v1624 = vpop.f32.mrf.mxu0
    %v1625 = vadd.f32 0.0, %v1624
    %1626 = vmatmul.bf16.gmra.mxu0 %v1388
    %v1627 = vpop.f32.mrf.mxu0
    %v1628 = vadd.f32 0.0, %v1627
    %v1629 = vpop.f32.mrf.mxu0
    %v1630 = vadd.f32 0.0, %v1629
    %1631 = vdwg.mxu0
    %1632 = vmatpush.bf16.msra.mxu0 %v1549
    %1633 = vmatpush.bf16.msra.mxu0 %v1547
    %1634 = vmatpush.bf16.msra.mxu0 %v1545
    %1635 = vmatpush.bf16.msra.mxu0 %v1543
    %1636 = vmatpush.bf16.msra.mxu0 %v1541
    %1637 = vmatpush.bf16.msra.mxu0 %v1539
    %1638 = vmatpush.bf16.msra.mxu0 %v1537
    %1639 = vmatpush.bf16.msra.mxu0 %v1535
    %1640 = vmatmul.bf16.gmra.mxu0 %v1375
    %v1641 = vpop.f32.mrf.mxu0
    %v1642 = vadd.f32 %v1593, %v1641
    %v1643 = vpop.f32.mrf.mxu0
    %v1644 = vadd.f32 %v1595, %v1643
    %1645 = vmatmul.bf16.gmra.mxu0 %v1377
    %v1646 = vpop.f32.mrf.mxu0
    %v1647 = vadd.f32 %v1598, %v1646
    %v1648 = vpop.f32.mrf.mxu0
    %v1649 = vadd.f32 %v1600, %v1648
    %1650 = vmatmul.bf16.gmra.mxu0 %v1379
    %v1651 = vpop.f32.mrf.mxu0
    %v1652 = vadd.f32 %v1603, %v1651
    %v1653 = vpop.f32.mrf.mxu0
    %v1654 = vadd.f32 %v1605, %v1653
    %1655 = vmatmul.bf16.gmra.mxu0 %v1381
    %v1656 = vpop.f32.mrf.mxu0
    %v1657 = vadd.f32 %v1608, %v1656
    %v1658 = vpop.f32.mrf.mxu0
    %v1659 = vadd.f32 %v1610, %v1658
    %1660 = vmatmul.bf16.gmra.mxu0 %v1383
    %v1661 = vpop.f32.mrf.mxu0
    %v1662 = vadd.f32 %v1613, %v1661
    %v1663 = vpop.f32.mrf.mxu0
    %v1664 = vadd.f32 %v1615, %v1663
    %1665 = vmatmul.bf16.gmra.mxu0 %v1385
    %v1666 = vpop.f32.mrf.mxu0
    %v1667 = vadd.f32 %v1618, %v1666
    %v1668 = vpop.f32.mrf.mxu0
    %v1669 = vadd.f32 %v1620, %v1668
    %1670 = vmatmul.bf16.gmra.mxu0 %v1387
    %v1671 = vpop.f32.mrf.mxu0
    %v1672 = vadd.f32 %v1623, %v1671
    %v1673 = vpop.f32.mrf.mxu0
    %v1674 = vadd.f32 %v1625, %v1673
    %1675 = vmatmul.bf16.gmra.mxu0 %v1389
    %v1676 = vpop.f32.mrf.mxu0
    %v1677 = vadd.f32 %v1628, %v1676
    %v1678 = vpop.f32.mrf.mxu0
    %v1679 = vadd.f32 %v1630, %v1678
    %1680 = vdwg.mxu0
    %1681 = vmatpush.bf16.msra.mxu0 %v1534
    %1682 = vmatpush.bf16.msra.mxu0 %v1532
    %1683 = vmatpush.bf16.msra.mxu0 %v1530
    %1684 = vmatpush.bf16.msra.mxu0 %v1528
    %1685 = vmatpush.bf16.msra.mxu0 %v1526
    %1686 = vmatpush.bf16.msra.mxu0 %v1524
    %1687 = vmatpush.bf16.msra.mxu0 %v1522
    %1688 = vmatpush.bf16.msra.mxu0 %v1520
    %1689 = vmatmul.bf16.gmra.mxu0 %v1374
    %v1690 = vpop.f32.mrf.mxu0
    %v1691 = vadd.f32 0.0, %v1690
    %v1692 = vpop.f32.mrf.mxu0
    %v1693 = vadd.f32 0.0, %v1692
    %1694 = vmatmul.bf16.gmra.mxu0 %v1376
    %v1695 = vpop.f32.mrf.mxu0
    %v1696 = vadd.f32 0.0, %v1695
    %v1697 = vpop.f32.mrf.mxu0
    %v1698 = vadd.f32 0.0, %v1697
    %1699 = vmatmul.bf16.gmra.mxu0 %v1378
    %v1700 = vpop.f32.mrf.mxu0
    %v1701 = vadd.f32 0.0, %v1700
    %v1702 = vpop.f32.mrf.mxu0
    %v1703 = vadd.f32 0.0, %v1702
    %1704 = vmatmul.bf16.gmra.mxu0 %v1380
    %v1705 = vpop.f32.mrf.mxu0
    %v1706 = vadd.f32 0.0, %v1705
    %v1707 = vpop.f32.mrf.mxu0
    %v1708 = vadd.f32 0.0, %v1707
    %1709 = vmatmul.bf16.gmra.mxu0 %v1382
    %v1710 = vpop.f32.mrf.mxu0
    %v1711 = vadd.f32 0.0, %v1710
    %v1712 = vpop.f32.mrf.mxu0
    %v1713 = vadd.f32 0.0, %v1712
    %1714 = vmatmul.bf16.gmra.mxu0 %v1384
    %v1715 = vpop.f32.mrf.mxu0
    %v1716 = vadd.f32 0.0, %v1715
    %v1717 = vpop.f32.mrf.mxu0
    %v1718 = vadd.f32 0.0, %v1717
    %1719 = vmatmul.bf16.gmra.mxu0 %v1386
    %v1720 = vpop.f32.mrf.mxu0
    %v1721 = vadd.f32 0.0, %v1720
    %v1722 = vpop.f32.mrf.mxu0
    %v1723 = vadd.f32 0.0, %v1722
    %1724 = vmatmul.bf16.gmra.mxu0 %v1388
    %v1725 = vpop.f32.mrf.mxu0
    %v1726 = vadd.f32 0.0, %v1725
    %v1727 = vpop.f32.mrf.mxu0
    %v1728 = vadd.f32 0.0, %v1727
    %1729 = vdwg.mxu0
    %1730 = vmatpush.bf16.msra.mxu0 %v1550
    %1731 = vmatpush.bf16.msra.mxu0 %v1548
    %1732 = vmatpush.bf16.msra.mxu0 %v1546
    %1733 = vmatpush.bf16.msra.mxu0 %v1544
    %1734 = vmatpush.bf16.msra.mxu0 %v1542
    %1735 = vmatpush.bf16.msra.mxu0 %v1540
    %1736 = vmatpush.bf16.msra.mxu0 %v1538
    %1737 = vmatpush.bf16.msra.mxu0 %v1536
    %1738 = vmatmul.bf16.gmra.mxu0 %v1375
    %v1739 = vpop.f32.mrf.mxu0
    %v1740 = vadd.f32 %v1691, %v1739
    %v1741 = vpop.f32.mrf.mxu0
    %v1742 = vadd.f32 %v1693, %v1741
    %1743 = vmatmul.bf16.gmra.mxu0 %v1377
    %v1744 = vpop.f32.mrf.mxu0
    %v1745 = vadd.f32 %v1696, %v1744
    %v1746 = vpop.f32.mrf.mxu0
    %v1747 = vadd.f32 %v1698, %v1746
    %1748 = vmatmul.bf16.gmra.mxu0 %v1379
    %v1749 = vpop.f32.mrf.mxu0
    %v1750 = vadd.f32 %v1701, %v1749
    %v1751 = vpop.f32.mrf.mxu0
    %v1752 = vadd.f32 %v1703, %v1751
    %1753 = vmatmul.bf16.gmra.mxu0 %v1381
    %v1754 = vpop.f32.mrf.mxu0
    %v1755 = vadd.f32 %v1706, %v1754
    %v1756 = vpop.f32.mrf.mxu0
    %v1757 = vadd.f32 %v1708, %v1756
    %1758 = vmatmul.bf16.gmra.mxu0 %v1383
    %v1759 = vpop.f32.mrf.mxu0
    %v1760 = vadd.f32 %v1711, %v1759
    %v1761 = vpop.f32.mrf.mxu0
    %v1762 = vadd.f32 %v1713, %v1761
    %1763 = vmatmul.bf16.gmra.mxu0 %v1385
    %v1764 = vpop.f32.mrf.mxu0
    %v1765 = vadd.f32 %v1716, %v1764
    %v1766 = vpop.f32.mrf.mxu0
    %v1767 = vadd.f32 %v1718, %v1766
    %1768 = vmatmul.bf16.gmra.mxu0 %v1387
    %v1769 = vpop.f32.mrf.mxu0
    %v1770 = vadd.f32 %v1721, %v1769
    %v1771 = vpop.f32.mrf.mxu0
    %v1772 = vadd.f32 %v1723, %v1771
    %1773 = vmatmul.bf16.gmra.mxu0 %v1389
    %v1774 = vpop.f32.mrf.mxu0
    %v1775 = vadd.f32 %v1726, %v1774
    %v1776 = vpop.f32.mrf.mxu0
    %v1777 = vadd.f32 %v1728, %v1776
    %1778 = vdwg.mxu0
    %v1779 = vadd.f32 %v980, %v1642
    %v1780 = vadd.f32 %v1078, %v1740
    %v1781 = vadd.f32 %v982, %v1644
    %v1782 = vadd.f32 %v1080, %v1742
    %v1783 = vadd.f32 %v985, %v1647
    %v1784 = vadd.f32 %v1083, %v1745
    %v1785 = vadd.f32 %v987, %v1649
    %v1786 = vadd.f32 %v1085, %v1747
    %v1787 = vadd.f32 %v990, %v1652
    %v1788 = vadd.f32 %v1088, %v1750
    %v1789 = vadd.f32 %v992, %v1654
    %v1790 = vadd.f32 %v1090, %v1752
    %v1791 = vadd.f32 %v995, %v1657
    %v1792 = vadd.f32 %v1093, %v1755
    %v1793 = vadd.f32 %v997, %v1659
    %v1794 = vadd.f32 %v1095, %v1757
    %v1795 = vadd.f32 %v1000, %v1662
    %v1796 = vadd.f32 %v1098, %v1760
    %v1797 = vadd.f32 %v1002, %v1664
    %v1798 = vadd.f32 %v1100, %v1762
    %v1799 = vadd.f32 %v1005, %v1667
    %v1800 = vadd.f32 %v1103, %v1765
    %v1801 = vadd.f32 %v1007, %v1669
    %v1802 = vadd.f32 %v1105, %v1767
    %v1803 = vadd.f32 %v1010, %v1672
    %v1804 = vadd.f32 %v1108, %v1770
    %v1805 = vadd.f32 %v1012, %v1674
    %v1806 = vadd.f32 %v1110, %v1772
    %v1807 = vadd.f32 %v1015, %v1677
    %v1808 = vadd.f32 %v1113, %v1775
    %v1809 = vadd.f32 %v1017, %v1679
    %v1810 = vadd.f32 %v1115, %v1777
    %s1811 = scalar_lea.vmem %s0, 32
    %v1812 = vld [vmem:[%s1811] sm:$0xff]
    %v1813 = vld [vmem:[%s1811 + $0x8] sm:$0xff]
    %v1814 = vld [vmem:[%s1811 + $0x20] sm:$0xff]
    %v1815 = vld [vmem:[%s1811 + $0x28] sm:$0xff]
    %v1816 = vld [vmem:[%s1811 + $0x40] sm:$0xff]
    %v1817 = vld [vmem:[%s1811 + $0x48] sm:$0xff]
    %v1818 = vld [vmem:[%s1811 + $0x60] sm:$0xff]
    %v1819 = vld [vmem:[%s1811 + $0x68] sm:$0xff]
    %v1820 = vld [vmem:[%s1811 + $0x80] sm:$0xff]
    %v1821 = vld [vmem:[%s1811 + $0x88] sm:$0xff]
    %v1822 = vld [vmem:[%s1811 + $0xa0] sm:$0xff]
    %v1823 = vld [vmem:[%s1811 + $0xa8] sm:$0xff]
    %v1824 = vld [vmem:[%s1811 + $0xc0] sm:$0xff]
    %v1825 = vld [vmem:[%s1811 + $0xc8] sm:$0xff]
    %v1826 = vld [vmem:[%s1811 + $0xe0] sm:$0xff]
    %v1827 = vld [vmem:[%s1811 + $0xe8] sm:$0xff]
    %v1828 = vld [vmem:[%s1811 + $0x140] sm:$0xff]
    %v1829 = vld [vmem:[%s1811 + $0x148] sm:$0xff]
    %v1830 = vld [vmem:[%s1811 + $0x160] sm:$0xff]
    %v1831 = vld [vmem:[%s1811 + $0x168] sm:$0xff]
    %v1832 = vld [vmem:[%s1811 + $0x180] sm:$0xff]
    %v1833 = vld [vmem:[%s1811 + $0x188] sm:$0xff]
    %v1834 = vld [vmem:[%s1811 + $0x1a0] sm:$0xff]
    %v1835 = vld [vmem:[%s1811 + $0x1a8] sm:$0xff]
    %v1836 = vld [vmem:[%s1811 + $0x1c0] sm:$0xff]
    %v1837 = vld [vmem:[%s1811 + $0x1c8] sm:$0xff]
    %v1838 = vld [vmem:[%s1811 + $0x1e0] sm:$0xff]
    %v1839 = vld [vmem:[%s1811 + $0x1e8] sm:$0xff]
    %v1840 = vld [vmem:[%s1811 + $0x200] sm:$0xff]
    %v1841 = vld [vmem:[%s1811 + $0x208] sm:$0xff]
    %v1842 = vld [vmem:[%s1811 + $0x220] sm:$0xff]
    %v1843 = vld [vmem:[%s1811 + $0x228] sm:$0xff]
    %v1844 = vpack.c.bf16 %v1814, %v1812
    %v1845 = vpack.c.bf16 %v1815, %v1813
    %v1846 = vpack.c.bf16 %v1818, %v1816
    %v1847 = vpack.c.bf16 %v1819, %v1817
    %v1848 = vpack.c.bf16 %v1822, %v1820
    %v1849 = vpack.c.bf16 %v1823, %v1821
    %v1850 = vpack.c.bf16 %v1826, %v1824
    %v1851 = vpack.c.bf16 %v1827, %v1825
    %v1852 = vpack.c.bf16 %v1830, %v1828
    %v1853 = vpack.c.bf16 %v1831, %v1829
    %v1854 = vpack.c.bf16 %v1834, %v1832
    %v1855 = vpack.c.bf16 %v1835, %v1833
    %v1856 = vpack.c.bf16 %v1838, %v1836
    %v1857 = vpack.c.bf16 %v1839, %v1837
    %v1858 = vpack.c.bf16 %v1842, %v1840
    %v1859 = vpack.c.bf16 %v1843, %v1841
    %s1860 = scalar_lea.vmem %s1, 768
    %v1861 = vld [vmem:[%s1860] sm:$0xff]
    %v1862 = vld [vmem:[%s1860 + $0x8] sm:$0xff]
    %v1863 = vld [vmem:[%s1860 + $0x10] sm:$0xff]
    %v1864 = vld [vmem:[%s1860 + $0x18] sm:$0xff]
    %v1865 = vld [vmem:[%s1860 + $0x20] sm:$0xff]
    %v1866 = vld [vmem:[%s1860 + $0x28] sm:$0xff]
    %v1867 = vld [vmem:[%s1860 + $0x30] sm:$0xff]
    %v1868 = vld [vmem:[%s1860 + $0x38] sm:$0xff]
    %v1869 = vld [vmem:[%s1860 + $0x40] sm:$0xff]
    %v1870 = vld [vmem:[%s1860 + $0x48] sm:$0xff]
    %v1871 = vld [vmem:[%s1860 + $0x50] sm:$0xff]
    %v1872 = vld [vmem:[%s1860 + $0x58] sm:$0xff]
    %v1873 = vld [vmem:[%s1860 + $0x60] sm:$0xff]
    %v1874 = vld [vmem:[%s1860 + $0x68] sm:$0xff]
    %v1875 = vld [vmem:[%s1860 + $0x70] sm:$0xff]
    %v1876 = vld [vmem:[%s1860 + $0x78] sm:$0xff]
    %v1877 = vld [vmem:[%s1860 + $0x80] sm:$0xff]
    %v1878 = vld [vmem:[%s1860 + $0x88] sm:$0xff]
    %v1879 = vld [vmem:[%s1860 + $0x90] sm:$0xff]
    %v1880 = vld [vmem:[%s1860 + $0x98] sm:$0xff]
    %v1881 = vld [vmem:[%s1860 + $0xa0] sm:$0xff]
    %v1882 = vld [vmem:[%s1860 + $0xa8] sm:$0xff]
    %v1883 = vld [vmem:[%s1860 + $0xb0] sm:$0xff]
    %v1884 = vld [vmem:[%s1860 + $0xb8] sm:$0xff]
    %v1885 = vld [vmem:[%s1860 + $0xc0] sm:$0xff]
    %v1886 = vld [vmem:[%s1860 + $0xc8] sm:$0xff]
    %v1887 = vld [vmem:[%s1860 + $0xd0] sm:$0xff]
    %v1888 = vld [vmem:[%s1860 + $0xd8] sm:$0xff]
    %v1889 = vld [vmem:[%s1860 + $0xe0] sm:$0xff]
    %v1890 = vld [vmem:[%s1860 + $0xe8] sm:$0xff]
    %v1891 = vld [vmem:[%s1860 + $0xf0] sm:$0xff]
    %v1892 = vld [vmem:[%s1860 + $0xf8] sm:$0xff]
    %v1925 = vunpack.c.l.b16 %v1861
    %v1926 = vunpack.c.h.b16 %v1861
    %v1927 = vunpack.c.l.b16 %v1862
    %v1928 = vunpack.c.h.b16 %v1862
    %v1929 = vunpack.c.l.b16 %v1863
    %v1930 = vunpack.c.h.b16 %v1863
    %v1931 = vunpack.c.l.b16 %v1864
    %v1932 = vunpack.c.h.b16 %v1864
    %v1933 = vunpack.c.l.b16 %v1865
    %v1934 = vunpack.c.h.b16 %v1865
    %v1935 = vunpack.c.l.b16 %v1866
    %v1936 = vunpack.c.h.b16 %v1866
    %v1937 = vunpack.c.l.b16 %v1867
    %v1938 = vunpack.c.h.b16 %v1867
    %v1939 = vunpack.c.l.b16 %v1868
    %v1940 = vunpack.c.h.b16 %v1868
    %v1941 = vunpack.c.l.b16 %v1869
    %v1942 = vunpack.c.h.b16 %v1869
    %v1943 = vunpack.c.l.b16 %v1870
    %v1944 = vunpack.c.h.b16 %v1870
    %v1945 = vunpack.c.l.b16 %v1871
    %v1946 = vunpack.c.h.b16 %v1871
    %v1947 = vunpack.c.l.b16 %v1872
    %v1948 = vunpack.c.h.b16 %v1872
    %v1949 = vunpack.c.l.b16 %v1873
    %v1950 = vunpack.c.h.b16 %v1873
    %v1951 = vunpack.c.l.b16 %v1874
    %v1952 = vunpack.c.h.b16 %v1874
    %v1953 = vunpack.c.l.b16 %v1875
    %v1954 = vunpack.c.h.b16 %v1875
    %v1955 = vunpack.c.l.b16 %v1876
    %v1956 = vunpack.c.h.b16 %v1876
    %v1957 = vunpack.c.l.b16 %v1877
    %v1958 = vunpack.c.h.b16 %v1877
    %v1959 = vunpack.c.l.b16 %v1878
    %v1960 = vunpack.c.h.b16 %v1878
    %v1961 = vunpack.c.l.b16 %v1879
    %v1962 = vunpack.c.h.b16 %v1879
    %v1963 = vunpack.c.l.b16 %v1880
    %v1964 = vunpack.c.h.b16 %v1880
    %v1965 = vunpack.c.l.b16 %v1881
    %v1966 = vunpack.c.h.b16 %v1881
    %v1967 = vunpack.c.l.b16 %v1882
    %v1968 = vunpack.c.h.b16 %v1882
    %v1969 = vunpack.c.l.b16 %v1883
    %v1970 = vunpack.c.h.b16 %v1883
    %v1971 = vunpack.c.l.b16 %v1884
    %v1972 = vunpack.c.h.b16 %v1884
    %v1973 = vunpack.c.l.b16 %v1885
    %v1974 = vunpack.c.h.b16 %v1885
    %v1975 = vunpack.c.l.b16 %v1886
    %v1976 = vunpack.c.h.b16 %v1886
    %v1977 = vunpack.c.l.b16 %v1887
    %v1978 = vunpack.c.h.b16 %v1887
    %v1979 = vunpack.c.l.b16 %v1888
    %v1980 = vunpack.c.h.b16 %v1888
    %v1981 = vunpack.c.l.b16 %v1889
    %v1982 = vunpack.c.h.b16 %v1889
    %v1983 = vunpack.c.l.b16 %v1890
    %v1984 = vunpack.c.h.b16 %v1890
    %v1985 = vunpack.c.l.b16 %v1891
    %v1986 = vunpack.c.h.b16 %v1891
    %v1987 = vunpack.c.l.b16 %v1892
    %v1988 = vunpack.c.h.b16 %v1892
    %v1989 = vpack.c.b16 %v1927, %v1925
    %v1990 = vpack.c.b16 %v1928, %v1926
    %v1991 = vpack.c.b16 %v1931, %v1929
    %v1992 = vpack.c.b16 %v1932, %v1930
    %v1993 = vpack.c.b16 %v1935, %v1933
    %v1994 = vpack.c.b16 %v1936, %v1934
    %v1995 = vpack.c.b16 %v1939, %v1937
    %v1996 = vpack.c.b16 %v1940, %v1938
    %v1997 = vpack.c.b16 %v1943, %v1941
    %v1998 = vpack.c.b16 %v1944, %v1942
    %v1999 = vpack.c.b16 %v1947, %v1945
    %v2000 = vpack.c.b16 %v1948, %v1946
    %v2001 = vpack.c.b16 %v1951, %v1949
    %v2002 = vpack.c.b16 %v1952, %v1950
    %v2003 = vpack.c.b16 %v1955, %v1953
    %v2004 = vpack.c.b16 %v1956, %v1954
    %v2005 = vpack.c.b16 %v1959, %v1957
    %v2006 = vpack.c.b16 %v1960, %v1958
    %v2007 = vpack.c.b16 %v1963, %v1961
    %v2008 = vpack.c.b16 %v1964, %v1962
    %v2009 = vpack.c.b16 %v1967, %v1965
    %v2010 = vpack.c.b16 %v1968, %v1966
    %v2011 = vpack.c.b16 %v1971, %v1969
    %v2012 = vpack.c.b16 %v1972, %v1970
    %v2013 = vpack.c.b16 %v1975, %v1973
    %v2014 = vpack.c.b16 %v1976, %v1974
    %v2015 = vpack.c.b16 %v1979, %v1977
    %v2016 = vpack.c.b16 %v1980, %v1978
    %v2017 = vpack.c.b16 %v1983, %v1981
    %v2018 = vpack.c.b16 %v1984, %v1982
    %v2019 = vpack.c.b16 %v1987, %v1985
    %v2020 = vpack.c.b16 %v1988, %v1986
    %2053 = vmatpush.bf16.msra.mxu0 %v2003
    %2054 = vmatpush.bf16.msra.mxu0 %v2001
    %2055 = vmatpush.bf16.msra.mxu0 %v1999
    %2056 = vmatpush.bf16.msra.mxu0 %v1997
    %2057 = vmatpush.bf16.msra.mxu0 %v1995
    %2058 = vmatpush.bf16.msra.mxu0 %v1993
    %2059 = vmatpush.bf16.msra.mxu0 %v1991
    %2060 = vmatpush.bf16.msra.mxu0 %v1989
    %2061 = vmatmul.bf16.gmra.mxu0 %v1844
    %v2062 = vpop.f32.mrf.mxu0
    %v2063 = vadd.f32 0.0, %v2062
    %v2064 = vpop.f32.mrf.mxu0
    %v2065 = vadd.f32 0.0, %v2064
    %2066 = vmatmul.bf16.gmra.mxu0 %v1846
    %v2067 = vpop.f32.mrf.mxu0
    %v2068 = vadd.f32 0.0, %v2067
    %v2069 = vpop.f32.mrf.mxu0
    %v2070 = vadd.f32 0.0, %v2069
    %2071 = vmatmul.bf16.gmra.mxu0 %v1848
    %v2072 = vpop.f32.mrf.mxu0
    %v2073 = vadd.f32 0.0, %v2072
    %v2074 = vpop.f32.mrf.mxu0
    %v2075 = vadd.f32 0.0, %v2074
    %2076 = vmatmul.bf16.gmra.mxu0 %v1850
    %v2077 = vpop.f32.mrf.mxu0
    %v2078 = vadd.f32 0.0, %v2077
    %v2079 = vpop.f32.mrf.mxu0
    %v2080 = vadd.f32 0.0, %v2079
    %2081 = vmatmul.bf16.gmra.mxu0 %v1852
    %v2082 = vpop.f32.mrf.mxu0
    %v2083 = vadd.f32 0.0, %v2082
    %v2084 = vpop.f32.mrf.mxu0
    %v2085 = vadd.f32 0.0, %v2084
    %2086 = vmatmul.bf16.gmra.mxu0 %v1854
    %v2087 = vpop.f32.mrf.mxu0
    %v2088 = vadd.f32 0.0, %v2087
    %v2089 = vpop.f32.mrf.mxu0
    %v2090 = vadd.f32 0.0, %v2089
    %2091 = vmatmul.bf16.gmra.mxu0 %v1856
    %v2092 = vpop.f32.mrf.mxu0
    %v2093 = vadd.f32 0.0, %v2092
    %v2094 = vpop.f32.mrf.mxu0
    %v2095 = vadd.f32 0.0, %v2094
    %2096 = vmatmul.bf16.gmra.mxu0 %v1858
    %v2097 = vpop.f32.mrf.mxu0
    %v2098 = vadd.f32 0.0, %v2097
    %v2099 = vpop.f32.mrf.mxu0
    %v2100 = vadd.f32 0.0, %v2099
    %2101 = vdwg.mxu0
    %2102 = vmatpush.bf16.msra.mxu0 %v2019
    %2103 = vmatpush.bf16.msra.mxu0 %v2017
    %2104 = vmatpush.bf16.msra.mxu0 %v2015
    %2105 = vmatpush.bf16.msra.mxu0 %v2013
    %2106 = vmatpush.bf16.msra.mxu0 %v2011
    %2107 = vmatpush.bf16.msra.mxu0 %v2009
    %2108 = vmatpush.bf16.msra.mxu0 %v2007
    %2109 = vmatpush.bf16.msra.mxu0 %v2005
    %2110 = vmatmul.bf16.gmra.mxu0 %v1845
    %v2111 = vpop.f32.mrf.mxu0
    %v2112 = vadd.f32 %v2063, %v2111
    %v2113 = vpop.f32.mrf.mxu0
    %v2114 = vadd.f32 %v2065, %v2113
    %2115 = vmatmul.bf16.gmra.mxu0 %v1847
    %v2116 = vpop.f32.mrf.mxu0
    %v2117 = vadd.f32 %v2068, %v2116
    %v2118 = vpop.f32.mrf.mxu0
    %v2119 = vadd.f32 %v2070, %v2118
    %2120 = vmatmul.bf16.gmra.mxu0 %v1849
    %v2121 = vpop.f32.mrf.mxu0
    %v2122 = vadd.f32 %v2073, %v2121
    %v2123 = vpop.f32.mrf.mxu0
    %v2124 = vadd.f32 %v2075, %v2123
    %2125 = vmatmul.bf16.gmra.mxu0 %v1851
    %v2126 = vpop.f32.mrf.mxu0
    %v2127 = vadd.f32 %v2078, %v2126
    %v2128 = vpop.f32.mrf.mxu0
    %v2129 = vadd.f32 %v2080, %v2128
    %2130 = vmatmul.bf16.gmra.mxu0 %v1853
    %v2131 = vpop.f32.mrf.mxu0
    %v2132 = vadd.f32 %v2083, %v2131
    %v2133 = vpop.f32.mrf.mxu0
    %v2134 = vadd.f32 %v2085, %v2133
    %2135 = vmatmul.bf16.gmra.mxu0 %v1855
    %v2136 = vpop.f32.mrf.mxu0
    %v2137 = vadd.f32 %v2088, %v2136
    %v2138 = vpop.f32.mrf.mxu0
    %v2139 = vadd.f32 %v2090, %v2138
    %2140 = vmatmul.bf16.gmra.mxu0 %v1857
    %v2141 = vpop.f32.mrf.mxu0
    %v2142 = vadd.f32 %v2093, %v2141
    %v2143 = vpop.f32.mrf.mxu0
    %v2144 = vadd.f32 %v2095, %v2143
    %2145 = vmatmul.bf16.gmra.mxu0 %v1859
    %v2146 = vpop.f32.mrf.mxu0
    %v2147 = vadd.f32 %v2098, %v2146
    %v2148 = vpop.f32.mrf.mxu0
    %v2149 = vadd.f32 %v2100, %v2148
    %2150 = vdwg.mxu0
    %2151 = vmatpush.bf16.msra.mxu0 %v2004
    %2152 = vmatpush.bf16.msra.mxu0 %v2002
    %2153 = vmatpush.bf16.msra.mxu0 %v2000
    %2154 = vmatpush.bf16.msra.mxu0 %v1998
    %2155 = vmatpush.bf16.msra.mxu0 %v1996
    %2156 = vmatpush.bf16.msra.mxu0 %v1994
    %2157 = vmatpush.bf16.msra.mxu0 %v1992
    %2158 = vmatpush.bf16.msra.mxu0 %v1990
    %2159 = vmatmul.bf16.gmra.mxu0 %v1844
    %v2160 = vpop.f32.mrf.mxu0
    %v2161 = vadd.f32 0.0, %v2160
    %v2162 = vpop.f32.mrf.mxu0
    %v2163 = vadd.f32 0.0, %v2162
    %2164 = vmatmul.bf16.gmra.mxu0 %v1846
    %v2165 = vpop.f32.mrf.mxu0
    %v2166 = vadd.f32 0.0, %v2165
    %v2167 = vpop.f32.mrf.mxu0
    %v2168 = vadd.f32 0.0, %v2167
    %2169 = vmatmul.bf16.gmra.mxu0 %v1848
    %v2170 = vpop.f32.mrf.mxu0
    %v2171 = vadd.f32 0.0, %v2170
    %v2172 = vpop.f32.mrf.mxu0
    %v2173 = vadd.f32 0.0, %v2172
    %2174 = vmatmul.bf16.gmra.mxu0 %v1850
    %v2175 = vpop.f32.mrf.mxu0
    %v2176 = vadd.f32 0.0, %v2175
    %v2177 = vpop.f32.mrf.mxu0
    %v2178 = vadd.f32 0.0, %v2177
    %2179 = vmatmul.bf16.gmra.mxu0 %v1852
    %v2180 = vpop.f32.mrf.mxu0
    %v2181 = vadd.f32 0.0, %v2180
    %v2182 = vpop.f32.mrf.mxu0
    %v2183 = vadd.f32 0.0, %v2182
    %2184 = vmatmul.bf16.gmra.mxu0 %v1854
    %v2185 = vpop.f32.mrf.mxu0
    %v2186 = vadd.f32 0.0, %v2185
    %v2187 = vpop.f32.mrf.mxu0
    %v2188 = vadd.f32 0.0, %v2187
    %2189 = vmatmul.bf16.gmra.mxu0 %v1856
    %v2190 = vpop.f32.mrf.mxu0
    %v2191 = vadd.f32 0.0, %v2190
    %v2192 = vpop.f32.mrf.mxu0
    %v2193 = vadd.f32 0.0, %v2192
    %2194 = vmatmul.bf16.gmra.mxu0 %v1858
    %v2195 = vpop.f32.mrf.mxu0
    %v2196 = vadd.f32 0.0, %v2195
    %v2197 = vpop.f32.mrf.mxu0
    %v2198 = vadd.f32 0.0, %v2197
    %2199 = vdwg.mxu0
    %2200 = vmatpush.bf16.msra.mxu0 %v2020
    %2201 = vmatpush.bf16.msra.mxu0 %v2018
    %2202 = vmatpush.bf16.msra.mxu0 %v2016
    %2203 = vmatpush.bf16.msra.mxu0 %v2014
    %2204 = vmatpush.bf16.msra.mxu0 %v2012
    %2205 = vmatpush.bf16.msra.mxu0 %v2010
    %2206 = vmatpush.bf16.msra.mxu0 %v2008
    %2207 = vmatpush.bf16.msra.mxu0 %v2006
    %2208 = vmatmul.bf16.gmra.mxu0 %v1845
    %v2209 = vpop.f32.mrf.mxu0
    %v2210 = vadd.f32 %v2161, %v2209
    %v2211 = vpop.f32.mrf.mxu0
    %v2212 = vadd.f32 %v2163, %v2211
    %2213 = vmatmul.bf16.gmra.mxu0 %v1847
    %v2214 = vpop.f32.mrf.mxu0
    %v2215 = vadd.f32 %v2166, %v2214
    %v2216 = vpop.f32.mrf.mxu0
    %v2217 = vadd.f32 %v2168, %v2216
    %2218 = vmatmul.bf16.gmra.mxu0 %v1849
    %v2219 = vpop.f32.mrf.mxu0
    %v2220 = vadd.f32 %v2171, %v2219
    %v2221 = vpop.f32.mrf.mxu0
    %v2222 = vadd.f32 %v2173, %v2221
    %2223 = vmatmul.bf16.gmra.mxu0 %v1851
    %v2224 = vpop.f32.mrf.mxu0
    %v2225 = vadd.f32 %v2176, %v2224
    %v2226 = vpop.f32.mrf.mxu0
    %v2227 = vadd.f32 %v2178, %v2226
    %2228 = vmatmul.bf16.gmra.mxu0 %v1853
    %v2229 = vpop.f32.mrf.mxu0
    %v2230 = vadd.f32 %v2181, %v2229
    %v2231 = vpop.f32.mrf.mxu0
    %v2232 = vadd.f32 %v2183, %v2231
    %2233 = vmatmul.bf16.gmra.mxu0 %v1855
    %v2234 = vpop.f32.mrf.mxu0
    %v2235 = vadd.f32 %v2186, %v2234
    %v2236 = vpop.f32.mrf.mxu0
    %v2237 = vadd.f32 %v2188, %v2236
    %2238 = vmatmul.bf16.gmra.mxu0 %v1857
    %v2239 = vpop.f32.mrf.mxu0
    %v2240 = vadd.f32 %v2191, %v2239
    %v2241 = vpop.f32.mrf.mxu0
    %v2242 = vadd.f32 %v2193, %v2241
    %2243 = vmatmul.bf16.gmra.mxu0 %v1859
    %v2244 = vpop.f32.mrf.mxu0
    %v2245 = vadd.f32 %v2196, %v2244
    %v2246 = vpop.f32.mrf.mxu0
    %v2247 = vadd.f32 %v2198, %v2246
    %2248 = vdwg.mxu0
    %v2249 = vadd.f32 %v1779, %v2112
    %v2250 = vadd.f32 %v1780, %v2210
    %v2251 = vadd.f32 %v1781, %v2114
    %v2252 = vadd.f32 %v1782, %v2212
    %v2253 = vadd.f32 %v1783, %v2117
    %v2254 = vadd.f32 %v1784, %v2215
    %v2255 = vadd.f32 %v1785, %v2119
    %v2256 = vadd.f32 %v1786, %v2217
    %v2257 = vadd.f32 %v1787, %v2122
    %v2258 = vadd.f32 %v1788, %v2220
    %v2259 = vadd.f32 %v1789, %v2124
    %v2260 = vadd.f32 %v1790, %v2222
    %v2261 = vadd.f32 %v1791, %v2127
    %v2262 = vadd.f32 %v1792, %v2225
    %v2263 = vadd.f32 %v1793, %v2129
    %v2264 = vadd.f32 %v1794, %v2227
    %v2265 = vadd.f32 %v1795, %v2132
    %v2266 = vadd.f32 %v1796, %v2230
    %v2267 = vadd.f32 %v1797, %v2134
    %v2268 = vadd.f32 %v1798, %v2232
    %v2269 = vadd.f32 %v1799, %v2137
    %v2270 = vadd.f32 %v1800, %v2235
    %v2271 = vadd.f32 %v1801, %v2139
    %v2272 = vadd.f32 %v1802, %v2237
    %v2273 = vadd.f32 %v1803, %v2142
    %v2274 = vadd.f32 %v1804, %v2240
    %v2275 = vadd.f32 %v1805, %v2144
    %v2276 = vadd.f32 %v1806, %v2242
    %v2277 = vadd.f32 %v1807, %v2147
    %v2278 = vadd.f32 %v1808, %v2245
    %v2279 = vadd.f32 %v1809, %v2149
    %v2280 = vadd.f32 %v1810, %v2247
    %v2281 = vld [vmem:[%s1811] sm:$0xfe]
    %v2282 = vld [vmem:[%s1811 + $0x8] sm:$0xfe]
    %v2283 = vld [vmem:[%s1811 + $0x10] sm:$0x1]
    %v2284 = vld [vmem:[%s1811 + $0x18] sm:$0x1]
    %v2285 = vld [vmem:[%s1811 + $0x20] sm:$0xfe]
    %v2286 = vld [vmem:[%s1811 + $0x28] sm:$0xfe]
    %v2287 = vld [vmem:[%s1811 + $0x30] sm:$0x1]
    %v2288 = vld [vmem:[%s1811 + $0x38] sm:$0x1]
    %v2289 = vld [vmem:[%s1811 + $0x40] sm:$0xfe]
    %v2290 = vld [vmem:[%s1811 + $0x48] sm:$0xfe]
    %v2291 = vld [vmem:[%s1811 + $0x50] sm:$0x1]
    %v2292 = vld [vmem:[%s1811 + $0x58] sm:$0x1]
    %v2293 = vld [vmem:[%s1811 + $0x60] sm:$0xfe]
    %v2294 = vld [vmem:[%s1811 + $0x68] sm:$0xfe]
    %v2295 = vld [vmem:[%s1811 + $0x70] sm:$0x1]
    %v2296 = vld [vmem:[%s1811 + $0x78] sm:$0x1]
    %v2297 = vld [vmem:[%s1811 + $0x80] sm:$0xfe]
    %v2298 = vld [vmem:[%s1811 + $0x88] sm:$0xfe]
    %v2299 = vld [vmem:[%s1811 + $0x90] sm:$0x1]
    %v2300 = vld [vmem:[%s1811 + $0x98] sm:$0x1]
    %v2301 = vld [vmem:[%s1811 + $0xa0] sm:$0xfe]
    %v2302 = vld [vmem:[%s1811 + $0xa8] sm:$0xfe]
    %v2303 = vld [vmem:[%s1811 + $0xb0] sm:$0x1]
    %v2304 = vld [vmem:[%s1811 + $0xb8] sm:$0x1]
    %v2305 = vld [vmem:[%s1811 + $0xc0] sm:$0xfe]
    %v2306 = vld [vmem:[%s1811 + $0xc8] sm:$0xfe]
    %v2307 = vld [vmem:[%s1811 + $0xd0] sm:$0x1]
    %v2308 = vld [vmem:[%s1811 + $0xd8] sm:$0x1]
    %v2309 = vld [vmem:[%s1811 + $0xe0] sm:$0xfe]
    %v2310 = vld [vmem:[%s1811 + $0xe8] sm:$0xfe]
    %v2311 = vld [vmem:[%s1811 + $0xf0] sm:$0x1]
    %v2312 = vld [vmem:[%s1811 + $0xf8] sm:$0x1]
    %v2313 = vld [vmem:[%s1811 + $0x140] sm:$0xfe]
    %v2314 = vld [vmem:[%s1811 + $0x148] sm:$0xfe]
    %v2315 = vld [vmem:[%s1811 + $0x150] sm:$0x1]
    %v2316 = vld [vmem:[%s1811 + $0x158] sm:$0x1]
    %v2317 = vld [vmem:[%s1811 + $0x160] sm:$0xfe]
    %v2318 = vld [vmem:[%s1811 + $0x168] sm:$0xfe]
    %v2319 = vld [vmem:[%s1811 + $0x170] sm:$0x1]
    %v2320 = vld [vmem:[%s1811 + $0x178] sm:$0x1]
    %v2321 = vld [vmem:[%s1811 + $0x180] sm:$0xfe]
    %v2322 = vld [vmem:[%s1811 + $0x188] sm:$0xfe]
    %v2323 = vld [vmem:[%s1811 + $0x190] sm:$0x1]
    %v2324 = vld [vmem:[%s1811 + $0x198] sm:$0x1]
    %v2325 = vld [vmem:[%s1811 + $0x1a0] sm:$0xfe]
    %v2326 = vld [vmem:[%s1811 + $0x1a8] sm:$0xfe]
    %v2327 = vld [vmem:[%s1811 + $0x1b0] sm:$0x1]
    %v2328 = vld [vmem:[%s1811 + $0x1b8] sm:$0x1]
    %v2329 = vld [vmem:[%s1811 + $0x1c0] sm:$0xfe]
    %v2330 = vld [vmem:[%s1811 + $0x1c8] sm:$0xfe]
    %v2331 = vld [vmem:[%s1811 + $0x1d0] sm:$0x1]
    %v2332 = vld [vmem:[%s1811 + $0x1d8] sm:$0x1]
    %v2333 = vld [vmem:[%s1811 + $0x1e0] sm:$0xfe]
    %v2334 = vld [vmem:[%s1811 + $0x1e8] sm:$0xfe]
    %v2335 = vld [vmem:[%s1811 + $0x1f0] sm:$0x1]
    %v2336 = vld [vmem:[%s1811 + $0x1f8] sm:$0x1]
    %v2337 = vld [vmem:[%s1811 + $0x200] sm:$0xfe]
    %v2338 = vld [vmem:[%s1811 + $0x208] sm:$0xfe]
    %v2339 = vld [vmem:[%s1811 + $0x210] sm:$0x1]
    %v2340 = vld [vmem:[%s1811 + $0x218] sm:$0x1]
    %v2341 = vld [vmem:[%s1811 + $0x220] sm:$0xfe]
    %v2342 = vld [vmem:[%s1811 + $0x228] sm:$0xfe]
    %v2343 = vld [vmem:[%s1811 + $0x230] sm:$0x1]
    %v2344 = vld [vmem:[%s1811 + $0x238] sm:$0x1]
    %v2409 = vrot.slane %v2281, 1
    %v2410 = vrot.slane %v2283, 1
    %v2411 = vsel %vm227, %v2409, %v2410
    %v2412 = vrot.slane %v2282, 1
    %v2413 = vrot.slane %v2284, 1
    %v2414 = vsel %vm227, %v2412, %v2413
    %v2415 = vrot.slane %v2285, 1
    %v2416 = vrot.slane %v2287, 1
    %v2417 = vsel %vm227, %v2415, %v2416
    %v2418 = vrot.slane %v2286, 1
    %v2419 = vrot.slane %v2288, 1
    %v2420 = vsel %vm227, %v2418, %v2419
    %v2421 = vrot.slane %v2289, 1
    %v2422 = vrot.slane %v2291, 1
    %v2423 = vsel %vm227, %v2421, %v2422
    %v2424 = vrot.slane %v2290, 1
    %v2425 = vrot.slane %v2292, 1
    %v2426 = vsel %vm227, %v2424, %v2425
    %v2427 = vrot.slane %v2293, 1
    %v2428 = vrot.slane %v2295, 1
    %v2429 = vsel %vm227, %v2427, %v2428
    %v2430 = vrot.slane %v2294, 1
    %v2431 = vrot.slane %v2296, 1
    %v2432 = vsel %vm227, %v2430, %v2431
    %v2433 = vrot.slane %v2297, 1
    %v2434 = vrot.slane %v2299, 1
    %v2435 = vsel %vm227, %v2433, %v2434
    %v2436 = vrot.slane %v2298, 1
    %v2437 = vrot.slane %v2300, 1
    %v2438 = vsel %vm227, %v2436, %v2437
    %v2439 = vrot.slane %v2301, 1
    %v2440 = vrot.slane %v2303, 1
    %v2441 = vsel %vm227, %v2439, %v2440
    %v2442 = vrot.slane %v2302, 1
    %v2443 = vrot.slane %v2304, 1
    %v2444 = vsel %vm227, %v2442, %v2443
    %v2445 = vrot.slane %v2305, 1
    %v2446 = vrot.slane %v2307, 1
    %v2447 = vsel %vm227, %v2445, %v2446
    %v2448 = vrot.slane %v2306, 1
    %v2449 = vrot.slane %v2308, 1
    %v2450 = vsel %vm227, %v2448, %v2449
    %v2451 = vrot.slane %v2309, 1
    %v2452 = vrot.slane %v2311, 1
    %v2453 = vsel %vm227, %v2451, %v2452
    %v2454 = vrot.slane %v2310, 1
    %v2455 = vrot.slane %v2312, 1
    %v2456 = vsel %vm227, %v2454, %v2455
    %v2457 = vrot.slane %v2313, 1
    %v2458 = vrot.slane %v2315, 1
    %v2459 = vsel %vm227, %v2457, %v2458
    %v2460 = vrot.slane %v2314, 1
    %v2461 = vrot.slane %v2316, 1
    %v2462 = vsel %vm227, %v2460, %v2461
    %v2463 = vrot.slane %v2317, 1
    %v2464 = vrot.slane %v2319, 1
    %v2465 = vsel %vm227, %v2463, %v2464
    %v2466 = vrot.slane %v2318, 1
    %v2467 = vrot.slane %v2320, 1
    %v2468 = vsel %vm227, %v2466, %v2467
    %v2469 = vrot.slane %v2321, 1
    %v2470 = vrot.slane %v2323, 1
    %v2471 = vsel %vm227, %v2469, %v2470
    %v2472 = vrot.slane %v2322, 1
    %v2473 = vrot.slane %v2324, 1
    %v2474 = vsel %vm227, %v2472, %v2473
    %v2475 = vrot.slane %v2325, 1
    %v2476 = vrot.slane %v2327, 1
    %v2477 = vsel %vm227, %v2475, %v2476
    %v2478 = vrot.slane %v2326, 1
    %v2479 = vrot.slane %v2328, 1
    %v2480 = vsel %vm227, %v2478, %v2479
    %v2481 = vrot.slane %v2329, 1
    %v2482 = vrot.slane %v2331, 1
    %v2483 = vsel %vm227, %v2481, %v2482
    %v2484 = vrot.slane %v2330, 1
    %v2485 = vrot.slane %v2332, 1
    %v2486 = vsel %vm227, %v2484, %v2485
    %v2487 = vrot.slane %v2333, 1
    %v2488 = vrot.slane %v2335, 1
    %v2489 = vsel %vm227, %v2487, %v2488
    %v2490 = vrot.slane %v2334, 1
    %v2491 = vrot.slane %v2336, 1
    %v2492 = vsel %vm227, %v2490, %v2491
    %v2493 = vrot.slane %v2337, 1
    %v2494 = vrot.slane %v2339, 1
    %v2495 = vsel %vm227, %v2493, %v2494
    %v2496 = vrot.slane %v2338, 1
    %v2497 = vrot.slane %v2340, 1
    %v2498 = vsel %vm227, %v2496, %v2497
    %v2499 = vrot.slane %v2341, 1
    %v2500 = vrot.slane %v2343, 1
    %v2501 = vsel %vm227, %v2499, %v2500
    %v2502 = vrot.slane %v2342, 1
    %v2503 = vrot.slane %v2344, 1
    %v2504 = vsel %vm227, %v2502, %v2503
    %v2537 = vpack.c.bf16 %v2417, %v2411
    %v2538 = vpack.c.bf16 %v2420, %v2414
    %v2539 = vpack.c.bf16 %v2429, %v2423
    %v2540 = vpack.c.bf16 %v2432, %v2426
    %v2541 = vpack.c.bf16 %v2441, %v2435
    %v2542 = vpack.c.bf16 %v2444, %v2438
    %v2543 = vpack.c.bf16 %v2453, %v2447
    %v2544 = vpack.c.bf16 %v2456, %v2450
    %v2545 = vpack.c.bf16 %v2465, %v2459
    %v2546 = vpack.c.bf16 %v2468, %v2462
    %v2547 = vpack.c.bf16 %v2477, %v2471
    %v2548 = vpack.c.bf16 %v2480, %v2474
    %v2549 = vpack.c.bf16 %v2489, %v2483
    %v2550 = vpack.c.bf16 %v2492, %v2486
    %v2551 = vpack.c.bf16 %v2501, %v2495
    %v2552 = vpack.c.bf16 %v2504, %v2498
    %s2553 = scalar_lea.vmem %s1, 1024
    %v2554 = vld [vmem:[%s2553] sm:$0xff]
    %v2555 = vld [vmem:[%s2553 + $0x8] sm:$0xff]
    %v2556 = vld [vmem:[%s2553 + $0x10] sm:$0xff]
    %v2557 = vld [vmem:[%s2553 + $0x18] sm:$0xff]
    %v2558 = vld [vmem:[%s2553 + $0x20] sm:$0xff]
    %v2559 = vld [vmem:[%s2553 + $0x28] sm:$0xff]
    %v2560 = vld [vmem:[%s2553 + $0x30] sm:$0xff]
    %v2561 = vld [vmem:[%s2553 + $0x38] sm:$0xff]
    %v2562 = vld [vmem:[%s2553 + $0x40] sm:$0xff]
    %v2563 = vld [vmem:[%s2553 + $0x48] sm:$0xff]
    %v2564 = vld [vmem:[%s2553 + $0x50] sm:$0xff]
    %v2565 = vld [vmem:[%s2553 + $0x58] sm:$0xff]
    %v2566 = vld [vmem:[%s2553 + $0x60] sm:$0xff]
    %v2567 = vld [vmem:[%s2553 + $0x68] sm:$0xff]
    %v2568 = vld [vmem:[%s2553 + $0x70] sm:$0xff]
    %v2569 = vld [vmem:[%s2553 + $0x78] sm:$0xff]
    %v2570 = vld [vmem:[%s2553 + $0x80] sm:$0xff]
    %v2571 = vld [vmem:[%s2553 + $0x88] sm:$0xff]
    %v2572 = vld [vmem:[%s2553 + $0x90] sm:$0xff]
    %v2573 = vld [vmem:[%s2553 + $0x98] sm:$0xff]
    %v2574 = vld [vmem:[%s2553 + $0xa0] sm:$0xff]
    %v2575 = vld [vmem:[%s2553 + $0xa8] sm:$0xff]
    %v2576 = vld [vmem:[%s2553 + $0xb0] sm:$0xff]
    %v2577 = vld [vmem:[%s2553 + $0xb8] sm:$0xff]
    %v2578 = vld [vmem:[%s2553 + $0xc0] sm:$0xff]
    %v2579 = vld [vmem:[%s2553 + $0xc8] sm:$0xff]
    %v2580 = vld [vmem:[%s2553 + $0xd0] sm:$0xff]
    %v2581 = vld [vmem:[%s2553 + $0xd8] sm:$0xff]
    %v2582 = vld [vmem:[%s2553 + $0xe0] sm:$0xff]
    %v2583 = vld [vmem:[%s2553 + $0xe8] sm:$0xff]
    %v2584 = vld [vmem:[%s2553 + $0xf0] sm:$0xff]
    %v2585 = vld [vmem:[%s2553 + $0xf8] sm:$0xff]
    %v2618 = vunpack.c.l.b16 %v2554
    %v2619 = vunpack.c.h.b16 %v2554
    %v2620 = vunpack.c.l.b16 %v2555
    %v2621 = vunpack.c.h.b16 %v2555
    %v2622 = vunpack.c.l.b16 %v2556
    %v2623 = vunpack.c.h.b16 %v2556
    %v2624 = vunpack.c.l.b16 %v2557
    %v2625 = vunpack.c.h.b16 %v2557
    %v2626 = vunpack.c.l.b16 %v2558
    %v2627 = vunpack.c.h.b16 %v2558
    %v2628 = vunpack.c.l.b16 %v2559
    %v2629 = vunpack.c.h.b16 %v2559
    %v2630 = vunpack.c.l.b16 %v2560
    %v2631 = vunpack.c.h.b16 %v2560
    %v2632 = vunpack.c.l.b16 %v2561
    %v2633 = vunpack.c.h.b16 %v2561
    %v2634 = vunpack.c.l.b16 %v2562
    %v2635 = vunpack.c.h.b16 %v2562
    %v2636 = vunpack.c.l.b16 %v2563
    %v2637 = vunpack.c.h.b16 %v2563
    %v2638 = vunpack.c.l.b16 %v2564
    %v2639 = vunpack.c.h.b16 %v2564
    %v2640 = vunpack.c.l.b16 %v2565
    %v2641 = vunpack.c.h.b16 %v2565
    %v2642 = vunpack.c.l.b16 %v2566
    %v2643 = vunpack.c.h.b16 %v2566
    %v2644 = vunpack.c.l.b16 %v2567
    %v2645 = vunpack.c.h.b16 %v2567
    %v2646 = vunpack.c.l.b16 %v2568
    %v2647 = vunpack.c.h.b16 %v2568
    %v2648 = vunpack.c.l.b16 %v2569
    %v2649 = vunpack.c.h.b16 %v2569
    %v2650 = vunpack.c.l.b16 %v2570
    %v2651 = vunpack.c.h.b16 %v2570
    %v2652 = vunpack.c.l.b16 %v2571
    %v2653 = vunpack.c.h.b16 %v2571
    %v2654 = vunpack.c.l.b16 %v2572
    %v2655 = vunpack.c.h.b16 %v2572
    %v2656 = vunpack.c.l.b16 %v2573
    %v2657 = vunpack.c.h.b16 %v2573
    %v2658 = vunpack.c.l.b16 %v2574
    %v2659 = vunpack.c.h.b16 %v2574
    %v2660 = vunpack.c.l.b16 %v2575
    %v2661 = vunpack.c.h.b16 %v2575
    %v2662 = vunpack.c.l.b16 %v2576
    %v2663 = vunpack.c.h.b16 %v2576
    %v2664 = vunpack.c.l.b16 %v2577
    %v2665 = vunpack.c.h.b16 %v2577
    %v2666 = vunpack.c.l.b16 %v2578
    %v2667 = vunpack.c.h.b16 %v2578
    %v2668 = vunpack.c.l.b16 %v2579
    %v2669 = vunpack.c.h.b16 %v2579
    %v2670 = vunpack.c.l.b16 %v2580
    %v2671 = vunpack.c.h.b16 %v2580
    %v2672 = vunpack.c.l.b16 %v2581
    %v2673 = vunpack.c.h.b16 %v2581
    %v2674 = vunpack.c.l.b16 %v2582
    %v2675 = vunpack.c.h.b16 %v2582
    %v2676 = vunpack.c.l.b16 %v2583
    %v2677 = vunpack.c.h.b16 %v2583
    %v2678 = vunpack.c.l.b16 %v2584
    %v2679 = vunpack.c.h.b16 %v2584
    %v2680 = vunpack.c.l.b16 %v2585
    %v2681 = vunpack.c.h.b16 %v2585
    %v2682 = vpack.c.b16 %v2620, %v2618
    %v2683 = vpack.c.b16 %v2621, %v2619
    %v2684 = vpack.c.b16 %v2624, %v2622
    %v2685 = vpack.c.b16 %v2625, %v2623
    %v2686 = vpack.c.b16 %v2628, %v2626
    %v2687 = vpack.c.b16 %v2629, %v2627
    %v2688 = vpack.c.b16 %v2632, %v2630
    %v2689 = vpack.c.b16 %v2633, %v2631
    %v2690 = vpack.c.b16 %v2636, %v2634
    %v2691 = vpack.c.b16 %v2637, %v2635
    %v2692 = vpack.c.b16 %v2640, %v2638
    %v2693 = vpack.c.b16 %v2641, %v2639
    %v2694 = vpack.c.b16 %v2644, %v2642
    %v2695 = vpack.c.b16 %v2645, %v2643
    %v2696 = vpack.c.b16 %v2648, %v2646
    %v2697 = vpack.c.b16 %v2649, %v2647
    %v2698 = vpack.c.b16 %v2652, %v2650
    %v2699 = vpack.c.b16 %v2653, %v2651
    %v2700 = vpack.c.b16 %v2656, %v2654
    %v2701 = vpack.c.b16 %v2657, %v2655
    %v2702 = vpack.c.b16 %v2660, %v2658
    %v2703 = vpack.c.b16 %v2661, %v2659
    %v2704 = vpack.c.b16 %v2664, %v2662
    %v2705 = vpack.c.b16 %v2665, %v2663
    %v2706 = vpack.c.b16 %v2668, %v2666
    %v2707 = vpack.c.b16 %v2669, %v2667
    %v2708 = vpack.c.b16 %v2672, %v2670
    %v2709 = vpack.c.b16 %v2673, %v2671
    %v2710 = vpack.c.b16 %v2676, %v2674
    %v2711 = vpack.c.b16 %v2677, %v2675
    %v2712 = vpack.c.b16 %v2680, %v2678
    %v2713 = vpack.c.b16 %v2681, %v2679
    %2746 = vmatpush.bf16.msra.mxu0 %v2696
    %2747 = vmatpush.bf16.msra.mxu0 %v2694
    %2748 = vmatpush.bf16.msra.mxu0 %v2692
    %2749 = vmatpush.bf16.msra.mxu0 %v2690
    %2750 = vmatpush.bf16.msra.mxu0 %v2688
    %2751 = vmatpush.bf16.msra.mxu0 %v2686
    %2752 = vmatpush.bf16.msra.mxu0 %v2684
    %2753 = vmatpush.bf16.msra.mxu0 %v2682
    %2754 = vmatmul.bf16.gmra.mxu0 %v2537
    %v2755 = vpop.f32.mrf.mxu0
    %v2756 = vadd.f32 0.0, %v2755
    %v2757 = vpop.f32.mrf.mxu0
    %v2758 = vadd.f32 0.0, %v2757
    %2759 = vmatmul.bf16.gmra.mxu0 %v2539
    %v2760 = vpop.f32.mrf.mxu0
    %v2761 = vadd.f32 0.0, %v2760
    %v2762 = vpop.f32.mrf.mxu0
    %v2763 = vadd.f32 0.0, %v2762
    %2764 = vmatmul.bf16.gmra.mxu0 %v2541
    %v2765 = vpop.f32.mrf.mxu0
    %v2766 = vadd.f32 0.0, %v2765
    %v2767 = vpop.f32.mrf.mxu0
    %v2768 = vadd.f32 0.0, %v2767
    %2769 = vmatmul.bf16.gmra.mxu0 %v2543
    %v2770 = vpop.f32.mrf.mxu0
    %v2771 = vadd.f32 0.0, %v2770
    %v2772 = vpop.f32.mrf.mxu0
    %v2773 = vadd.f32 0.0, %v2772
    %2774 = vmatmul.bf16.gmra.mxu0 %v2545
    %v2775 = vpop.f32.mrf.mxu0
    %v2776 = vadd.f32 0.0, %v2775
    %v2777 = vpop.f32.mrf.mxu0
    %v2778 = vadd.f32 0.0, %v2777
    %2779 = vmatmul.bf16.gmra.mxu0 %v2547
    %v2780 = vpop.f32.mrf.mxu0
    %v2781 = vadd.f32 0.0, %v2780
    %v2782 = vpop.f32.mrf.mxu0
    %v2783 = vadd.f32 0.0, %v2782
    %2784 = vmatmul.bf16.gmra.mxu0 %v2549
    %v2785 = vpop.f32.mrf.mxu0
    %v2786 = vadd.f32 0.0, %v2785
    %v2787 = vpop.f32.mrf.mxu0
    %v2788 = vadd.f32 0.0, %v2787
    %2789 = vmatmul.bf16.gmra.mxu0 %v2551
    %v2790 = vpop.f32.mrf.mxu0
    %v2791 = vadd.f32 0.0, %v2790
    %v2792 = vpop.f32.mrf.mxu0
    %v2793 = vadd.f32 0.0, %v2792
    %2794 = vdwg.mxu0
    %2795 = vmatpush.bf16.msra.mxu0 %v2712
    %2796 = vmatpush.bf16.msra.mxu0 %v2710
    %2797 = vmatpush.bf16.msra.mxu0 %v2708
    %2798 = vmatpush.bf16.msra.mxu0 %v2706
    %2799 = vmatpush.bf16.msra.mxu0 %v2704
    %2800 = vmatpush.bf16.msra.mxu0 %v2702
    %2801 = vmatpush.bf16.msra.mxu0 %v2700
    %2802 = vmatpush.bf16.msra.mxu0 %v2698
    %2803 = vmatmul.bf16.gmra.mxu0 %v2538
    %v2804 = vpop.f32.mrf.mxu0
    %v2805 = vadd.f32 %v2756, %v2804
    %v2806 = vpop.f32.mrf.mxu0
    %v2807 = vadd.f32 %v2758, %v2806
    %2808 = vmatmul.bf16.gmra.mxu0 %v2540
    %v2809 = vpop.f32.mrf.mxu0
    %v2810 = vadd.f32 %v2761, %v2809
    %v2811 = vpop.f32.mrf.mxu0
    %v2812 = vadd.f32 %v2763, %v2811
    %2813 = vmatmul.bf16.gmra.mxu0 %v2542
    %v2814 = vpop.f32.mrf.mxu0
    %v2815 = vadd.f32 %v2766, %v2814
    %v2816 = vpop.f32.mrf.mxu0
    %v2817 = vadd.f32 %v2768, %v2816
    %2818 = vmatmul.bf16.gmra.mxu0 %v2544
    %v2819 = vpop.f32.mrf.mxu0
    %v2820 = vadd.f32 %v2771, %v2819
    %v2821 = vpop.f32.mrf.mxu0
    %v2822 = vadd.f32 %v2773, %v2821
    %2823 = vmatmul.bf16.gmra.mxu0 %v2546
    %v2824 = vpop.f32.mrf.mxu0
    %v2825 = vadd.f32 %v2776, %v2824
    %v2826 = vpop.f32.mrf.mxu0
    %v2827 = vadd.f32 %v2778, %v2826
    %2828 = vmatmul.bf16.gmra.mxu0 %v2548
    %v2829 = vpop.f32.mrf.mxu0
    %v2830 = vadd.f32 %v2781, %v2829
    %v2831 = vpop.f32.mrf.mxu0
    %v2832 = vadd.f32 %v2783, %v2831
    %2833 = vmatmul.bf16.gmra.mxu0 %v2550
    %v2834 = vpop.f32.mrf.mxu0
    %v2835 = vadd.f32 %v2786, %v2834
    %v2836 = vpop.f32.mrf.mxu0
    %v2837 = vadd.f32 %v2788, %v2836
    %2838 = vmatmul.bf16.gmra.mxu0 %v2552
    %v2839 = vpop.f32.mrf.mxu0
    %v2840 = vadd.f32 %v2791, %v2839
    %v2841 = vpop.f32.mrf.mxu0
    %v2842 = vadd.f32 %v2793, %v2841
    %2843 = vdwg.mxu0
    %2844 = vmatpush.bf16.msra.mxu0 %v2697
    %2845 = vmatpush.bf16.msra.mxu0 %v2695
    %2846 = vmatpush.bf16.msra.mxu0 %v2693
    %2847 = vmatpush.bf16.msra.mxu0 %v2691
    %2848 = vmatpush.bf16.msra.mxu0 %v2689
    %2849 = vmatpush.bf16.msra.mxu0 %v2687
    %2850 = vmatpush.bf16.msra.mxu0 %v2685
    %2851 = vmatpush.bf16.msra.mxu0 %v2683
    %2852 = vmatmul.bf16.gmra.mxu0 %v2537
    %v2853 = vpop.f32.mrf.mxu0
    %v2854 = vadd.f32 0.0, %v2853
    %v2855 = vpop.f32.mrf.mxu0
    %v2856 = vadd.f32 0.0, %v2855
    %2857 = vmatmul.bf16.gmra.mxu0 %v2539
    %v2858 = vpop.f32.mrf.mxu0
    %v2859 = vadd.f32 0.0, %v2858
    %v2860 = vpop.f32.mrf.mxu0
    %v2861 = vadd.f32 0.0, %v2860
    %2862 = vmatmul.bf16.gmra.mxu0 %v2541
    %v2863 = vpop.f32.mrf.mxu0
    %v2864 = vadd.f32 0.0, %v2863
    %v2865 = vpop.f32.mrf.mxu0
    %v2866 = vadd.f32 0.0, %v2865
    %2867 = vmatmul.bf16.gmra.mxu0 %v2543
    %v2868 = vpop.f32.mrf.mxu0
    %v2869 = vadd.f32 0.0, %v2868
    %v2870 = vpop.f32.mrf.mxu0
    %v2871 = vadd.f32 0.0, %v2870
    %2872 = vmatmul.bf16.gmra.mxu0 %v2545
    %v2873 = vpop.f32.mrf.mxu0
    %v2874 = vadd.f32 0.0, %v2873
    %v2875 = vpop.f32.mrf.mxu0
    %v2876 = vadd.f32 0.0, %v2875
    %2877 = vmatmul.bf16.gmra.mxu0 %v2547
    %v2878 = vpop.f32.mrf.mxu0
    %v2879 = vadd.f32 0.0, %v2878
    %v2880 = vpop.f32.mrf.mxu0
    %v2881 = vadd.f32 0.0, %v2880
    %2882 = vmatmul.bf16.gmra.mxu0 %v2549
    %v2883 = vpop.f32.mrf.mxu0
    %v2884 = vadd.f32 0.0, %v2883
    %v2885 = vpop.f32.mrf.mxu0
    %v2886 = vadd.f32 0.0, %v2885
    %2887 = vmatmul.bf16.gmra.mxu0 %v2551
    %v2888 = vpop.f32.mrf.mxu0
    %v2889 = vadd.f32 0.0, %v2888
    %v2890 = vpop.f32.mrf.mxu0
    %v2891 = vadd.f32 0.0, %v2890
    %2892 = vdwg.mxu0
    %2893 = vmatpush.bf16.msra.mxu0 %v2713
    %2894 = vmatpush.bf16.msra.mxu0 %v2711
    %2895 = vmatpush.bf16.msra.mxu0 %v2709
    %2896 = vmatpush.bf16.msra.mxu0 %v2707
    %2897 = vmatpush.bf16.msra.mxu0 %v2705
    %2898 = vmatpush.bf16.msra.mxu0 %v2703
    %2899 = vmatpush.bf16.msra.mxu0 %v2701
    %2900 = vmatpush.bf16.msra.mxu0 %v2699
    %2901 = vmatmul.bf16.gmra.mxu0 %v2538
    %v2902 = vpop.f32.mrf.mxu0
    %v2903 = vadd.f32 %v2854, %v2902
    %v2904 = vpop.f32.mrf.mxu0
    %v2905 = vadd.f32 %v2856, %v2904
    %2906 = vmatmul.bf16.gmra.mxu0 %v2540
    %v2907 = vpop.f32.mrf.mxu0
    %v2908 = vadd.f32 %v2859, %v2907
    %v2909 = vpop.f32.mrf.mxu0
    %v2910 = vadd.f32 %v2861, %v2909
    %2911 = vmatmul.bf16.gmra.mxu0 %v2542
    %v2912 = vpop.f32.mrf.mxu0
    %v2913 = vadd.f32 %v2864, %v2912
    %v2914 = vpop.f32.mrf.mxu0
    %v2915 = vadd.f32 %v2866, %v2914
    %2916 = vmatmul.bf16.gmra.mxu0 %v2544
    %v2917 = vpop.f32.mrf.mxu0
    %v2918 = vadd.f32 %v2869, %v2917
    %v2919 = vpop.f32.mrf.mxu0
    %v2920 = vadd.f32 %v2871, %v2919
    %2921 = vmatmul.bf16.gmra.mxu0 %v2546
    %v2922 = vpop.f32.mrf.mxu0
    %v2923 = vadd.f32 %v2874, %v2922
    %v2924 = vpop.f32.mrf.mxu0
    %v2925 = vadd.f32 %v2876, %v2924
    %2926 = vmatmul.bf16.gmra.mxu0 %v2548
    %v2927 = vpop.f32.mrf.mxu0
    %v2928 = vadd.f32 %v2879, %v2927
    %v2929 = vpop.f32.mrf.mxu0
    %v2930 = vadd.f32 %v2881, %v2929
    %2931 = vmatmul.bf16.gmra.mxu0 %v2550
    %v2932 = vpop.f32.mrf.mxu0
    %v2933 = vadd.f32 %v2884, %v2932
    %v2934 = vpop.f32.mrf.mxu0
    %v2935 = vadd.f32 %v2886, %v2934
    %2936 = vmatmul.bf16.gmra.mxu0 %v2552
    %v2937 = vpop.f32.mrf.mxu0
    %v2938 = vadd.f32 %v2889, %v2937
    %v2939 = vpop.f32.mrf.mxu0
    %v2940 = vadd.f32 %v2891, %v2939
    %2941 = vdwg.mxu0
    %v2942 = vadd.f32 %v2249, %v2805
    %v2943 = vadd.f32 %v2250, %v2903
    %v2944 = vadd.f32 %v2251, %v2807
    %v2945 = vadd.f32 %v2252, %v2905
    %v2946 = vadd.f32 %v2253, %v2810
    %v2947 = vadd.f32 %v2254, %v2908
    %v2948 = vadd.f32 %v2255, %v2812
    %v2949 = vadd.f32 %v2256, %v2910
    %v2950 = vadd.f32 %v2257, %v2815
    %v2951 = vadd.f32 %v2258, %v2913
    %v2952 = vadd.f32 %v2259, %v2817
    %v2953 = vadd.f32 %v2260, %v2915
    %v2954 = vadd.f32 %v2261, %v2820
    %v2955 = vadd.f32 %v2262, %v2918
    %v2956 = vadd.f32 %v2263, %v2822
    %v2957 = vadd.f32 %v2264, %v2920
    %v2958 = vadd.f32 %v2265, %v2825
    %v2959 = vadd.f32 %v2266, %v2923
    %v2960 = vadd.f32 %v2267, %v2827
    %v2961 = vadd.f32 %v2268, %v2925
    %v2962 = vadd.f32 %v2269, %v2830
    %v2963 = vadd.f32 %v2270, %v2928
    %v2964 = vadd.f32 %v2271, %v2832
    %v2965 = vadd.f32 %v2272, %v2930
    %v2966 = vadd.f32 %v2273, %v2835
    %v2967 = vadd.f32 %v2274, %v2933
    %v2968 = vadd.f32 %v2275, %v2837
    %v2969 = vadd.f32 %v2276, %v2935
    %v2970 = vadd.f32 %v2277, %v2840
    %v2971 = vadd.f32 %v2278, %v2938
    %v2972 = vadd.f32 %v2279, %v2842
    %v2973 = vadd.f32 %v2280, %v2940
    %v2974 = vld [vmem:[%s1811] sm:$0xfc]
    %v2975 = vld [vmem:[%s1811 + $0x8] sm:$0xfc]
    %v2976 = vld [vmem:[%s1811 + $0x10] sm:$0x3]
    %v2977 = vld [vmem:[%s1811 + $0x18] sm:$0x3]
    %v2978 = vld [vmem:[%s1811 + $0x20] sm:$0xfc]
    %v2979 = vld [vmem:[%s1811 + $0x28] sm:$0xfc]
    %v2980 = vld [vmem:[%s1811 + $0x30] sm:$0x3]
    %v2981 = vld [vmem:[%s1811 + $0x38] sm:$0x3]
    %v2982 = vld [vmem:[%s1811 + $0x40] sm:$0xfc]
    %v2983 = vld [vmem:[%s1811 + $0x48] sm:$0xfc]
    %v2984 = vld [vmem:[%s1811 + $0x50] sm:$0x3]
    %v2985 = vld [vmem:[%s1811 + $0x58] sm:$0x3]
    %v2986 = vld [vmem:[%s1811 + $0x60] sm:$0xfc]
    %v2987 = vld [vmem:[%s1811 + $0x68] sm:$0xfc]
    %v2988 = vld [vmem:[%s1811 + $0x70] sm:$0x3]
    %v2989 = vld [vmem:[%s1811 + $0x78] sm:$0x3]
    %v2990 = vld [vmem:[%s1811 + $0x80] sm:$0xfc]
    %v2991 = vld [vmem:[%s1811 + $0x88] sm:$0xfc]
    %v2992 = vld [vmem:[%s1811 + $0x90] sm:$0x3]
    %v2993 = vld [vmem:[%s1811 + $0x98] sm:$0x3]
    %v2994 = vld [vmem:[%s1811 + $0xa0] sm:$0xfc]
    %v2995 = vld [vmem:[%s1811 + $0xa8] sm:$0xfc]
    %v2996 = vld [vmem:[%s1811 + $0xb0] sm:$0x3]
    %v2997 = vld [vmem:[%s1811 + $0xb8] sm:$0x3]
    %v2998 = vld [vmem:[%s1811 + $0xc0] sm:$0xfc]
    %v2999 = vld [vmem:[%s1811 + $0xc8] sm:$0xfc]
    %v3000 = vld [vmem:[%s1811 + $0xd0] sm:$0x3]
    %v3001 = vld [vmem:[%s1811 + $0xd8] sm:$0x3]
    %v3002 = vld [vmem:[%s1811 + $0xe0] sm:$0xfc]
    %v3003 = vld [vmem:[%s1811 + $0xe8] sm:$0xfc]
    %v3004 = vld [vmem:[%s1811 + $0xf0] sm:$0x3]
    %v3005 = vld [vmem:[%s1811 + $0xf8] sm:$0x3]
    %v3006 = vld [vmem:[%s1811 + $0x140] sm:$0xfc]
    %v3007 = vld [vmem:[%s1811 + $0x148] sm:$0xfc]
    %v3008 = vld [vmem:[%s1811 + $0x150] sm:$0x3]
    %v3009 = vld [vmem:[%s1811 + $0x158] sm:$0x3]
    %v3010 = vld [vmem:[%s1811 + $0x160] sm:$0xfc]
    %v3011 = vld [vmem:[%s1811 + $0x168] sm:$0xfc]
    %v3012 = vld [vmem:[%s1811 + $0x170] sm:$0x3]
    %v3013 = vld [vmem:[%s1811 + $0x178] sm:$0x3]
    %v3014 = vld [vmem:[%s1811 + $0x180] sm:$0xfc]
    %v3015 = vld [vmem:[%s1811 + $0x188] sm:$0xfc]
    %v3016 = vld [vmem:[%s1811 + $0x190] sm:$0x3]
    %v3017 = vld [vmem:[%s1811 + $0x198] sm:$0x3]
    %v3018 = vld [vmem:[%s1811 + $0x1a0] sm:$0xfc]
    %v3019 = vld [vmem:[%s1811 + $0x1a8] sm:$0xfc]
    %v3020 = vld [vmem:[%s1811 + $0x1b0] sm:$0x3]
    %v3021 = vld [vmem:[%s1811 + $0x1b8] sm:$0x3]
    %v3022 = vld [vmem:[%s1811 + $0x1c0] sm:$0xfc]
    %v3023 = vld [vmem:[%s1811 + $0x1c8] sm:$0xfc]
    %v3024 = vld [vmem:[%s1811 + $0x1d0] sm:$0x3]
    %v3025 = vld [vmem:[%s1811 + $0x1d8] sm:$0x3]
    %v3026 = vld [vmem:[%s1811 + $0x1e0] sm:$0xfc]
    %v3027 = vld [vmem:[%s1811 + $0x1e8] sm:$0xfc]
    %v3028 = vld [vmem:[%s1811 + $0x1f0] sm:$0x3]
    %v3029 = vld [vmem:[%s1811 + $0x1f8] sm:$0x3]
    %v3030 = vld [vmem:[%s1811 + $0x200] sm:$0xfc]
    %v3031 = vld [vmem:[%s1811 + $0x208] sm:$0xfc]
    %v3032 = vld [vmem:[%s1811 + $0x210] sm:$0x3]
    %v3033 = vld [vmem:[%s1811 + $0x218] sm:$0x3]
    %v3034 = vld [vmem:[%s1811 + $0x220] sm:$0xfc]
    %v3035 = vld [vmem:[%s1811 + $0x228] sm:$0xfc]
    %v3036 = vld [vmem:[%s1811 + $0x230] sm:$0x3]
    %v3037 = vld [vmem:[%s1811 + $0x238] sm:$0x3]
    %v3102 = vrot.slane %v2974, 2
    %v3103 = vrot.slane %v2976, 2
    %v3104 = vsel %vm1245, %v3102, %v3103
    %v3105 = vrot.slane %v2975, 2
    %v3106 = vrot.slane %v2977, 2
    %v3107 = vsel %vm1245, %v3105, %v3106
    %v3108 = vrot.slane %v2978, 2
    %v3109 = vrot.slane %v2980, 2
    %v3110 = vsel %vm1245, %v3108, %v3109
    %v3111 = vrot.slane %v2979, 2
    %v3112 = vrot.slane %v2981, 2
    %v3113 = vsel %vm1245, %v3111, %v3112
    %v3114 = vrot.slane %v2982, 2
    %v3115 = vrot.slane %v2984, 2
    %v3116 = vsel %vm1245, %v3114, %v3115
    %v3117 = vrot.slane %v2983, 2
    %v3118 = vrot.slane %v2985, 2
    %v3119 = vsel %vm1245, %v3117, %v3118
    %v3120 = vrot.slane %v2986, 2
    %v3121 = vrot.slane %v2988, 2
    %v3122 = vsel %vm1245, %v3120, %v3121
    %v3123 = vrot.slane %v2987, 2
    %v3124 = vrot.slane %v2989, 2
    %v3125 = vsel %vm1245, %v3123, %v3124
    %v3126 = vrot.slane %v2990, 2
    %v3127 = vrot.slane %v2992, 2
    %v3128 = vsel %vm1245, %v3126, %v3127
    %v3129 = vrot.slane %v2991, 2
    %v3130 = vrot.slane %v2993, 2
    %v3131 = vsel %vm1245, %v3129, %v3130
    %v3132 = vrot.slane %v2994, 2
    %v3133 = vrot.slane %v2996, 2
    %v3134 = vsel %vm1245, %v3132, %v3133
    %v3135 = vrot.slane %v2995, 2
    %v3136 = vrot.slane %v2997, 2
    %v3137 = vsel %vm1245, %v3135, %v3136
    %v3138 = vrot.slane %v2998, 2
    %v3139 = vrot.slane %v3000, 2
    %v3140 = vsel %vm1245, %v3138, %v3139
    %v3141 = vrot.slane %v2999, 2
    %v3142 = vrot.slane %v3001, 2
    %v3143 = vsel %vm1245, %v3141, %v3142
    %v3144 = vrot.slane %v3002, 2
    %v3145 = vrot.slane %v3004, 2
    %v3146 = vsel %vm1245, %v3144, %v3145
    %v3147 = vrot.slane %v3003, 2
    %v3148 = vrot.slane %v3005, 2
    %v3149 = vsel %vm1245, %v3147, %v3148
    %v3150 = vrot.slane %v3006, 2
    %v3151 = vrot.slane %v3008, 2
    %v3152 = vsel %vm1245, %v3150, %v3151
    %v3153 = vrot.slane %v3007, 2
    %v3154 = vrot.slane %v3009, 2
    %v3155 = vsel %vm1245, %v3153, %v3154
    %v3156 = vrot.slane %v3010, 2
    %v3157 = vrot.slane %v3012, 2
    %v3158 = vsel %vm1245, %v3156, %v3157
    %v3159 = vrot.slane %v3011, 2
    %v3160 = vrot.slane %v3013, 2
    %v3161 = vsel %vm1245, %v3159, %v3160
    %v3162 = vrot.slane %v3014, 2
    %v3163 = vrot.slane %v3016, 2
    %v3164 = vsel %vm1245, %v3162, %v3163
    %v3165 = vrot.slane %v3015, 2
    %v3166 = vrot.slane %v3017, 2
    %v3167 = vsel %vm1245, %v3165, %v3166
    %v3168 = vrot.slane %v3018, 2
    %v3169 = vrot.slane %v3020, 2
    %v3170 = vsel %vm1245, %v3168, %v3169
    %v3171 = vrot.slane %v3019, 2
    %v3172 = vrot.slane %v3021, 2
    %v3173 = vsel %vm1245, %v3171, %v3172
    %v3174 = vrot.slane %v3022, 2
    %v3175 = vrot.slane %v3024, 2
    %v3176 = vsel %vm1245, %v3174, %v3175
    %v3177 = vrot.slane %v3023, 2
    %v3178 = vrot.slane %v3025, 2
    %v3179 = vsel %vm1245, %v3177, %v3178
    %v3180 = vrot.slane %v3026, 2
    %v3181 = vrot.slane %v3028, 2
    %v3182 = vsel %vm1245, %v3180, %v3181
    %v3183 = vrot.slane %v3027, 2
    %v3184 = vrot.slane %v3029, 2
    %v3185 = vsel %vm1245, %v3183, %v3184
    %v3186 = vrot.slane %v3030, 2
    %v3187 = vrot.slane %v3032, 2
    %v3188 = vsel %vm1245, %v3186, %v3187
    %v3189 = vrot.slane %v3031, 2
    %v3190 = vrot.slane %v3033, 2
    %v3191 = vsel %vm1245, %v3189, %v3190
    %v3192 = vrot.slane %v3034, 2
    %v3193 = vrot.slane %v3036, 2
    %v3194 = vsel %vm1245, %v3192, %v3193
    %v3195 = vrot.slane %v3035, 2
    %v3196 = vrot.slane %v3037, 2
    %v3197 = vsel %vm1245, %v3195, %v3196
    %v3230 = vpack.c.bf16 %v3110, %v3104
    %v3231 = vpack.c.bf16 %v3113, %v3107
    %v3232 = vpack.c.bf16 %v3122, %v3116
    %v3233 = vpack.c.bf16 %v3125, %v3119
    %v3234 = vpack.c.bf16 %v3134, %v3128
    %v3235 = vpack.c.bf16 %v3137, %v3131
    %v3236 = vpack.c.bf16 %v3146, %v3140
    %v3237 = vpack.c.bf16 %v3149, %v3143
    %v3238 = vpack.c.bf16 %v3158, %v3152
    %v3239 = vpack.c.bf16 %v3161, %v3155
    %v3240 = vpack.c.bf16 %v3170, %v3164
    %v3241 = vpack.c.bf16 %v3173, %v3167
    %v3242 = vpack.c.bf16 %v3182, %v3176
    %v3243 = vpack.c.bf16 %v3185, %v3179
    %v3244 = vpack.c.bf16 %v3194, %v3188
    %v3245 = vpack.c.bf16 %v3197, %v3191
    %s3246 = scalar_lea.vmem %s1, 1280
    %v3247 = vld [vmem:[%s3246] sm:$0xff]
    %v3248 = vld [vmem:[%s3246 + $0x8] sm:$0xff]
    %v3249 = vld [vmem:[%s3246 + $0x10] sm:$0xff]
    %v3250 = vld [vmem:[%s3246 + $0x18] sm:$0xff]
    %v3251 = vld [vmem:[%s3246 + $0x20] sm:$0xff]
    %v3252 = vld [vmem:[%s3246 + $0x28] sm:$0xff]
    %v3253 = vld [vmem:[%s3246 + $0x30] sm:$0xff]
    %v3254 = vld [vmem:[%s3246 + $0x38] sm:$0xff]
    %v3255 = vld [vmem:[%s3246 + $0x40] sm:$0xff]
    %v3256 = vld [vmem:[%s3246 + $0x48] sm:$0xff]
    %v3257 = vld [vmem:[%s3246 + $0x50] sm:$0xff]
    %v3258 = vld [vmem:[%s3246 + $0x58] sm:$0xff]
    %v3259 = vld [vmem:[%s3246 + $0x60] sm:$0xff]
    %v3260 = vld [vmem:[%s3246 + $0x68] sm:$0xff]
    %v3261 = vld [vmem:[%s3246 + $0x70] sm:$0xff]
    %v3262 = vld [vmem:[%s3246 + $0x78] sm:$0xff]
    %v3263 = vld [vmem:[%s3246 + $0x80] sm:$0xff]
    %v3264 = vld [vmem:[%s3246 + $0x88] sm:$0xff]
    %v3265 = vld [vmem:[%s3246 + $0x90] sm:$0xff]
    %v3266 = vld [vmem:[%s3246 + $0x98] sm:$0xff]
    %v3267 = vld [vmem:[%s3246 + $0xa0] sm:$0xff]
    %v3268 = vld [vmem:[%s3246 + $0xa8] sm:$0xff]
    %v3269 = vld [vmem:[%s3246 + $0xb0] sm:$0xff]
    %v3270 = vld [vmem:[%s3246 + $0xb8] sm:$0xff]
    %v3271 = vld [vmem:[%s3246 + $0xc0] sm:$0xff]
    %v3272 = vld [vmem:[%s3246 + $0xc8] sm:$0xff]
    %v3273 = vld [vmem:[%s3246 + $0xd0] sm:$0xff]
    %v3274 = vld [vmem:[%s3246 + $0xd8] sm:$0xff]
    %v3275 = vld [vmem:[%s3246 + $0xe0] sm:$0xff]
    %v3276 = vld [vmem:[%s3246 + $0xe8] sm:$0xff]
    %v3277 = vld [vmem:[%s3246 + $0xf0] sm:$0xff]
    %v3278 = vld [vmem:[%s3246 + $0xf8] sm:$0xff]
    %v3311 = vunpack.c.l.b16 %v3247
    %v3312 = vunpack.c.h.b16 %v3247
    %v3313 = vunpack.c.l.b16 %v3248
    %v3314 = vunpack.c.h.b16 %v3248
    %v3315 = vunpack.c.l.b16 %v3249
    %v3316 = vunpack.c.h.b16 %v3249
    %v3317 = vunpack.c.l.b16 %v3250
    %v3318 = vunpack.c.h.b16 %v3250
    %v3319 = vunpack.c.l.b16 %v3251
    %v3320 = vunpack.c.h.b16 %v3251
    %v3321 = vunpack.c.l.b16 %v3252
    %v3322 = vunpack.c.h.b16 %v3252
    %v3323 = vunpack.c.l.b16 %v3253
    %v3324 = vunpack.c.h.b16 %v3253
    %v3325 = vunpack.c.l.b16 %v3254
    %v3326 = vunpack.c.h.b16 %v3254
    %v3327 = vunpack.c.l.b16 %v3255
    %v3328 = vunpack.c.h.b16 %v3255
    %v3329 = vunpack.c.l.b16 %v3256
    %v3330 = vunpack.c.h.b16 %v3256
    %v3331 = vunpack.c.l.b16 %v3257
    %v3332 = vunpack.c.h.b16 %v3257
    %v3333 = vunpack.c.l.b16 %v3258
    %v3334 = vunpack.c.h.b16 %v3258
    %v3335 = vunpack.c.l.b16 %v3259
    %v3336 = vunpack.c.h.b16 %v3259
    %v3337 = vunpack.c.l.b16 %v3260
    %v3338 = vunpack.c.h.b16 %v3260
    %v3339 = vunpack.c.l.b16 %v3261
    %v3340 = vunpack.c.h.b16 %v3261
    %v3341 = vunpack.c.l.b16 %v3262
    %v3342 = vunpack.c.h.b16 %v3262
    %v3343 = vunpack.c.l.b16 %v3263
    %v3344 = vunpack.c.h.b16 %v3263
    %v3345 = vunpack.c.l.b16 %v3264
    %v3346 = vunpack.c.h.b16 %v3264
    %v3347 = vunpack.c.l.b16 %v3265
    %v3348 = vunpack.c.h.b16 %v3265
    %v3349 = vunpack.c.l.b16 %v3266
    %v3350 = vunpack.c.h.b16 %v3266
    %v3351 = vunpack.c.l.b16 %v3267
    %v3352 = vunpack.c.h.b16 %v3267
    %v3353 = vunpack.c.l.b16 %v3268
    %v3354 = vunpack.c.h.b16 %v3268
    %v3355 = vunpack.c.l.b16 %v3269
    %v3356 = vunpack.c.h.b16 %v3269
    %v3357 = vunpack.c.l.b16 %v3270
    %v3358 = vunpack.c.h.b16 %v3270
    %v3359 = vunpack.c.l.b16 %v3271
    %v3360 = vunpack.c.h.b16 %v3271
    %v3361 = vunpack.c.l.b16 %v3272
    %v3362 = vunpack.c.h.b16 %v3272
    %v3363 = vunpack.c.l.b16 %v3273
    %v3364 = vunpack.c.h.b16 %v3273
    %v3365 = vunpack.c.l.b16 %v3274
    %v3366 = vunpack.c.h.b16 %v3274
    %v3367 = vunpack.c.l.b16 %v3275
    %v3368 = vunpack.c.h.b16 %v3275
    %v3369 = vunpack.c.l.b16 %v3276
    %v3370 = vunpack.c.h.b16 %v3276
    %v3371 = vunpack.c.l.b16 %v3277
    %v3372 = vunpack.c.h.b16 %v3277
    %v3373 = vunpack.c.l.b16 %v3278
    %v3374 = vunpack.c.h.b16 %v3278
    %v3375 = vpack.c.b16 %v3313, %v3311
    %v3376 = vpack.c.b16 %v3314, %v3312
    %v3377 = vpack.c.b16 %v3317, %v3315
    %v3378 = vpack.c.b16 %v3318, %v3316
    %v3379 = vpack.c.b16 %v3321, %v3319
    %v3380 = vpack.c.b16 %v3322, %v3320
    %v3381 = vpack.c.b16 %v3325, %v3323
    %v3382 = vpack.c.b16 %v3326, %v3324
    %v3383 = vpack.c.b16 %v3329, %v3327
    %v3384 = vpack.c.b16 %v3330, %v3328
    %v3385 = vpack.c.b16 %v3333, %v3331
    %v3386 = vpack.c.b16 %v3334, %v3332
    %v3387 = vpack.c.b16 %v3337, %v3335
    %v3388 = vpack.c.b16 %v3338, %v3336
    %v3389 = vpack.c.b16 %v3341, %v3339
    %v3390 = vpack.c.b16 %v3342, %v3340
    %v3391 = vpack.c.b16 %v3345, %v3343
    %v3392 = vpack.c.b16 %v3346, %v3344
    %v3393 = vpack.c.b16 %v3349, %v3347
    %v3394 = vpack.c.b16 %v3350, %v3348
    %v3395 = vpack.c.b16 %v3353, %v3351
    %v3396 = vpack.c.b16 %v3354, %v3352
    %v3397 = vpack.c.b16 %v3357, %v3355
    %v3398 = vpack.c.b16 %v3358, %v3356
    %v3399 = vpack.c.b16 %v3361, %v3359
    %v3400 = vpack.c.b16 %v3362, %v3360
    %v3401 = vpack.c.b16 %v3365, %v3363
    %v3402 = vpack.c.b16 %v3366, %v3364
    %v3403 = vpack.c.b16 %v3369, %v3367
    %v3404 = vpack.c.b16 %v3370, %v3368
    %v3405 = vpack.c.b16 %v3373, %v3371
    %v3406 = vpack.c.b16 %v3374, %v3372
    %3439 = vmatpush.bf16.msra.mxu0 %v3389
    %3440 = vmatpush.bf16.msra.mxu0 %v3387
    %3441 = vmatpush.bf16.msra.mxu0 %v3385
    %3442 = vmatpush.bf16.msra.mxu0 %v3383
    %3443 = vmatpush.bf16.msra.mxu0 %v3381
    %3444 = vmatpush.bf16.msra.mxu0 %v3379
    %3445 = vmatpush.bf16.msra.mxu0 %v3377
    %3446 = vmatpush.bf16.msra.mxu0 %v3375
    %3447 = vmatmul.bf16.gmra.mxu0 %v3230
    %v3448 = vpop.f32.mrf.mxu0
    %v3449 = vadd.f32 0.0, %v3448
    %v3450 = vpop.f32.mrf.mxu0
    %v3451 = vadd.f32 0.0, %v3450
    %3452 = vmatmul.bf16.gmra.mxu0 %v3232
    %v3453 = vpop.f32.mrf.mxu0
    %v3454 = vadd.f32 0.0, %v3453
    %v3455 = vpop.f32.mrf.mxu0
    %v3456 = vadd.f32 0.0, %v3455
    %3457 = vmatmul.bf16.gmra.mxu0 %v3234
    %v3458 = vpop.f32.mrf.mxu0
    %v3459 = vadd.f32 0.0, %v3458
    %v3460 = vpop.f32.mrf.mxu0
    %v3461 = vadd.f32 0.0, %v3460
    %3462 = vmatmul.bf16.gmra.mxu0 %v3236
    %v3463 = vpop.f32.mrf.mxu0
    %v3464 = vadd.f32 0.0, %v3463
    %v3465 = vpop.f32.mrf.mxu0
    %v3466 = vadd.f32 0.0, %v3465
    %3467 = vmatmul.bf16.gmra.mxu0 %v3238
    %v3468 = vpop.f32.mrf.mxu0
    %v3469 = vadd.f32 0.0, %v3468
    %v3470 = vpop.f32.mrf.mxu0
    %v3471 = vadd.f32 0.0, %v3470
    %3472 = vmatmul.bf16.gmra.mxu0 %v3240
    %v3473 = vpop.f32.mrf.mxu0
    %v3474 = vadd.f32 0.0, %v3473
    %v3475 = vpop.f32.mrf.mxu0
    %v3476 = vadd.f32 0.0, %v3475
    %3477 = vmatmul.bf16.gmra.mxu0 %v3242
    %v3478 = vpop.f32.mrf.mxu0
    %v3479 = vadd.f32 0.0, %v3478
    %v3480 = vpop.f32.mrf.mxu0
    %v3481 = vadd.f32 0.0, %v3480
    %3482 = vmatmul.bf16.gmra.mxu0 %v3244
    %v3483 = vpop.f32.mrf.mxu0
    %v3484 = vadd.f32 0.0, %v3483
    %v3485 = vpop.f32.mrf.mxu0
    %v3486 = vadd.f32 0.0, %v3485
    %3487 = vdwg.mxu0
    %3488 = vmatpush.bf16.msra.mxu0 %v3405
    %3489 = vmatpush.bf16.msra.mxu0 %v3403
    %3490 = vmatpush.bf16.msra.mxu0 %v3401
    %3491 = vmatpush.bf16.msra.mxu0 %v3399
    %3492 = vmatpush.bf16.msra.mxu0 %v3397
    %3493 = vmatpush.bf16.msra.mxu0 %v3395
    %3494 = vmatpush.bf16.msra.mxu0 %v3393
    %3495 = vmatpush.bf16.msra.mxu0 %v3391
    %3496 = vmatmul.bf16.gmra.mxu0 %v3231
    %v3497 = vpop.f32.mrf.mxu0
    %v3498 = vadd.f32 %v3449, %v3497
    %v3499 = vpop.f32.mrf.mxu0
    %v3500 = vadd.f32 %v3451, %v3499
    %3501 = vmatmul.bf16.gmra.mxu0 %v3233
    %v3502 = vpop.f32.mrf.mxu0
    %v3503 = vadd.f32 %v3454, %v3502
    %v3504 = vpop.f32.mrf.mxu0
    %v3505 = vadd.f32 %v3456, %v3504
    %3506 = vmatmul.bf16.gmra.mxu0 %v3235
    %v3507 = vpop.f32.mrf.mxu0
    %v3508 = vadd.f32 %v3459, %v3507
    %v3509 = vpop.f32.mrf.mxu0
    %v3510 = vadd.f32 %v3461, %v3509
    %3511 = vmatmul.bf16.gmra.mxu0 %v3237
    %v3512 = vpop.f32.mrf.mxu0
    %v3513 = vadd.f32 %v3464, %v3512
    %v3514 = vpop.f32.mrf.mxu0
    %v3515 = vadd.f32 %v3466, %v3514
    %3516 = vmatmul.bf16.gmra.mxu0 %v3239
    %v3517 = vpop.f32.mrf.mxu0
    %v3518 = vadd.f32 %v3469, %v3517
    %v3519 = vpop.f32.mrf.mxu0
    %v3520 = vadd.f32 %v3471, %v3519
    %3521 = vmatmul.bf16.gmra.mxu0 %v3241
    %v3522 = vpop.f32.mrf.mxu0
    %v3523 = vadd.f32 %v3474, %v3522
    %v3524 = vpop.f32.mrf.mxu0
    %v3525 = vadd.f32 %v3476, %v3524
    %3526 = vmatmul.bf16.gmra.mxu0 %v3243
    %v3527 = vpop.f32.mrf.mxu0
    %v3528 = vadd.f32 %v3479, %v3527
    %v3529 = vpop.f32.mrf.mxu0
    %v3530 = vadd.f32 %v3481, %v3529
    %3531 = vmatmul.bf16.gmra.mxu0 %v3245
    %v3532 = vpop.f32.mrf.mxu0
    %v3533 = vadd.f32 %v3484, %v3532
    %v3534 = vpop.f32.mrf.mxu0
    %v3535 = vadd.f32 %v3486, %v3534
    %3536 = vdwg.mxu0
    %3537 = vmatpush.bf16.msra.mxu0 %v3390
    %3538 = vmatpush.bf16.msra.mxu0 %v3388
    %3539 = vmatpush.bf16.msra.mxu0 %v3386
    %3540 = vmatpush.bf16.msra.mxu0 %v3384
    %3541 = vmatpush.bf16.msra.mxu0 %v3382
    %3542 = vmatpush.bf16.msra.mxu0 %v3380
    %3543 = vmatpush.bf16.msra.mxu0 %v3378
    %3544 = vmatpush.bf16.msra.mxu0 %v3376
    %3545 = vmatmul.bf16.gmra.mxu0 %v3230
    %v3546 = vpop.f32.mrf.mxu0
    %v3547 = vadd.f32 0.0, %v3546
    %v3548 = vpop.f32.mrf.mxu0
    %v3549 = vadd.f32 0.0, %v3548
    %3550 = vmatmul.bf16.gmra.mxu0 %v3232
    %v3551 = vpop.f32.mrf.mxu0
    %v3552 = vadd.f32 0.0, %v3551
    %v3553 = vpop.f32.mrf.mxu0
    %v3554 = vadd.f32 0.0, %v3553
    %3555 = vmatmul.bf16.gmra.mxu0 %v3234
    %v3556 = vpop.f32.mrf.mxu0
    %v3557 = vadd.f32 0.0, %v3556
    %v3558 = vpop.f32.mrf.mxu0
    %v3559 = vadd.f32 0.0, %v3558
    %3560 = vmatmul.bf16.gmra.mxu0 %v3236
    %v3561 = vpop.f32.mrf.mxu0
    %v3562 = vadd.f32 0.0, %v3561
    %v3563 = vpop.f32.mrf.mxu0
    %v3564 = vadd.f32 0.0, %v3563
    %3565 = vmatmul.bf16.gmra.mxu0 %v3238
    %v3566 = vpop.f32.mrf.mxu0
    %v3567 = vadd.f32 0.0, %v3566
    %v3568 = vpop.f32.mrf.mxu0
    %v3569 = vadd.f32 0.0, %v3568
    %3570 = vmatmul.bf16.gmra.mxu0 %v3240
    %v3571 = vpop.f32.mrf.mxu0
    %v3572 = vadd.f32 0.0, %v3571
    %v3573 = vpop.f32.mrf.mxu0
    %v3574 = vadd.f32 0.0, %v3573
    %3575 = vmatmul.bf16.gmra.mxu0 %v3242
    %v3576 = vpop.f32.mrf.mxu0
    %v3577 = vadd.f32 0.0, %v3576
    %v3578 = vpop.f32.mrf.mxu0
    %v3579 = vadd.f32 0.0, %v3578
    %3580 = vmatmul.bf16.gmra.mxu0 %v3244
    %v3581 = vpop.f32.mrf.mxu0
    %v3582 = vadd.f32 0.0, %v3581
    %v3583 = vpop.f32.mrf.mxu0
    %v3584 = vadd.f32 0.0, %v3583
    %3585 = vdwg.mxu0
    %3586 = vmatpush.bf16.msra.mxu0 %v3406
    %3587 = vmatpush.bf16.msra.mxu0 %v3404
    %3588 = vmatpush.bf16.msra.mxu0 %v3402
    %3589 = vmatpush.bf16.msra.mxu0 %v3400
    %3590 = vmatpush.bf16.msra.mxu0 %v3398
    %3591 = vmatpush.bf16.msra.mxu0 %v3396
    %3592 = vmatpush.bf16.msra.mxu0 %v3394
    %3593 = vmatpush.bf16.msra.mxu0 %v3392
    %3594 = vmatmul.bf16.gmra.mxu0 %v3231
    %v3595 = vpop.f32.mrf.mxu0
    %v3596 = vadd.f32 %v3547, %v3595
    %v3597 = vpop.f32.mrf.mxu0
    %v3598 = vadd.f32 %v3549, %v3597
    %3599 = vmatmul.bf16.gmra.mxu0 %v3233
    %v3600 = vpop.f32.mrf.mxu0
    %v3601 = vadd.f32 %v3552, %v3600
    %v3602 = vpop.f32.mrf.mxu0
    %v3603 = vadd.f32 %v3554, %v3602
    %3604 = vmatmul.bf16.gmra.mxu0 %v3235
    %v3605 = vpop.f32.mrf.mxu0
    %v3606 = vadd.f32 %v3557, %v3605
    %v3607 = vpop.f32.mrf.mxu0
    %v3608 = vadd.f32 %v3559, %v3607
    %3609 = vmatmul.bf16.gmra.mxu0 %v3237
    %v3610 = vpop.f32.mrf.mxu0
    %v3611 = vadd.f32 %v3562, %v3610
    %v3612 = vpop.f32.mrf.mxu0
    %v3613 = vadd.f32 %v3564, %v3612
    %3614 = vmatmul.bf16.gmra.mxu0 %v3239
    %v3615 = vpop.f32.mrf.mxu0
    %v3616 = vadd.f32 %v3567, %v3615
    %v3617 = vpop.f32.mrf.mxu0
    %v3618 = vadd.f32 %v3569, %v3617
    %3619 = vmatmul.bf16.gmra.mxu0 %v3241
    %v3620 = vpop.f32.mrf.mxu0
    %v3621 = vadd.f32 %v3572, %v3620
    %v3622 = vpop.f32.mrf.mxu0
    %v3623 = vadd.f32 %v3574, %v3622
    %3624 = vmatmul.bf16.gmra.mxu0 %v3243
    %v3625 = vpop.f32.mrf.mxu0
    %v3626 = vadd.f32 %v3577, %v3625
    %v3627 = vpop.f32.mrf.mxu0
    %v3628 = vadd.f32 %v3579, %v3627
    %3629 = vmatmul.bf16.gmra.mxu0 %v3245
    %v3630 = vpop.f32.mrf.mxu0
    %v3631 = vadd.f32 %v3582, %v3630
    %v3632 = vpop.f32.mrf.mxu0
    %v3633 = vadd.f32 %v3584, %v3632
    %3634 = vdwg.mxu0
    %v3635 = vadd.f32 %v2942, %v3498
    %v3636 = vadd.f32 %v2943, %v3596
    %v3637 = vadd.f32 %v2944, %v3500
    %v3638 = vadd.f32 %v2945, %v3598
    %v3639 = vadd.f32 %v2946, %v3503
    %v3640 = vadd.f32 %v2947, %v3601
    %v3641 = vadd.f32 %v2948, %v3505
    %v3642 = vadd.f32 %v2949, %v3603
    %v3643 = vadd.f32 %v2950, %v3508
    %v3644 = vadd.f32 %v2951, %v3606
    %v3645 = vadd.f32 %v2952, %v3510
    %v3646 = vadd.f32 %v2953, %v3608
    %v3647 = vadd.f32 %v2954, %v3513
    %v3648 = vadd.f32 %v2955, %v3611
    %v3649 = vadd.f32 %v2956, %v3515
    %v3650 = vadd.f32 %v2957, %v3613
    %v3651 = vadd.f32 %v2958, %v3518
    %v3652 = vadd.f32 %v2959, %v3616
    %v3653 = vadd.f32 %v2960, %v3520
    %v3654 = vadd.f32 %v2961, %v3618
    %v3655 = vadd.f32 %v2962, %v3523
    %v3656 = vadd.f32 %v2963, %v3621
    %v3657 = vadd.f32 %v2964, %v3525
    %v3658 = vadd.f32 %v2965, %v3623
    %v3659 = vadd.f32 %v2966, %v3528
    %v3660 = vadd.f32 %v2967, %v3626
    %v3661 = vadd.f32 %v2968, %v3530
    %v3662 = vadd.f32 %v2969, %v3628
    %v3663 = vadd.f32 %v2970, %v3533
    %v3664 = vadd.f32 %v2971, %v3631
    %v3665 = vadd.f32 %v2972, %v3535
    %v3666 = vadd.f32 %v2973, %v3633
    %s3667 = scalar_lea.vmem %s0, 64
    %v3668 = vld [vmem:[%s3667] sm:$0xff]
    %v3669 = vld [vmem:[%s3667 + $0x8] sm:$0xff]
    %v3670 = vld [vmem:[%s3667 + $0x20] sm:$0xff]
    %v3671 = vld [vmem:[%s3667 + $0x28] sm:$0xff]
    %v3672 = vld [vmem:[%s3667 + $0x40] sm:$0xff]
    %v3673 = vld [vmem:[%s3667 + $0x48] sm:$0xff]
    %v3674 = vld [vmem:[%s3667 + $0x60] sm:$0xff]
    %v3675 = vld [vmem:[%s3667 + $0x68] sm:$0xff]
    %v3676 = vld [vmem:[%s3667 + $0x80] sm:$0xff]
    %v3677 = vld [vmem:[%s3667 + $0x88] sm:$0xff]
    %v3678 = vld [vmem:[%s3667 + $0xa0] sm:$0xff]
    %v3679 = vld [vmem:[%s3667 + $0xa8] sm:$0xff]
    %v3680 = vld [vmem:[%s3667 + $0xc0] sm:$0xff]
    %v3681 = vld [vmem:[%s3667 + $0xc8] sm:$0xff]
    %v3682 = vld [vmem:[%s3667 + $0xe0] sm:$0xff]
    %v3683 = vld [vmem:[%s3667 + $0xe8] sm:$0xff]
    %v3684 = vld [vmem:[%s3667 + $0x140] sm:$0xff]
    %v3685 = vld [vmem:[%s3667 + $0x148] sm:$0xff]
    %v3686 = vld [vmem:[%s3667 + $0x160] sm:$0xff]
    %v3687 = vld [vmem:[%s3667 + $0x168] sm:$0xff]
    %v3688 = vld [vmem:[%s3667 + $0x180] sm:$0xff]
    %v3689 = vld [vmem:[%s3667 + $0x188] sm:$0xff]
    %v3690 = vld [vmem:[%s3667 + $0x1a0] sm:$0xff]
    %v3691 = vld [vmem:[%s3667 + $0x1a8] sm:$0xff]
    %v3692 = vld [vmem:[%s3667 + $0x1c0] sm:$0xff]
    %v3693 = vld [vmem:[%s3667 + $0x1c8] sm:$0xff]
    %v3694 = vld [vmem:[%s3667 + $0x1e0] sm:$0xff]
    %v3695 = vld [vmem:[%s3667 + $0x1e8] sm:$0xff]
    %v3696 = vld [vmem:[%s3667 + $0x200] sm:$0xff]
    %v3697 = vld [vmem:[%s3667 + $0x208] sm:$0xff]
    %v3698 = vld [vmem:[%s3667 + $0x220] sm:$0xff]
    %v3699 = vld [vmem:[%s3667 + $0x228] sm:$0xff]
    %v3700 = vpack.c.bf16 %v3670, %v3668
    %v3701 = vpack.c.bf16 %v3671, %v3669
    %v3702 = vpack.c.bf16 %v3674, %v3672
    %v3703 = vpack.c.bf16 %v3675, %v3673
    %v3704 = vpack.c.bf16 %v3678, %v3676
    %v3705 = vpack.c.bf16 %v3679, %v3677
    %v3706 = vpack.c.bf16 %v3682, %v3680
    %v3707 = vpack.c.bf16 %v3683, %v3681
    %v3708 = vpack.c.bf16 %v3686, %v3684
    %v3709 = vpack.c.bf16 %v3687, %v3685
    %v3710 = vpack.c.bf16 %v3690, %v3688
    %v3711 = vpack.c.bf16 %v3691, %v3689
    %v3712 = vpack.c.bf16 %v3694, %v3692
    %v3713 = vpack.c.bf16 %v3695, %v3693
    %v3714 = vpack.c.bf16 %v3698, %v3696
    %v3715 = vpack.c.bf16 %v3699, %v3697
    %s3716 = scalar_lea.vmem %s1, 1536
    %v3717 = vld [vmem:[%s3716] sm:$0xff]
    %v3718 = vld [vmem:[%s3716 + $0x8] sm:$0xff]
    %v3719 = vld [vmem:[%s3716 + $0x10] sm:$0xff]
    %v3720 = vld [vmem:[%s3716 + $0x18] sm:$0xff]
    %v3721 = vld [vmem:[%s3716 + $0x20] sm:$0xff]
    %v3722 = vld [vmem:[%s3716 + $0x28] sm:$0xff]
    %v3723 = vld [vmem:[%s3716 + $0x30] sm:$0xff]
    %v3724 = vld [vmem:[%s3716 + $0x38] sm:$0xff]
    %v3725 = vld [vmem:[%s3716 + $0x40] sm:$0xff]
    %v3726 = vld [vmem:[%s3716 + $0x48] sm:$0xff]
    %v3727 = vld [vmem:[%s3716 + $0x50] sm:$0xff]
    %v3728 = vld [vmem:[%s3716 + $0x58] sm:$0xff]
    %v3729 = vld [vmem:[%s3716 + $0x60] sm:$0xff]
    %v3730 = vld [vmem:[%s3716 + $0x68] sm:$0xff]
    %v3731 = vld [vmem:[%s3716 + $0x70] sm:$0xff]
    %v3732 = vld [vmem:[%s3716 + $0x78] sm:$0xff]
    %v3733 = vld [vmem:[%s3716 + $0x80] sm:$0xff]
    %v3734 = vld [vmem:[%s3716 + $0x88] sm:$0xff]
    %v3735 = vld [vmem:[%s3716 + $0x90] sm:$0xff]
    %v3736 = vld [vmem:[%s3716 + $0x98] sm:$0xff]
    %v3737 = vld [vmem:[%s3716 + $0xa0] sm:$0xff]
    %v3738 = vld [vmem:[%s3716 + $0xa8] sm:$0xff]
    %v3739 = vld [vmem:[%s3716 + $0xb0] sm:$0xff]
    %v3740 = vld [vmem:[%s3716 + $0xb8] sm:$0xff]
    %v3741 = vld [vmem:[%s3716 + $0xc0] sm:$0xff]
    %v3742 = vld [vmem:[%s3716 + $0xc8] sm:$0xff]
    %v3743 = vld [vmem:[%s3716 + $0xd0] sm:$0xff]
    %v3744 = vld [vmem:[%s3716 + $0xd8] sm:$0xff]
    %v3745 = vld [vmem:[%s3716 + $0xe0] sm:$0xff]
    %v3746 = vld [vmem:[%s3716 + $0xe8] sm:$0xff]
    %v3747 = vld [vmem:[%s3716 + $0xf0] sm:$0xff]
    %v3748 = vld [vmem:[%s3716 + $0xf8] sm:$0xff]
    %v3781 = vunpack.c.l.b16 %v3717
    %v3782 = vunpack.c.h.b16 %v3717
    %v3783 = vunpack.c.l.b16 %v3718
    %v3784 = vunpack.c.h.b16 %v3718
    %v3785 = vunpack.c.l.b16 %v3719
    %v3786 = vunpack.c.h.b16 %v3719
    %v3787 = vunpack.c.l.b16 %v3720
    %v3788 = vunpack.c.h.b16 %v3720
    %v3789 = vunpack.c.l.b16 %v3721
    %v3790 = vunpack.c.h.b16 %v3721
    %v3791 = vunpack.c.l.b16 %v3722
    %v3792 = vunpack.c.h.b16 %v3722
    %v3793 = vunpack.c.l.b16 %v3723
    %v3794 = vunpack.c.h.b16 %v3723
    %v3795 = vunpack.c.l.b16 %v3724
    %v3796 = vunpack.c.h.b16 %v3724
    %v3797 = vunpack.c.l.b16 %v3725
    %v3798 = vunpack.c.h.b16 %v3725
    %v3799 = vunpack.c.l.b16 %v3726
    %v3800 = vunpack.c.h.b16 %v3726
    %v3801 = vunpack.c.l.b16 %v3727
    %v3802 = vunpack.c.h.b16 %v3727
    %v3803 = vunpack.c.l.b16 %v3728
    %v3804 = vunpack.c.h.b16 %v3728
    %v3805 = vunpack.c.l.b16 %v3729
    %v3806 = vunpack.c.h.b16 %v3729
    %v3807 = vunpack.c.l.b16 %v3730
    %v3808 = vunpack.c.h.b16 %v3730
    %v3809 = vunpack.c.l.b16 %v3731
    %v3810 = vunpack.c.h.b16 %v3731
    %v3811 = vunpack.c.l.b16 %v3732
    %v3812 = vunpack.c.h.b16 %v3732
    %v3813 = vunpack.c.l.b16 %v3733
    %v3814 = vunpack.c.h.b16 %v3733
    %v3815 = vunpack.c.l.b16 %v3734
    %v3816 = vunpack.c.h.b16 %v3734
    %v3817 = vunpack.c.l.b16 %v3735
    %v3818 = vunpack.c.h.b16 %v3735
    %v3819 = vunpack.c.l.b16 %v3736
    %v3820 = vunpack.c.h.b16 %v3736
    %v3821 = vunpack.c.l.b16 %v3737
    %v3822 = vunpack.c.h.b16 %v3737
    %v3823 = vunpack.c.l.b16 %v3738
    %v3824 = vunpack.c.h.b16 %v3738
    %v3825 = vunpack.c.l.b16 %v3739
    %v3826 = vunpack.c.h.b16 %v3739
    %v3827 = vunpack.c.l.b16 %v3740
    %v3828 = vunpack.c.h.b16 %v3740
    %v3829 = vunpack.c.l.b16 %v3741
    %v3830 = vunpack.c.h.b16 %v3741
    %v3831 = vunpack.c.l.b16 %v3742
    %v3832 = vunpack.c.h.b16 %v3742
    %v3833 = vunpack.c.l.b16 %v3743
    %v3834 = vunpack.c.h.b16 %v3743
    %v3835 = vunpack.c.l.b16 %v3744
    %v3836 = vunpack.c.h.b16 %v3744
    %v3837 = vunpack.c.l.b16 %v3745
    %v3838 = vunpack.c.h.b16 %v3745
    %v3839 = vunpack.c.l.b16 %v3746
    %v3840 = vunpack.c.h.b16 %v3746
    %v3841 = vunpack.c.l.b16 %v3747
    %v3842 = vunpack.c.h.b16 %v3747
    %v3843 = vunpack.c.l.b16 %v3748
    %v3844 = vunpack.c.h.b16 %v3748
    %v3845 = vpack.c.b16 %v3783, %v3781
    %v3846 = vpack.c.b16 %v3784, %v3782
    %v3847 = vpack.c.b16 %v3787, %v3785
    %v3848 = vpack.c.b16 %v3788, %v3786
    %v3849 = vpack.c.b16 %v3791, %v3789
    %v3850 = vpack.c.b16 %v3792, %v3790
    %v3851 = vpack.c.b16 %v3795, %v3793
    %v3852 = vpack.c.b16 %v3796, %v3794
    %v3853 = vpack.c.b16 %v3799, %v3797
    %v3854 = vpack.c.b16 %v3800, %v3798
    %v3855 = vpack.c.b16 %v3803, %v3801
    %v3856 = vpack.c.b16 %v3804, %v3802
    %v3857 = vpack.c.b16 %v3807, %v3805
    %v3858 = vpack.c.b16 %v3808, %v3806
    %v3859 = vpack.c.b16 %v3811, %v3809
    %v3860 = vpack.c.b16 %v3812, %v3810
    %v3861 = vpack.c.b16 %v3815, %v3813
    %v3862 = vpack.c.b16 %v3816, %v3814
    %v3863 = vpack.c.b16 %v3819, %v3817
    %v3864 = vpack.c.b16 %v3820, %v3818
    %v3865 = vpack.c.b16 %v3823, %v3821
    %v3866 = vpack.c.b16 %v3824, %v3822
    %v3867 = vpack.c.b16 %v3827, %v3825
    %v3868 = vpack.c.b16 %v3828, %v3826
    %v3869 = vpack.c.b16 %v3831, %v3829
    %v3870 = vpack.c.b16 %v3832, %v3830
    %v3871 = vpack.c.b16 %v3835, %v3833
    %v3872 = vpack.c.b16 %v3836, %v3834
    %v3873 = vpack.c.b16 %v3839, %v3837
    %v3874 = vpack.c.b16 %v3840, %v3838
    %v3875 = vpack.c.b16 %v3843, %v3841
    %v3876 = vpack.c.b16 %v3844, %v3842
    %3909 = vmatpush.bf16.msra.mxu0 %v3859
    %3910 = vmatpush.bf16.msra.mxu0 %v3857
    %3911 = vmatpush.bf16.msra.mxu0 %v3855
    %3912 = vmatpush.bf16.msra.mxu0 %v3853
    %3913 = vmatpush.bf16.msra.mxu0 %v3851
    %3914 = vmatpush.bf16.msra.mxu0 %v3849
    %3915 = vmatpush.bf16.msra.mxu0 %v3847
    %3916 = vmatpush.bf16.msra.mxu0 %v3845
    %3917 = vmatmul.bf16.gmra.mxu0 %v3700
    %v3918 = vpop.f32.mrf.mxu0
    %v3919 = vadd.f32 0.0, %v3918
    %v3920 = vpop.f32.mrf.mxu0
    %v3921 = vadd.f32 0.0, %v3920
    %3922 = vmatmul.bf16.gmra.mxu0 %v3702
    %v3923 = vpop.f32.mrf.mxu0
    %v3924 = vadd.f32 0.0, %v3923
    %v3925 = vpop.f32.mrf.mxu0
    %v3926 = vadd.f32 0.0, %v3925
    %3927 = vmatmul.bf16.gmra.mxu0 %v3704
    %v3928 = vpop.f32.mrf.mxu0
    %v3929 = vadd.f32 0.0, %v3928
    %v3930 = vpop.f32.mrf.mxu0
    %v3931 = vadd.f32 0.0, %v3930
    %3932 = vmatmul.bf16.gmra.mxu0 %v3706
    %v3933 = vpop.f32.mrf.mxu0
    %v3934 = vadd.f32 0.0, %v3933
    %v3935 = vpop.f32.mrf.mxu0
    %v3936 = vadd.f32 0.0, %v3935
    %3937 = vmatmul.bf16.gmra.mxu0 %v3708
    %v3938 = vpop.f32.mrf.mxu0
    %v3939 = vadd.f32 0.0, %v3938
    %v3940 = vpop.f32.mrf.mxu0
    %v3941 = vadd.f32 0.0, %v3940
    %3942 = vmatmul.bf16.gmra.mxu0 %v3710
    %v3943 = vpop.f32.mrf.mxu0
    %v3944 = vadd.f32 0.0, %v3943
    %v3945 = vpop.f32.mrf.mxu0
    %v3946 = vadd.f32 0.0, %v3945
    %3947 = vmatmul.bf16.gmra.mxu0 %v3712
    %v3948 = vpop.f32.mrf.mxu0
    %v3949 = vadd.f32 0.0, %v3948
    %v3950 = vpop.f32.mrf.mxu0
    %v3951 = vadd.f32 0.0, %v3950
    %3952 = vmatmul.bf16.gmra.mxu0 %v3714
    %v3953 = vpop.f32.mrf.mxu0
    %v3954 = vadd.f32 0.0, %v3953
    %v3955 = vpop.f32.mrf.mxu0
    %v3956 = vadd.f32 0.0, %v3955
    %3957 = vdwg.mxu0
    %3958 = vmatpush.bf16.msra.mxu0 %v3875
    %3959 = vmatpush.bf16.msra.mxu0 %v3873
    %3960 = vmatpush.bf16.msra.mxu0 %v3871
    %3961 = vmatpush.bf16.msra.mxu0 %v3869
    %3962 = vmatpush.bf16.msra.mxu0 %v3867
    %3963 = vmatpush.bf16.msra.mxu0 %v3865
    %3964 = vmatpush.bf16.msra.mxu0 %v3863
    %3965 = vmatpush.bf16.msra.mxu0 %v3861
    %3966 = vmatmul.bf16.gmra.mxu0 %v3701
    %v3967 = vpop.f32.mrf.mxu0
    %v3968 = vadd.f32 %v3919, %v3967
    %v3969 = vpop.f32.mrf.mxu0
    %v3970 = vadd.f32 %v3921, %v3969
    %3971 = vmatmul.bf16.gmra.mxu0 %v3703
    %v3972 = vpop.f32.mrf.mxu0
    %v3973 = vadd.f32 %v3924, %v3972
    %v3974 = vpop.f32.mrf.mxu0
    %v3975 = vadd.f32 %v3926, %v3974
    %3976 = vmatmul.bf16.gmra.mxu0 %v3705
    %v3977 = vpop.f32.mrf.mxu0
    %v3978 = vadd.f32 %v3929, %v3977
    %v3979 = vpop.f32.mrf.mxu0
    %v3980 = vadd.f32 %v3931, %v3979
    %3981 = vmatmul.bf16.gmra.mxu0 %v3707
    %v3982 = vpop.f32.mrf.mxu0
    %v3983 = vadd.f32 %v3934, %v3982
    %v3984 = vpop.f32.mrf.mxu0
    %v3985 = vadd.f32 %v3936, %v3984
    %3986 = vmatmul.bf16.gmra.mxu0 %v3709
    %v3987 = vpop.f32.mrf.mxu0
    %v3988 = vadd.f32 %v3939, %v3987
    %v3989 = vpop.f32.mrf.mxu0
    %v3990 = vadd.f32 %v3941, %v3989
    %3991 = vmatmul.bf16.gmra.mxu0 %v3711
    %v3992 = vpop.f32.mrf.mxu0
    %v3993 = vadd.f32 %v3944, %v3992
    %v3994 = vpop.f32.mrf.mxu0
    %v3995 = vadd.f32 %v3946, %v3994
    %3996 = vmatmul.bf16.gmra.mxu0 %v3713
    %v3997 = vpop.f32.mrf.mxu0
    %v3998 = vadd.f32 %v3949, %v3997
    %v3999 = vpop.f32.mrf.mxu0
    %v4000 = vadd.f32 %v3951, %v3999
    %4001 = vmatmul.bf16.gmra.mxu0 %v3715
    %v4002 = vpop.f32.mrf.mxu0
    %v4003 = vadd.f32 %v3954, %v4002
    %v4004 = vpop.f32.mrf.mxu0
    %v4005 = vadd.f32 %v3956, %v4004
    %4006 = vdwg.mxu0
    %4007 = vmatpush.bf16.msra.mxu0 %v3860
    %4008 = vmatpush.bf16.msra.mxu0 %v3858
    %4009 = vmatpush.bf16.msra.mxu0 %v3856
    %4010 = vmatpush.bf16.msra.mxu0 %v3854
    %4011 = vmatpush.bf16.msra.mxu0 %v3852
    %4012 = vmatpush.bf16.msra.mxu0 %v3850
    %4013 = vmatpush.bf16.msra.mxu0 %v3848
    %4014 = vmatpush.bf16.msra.mxu0 %v3846
    %4015 = vmatmul.bf16.gmra.mxu0 %v3700
    %v4016 = vpop.f32.mrf.mxu0
    %v4017 = vadd.f32 0.0, %v4016
    %v4018 = vpop.f32.mrf.mxu0
    %v4019 = vadd.f32 0.0, %v4018
    %4020 = vmatmul.bf16.gmra.mxu0 %v3702
    %v4021 = vpop.f32.mrf.mxu0
    %v4022 = vadd.f32 0.0, %v4021
    %v4023 = vpop.f32.mrf.mxu0
    %v4024 = vadd.f32 0.0, %v4023
    %4025 = vmatmul.bf16.gmra.mxu0 %v3704
    %v4026 = vpop.f32.mrf.mxu0
    %v4027 = vadd.f32 0.0, %v4026
    %v4028 = vpop.f32.mrf.mxu0
    %v4029 = vadd.f32 0.0, %v4028
    %4030 = vmatmul.bf16.gmra.mxu0 %v3706
    %v4031 = vpop.f32.mrf.mxu0
    %v4032 = vadd.f32 0.0, %v4031
    %v4033 = vpop.f32.mrf.mxu0
    %v4034 = vadd.f32 0.0, %v4033
    %4035 = vmatmul.bf16.gmra.mxu0 %v3708
    %v4036 = vpop.f32.mrf.mxu0
    %v4037 = vadd.f32 0.0, %v4036
    %v4038 = vpop.f32.mrf.mxu0
    %v4039 = vadd.f32 0.0, %v4038
    %4040 = vmatmul.bf16.gmra.mxu0 %v3710
    %v4041 = vpop.f32.mrf.mxu0
    %v4042 = vadd.f32 0.0, %v4041
    %v4043 = vpop.f32.mrf.mxu0
    %v4044 = vadd.f32 0.0, %v4043
    %4045 = vmatmul.bf16.gmra.mxu0 %v3712
    %v4046 = vpop.f32.mrf.mxu0
    %v4047 = vadd.f32 0.0, %v4046
    %v4048 = vpop.f32.mrf.mxu0
    %v4049 = vadd.f32 0.0, %v4048
    %4050 = vmatmul.bf16.gmra.mxu0 %v3714
    %v4051 = vpop.f32.mrf.mxu0
    %v4052 = vadd.f32 0.0, %v4051
    %v4053 = vpop.f32.mrf.mxu0
    %v4054 = vadd.f32 0.0, %v4053
    %4055 = vdwg.mxu0
    %4056 = vmatpush.bf16.msra.mxu0 %v3876
    %4057 = vmatpush.bf16.msra.mxu0 %v3874
    %4058 = vmatpush.bf16.msra.mxu0 %v3872
    %4059 = vmatpush.bf16.msra.mxu0 %v3870
    %4060 = vmatpush.bf16.msra.mxu0 %v3868
    %4061 = vmatpush.bf16.msra.mxu0 %v3866
    %4062 = vmatpush.bf16.msra.mxu0 %v3864
    %4063 = vmatpush.bf16.msra.mxu0 %v3862
    %4064 = vmatmul.bf16.gmra.mxu0 %v3701
    %v4065 = vpop.f32.mrf.mxu0
    %v4066 = vadd.f32 %v4017, %v4065
    %v4067 = vpop.f32.mrf.mxu0
    %v4068 = vadd.f32 %v4019, %v4067
    %4069 = vmatmul.bf16.gmra.mxu0 %v3703
    %v4070 = vpop.f32.mrf.mxu0
    %v4071 = vadd.f32 %v4022, %v4070
    %v4072 = vpop.f32.mrf.mxu0
    %v4073 = vadd.f32 %v4024, %v4072
    %4074 = vmatmul.bf16.gmra.mxu0 %v3705
    %v4075 = vpop.f32.mrf.mxu0
    %v4076 = vadd.f32 %v4027, %v4075
    %v4077 = vpop.f32.mrf.mxu0
    %v4078 = vadd.f32 %v4029, %v4077
    %4079 = vmatmul.bf16.gmra.mxu0 %v3707
    %v4080 = vpop.f32.mrf.mxu0
    %v4081 = vadd.f32 %v4032, %v4080
    %v4082 = vpop.f32.mrf.mxu0
    %v4083 = vadd.f32 %v4034, %v4082
    %4084 = vmatmul.bf16.gmra.mxu0 %v3709
    %v4085 = vpop.f32.mrf.mxu0
    %v4086 = vadd.f32 %v4037, %v4085
    %v4087 = vpop.f32.mrf.mxu0
    %v4088 = vadd.f32 %v4039, %v4087
    %4089 = vmatmul.bf16.gmra.mxu0 %v3711
    %v4090 = vpop.f32.mrf.mxu0
    %v4091 = vadd.f32 %v4042, %v4090
    %v4092 = vpop.f32.mrf.mxu0
    %v4093 = vadd.f32 %v4044, %v4092
    %4094 = vmatmul.bf16.gmra.mxu0 %v3713
    %v4095 = vpop.f32.mrf.mxu0
    %v4096 = vadd.f32 %v4047, %v4095
    %v4097 = vpop.f32.mrf.mxu0
    %v4098 = vadd.f32 %v4049, %v4097
    %4099 = vmatmul.bf16.gmra.mxu0 %v3715
    %v4100 = vpop.f32.mrf.mxu0
    %v4101 = vadd.f32 %v4052, %v4100
    %v4102 = vpop.f32.mrf.mxu0
    %v4103 = vadd.f32 %v4054, %v4102
    %4104 = vdwg.mxu0
    %v4105 = vadd.f32 %v3635, %v3968
    %v4106 = vadd.f32 %v3636, %v4066
    %v4107 = vadd.f32 %v3637, %v3970
    %v4108 = vadd.f32 %v3638, %v4068
    %v4109 = vadd.f32 %v3639, %v3973
    %v4110 = vadd.f32 %v3640, %v4071
    %v4111 = vadd.f32 %v3641, %v3975
    %v4112 = vadd.f32 %v3642, %v4073
    %v4113 = vadd.f32 %v3643, %v3978
    %v4114 = vadd.f32 %v3644, %v4076
    %v4115 = vadd.f32 %v3645, %v3980
    %v4116 = vadd.f32 %v3646, %v4078
    %v4117 = vadd.f32 %v3647, %v3983
    %v4118 = vadd.f32 %v3648, %v4081
    %v4119 = vadd.f32 %v3649, %v3985
    %v4120 = vadd.f32 %v3650, %v4083
    %v4121 = vadd.f32 %v3651, %v3988
    %v4122 = vadd.f32 %v3652, %v4086
    %v4123 = vadd.f32 %v3653, %v3990
    %v4124 = vadd.f32 %v3654, %v4088
    %v4125 = vadd.f32 %v3655, %v3993
    %v4126 = vadd.f32 %v3656, %v4091
    %v4127 = vadd.f32 %v3657, %v3995
    %v4128 = vadd.f32 %v3658, %v4093
    %v4129 = vadd.f32 %v3659, %v3998
    %v4130 = vadd.f32 %v3660, %v4096
    %v4131 = vadd.f32 %v3661, %v4000
    %v4132 = vadd.f32 %v3662, %v4098
    %v4133 = vadd.f32 %v3663, %v4003
    %v4134 = vadd.f32 %v3664, %v4101
    %v4135 = vadd.f32 %v3665, %v4005
    %v4136 = vadd.f32 %v3666, %v4103
    %v4137 = vld [vmem:[%s3667] sm:$0xfe]
    %v4138 = vld [vmem:[%s3667 + $0x8] sm:$0xfe]
    %v4139 = vld [vmem:[%s3667 + $0x10] sm:$0x1]
    %v4140 = vld [vmem:[%s3667 + $0x18] sm:$0x1]
    %v4141 = vld [vmem:[%s3667 + $0x20] sm:$0xfe]
    %v4142 = vld [vmem:[%s3667 + $0x28] sm:$0xfe]
    %v4143 = vld [vmem:[%s3667 + $0x30] sm:$0x1]
    %v4144 = vld [vmem:[%s3667 + $0x38] sm:$0x1]
    %v4145 = vld [vmem:[%s3667 + $0x40] sm:$0xfe]
    %v4146 = vld [vmem:[%s3667 + $0x48] sm:$0xfe]
    %v4147 = vld [vmem:[%s3667 + $0x50] sm:$0x1]
    %v4148 = vld [vmem:[%s3667 + $0x58] sm:$0x1]
    %v4149 = vld [vmem:[%s3667 + $0x60] sm:$0xfe]
    %v4150 = vld [vmem:[%s3667 + $0x68] sm:$0xfe]
    %v4151 = vld [vmem:[%s3667 + $0x70] sm:$0x1]
    %v4152 = vld [vmem:[%s3667 + $0x78] sm:$0x1]
    %v4153 = vld [vmem:[%s3667 + $0x80] sm:$0xfe]
    %v4154 = vld [vmem:[%s3667 + $0x88] sm:$0xfe]
    %v4155 = vld [vmem:[%s3667 + $0x90] sm:$0x1]
    %v4156 = vld [vmem:[%s3667 + $0x98] sm:$0x1]
    %v4157 = vld [vmem:[%s3667 + $0xa0] sm:$0xfe]
    %v4158 = vld [vmem:[%s3667 + $0xa8] sm:$0xfe]
    %v4159 = vld [vmem:[%s3667 + $0xb0] sm:$0x1]
    %v4160 = vld [vmem:[%s3667 + $0xb8] sm:$0x1]
    %v4161 = vld [vmem:[%s3667 + $0xc0] sm:$0xfe]
    %v4162 = vld [vmem:[%s3667 + $0xc8] sm:$0xfe]
    %v4163 = vld [vmem:[%s3667 + $0xd0] sm:$0x1]
    %v4164 = vld [vmem:[%s3667 + $0xd8] sm:$0x1]
    %v4165 = vld [vmem:[%s3667 + $0xe0] sm:$0xfe]
    %v4166 = vld [vmem:[%s3667 + $0xe8] sm:$0xfe]
    %v4167 = vld [vmem:[%s3667 + $0xf0] sm:$0x1]
    %v4168 = vld [vmem:[%s3667 + $0xf8] sm:$0x1]
    %v4169 = vld [vmem:[%s3667 + $0x140] sm:$0xfe]
    %v4170 = vld [vmem:[%s3667 + $0x148] sm:$0xfe]
    %v4171 = vld [vmem:[%s3667 + $0x150] sm:$0x1]
    %v4172 = vld [vmem:[%s3667 + $0x158] sm:$0x1]
    %v4173 = vld [vmem:[%s3667 + $0x160] sm:$0xfe]
    %v4174 = vld [vmem:[%s3667 + $0x168] sm:$0xfe]
    %v4175 = vld [vmem:[%s3667 + $0x170] sm:$0x1]
    %v4176 = vld [vmem:[%s3667 + $0x178] sm:$0x1]
    %v4177 = vld [vmem:[%s3667 + $0x180] sm:$0xfe]
    %v4178 = vld [vmem:[%s3667 + $0x188] sm:$0xfe]
    %v4179 = vld [vmem:[%s3667 + $0x190] sm:$0x1]
    %v4180 = vld [vmem:[%s3667 + $0x198] sm:$0x1]
    %v4181 = vld [vmem:[%s3667 + $0x1a0] sm:$0xfe]
    %v4182 = vld [vmem:[%s3667 + $0x1a8] sm:$0xfe]
    %v4183 = vld [vmem:[%s3667 + $0x1b0] sm:$0x1]
    %v4184 = vld [vmem:[%s3667 + $0x1b8] sm:$0x1]
    %v4185 = vld [vmem:[%s3667 + $0x1c0] sm:$0xfe]
    %v4186 = vld [vmem:[%s3667 + $0x1c8] sm:$0xfe]
    %v4187 = vld [vmem:[%s3667 + $0x1d0] sm:$0x1]
    %v4188 = vld [vmem:[%s3667 + $0x1d8] sm:$0x1]
    %v4189 = vld [vmem:[%s3667 + $0x1e0] sm:$0xfe]
    %v4190 = vld [vmem:[%s3667 + $0x1e8] sm:$0xfe]
    %v4191 = vld [vmem:[%s3667 + $0x1f0] sm:$0x1]
    %v4192 = vld [vmem:[%s3667 + $0x1f8] sm:$0x1]
    %v4193 = vld [vmem:[%s3667 + $0x200] sm:$0xfe]
    %v4194 = vld [vmem:[%s3667 + $0x208] sm:$0xfe]
    %v4195 = vld [vmem:[%s3667 + $0x210] sm:$0x1]
    %v4196 = vld [vmem:[%s3667 + $0x218] sm:$0x1]
    %v4197 = vld [vmem:[%s3667 + $0x220] sm:$0xfe]
    %v4198 = vld [vmem:[%s3667 + $0x228] sm:$0xfe]
    %v4199 = vld [vmem:[%s3667 + $0x230] sm:$0x1]
    %v4200 = vld [vmem:[%s3667 + $0x238] sm:$0x1]
    %v4265 = vrot.slane %v4137, 1
    %v4266 = vrot.slane %v4139, 1
    %v4267 = vsel %vm227, %v4265, %v4266
    %v4268 = vrot.slane %v4138, 1
    %v4269 = vrot.slane %v4140, 1
    %v4270 = vsel %vm227, %v4268, %v4269
    %v4271 = vrot.slane %v4141, 1
    %v4272 = vrot.slane %v4143, 1
    %v4273 = vsel %vm227, %v4271, %v4272
    %v4274 = vrot.slane %v4142, 1
    %v4275 = vrot.slane %v4144, 1
    %v4276 = vsel %vm227, %v4274, %v4275
    %v4277 = vrot.slane %v4145, 1
    %v4278 = vrot.slane %v4147, 1
    %v4279 = vsel %vm227, %v4277, %v4278
    %v4280 = vrot.slane %v4146, 1
    %v4281 = vrot.slane %v4148, 1
    %v4282 = vsel %vm227, %v4280, %v4281
    %v4283 = vrot.slane %v4149, 1
    %v4284 = vrot.slane %v4151, 1
    %v4285 = vsel %vm227, %v4283, %v4284
    %v4286 = vrot.slane %v4150, 1
    %v4287 = vrot.slane %v4152, 1
    %v4288 = vsel %vm227, %v4286, %v4287
    %v4289 = vrot.slane %v4153, 1
    %v4290 = vrot.slane %v4155, 1
    %v4291 = vsel %vm227, %v4289, %v4290
    %v4292 = vrot.slane %v4154, 1
    %v4293 = vrot.slane %v4156, 1
    %v4294 = vsel %vm227, %v4292, %v4293
    %v4295 = vrot.slane %v4157, 1
    %v4296 = vrot.slane %v4159, 1
    %v4297 = vsel %vm227, %v4295, %v4296
    %v4298 = vrot.slane %v4158, 1
    %v4299 = vrot.slane %v4160, 1
    %v4300 = vsel %vm227, %v4298, %v4299
    %v4301 = vrot.slane %v4161, 1
    %v4302 = vrot.slane %v4163, 1
    %v4303 = vsel %vm227, %v4301, %v4302
    %v4304 = vrot.slane %v4162, 1
    %v4305 = vrot.slane %v4164, 1
    %v4306 = vsel %vm227, %v4304, %v4305
    %v4307 = vrot.slane %v4165, 1
    %v4308 = vrot.slane %v4167, 1
    %v4309 = vsel %vm227, %v4307, %v4308
    %v4310 = vrot.slane %v4166, 1
    %v4311 = vrot.slane %v4168, 1
    %v4312 = vsel %vm227, %v4310, %v4311
    %v4313 = vrot.slane %v4169, 1
    %v4314 = vrot.slane %v4171, 1
    %v4315 = vsel %vm227, %v4313, %v4314
    %v4316 = vrot.slane %v4170, 1
    %v4317 = vrot.slane %v4172, 1
    %v4318 = vsel %vm227, %v4316, %v4317
    %v4319 = vrot.slane %v4173, 1
    %v4320 = vrot.slane %v4175, 1
    %v4321 = vsel %vm227, %v4319, %v4320
    %v4322 = vrot.slane %v4174, 1
    %v4323 = vrot.slane %v4176, 1
    %v4324 = vsel %vm227, %v4322, %v4323
    %v4325 = vrot.slane %v4177, 1
    %v4326 = vrot.slane %v4179, 1
    %v4327 = vsel %vm227, %v4325, %v4326
    %v4328 = vrot.slane %v4178, 1
    %v4329 = vrot.slane %v4180, 1
    %v4330 = vsel %vm227, %v4328, %v4329
    %v4331 = vrot.slane %v4181, 1
    %v4332 = vrot.slane %v4183, 1
    %v4333 = vsel %vm227, %v4331, %v4332
    %v4334 = vrot.slane %v4182, 1
    %v4335 = vrot.slane %v4184, 1
    %v4336 = vsel %vm227, %v4334, %v4335
    %v4337 = vrot.slane %v4185, 1
    %v4338 = vrot.slane %v4187, 1
    %v4339 = vsel %vm227, %v4337, %v4338
    %v4340 = vrot.slane %v4186, 1
    %v4341 = vrot.slane %v4188, 1
    %v4342 = vsel %vm227, %v4340, %v4341
    %v4343 = vrot.slane %v4189, 1
    %v4344 = vrot.slane %v4191, 1
    %v4345 = vsel %vm227, %v4343, %v4344
    %v4346 = vrot.slane %v4190, 1
    %v4347 = vrot.slane %v4192, 1
    %v4348 = vsel %vm227, %v4346, %v4347
    %v4349 = vrot.slane %v4193, 1
    %v4350 = vrot.slane %v4195, 1
    %v4351 = vsel %vm227, %v4349, %v4350
    %v4352 = vrot.slane %v4194, 1
    %v4353 = vrot.slane %v4196, 1
    %v4354 = vsel %vm227, %v4352, %v4353
    %v4355 = vrot.slane %v4197, 1
    %v4356 = vrot.slane %v4199, 1
    %v4357 = vsel %vm227, %v4355, %v4356
    %v4358 = vrot.slane %v4198, 1
    %v4359 = vrot.slane %v4200, 1
    %v4360 = vsel %vm227, %v4358, %v4359
    %v4393 = vpack.c.bf16 %v4273, %v4267
    %v4394 = vpack.c.bf16 %v4276, %v4270
    %v4395 = vpack.c.bf16 %v4285, %v4279
    %v4396 = vpack.c.bf16 %v4288, %v4282
    %v4397 = vpack.c.bf16 %v4297, %v4291
    %v4398 = vpack.c.bf16 %v4300, %v4294
    %v4399 = vpack.c.bf16 %v4309, %v4303
    %v4400 = vpack.c.bf16 %v4312, %v4306
    %v4401 = vpack.c.bf16 %v4321, %v4315
    %v4402 = vpack.c.bf16 %v4324, %v4318
    %v4403 = vpack.c.bf16 %v4333, %v4327
    %v4404 = vpack.c.bf16 %v4336, %v4330
    %v4405 = vpack.c.bf16 %v4345, %v4339
    %v4406 = vpack.c.bf16 %v4348, %v4342
    %v4407 = vpack.c.bf16 %v4357, %v4351
    %v4408 = vpack.c.bf16 %v4360, %v4354
    %s4409 = scalar_lea.vmem %s1, 1792
    %v4410 = vld [vmem:[%s4409] sm:$0xff]
    %v4411 = vld [vmem:[%s4409 + $0x8] sm:$0xff]
    %v4412 = vld [vmem:[%s4409 + $0x10] sm:$0xff]
    %v4413 = vld [vmem:[%s4409 + $0x18] sm:$0xff]
    %v4414 = vld [vmem:[%s4409 + $0x20] sm:$0xff]
    %v4415 = vld [vmem:[%s4409 + $0x28] sm:$0xff]
    %v4416 = vld [vmem:[%s4409 + $0x30] sm:$0xff]
    %v4417 = vld [vmem:[%s4409 + $0x38] sm:$0xff]
    %v4418 = vld [vmem:[%s4409 + $0x40] sm:$0xff]
    %v4419 = vld [vmem:[%s4409 + $0x48] sm:$0xff]
    %v4420 = vld [vmem:[%s4409 + $0x50] sm:$0xff]
    %v4421 = vld [vmem:[%s4409 + $0x58] sm:$0xff]
    %v4422 = vld [vmem:[%s4409 + $0x60] sm:$0xff]
    %v4423 = vld [vmem:[%s4409 + $0x68] sm:$0xff]
    %v4424 = vld [vmem:[%s4409 + $0x70] sm:$0xff]
    %v4425 = vld [vmem:[%s4409 + $0x78] sm:$0xff]
    %v4426 = vld [vmem:[%s4409 + $0x80] sm:$0xff]
    %v4427 = vld [vmem:[%s4409 + $0x88] sm:$0xff]
    %v4428 = vld [vmem:[%s4409 + $0x90] sm:$0xff]
    %v4429 = vld [vmem:[%s4409 + $0x98] sm:$0xff]
    %v4430 = vld [vmem:[%s4409 + $0xa0] sm:$0xff]
    %v4431 = vld [vmem:[%s4409 + $0xa8] sm:$0xff]
    %v4432 = vld [vmem:[%s4409 + $0xb0] sm:$0xff]
    %v4433 = vld [vmem:[%s4409 + $0xb8] sm:$0xff]
    %v4434 = vld [vmem:[%s4409 + $0xc0] sm:$0xff]
    %v4435 = vld [vmem:[%s4409 + $0xc8] sm:$0xff]
    %v4436 = vld [vmem:[%s4409 + $0xd0] sm:$0xff]
    %v4437 = vld [vmem:[%s4409 + $0xd8] sm:$0xff]
    %v4438 = vld [vmem:[%s4409 + $0xe0] sm:$0xff]
    %v4439 = vld [vmem:[%s4409 + $0xe8] sm:$0xff]
    %v4440 = vld [vmem:[%s4409 + $0xf0] sm:$0xff]
    %v4441 = vld [vmem:[%s4409 + $0xf8] sm:$0xff]
    %v4474 = vunpack.c.l.b16 %v4410
    %v4475 = vunpack.c.h.b16 %v4410
    %v4476 = vunpack.c.l.b16 %v4411
    %v4477 = vunpack.c.h.b16 %v4411
    %v4478 = vunpack.c.l.b16 %v4412
    %v4479 = vunpack.c.h.b16 %v4412
    %v4480 = vunpack.c.l.b16 %v4413
    %v4481 = vunpack.c.h.b16 %v4413
    %v4482 = vunpack.c.l.b16 %v4414
    %v4483 = vunpack.c.h.b16 %v4414
    %v4484 = vunpack.c.l.b16 %v4415
    %v4485 = vunpack.c.h.b16 %v4415
    %v4486 = vunpack.c.l.b16 %v4416
    %v4487 = vunpack.c.h.b16 %v4416
    %v4488 = vunpack.c.l.b16 %v4417
    %v4489 = vunpack.c.h.b16 %v4417
    %v4490 = vunpack.c.l.b16 %v4418
    %v4491 = vunpack.c.h.b16 %v4418
    %v4492 = vunpack.c.l.b16 %v4419
    %v4493 = vunpack.c.h.b16 %v4419
    %v4494 = vunpack.c.l.b16 %v4420
    %v4495 = vunpack.c.h.b16 %v4420
    %v4496 = vunpack.c.l.b16 %v4421
    %v4497 = vunpack.c.h.b16 %v4421
    %v4498 = vunpack.c.l.b16 %v4422
    %v4499 = vunpack.c.h.b16 %v4422
    %v4500 = vunpack.c.l.b16 %v4423
    %v4501 = vunpack.c.h.b16 %v4423
    %v4502 = vunpack.c.l.b16 %v4424
    %v4503 = vunpack.c.h.b16 %v4424
    %v4504 = vunpack.c.l.b16 %v4425
    %v4505 = vunpack.c.h.b16 %v4425
    %v4506 = vunpack.c.l.b16 %v4426
    %v4507 = vunpack.c.h.b16 %v4426
    %v4508 = vunpack.c.l.b16 %v4427
    %v4509 = vunpack.c.h.b16 %v4427
    %v4510 = vunpack.c.l.b16 %v4428
    %v4511 = vunpack.c.h.b16 %v4428
    %v4512 = vunpack.c.l.b16 %v4429
    %v4513 = vunpack.c.h.b16 %v4429
    %v4514 = vunpack.c.l.b16 %v4430
    %v4515 = vunpack.c.h.b16 %v4430
    %v4516 = vunpack.c.l.b16 %v4431
    %v4517 = vunpack.c.h.b16 %v4431
    %v4518 = vunpack.c.l.b16 %v4432
    %v4519 = vunpack.c.h.b16 %v4432
    %v4520 = vunpack.c.l.b16 %v4433
    %v4521 = vunpack.c.h.b16 %v4433
    %v4522 = vunpack.c.l.b16 %v4434
    %v4523 = vunpack.c.h.b16 %v4434
    %v4524 = vunpack.c.l.b16 %v4435
    %v4525 = vunpack.c.h.b16 %v4435
    %v4526 = vunpack.c.l.b16 %v4436
    %v4527 = vunpack.c.h.b16 %v4436
    %v4528 = vunpack.c.l.b16 %v4437
    %v4529 = vunpack.c.h.b16 %v4437
    %v4530 = vunpack.c.l.b16 %v4438
    %v4531 = vunpack.c.h.b16 %v4438
    %v4532 = vunpack.c.l.b16 %v4439
    %v4533 = vunpack.c.h.b16 %v4439
    %v4534 = vunpack.c.l.b16 %v4440
    %v4535 = vunpack.c.h.b16 %v4440
    %v4536 = vunpack.c.l.b16 %v4441
    %v4537 = vunpack.c.h.b16 %v4441
    %v4538 = vpack.c.b16 %v4476, %v4474
    %v4539 = vpack.c.b16 %v4477, %v4475
    %v4540 = vpack.c.b16 %v4480, %v4478
    %v4541 = vpack.c.b16 %v4481, %v4479
    %v4542 = vpack.c.b16 %v4484, %v4482
    %v4543 = vpack.c.b16 %v4485, %v4483
    %v4544 = vpack.c.b16 %v4488, %v4486
    %v4545 = vpack.c.b16 %v4489, %v4487
    %v4546 = vpack.c.b16 %v4492, %v4490
    %v4547 = vpack.c.b16 %v4493, %v4491
    %v4548 = vpack.c.b16 %v4496, %v4494
    %v4549 = vpack.c.b16 %v4497, %v4495
    %v4550 = vpack.c.b16 %v4500, %v4498
    %v4551 = vpack.c.b16 %v4501, %v4499
    %v4552 = vpack.c.b16 %v4504, %v4502
    %v4553 = vpack.c.b16 %v4505, %v4503
    %v4554 = vpack.c.b16 %v4508, %v4506
    %v4555 = vpack.c.b16 %v4509, %v4507
    %v4556 = vpack.c.b16 %v4512, %v4510
    %v4557 = vpack.c.b16 %v4513, %v4511
    %v4558 = vpack.c.b16 %v4516, %v4514
    %v4559 = vpack.c.b16 %v4517, %v4515
    %v4560 = vpack.c.b16 %v4520, %v4518
    %v4561 = vpack.c.b16 %v4521, %v4519
    %v4562 = vpack.c.b16 %v4524, %v4522
    %v4563 = vpack.c.b16 %v4525, %v4523
    %v4564 = vpack.c.b16 %v4528, %v4526
    %v4565 = vpack.c.b16 %v4529, %v4527
    %v4566 = vpack.c.b16 %v4532, %v4530
    %v4567 = vpack.c.b16 %v4533, %v4531
    %v4568 = vpack.c.b16 %v4536, %v4534
    %v4569 = vpack.c.b16 %v4537, %v4535
    %4602 = vmatpush.bf16.msra.mxu0 %v4552
    %4603 = vmatpush.bf16.msra.mxu0 %v4550
    %4604 = vmatpush.bf16.msra.mxu0 %v4548
    %4605 = vmatpush.bf16.msra.mxu0 %v4546
    %4606 = vmatpush.bf16.msra.mxu0 %v4544
    %4607 = vmatpush.bf16.msra.mxu0 %v4542
    %4608 = vmatpush.bf16.msra.mxu0 %v4540
    %4609 = vmatpush.bf16.msra.mxu0 %v4538
    %4610 = vmatmul.bf16.gmra.mxu0 %v4393
    %v4611 = vpop.f32.mrf.mxu0
    %v4612 = vadd.f32 0.0, %v4611
    %v4613 = vpop.f32.mrf.mxu0
    %v4614 = vadd.f32 0.0, %v4613
    %4615 = vmatmul.bf16.gmra.mxu0 %v4395
    %v4616 = vpop.f32.mrf.mxu0
    %v4617 = vadd.f32 0.0, %v4616
    %v4618 = vpop.f32.mrf.mxu0
    %v4619 = vadd.f32 0.0, %v4618
    %4620 = vmatmul.bf16.gmra.mxu0 %v4397
    %v4621 = vpop.f32.mrf.mxu0
    %v4622 = vadd.f32 0.0, %v4621
    %v4623 = vpop.f32.mrf.mxu0
    %v4624 = vadd.f32 0.0, %v4623
    %4625 = vmatmul.bf16.gmra.mxu0 %v4399
    %v4626 = vpop.f32.mrf.mxu0
    %v4627 = vadd.f32 0.0, %v4626
    %v4628 = vpop.f32.mrf.mxu0
    %v4629 = vadd.f32 0.0, %v4628
    %4630 = vmatmul.bf16.gmra.mxu0 %v4401
    %v4631 = vpop.f32.mrf.mxu0
    %v4632 = vadd.f32 0.0, %v4631
    %v4633 = vpop.f32.mrf.mxu0
    %v4634 = vadd.f32 0.0, %v4633
    %4635 = vmatmul.bf16.gmra.mxu0 %v4403
    %v4636 = vpop.f32.mrf.mxu0
    %v4637 = vadd.f32 0.0, %v4636
    %v4638 = vpop.f32.mrf.mxu0
    %v4639 = vadd.f32 0.0, %v4638
    %4640 = vmatmul.bf16.gmra.mxu0 %v4405
    %v4641 = vpop.f32.mrf.mxu0
    %v4642 = vadd.f32 0.0, %v4641
    %v4643 = vpop.f32.mrf.mxu0
    %v4644 = vadd.f32 0.0, %v4643
    %4645 = vmatmul.bf16.gmra.mxu0 %v4407
    %v4646 = vpop.f32.mrf.mxu0
    %v4647 = vadd.f32 0.0, %v4646
    %v4648 = vpop.f32.mrf.mxu0
    %v4649 = vadd.f32 0.0, %v4648
    %4650 = vdwg.mxu0
    %4651 = vmatpush.bf16.msra.mxu0 %v4568
    %4652 = vmatpush.bf16.msra.mxu0 %v4566
    %4653 = vmatpush.bf16.msra.mxu0 %v4564
    %4654 = vmatpush.bf16.msra.mxu0 %v4562
    %4655 = vmatpush.bf16.msra.mxu0 %v4560
    %4656 = vmatpush.bf16.msra.mxu0 %v4558
    %4657 = vmatpush.bf16.msra.mxu0 %v4556
    %4658 = vmatpush.bf16.msra.mxu0 %v4554
    %4659 = vmatmul.bf16.gmra.mxu0 %v4394
    %v4660 = vpop.f32.mrf.mxu0
    %v4661 = vadd.f32 %v4612, %v4660
    %v4662 = vpop.f32.mrf.mxu0
    %v4663 = vadd.f32 %v4614, %v4662
    %4664 = vmatmul.bf16.gmra.mxu0 %v4396
    %v4665 = vpop.f32.mrf.mxu0
    %v4666 = vadd.f32 %v4617, %v4665
    %v4667 = vpop.f32.mrf.mxu0
    %v4668 = vadd.f32 %v4619, %v4667
    %4669 = vmatmul.bf16.gmra.mxu0 %v4398
    %v4670 = vpop.f32.mrf.mxu0
    %v4671 = vadd.f32 %v4622, %v4670
    %v4672 = vpop.f32.mrf.mxu0
    %v4673 = vadd.f32 %v4624, %v4672
    %4674 = vmatmul.bf16.gmra.mxu0 %v4400
    %v4675 = vpop.f32.mrf.mxu0
    %v4676 = vadd.f32 %v4627, %v4675
    %v4677 = vpop.f32.mrf.mxu0
    %v4678 = vadd.f32 %v4629, %v4677
    %4679 = vmatmul.bf16.gmra.mxu0 %v4402
    %v4680 = vpop.f32.mrf.mxu0
    %v4681 = vadd.f32 %v4632, %v4680
    %v4682 = vpop.f32.mrf.mxu0
    %v4683 = vadd.f32 %v4634, %v4682
    %4684 = vmatmul.bf16.gmra.mxu0 %v4404
    %v4685 = vpop.f32.mrf.mxu0
    %v4686 = vadd.f32 %v4637, %v4685
    %v4687 = vpop.f32.mrf.mxu0
    %v4688 = vadd.f32 %v4639, %v4687
    %4689 = vmatmul.bf16.gmra.mxu0 %v4406
    %v4690 = vpop.f32.mrf.mxu0
    %v4691 = vadd.f32 %v4642, %v4690
    %v4692 = vpop.f32.mrf.mxu0
    %v4693 = vadd.f32 %v4644, %v4692
    %4694 = vmatmul.bf16.gmra.mxu0 %v4408
    %v4695 = vpop.f32.mrf.mxu0
    %v4696 = vadd.f32 %v4647, %v4695
    %v4697 = vpop.f32.mrf.mxu0
    %v4698 = vadd.f32 %v4649, %v4697
    %4699 = vdwg.mxu0
    %4700 = vmatpush.bf16.msra.mxu0 %v4553
    %4701 = vmatpush.bf16.msra.mxu0 %v4551
    %4702 = vmatpush.bf16.msra.mxu0 %v4549
    %4703 = vmatpush.bf16.msra.mxu0 %v4547
    %4704 = vmatpush.bf16.msra.mxu0 %v4545
    %4705 = vmatpush.bf16.msra.mxu0 %v4543
    %4706 = vmatpush.bf16.msra.mxu0 %v4541
    %4707 = vmatpush.bf16.msra.mxu0 %v4539
    %4708 = vmatmul.bf16.gmra.mxu0 %v4393
    %v4709 = vpop.f32.mrf.mxu0
    %v4710 = vadd.f32 0.0, %v4709
    %v4711 = vpop.f32.mrf.mxu0
    %v4712 = vadd.f32 0.0, %v4711
    %4713 = vmatmul.bf16.gmra.mxu0 %v4395
    %v4714 = vpop.f32.mrf.mxu0
    %v4715 = vadd.f32 0.0, %v4714
    %v4716 = vpop.f32.mrf.mxu0
    %v4717 = vadd.f32 0.0, %v4716
    %4718 = vmatmul.bf16.gmra.mxu0 %v4397
    %v4719 = vpop.f32.mrf.mxu0
    %v4720 = vadd.f32 0.0, %v4719
    %v4721 = vpop.f32.mrf.mxu0
    %v4722 = vadd.f32 0.0, %v4721
    %4723 = vmatmul.bf16.gmra.mxu0 %v4399
    %v4724 = vpop.f32.mrf.mxu0
    %v4725 = vadd.f32 0.0, %v4724
    %v4726 = vpop.f32.mrf.mxu0
    %v4727 = vadd.f32 0.0, %v4726
    %4728 = vmatmul.bf16.gmra.mxu0 %v4401
    %v4729 = vpop.f32.mrf.mxu0
    %v4730 = vadd.f32 0.0, %v4729
    %v4731 = vpop.f32.mrf.mxu0
    %v4732 = vadd.f32 0.0, %v4731
    %4733 = vmatmul.bf16.gmra.mxu0 %v4403
    %v4734 = vpop.f32.mrf.mxu0
    %v4735 = vadd.f32 0.0, %v4734
    %v4736 = vpop.f32.mrf.mxu0
    %v4737 = vadd.f32 0.0, %v4736
    %4738 = vmatmul.bf16.gmra.mxu0 %v4405
    %v4739 = vpop.f32.mrf.mxu0
    %v4740 = vadd.f32 0.0, %v4739
    %v4741 = vpop.f32.mrf.mxu0
    %v4742 = vadd.f32 0.0, %v4741
    %4743 = vmatmul.bf16.gmra.mxu0 %v4407
    %v4744 = vpop.f32.mrf.mxu0
    %v4745 = vadd.f32 0.0, %v4744
    %v4746 = vpop.f32.mrf.mxu0
    %v4747 = vadd.f32 0.0, %v4746
    %4748 = vdwg.mxu0
    %4749 = vmatpush.bf16.msra.mxu0 %v4569
    %4750 = vmatpush.bf16.msra.mxu0 %v4567
    %4751 = vmatpush.bf16.msra.mxu0 %v4565
    %4752 = vmatpush.bf16.msra.mxu0 %v4563
    %4753 = vmatpush.bf16.msra.mxu0 %v4561
    %4754 = vmatpush.bf16.msra.mxu0 %v4559
    %4755 = vmatpush.bf16.msra.mxu0 %v4557
    %4756 = vmatpush.bf16.msra.mxu0 %v4555
    %4757 = vmatmul.bf16.gmra.mxu0 %v4394
    %v4758 = vpop.f32.mrf.mxu0
    %v4759 = vadd.f32 %v4710, %v4758
    %v4760 = vpop.f32.mrf.mxu0
    %v4761 = vadd.f32 %v4712, %v4760
    %4762 = vmatmul.bf16.gmra.mxu0 %v4396
    %v4763 = vpop.f32.mrf.mxu0
    %v4764 = vadd.f32 %v4715, %v4763
    %v4765 = vpop.f32.mrf.mxu0
    %v4766 = vadd.f32 %v4717, %v4765
    %4767 = vmatmul.bf16.gmra.mxu0 %v4398
    %v4768 = vpop.f32.mrf.mxu0
    %v4769 = vadd.f32 %v4720, %v4768
    %v4770 = vpop.f32.mrf.mxu0
    %v4771 = vadd.f32 %v4722, %v4770
    %4772 = vmatmul.bf16.gmra.mxu0 %v4400
    %v4773 = vpop.f32.mrf.mxu0
    %v4774 = vadd.f32 %v4725, %v4773
    %v4775 = vpop.f32.mrf.mxu0
    %v4776 = vadd.f32 %v4727, %v4775
    %4777 = vmatmul.bf16.gmra.mxu0 %v4402
    %v4778 = vpop.f32.mrf.mxu0
    %v4779 = vadd.f32 %v4730, %v4778
    %v4780 = vpop.f32.mrf.mxu0
    %v4781 = vadd.f32 %v4732, %v4780
    %4782 = vmatmul.bf16.gmra.mxu0 %v4404
    %v4783 = vpop.f32.mrf.mxu0
    %v4784 = vadd.f32 %v4735, %v4783
    %v4785 = vpop.f32.mrf.mxu0
    %v4786 = vadd.f32 %v4737, %v4785
    %4787 = vmatmul.bf16.gmra.mxu0 %v4406
    %v4788 = vpop.f32.mrf.mxu0
    %v4789 = vadd.f32 %v4740, %v4788
    %v4790 = vpop.f32.mrf.mxu0
    %v4791 = vadd.f32 %v4742, %v4790
    %4792 = vmatmul.bf16.gmra.mxu0 %v4408
    %v4793 = vpop.f32.mrf.mxu0
    %v4794 = vadd.f32 %v4745, %v4793
    %v4795 = vpop.f32.mrf.mxu0
    %v4796 = vadd.f32 %v4747, %v4795
    %4797 = vdwg.mxu0
    %v4798 = vadd.f32 %v4105, %v4661
    %v4799 = vadd.f32 %v4106, %v4759
    %v4800 = vadd.f32 %v4107, %v4663
    %v4801 = vadd.f32 %v4108, %v4761
    %v4802 = vadd.f32 %v4109, %v4666
    %v4803 = vadd.f32 %v4110, %v4764
    %v4804 = vadd.f32 %v4111, %v4668
    %v4805 = vadd.f32 %v4112, %v4766
    %v4806 = vadd.f32 %v4113, %v4671
    %v4807 = vadd.f32 %v4114, %v4769
    %v4808 = vadd.f32 %v4115, %v4673
    %v4809 = vadd.f32 %v4116, %v4771
    %v4810 = vadd.f32 %v4117, %v4676
    %v4811 = vadd.f32 %v4118, %v4774
    %v4812 = vadd.f32 %v4119, %v4678
    %v4813 = vadd.f32 %v4120, %v4776
    %v4814 = vadd.f32 %v4121, %v4681
    %v4815 = vadd.f32 %v4122, %v4779
    %v4816 = vadd.f32 %v4123, %v4683
    %v4817 = vadd.f32 %v4124, %v4781
    %v4818 = vadd.f32 %v4125, %v4686
    %v4819 = vadd.f32 %v4126, %v4784
    %v4820 = vadd.f32 %v4127, %v4688
    %v4821 = vadd.f32 %v4128, %v4786
    %v4822 = vadd.f32 %v4129, %v4691
    %v4823 = vadd.f32 %v4130, %v4789
    %v4824 = vadd.f32 %v4131, %v4693
    %v4825 = vadd.f32 %v4132, %v4791
    %v4826 = vadd.f32 %v4133, %v4696
    %v4827 = vadd.f32 %v4134, %v4794
    %v4828 = vadd.f32 %v4135, %v4698
    %v4829 = vadd.f32 %v4136, %v4796
    %v4830 = vld [vmem:[%s3667] sm:$0xfc]
    %v4831 = vld [vmem:[%s3667 + $0x8] sm:$0xfc]
    %v4832 = vld [vmem:[%s3667 + $0x10] sm:$0x3]
    %v4833 = vld [vmem:[%s3667 + $0x18] sm:$0x3]
    %v4834 = vld [vmem:[%s3667 + $0x20] sm:$0xfc]
    %v4835 = vld [vmem:[%s3667 + $0x28] sm:$0xfc]
    %v4836 = vld [vmem:[%s3667 + $0x30] sm:$0x3]
    %v4837 = vld [vmem:[%s3667 + $0x38] sm:$0x3]
    %v4838 = vld [vmem:[%s3667 + $0x40] sm:$0xfc]
    %v4839 = vld [vmem:[%s3667 + $0x48] sm:$0xfc]
    %v4840 = vld [vmem:[%s3667 + $0x50] sm:$0x3]
    %v4841 = vld [vmem:[%s3667 + $0x58] sm:$0x3]
    %v4842 = vld [vmem:[%s3667 + $0x60] sm:$0xfc]
    %v4843 = vld [vmem:[%s3667 + $0x68] sm:$0xfc]
    %v4844 = vld [vmem:[%s3667 + $0x70] sm:$0x3]
    %v4845 = vld [vmem:[%s3667 + $0x78] sm:$0x3]
    %v4846 = vld [vmem:[%s3667 + $0x80] sm:$0xfc]
    %v4847 = vld [vmem:[%s3667 + $0x88] sm:$0xfc]
    %v4848 = vld [vmem:[%s3667 + $0x90] sm:$0x3]
    %v4849 = vld [vmem:[%s3667 + $0x98] sm:$0x3]
    %v4850 = vld [vmem:[%s3667 + $0xa0] sm:$0xfc]
    %v4851 = vld [vmem:[%s3667 + $0xa8] sm:$0xfc]
    %v4852 = vld [vmem:[%s3667 + $0xb0] sm:$0x3]
    %v4853 = vld [vmem:[%s3667 + $0xb8] sm:$0x3]
    %v4854 = vld [vmem:[%s3667 + $0xc0] sm:$0xfc]
    %v4855 = vld [vmem:[%s3667 + $0xc8] sm:$0xfc]
    %v4856 = vld [vmem:[%s3667 + $0xd0] sm:$0x3]
    %v4857 = vld [vmem:[%s3667 + $0xd8] sm:$0x3]
    %v4858 = vld [vmem:[%s3667 + $0xe0] sm:$0xfc]
    %v4859 = vld [vmem:[%s3667 + $0xe8] sm:$0xfc]
    %v4860 = vld [vmem:[%s3667 + $0xf0] sm:$0x3]
    %v4861 = vld [vmem:[%s3667 + $0xf8] sm:$0x3]
    %v4862 = vld [vmem:[%s3667 + $0x140] sm:$0xfc]
    %v4863 = vld [vmem:[%s3667 + $0x148] sm:$0xfc]
    %v4864 = vld [vmem:[%s3667 + $0x150] sm:$0x3]
    %v4865 = vld [vmem:[%s3667 + $0x158] sm:$0x3]
    %v4866 = vld [vmem:[%s3667 + $0x160] sm:$0xfc]
    %v4867 = vld [vmem:[%s3667 + $0x168] sm:$0xfc]
    %v4868 = vld [vmem:[%s3667 + $0x170] sm:$0x3]
    %v4869 = vld [vmem:[%s3667 + $0x178] sm:$0x3]
    %v4870 = vld [vmem:[%s3667 + $0x180] sm:$0xfc]
    %v4871 = vld [vmem:[%s3667 + $0x188] sm:$0xfc]
    %v4872 = vld [vmem:[%s3667 + $0x190] sm:$0x3]
    %v4873 = vld [vmem:[%s3667 + $0x198] sm:$0x3]
    %v4874 = vld [vmem:[%s3667 + $0x1a0] sm:$0xfc]
    %v4875 = vld [vmem:[%s3667 + $0x1a8] sm:$0xfc]
    %v4876 = vld [vmem:[%s3667 + $0x1b0] sm:$0x3]
    %v4877 = vld [vmem:[%s3667 + $0x1b8] sm:$0x3]
    %v4878 = vld [vmem:[%s3667 + $0x1c0] sm:$0xfc]
    %v4879 = vld [vmem:[%s3667 + $0x1c8] sm:$0xfc]
    %v4880 = vld [vmem:[%s3667 + $0x1d0] sm:$0x3]
    %v4881 = vld [vmem:[%s3667 + $0x1d8] sm:$0x3]
    %v4882 = vld [vmem:[%s3667 + $0x1e0] sm:$0xfc]
    %v4883 = vld [vmem:[%s3667 + $0x1e8] sm:$0xfc]
    %v4884 = vld [vmem:[%s3667 + $0x1f0] sm:$0x3]
    %v4885 = vld [vmem:[%s3667 + $0x1f8] sm:$0x3]
    %v4886 = vld [vmem:[%s3667 + $0x200] sm:$0xfc]
    %v4887 = vld [vmem:[%s3667 + $0x208] sm:$0xfc]
    %v4888 = vld [vmem:[%s3667 + $0x210] sm:$0x3]
    %v4889 = vld [vmem:[%s3667 + $0x218] sm:$0x3]
    %v4890 = vld [vmem:[%s3667 + $0x220] sm:$0xfc]
    %v4891 = vld [vmem:[%s3667 + $0x228] sm:$0xfc]
    %v4892 = vld [vmem:[%s3667 + $0x230] sm:$0x3]
    %v4893 = vld [vmem:[%s3667 + $0x238] sm:$0x3]
    %v4958 = vrot.slane %v4830, 2
    %v4959 = vrot.slane %v4832, 2
    %v4960 = vsel %vm1245, %v4958, %v4959
    %v4961 = vrot.slane %v4831, 2
    %v4962 = vrot.slane %v4833, 2
    %v4963 = vsel %vm1245, %v4961, %v4962
    %v4964 = vrot.slane %v4834, 2
    %v4965 = vrot.slane %v4836, 2
    %v4966 = vsel %vm1245, %v4964, %v4965
    %v4967 = vrot.slane %v4835, 2
    %v4968 = vrot.slane %v4837, 2
    %v4969 = vsel %vm1245, %v4967, %v4968
    %v4970 = vrot.slane %v4838, 2
    %v4971 = vrot.slane %v4840, 2
    %v4972 = vsel %vm1245, %v4970, %v4971
    %v4973 = vrot.slane %v4839, 2
    %v4974 = vrot.slane %v4841, 2
    %v4975 = vsel %vm1245, %v4973, %v4974
    %v4976 = vrot.slane %v4842, 2
    %v4977 = vrot.slane %v4844, 2
    %v4978 = vsel %vm1245, %v4976, %v4977
    %v4979 = vrot.slane %v4843, 2
    %v4980 = vrot.slane %v4845, 2
    %v4981 = vsel %vm1245, %v4979, %v4980
    %v4982 = vrot.slane %v4846, 2
    %v4983 = vrot.slane %v4848, 2
    %v4984 = vsel %vm1245, %v4982, %v4983
    %v4985 = vrot.slane %v4847, 2
    %v4986 = vrot.slane %v4849, 2
    %v4987 = vsel %vm1245, %v4985, %v4986
    %v4988 = vrot.slane %v4850, 2
    %v4989 = vrot.slane %v4852, 2
    %v4990 = vsel %vm1245, %v4988, %v4989
    %v4991 = vrot.slane %v4851, 2
    %v4992 = vrot.slane %v4853, 2
    %v4993 = vsel %vm1245, %v4991, %v4992
    %v4994 = vrot.slane %v4854, 2
    %v4995 = vrot.slane %v4856, 2
    %v4996 = vsel %vm1245, %v4994, %v4995
    %v4997 = vrot.slane %v4855, 2
    %v4998 = vrot.slane %v4857, 2
    %v4999 = vsel %vm1245, %v4997, %v4998
    %v5000 = vrot.slane %v4858, 2
    %v5001 = vrot.slane %v4860, 2
    %v5002 = vsel %vm1245, %v5000, %v5001
    %v5003 = vrot.slane %v4859, 2
    %v5004 = vrot.slane %v4861, 2
    %v5005 = vsel %vm1245, %v5003, %v5004
    %v5006 = vrot.slane %v4862, 2
    %v5007 = vrot.slane %v4864, 2
    %v5008 = vsel %vm1245, %v5006, %v5007
    %v5009 = vrot.slane %v4863, 2
    %v5010 = vrot.slane %v4865, 2
    %v5011 = vsel %vm1245, %v5009, %v5010
    %v5012 = vrot.slane %v4866, 2
    %v5013 = vrot.slane %v4868, 2
    %v5014 = vsel %vm1245, %v5012, %v5013
    %v5015 = vrot.slane %v4867, 2
    %v5016 = vrot.slane %v4869, 2
    %v5017 = vsel %vm1245, %v5015, %v5016
    %v5018 = vrot.slane %v4870, 2
    %v5019 = vrot.slane %v4872, 2
    %v5020 = vsel %vm1245, %v5018, %v5019
    %v5021 = vrot.slane %v4871, 2
    %v5022 = vrot.slane %v4873, 2
    %v5023 = vsel %vm1245, %v5021, %v5022
    %v5024 = vrot.slane %v4874, 2
    %v5025 = vrot.slane %v4876, 2
    %v5026 = vsel %vm1245, %v5024, %v5025
    %v5027 = vrot.slane %v4875, 2
    %v5028 = vrot.slane %v4877, 2
    %v5029 = vsel %vm1245, %v5027, %v5028
    %v5030 = vrot.slane %v4878, 2
    %v5031 = vrot.slane %v4880, 2
    %v5032 = vsel %vm1245, %v5030, %v5031
    %v5033 = vrot.slane %v4879, 2
    %v5034 = vrot.slane %v4881, 2
    %v5035 = vsel %vm1245, %v5033, %v5034
    %v5036 = vrot.slane %v4882, 2
    %v5037 = vrot.slane %v4884, 2
    %v5038 = vsel %vm1245, %v5036, %v5037
    %v5039 = vrot.slane %v4883, 2
    %v5040 = vrot.slane %v4885, 2
    %v5041 = vsel %vm1245, %v5039, %v5040
    %v5042 = vrot.slane %v4886, 2
    %v5043 = vrot.slane %v4888, 2
    %v5044 = vsel %vm1245, %v5042, %v5043
    %v5045 = vrot.slane %v4887, 2
    %v5046 = vrot.slane %v4889, 2
    %v5047 = vsel %vm1245, %v5045, %v5046
    %v5048 = vrot.slane %v4890, 2
    %v5049 = vrot.slane %v4892, 2
    %v5050 = vsel %vm1245, %v5048, %v5049
    %v5051 = vrot.slane %v4891, 2
    %v5052 = vrot.slane %v4893, 2
    %v5053 = vsel %vm1245, %v5051, %v5052
    %v5086 = vpack.c.bf16 %v4966, %v4960
    %v5087 = vpack.c.bf16 %v4969, %v4963
    %v5088 = vpack.c.bf16 %v4978, %v4972
    %v5089 = vpack.c.bf16 %v4981, %v4975
    %v5090 = vpack.c.bf16 %v4990, %v4984
    %v5091 = vpack.c.bf16 %v4993, %v4987
    %v5092 = vpack.c.bf16 %v5002, %v4996
    %v5093 = vpack.c.bf16 %v5005, %v4999
    %v5094 = vpack.c.bf16 %v5014, %v5008
    %v5095 = vpack.c.bf16 %v5017, %v5011
    %v5096 = vpack.c.bf16 %v5026, %v5020
    %v5097 = vpack.c.bf16 %v5029, %v5023
    %v5098 = vpack.c.bf16 %v5038, %v5032
    %v5099 = vpack.c.bf16 %v5041, %v5035
    %v5100 = vpack.c.bf16 %v5050, %v5044
    %v5101 = vpack.c.bf16 %v5053, %v5047
    %s5102 = scalar_lea.vmem %s1, 2048
    %v5103 = vld [vmem:[%s5102] sm:$0xff]
    %v5104 = vld [vmem:[%s5102 + $0x8] sm:$0xff]
    %v5105 = vld [vmem:[%s5102 + $0x10] sm:$0xff]
    %v5106 = vld [vmem:[%s5102 + $0x18] sm:$0xff]
    %v5107 = vld [vmem:[%s5102 + $0x20] sm:$0xff]
    %v5108 = vld [vmem:[%s5102 + $0x28] sm:$0xff]
    %v5109 = vld [vmem:[%s5102 + $0x30] sm:$0xff]
    %v5110 = vld [vmem:[%s5102 + $0x38] sm:$0xff]
    %v5111 = vld [vmem:[%s5102 + $0x40] sm:$0xff]
    %v5112 = vld [vmem:[%s5102 + $0x48] sm:$0xff]
    %v5113 = vld [vmem:[%s5102 + $0x50] sm:$0xff]
    %v5114 = vld [vmem:[%s5102 + $0x58] sm:$0xff]
    %v5115 = vld [vmem:[%s5102 + $0x60] sm:$0xff]
    %v5116 = vld [vmem:[%s5102 + $0x68] sm:$0xff]
    %v5117 = vld [vmem:[%s5102 + $0x70] sm:$0xff]
    %v5118 = vld [vmem:[%s5102 + $0x78] sm:$0xff]
    %v5119 = vld [vmem:[%s5102 + $0x80] sm:$0xff]
    %v5120 = vld [vmem:[%s5102 + $0x88] sm:$0xff]
    %v5121 = vld [vmem:[%s5102 + $0x90] sm:$0xff]
    %v5122 = vld [vmem:[%s5102 + $0x98] sm:$0xff]
    %v5123 = vld [vmem:[%s5102 + $0xa0] sm:$0xff]
    %v5124 = vld [vmem:[%s5102 + $0xa8] sm:$0xff]
    %v5125 = vld [vmem:[%s5102 + $0xb0] sm:$0xff]
    %v5126 = vld [vmem:[%s5102 + $0xb8] sm:$0xff]
    %v5127 = vld [vmem:[%s5102 + $0xc0] sm:$0xff]
    %v5128 = vld [vmem:[%s5102 + $0xc8] sm:$0xff]
    %v5129 = vld [vmem:[%s5102 + $0xd0] sm:$0xff]
    %v5130 = vld [vmem:[%s5102 + $0xd8] sm:$0xff]
    %v5131 = vld [vmem:[%s5102 + $0xe0] sm:$0xff]
    %v5132 = vld [vmem:[%s5102 + $0xe8] sm:$0xff]
    %v5133 = vld [vmem:[%s5102 + $0xf0] sm:$0xff]
    %v5134 = vld [vmem:[%s5102 + $0xf8] sm:$0xff]
    %v5167 = vunpack.c.l.b16 %v5103
    %v5168 = vunpack.c.h.b16 %v5103
    %v5169 = vunpack.c.l.b16 %v5104
    %v5170 = vunpack.c.h.b16 %v5104
    %v5171 = vunpack.c.l.b16 %v5105
    %v5172 = vunpack.c.h.b16 %v5105
    %v5173 = vunpack.c.l.b16 %v5106
    %v5174 = vunpack.c.h.b16 %v5106
    %v5175 = vunpack.c.l.b16 %v5107
    %v5176 = vunpack.c.h.b16 %v5107
    %v5177 = vunpack.c.l.b16 %v5108
    %v5178 = vunpack.c.h.b16 %v5108
    %v5179 = vunpack.c.l.b16 %v5109
    %v5180 = vunpack.c.h.b16 %v5109
    %v5181 = vunpack.c.l.b16 %v5110
    %v5182 = vunpack.c.h.b16 %v5110
    %v5183 = vunpack.c.l.b16 %v5111
    %v5184 = vunpack.c.h.b16 %v5111
    %v5185 = vunpack.c.l.b16 %v5112
    %v5186 = vunpack.c.h.b16 %v5112
    %v5187 = vunpack.c.l.b16 %v5113
    %v5188 = vunpack.c.h.b16 %v5113
    %v5189 = vunpack.c.l.b16 %v5114
    %v5190 = vunpack.c.h.b16 %v5114
    %v5191 = vunpack.c.l.b16 %v5115
    %v5192 = vunpack.c.h.b16 %v5115
    %v5193 = vunpack.c.l.b16 %v5116
    %v5194 = vunpack.c.h.b16 %v5116
    %v5195 = vunpack.c.l.b16 %v5117
    %v5196 = vunpack.c.h.b16 %v5117
    %v5197 = vunpack.c.l.b16 %v5118
    %v5198 = vunpack.c.h.b16 %v5118
    %v5199 = vunpack.c.l.b16 %v5119
    %v5200 = vunpack.c.h.b16 %v5119
    %v5201 = vunpack.c.l.b16 %v5120
    %v5202 = vunpack.c.h.b16 %v5120
    %v5203 = vunpack.c.l.b16 %v5121
    %v5204 = vunpack.c.h.b16 %v5121
    %v5205 = vunpack.c.l.b16 %v5122
    %v5206 = vunpack.c.h.b16 %v5122
    %v5207 = vunpack.c.l.b16 %v5123
    %v5208 = vunpack.c.h.b16 %v5123
    %v5209 = vunpack.c.l.b16 %v5124
    %v5210 = vunpack.c.h.b16 %v5124
    %v5211 = vunpack.c.l.b16 %v5125
    %v5212 = vunpack.c.h.b16 %v5125
    %v5213 = vunpack.c.l.b16 %v5126
    %v5214 = vunpack.c.h.b16 %v5126
    %v5215 = vunpack.c.l.b16 %v5127
    %v5216 = vunpack.c.h.b16 %v5127
    %v5217 = vunpack.c.l.b16 %v5128
    %v5218 = vunpack.c.h.b16 %v5128
    %v5219 = vunpack.c.l.b16 %v5129
    %v5220 = vunpack.c.h.b16 %v5129
    %v5221 = vunpack.c.l.b16 %v5130
    %v5222 = vunpack.c.h.b16 %v5130
    %v5223 = vunpack.c.l.b16 %v5131
    %v5224 = vunpack.c.h.b16 %v5131
    %v5225 = vunpack.c.l.b16 %v5132
    %v5226 = vunpack.c.h.b16 %v5132
    %v5227 = vunpack.c.l.b16 %v5133
    %v5228 = vunpack.c.h.b16 %v5133
    %v5229 = vunpack.c.l.b16 %v5134
    %v5230 = vunpack.c.h.b16 %v5134
    %v5231 = vpack.c.b16 %v5169, %v5167
    %v5232 = vpack.c.b16 %v5170, %v5168
    %v5233 = vpack.c.b16 %v5173, %v5171
    %v5234 = vpack.c.b16 %v5174, %v5172
    %v5235 = vpack.c.b16 %v5177, %v5175
    %v5236 = vpack.c.b16 %v5178, %v5176
    %v5237 = vpack.c.b16 %v5181, %v5179
    %v5238 = vpack.c.b16 %v5182, %v5180
    %v5239 = vpack.c.b16 %v5185, %v5183
    %v5240 = vpack.c.b16 %v5186, %v5184
    %v5241 = vpack.c.b16 %v5189, %v5187
    %v5242 = vpack.c.b16 %v5190, %v5188
    %v5243 = vpack.c.b16 %v5193, %v5191
    %v5244 = vpack.c.b16 %v5194, %v5192
    %v5245 = vpack.c.b16 %v5197, %v5195
    %v5246 = vpack.c.b16 %v5198, %v5196
    %v5247 = vpack.c.b16 %v5201, %v5199
    %v5248 = vpack.c.b16 %v5202, %v5200
    %v5249 = vpack.c.b16 %v5205, %v5203
    %v5250 = vpack.c.b16 %v5206, %v5204
    %v5251 = vpack.c.b16 %v5209, %v5207
    %v5252 = vpack.c.b16 %v5210, %v5208
    %v5253 = vpack.c.b16 %v5213, %v5211
    %v5254 = vpack.c.b16 %v5214, %v5212
    %v5255 = vpack.c.b16 %v5217, %v5215
    %v5256 = vpack.c.b16 %v5218, %v5216
    %v5257 = vpack.c.b16 %v5221, %v5219
    %v5258 = vpack.c.b16 %v5222, %v5220
    %v5259 = vpack.c.b16 %v5225, %v5223
    %v5260 = vpack.c.b16 %v5226, %v5224
    %v5261 = vpack.c.b16 %v5229, %v5227
    %v5262 = vpack.c.b16 %v5230, %v5228
    %5295 = vmatpush.bf16.msra.mxu0 %v5245
    %5296 = vmatpush.bf16.msra.mxu0 %v5243
    %5297 = vmatpush.bf16.msra.mxu0 %v5241
    %5298 = vmatpush.bf16.msra.mxu0 %v5239
    %5299 = vmatpush.bf16.msra.mxu0 %v5237
    %5300 = vmatpush.bf16.msra.mxu0 %v5235
    %5301 = vmatpush.bf16.msra.mxu0 %v5233
    %5302 = vmatpush.bf16.msra.mxu0 %v5231
    %5303 = vmatmul.bf16.gmra.mxu0 %v5086
    %v5304 = vpop.f32.mrf.mxu0
    %v5305 = vadd.f32 0.0, %v5304
    %v5306 = vpop.f32.mrf.mxu0
    %v5307 = vadd.f32 0.0, %v5306
    %5308 = vmatmul.bf16.gmra.mxu0 %v5088
    %v5309 = vpop.f32.mrf.mxu0
    %v5310 = vadd.f32 0.0, %v5309
    %v5311 = vpop.f32.mrf.mxu0
    %v5312 = vadd.f32 0.0, %v5311
    %5313 = vmatmul.bf16.gmra.mxu0 %v5090
    %v5314 = vpop.f32.mrf.mxu0
    %v5315 = vadd.f32 0.0, %v5314
    %v5316 = vpop.f32.mrf.mxu0
    %v5317 = vadd.f32 0.0, %v5316
    %5318 = vmatmul.bf16.gmra.mxu0 %v5092
    %v5319 = vpop.f32.mrf.mxu0
    %v5320 = vadd.f32 0.0, %v5319
    %v5321 = vpop.f32.mrf.mxu0
    %v5322 = vadd.f32 0.0, %v5321
    %5323 = vmatmul.bf16.gmra.mxu0 %v5094
    %v5324 = vpop.f32.mrf.mxu0
    %v5325 = vadd.f32 0.0, %v5324
    %v5326 = vpop.f32.mrf.mxu0
    %v5327 = vadd.f32 0.0, %v5326
    %5328 = vmatmul.bf16.gmra.mxu0 %v5096
    %v5329 = vpop.f32.mrf.mxu0
    %v5330 = vadd.f32 0.0, %v5329
    %v5331 = vpop.f32.mrf.mxu0
    %v5332 = vadd.f32 0.0, %v5331
    %5333 = vmatmul.bf16.gmra.mxu0 %v5098
    %v5334 = vpop.f32.mrf.mxu0
    %v5335 = vadd.f32 0.0, %v5334
    %v5336 = vpop.f32.mrf.mxu0
    %v5337 = vadd.f32 0.0, %v5336
    %5338 = vmatmul.bf16.gmra.mxu0 %v5100
    %v5339 = vpop.f32.mrf.mxu0
    %v5340 = vadd.f32 0.0, %v5339
    %v5341 = vpop.f32.mrf.mxu0
    %v5342 = vadd.f32 0.0, %v5341
    %5343 = vdwg.mxu0
    %5344 = vmatpush.bf16.msra.mxu0 %v5261
    %5345 = vmatpush.bf16.msra.mxu0 %v5259
    %5346 = vmatpush.bf16.msra.mxu0 %v5257
    %5347 = vmatpush.bf16.msra.mxu0 %v5255
    %5348 = vmatpush.bf16.msra.mxu0 %v5253
    %5349 = vmatpush.bf16.msra.mxu0 %v5251
    %5350 = vmatpush.bf16.msra.mxu0 %v5249
    %5351 = vmatpush.bf16.msra.mxu0 %v5247
    %5352 = vmatmul.bf16.gmra.mxu0 %v5087
    %v5353 = vpop.f32.mrf.mxu0
    %v5354 = vadd.f32 %v5305, %v5353
    %v5355 = vpop.f32.mrf.mxu0
    %v5356 = vadd.f32 %v5307, %v5355
    %5357 = vmatmul.bf16.gmra.mxu0 %v5089
    %v5358 = vpop.f32.mrf.mxu0
    %v5359 = vadd.f32 %v5310, %v5358
    %v5360 = vpop.f32.mrf.mxu0
    %v5361 = vadd.f32 %v5312, %v5360
    %5362 = vmatmul.bf16.gmra.mxu0 %v5091
    %v5363 = vpop.f32.mrf.mxu0
    %v5364 = vadd.f32 %v5315, %v5363
    %v5365 = vpop.f32.mrf.mxu0
    %v5366 = vadd.f32 %v5317, %v5365
    %5367 = vmatmul.bf16.gmra.mxu0 %v5093
    %v5368 = vpop.f32.mrf.mxu0
    %v5369 = vadd.f32 %v5320, %v5368
    %v5370 = vpop.f32.mrf.mxu0
    %v5371 = vadd.f32 %v5322, %v5370
    %5372 = vmatmul.bf16.gmra.mxu0 %v5095
    %v5373 = vpop.f32.mrf.mxu0
    %v5374 = vadd.f32 %v5325, %v5373
    %v5375 = vpop.f32.mrf.mxu0
    %v5376 = vadd.f32 %v5327, %v5375
    %5377 = vmatmul.bf16.gmra.mxu0 %v5097
    %v5378 = vpop.f32.mrf.mxu0
    %v5379 = vadd.f32 %v5330, %v5378
    %v5380 = vpop.f32.mrf.mxu0
    %v5381 = vadd.f32 %v5332, %v5380
    %5382 = vmatmul.bf16.gmra.mxu0 %v5099
    %v5383 = vpop.f32.mrf.mxu0
    %v5384 = vadd.f32 %v5335, %v5383
    %v5385 = vpop.f32.mrf.mxu0
    %v5386 = vadd.f32 %v5337, %v5385
    %5387 = vmatmul.bf16.gmra.mxu0 %v5101
    %v5388 = vpop.f32.mrf.mxu0
    %v5389 = vadd.f32 %v5340, %v5388
    %v5390 = vpop.f32.mrf.mxu0
    %v5391 = vadd.f32 %v5342, %v5390
    %5392 = vdwg.mxu0
    %5393 = vmatpush.bf16.msra.mxu0 %v5246
    %5394 = vmatpush.bf16.msra.mxu0 %v5244
    %5395 = vmatpush.bf16.msra.mxu0 %v5242
    %5396 = vmatpush.bf16.msra.mxu0 %v5240
    %5397 = vmatpush.bf16.msra.mxu0 %v5238
    %5398 = vmatpush.bf16.msra.mxu0 %v5236
    %5399 = vmatpush.bf16.msra.mxu0 %v5234
    %5400 = vmatpush.bf16.msra.mxu0 %v5232
    %5401 = vmatmul.bf16.gmra.mxu0 %v5086
    %v5402 = vpop.f32.mrf.mxu0
    %v5403 = vadd.f32 0.0, %v5402
    %v5404 = vpop.f32.mrf.mxu0
    %v5405 = vadd.f32 0.0, %v5404
    %5406 = vmatmul.bf16.gmra.mxu0 %v5088
    %v5407 = vpop.f32.mrf.mxu0
    %v5408 = vadd.f32 0.0, %v5407
    %v5409 = vpop.f32.mrf.mxu0
    %v5410 = vadd.f32 0.0, %v5409
    %5411 = vmatmul.bf16.gmra.mxu0 %v5090
    %v5412 = vpop.f32.mrf.mxu0
    %v5413 = vadd.f32 0.0, %v5412
    %v5414 = vpop.f32.mrf.mxu0
    %v5415 = vadd.f32 0.0, %v5414
    %5416 = vmatmul.bf16.gmra.mxu0 %v5092
    %v5417 = vpop.f32.mrf.mxu0
    %v5418 = vadd.f32 0.0, %v5417
    %v5419 = vpop.f32.mrf.mxu0
    %v5420 = vadd.f32 0.0, %v5419
    %5421 = vmatmul.bf16.gmra.mxu0 %v5094
    %v5422 = vpop.f32.mrf.mxu0
    %v5423 = vadd.f32 0.0, %v5422
    %v5424 = vpop.f32.mrf.mxu0
    %v5425 = vadd.f32 0.0, %v5424
    %5426 = vmatmul.bf16.gmra.mxu0 %v5096
    %v5427 = vpop.f32.mrf.mxu0
    %v5428 = vadd.f32 0.0, %v5427
    %v5429 = vpop.f32.mrf.mxu0
    %v5430 = vadd.f32 0.0, %v5429
    %5431 = vmatmul.bf16.gmra.mxu0 %v5098
    %v5432 = vpop.f32.mrf.mxu0
    %v5433 = vadd.f32 0.0, %v5432
    %v5434 = vpop.f32.mrf.mxu0
    %v5435 = vadd.f32 0.0, %v5434
    %5436 = vmatmul.bf16.gmra.mxu0 %v5100
    %v5437 = vpop.f32.mrf.mxu0
    %v5438 = vadd.f32 0.0, %v5437
    %v5439 = vpop.f32.mrf.mxu0
    %v5440 = vadd.f32 0.0, %v5439
    %5441 = vdwg.mxu0
    %5442 = vmatpush.bf16.msra.mxu0 %v5262
    %5443 = vmatpush.bf16.msra.mxu0 %v5260
    %5444 = vmatpush.bf16.msra.mxu0 %v5258
    %5445 = vmatpush.bf16.msra.mxu0 %v5256
    %5446 = vmatpush.bf16.msra.mxu0 %v5254
    %5447 = vmatpush.bf16.msra.mxu0 %v5252
    %5448 = vmatpush.bf16.msra.mxu0 %v5250
    %5449 = vmatpush.bf16.msra.mxu0 %v5248
    %5450 = vmatmul.bf16.gmra.mxu0 %v5087
    %v5451 = vpop.f32.mrf.mxu0
    %v5452 = vadd.f32 %v5403, %v5451
    %v5453 = vpop.f32.mrf.mxu0
    %v5454 = vadd.f32 %v5405, %v5453
    %5455 = vmatmul.bf16.gmra.mxu0 %v5089
    %v5456 = vpop.f32.mrf.mxu0
    %v5457 = vadd.f32 %v5408, %v5456
    %v5458 = vpop.f32.mrf.mxu0
    %v5459 = vadd.f32 %v5410, %v5458
    %5460 = vmatmul.bf16.gmra.mxu0 %v5091
    %v5461 = vpop.f32.mrf.mxu0
    %v5462 = vadd.f32 %v5413, %v5461
    %v5463 = vpop.f32.mrf.mxu0
    %v5464 = vadd.f32 %v5415, %v5463
    %5465 = vmatmul.bf16.gmra.mxu0 %v5093
    %v5466 = vpop.f32.mrf.mxu0
    %v5467 = vadd.f32 %v5418, %v5466
    %v5468 = vpop.f32.mrf.mxu0
    %v5469 = vadd.f32 %v5420, %v5468
    %5470 = vmatmul.bf16.gmra.mxu0 %v5095
    %v5471 = vpop.f32.mrf.mxu0
    %v5472 = vadd.f32 %v5423, %v5471
    %v5473 = vpop.f32.mrf.mxu0
    %v5474 = vadd.f32 %v5425, %v5473
    %5475 = vmatmul.bf16.gmra.mxu0 %v5097
    %v5476 = vpop.f32.mrf.mxu0
    %v5477 = vadd.f32 %v5428, %v5476
    %v5478 = vpop.f32.mrf.mxu0
    %v5479 = vadd.f32 %v5430, %v5478
    %5480 = vmatmul.bf16.gmra.mxu0 %v5099
    %v5481 = vpop.f32.mrf.mxu0
    %v5482 = vadd.f32 %v5433, %v5481
    %v5483 = vpop.f32.mrf.mxu0
    %v5484 = vadd.f32 %v5435, %v5483
    %5485 = vmatmul.bf16.gmra.mxu0 %v5101
    %v5486 = vpop.f32.mrf.mxu0
    %v5487 = vadd.f32 %v5438, %v5486
    %v5488 = vpop.f32.mrf.mxu0
    %v5489 = vadd.f32 %v5440, %v5488
    %5490 = vdwg.mxu0
    %v5491 = vadd.f32 %v4798, %v5354
    %v5492 = vadd.f32 %v4799, %v5452
    %v5493 = vadd.f32 %v4800, %v5356
    %v5494 = vadd.f32 %v4801, %v5454
    %v5495 = vadd.f32 %v4802, %v5359
    %v5496 = vadd.f32 %v4803, %v5457
    %v5497 = vadd.f32 %v4804, %v5361
    %v5498 = vadd.f32 %v4805, %v5459
    %v5499 = vadd.f32 %v4806, %v5364
    %v5500 = vadd.f32 %v4807, %v5462
    %v5501 = vadd.f32 %v4808, %v5366
    %v5502 = vadd.f32 %v4809, %v5464
    %v5503 = vadd.f32 %v4810, %v5369
    %v5504 = vadd.f32 %v4811, %v5467
    %v5505 = vadd.f32 %v4812, %v5371
    %v5506 = vadd.f32 %v4813, %v5469
    %v5507 = vadd.f32 %v4814, %v5374
    %v5508 = vadd.f32 %v4815, %v5472
    %v5509 = vadd.f32 %v4816, %v5376
    %v5510 = vadd.f32 %v4817, %v5474
    %v5511 = vadd.f32 %v4818, %v5379
    %v5512 = vadd.f32 %v4819, %v5477
    %v5513 = vadd.f32 %v4820, %v5381
    %v5514 = vadd.f32 %v4821, %v5479
    %v5515 = vadd.f32 %v4822, %v5384
    %v5516 = vadd.f32 %v4823, %v5482
    %v5517 = vadd.f32 %v4824, %v5386
    %v5518 = vadd.f32 %v4825, %v5484
    %v5519 = vadd.f32 %v4826, %v5389
    %v5520 = vadd.f32 %v4827, %v5487
    %v5521 = vadd.f32 %v4828, %v5391
    %v5522 = vadd.f32 %v4829, %v5489
    %v5523 = vadd.f32 %v5491, %v5493
    %v5524 = vadd.f32 %v5523, %v5495
    %v5525 = vadd.f32 %v5524, %v5497
    %v5526 = vadd.f32 %v5525, %v5499
    %v5527 = vadd.f32 %v5526, %v5501
    %v5528 = vadd.f32 %v5527, %v5503
    %v5529 = vadd.f32 %v5528, %v5505
    %v5530 = vadd.f32 %v5529, %v5507
    %v5531 = vadd.f32 %v5530, %v5509
    %v5532 = vadd.f32 %v5531, %v5511
    %v5533 = vadd.f32 %v5532, %v5513
    %v5534 = vadd.f32 %v5533, %v5515
    %v5535 = vadd.f32 %v5534, %v5517
    %v5536 = vadd.f32 %v5535, %v5519
    %v5537 = vadd.f32 %v5536, %v5521
    %v5538 = vrot.slane %v5537, 4
    %v5539 = vadd.f32 %v5537, %v5538
    %v5540 = vrot.slane %v5539, 2
    %v5541 = vadd.f32 %v5539, %v5540
    %v5542 = vrot.slane %v5541, 1
    %v5543 = vadd.f32 %v5541, %v5542
    %v5544 = vadd.f32 %v5492, %v5494
    %v5545 = vadd.f32 %v5544, %v5496
    %v5546 = vadd.f32 %v5545, %v5498
    %v5547 = vadd.f32 %v5546, %v5500
    %v5548 = vadd.f32 %v5547, %v5502
    %v5549 = vadd.f32 %v5548, %v5504
    %v5550 = vadd.f32 %v5549, %v5506
    %v5551 = vadd.f32 %v5550, %v5508
    %v5552 = vadd.f32 %v5551, %v5510
    %v5553 = vadd.f32 %v5552, %v5512
    %v5554 = vadd.f32 %v5553, %v5514
    %v5555 = vadd.f32 %v5554, %v5516
    %v5556 = vadd.f32 %v5555, %v5518
    %v5557 = vadd.f32 %v5556, %v5520
    %v5558 = vadd.f32 %v5557, %v5522
    %v5559 = vrot.slane %v5558, 4
    %v5560 = vadd.f32 %v5558, %v5559
    %v5561 = vrot.slane %v5560, 2
    %v5562 = vadd.f32 %v5560, %v5561
    %v5563 = vrot.slane %v5562, 1
    %v5564 = vadd.f32 %v5562, %v5563
    %v5565 = vrcp.pop 128.0
    %v5566 = vmul.f32 128.0, %v5565
    %v5567 = vsub.f32 1.0, %v5566
    %v5568 = vmul.f32 %v5565, %v5567
    %v5569 = vadd.f32 %v5565, %v5568
    %vm5570 = vweird.f32 %v5565
    %v5571 = vsel %vm5570, %v5565, %v5569
    %v5572 = vmul.f32 %v5543, %v5571
    %v5573 = vmul.f32 %v5564, %v5571
    %v5574 = vsub.f32 %v5491, %v5572
    %v5575 = vsub.f32 %v5492, %v5573
    %v5576 = vsub.f32 %v5493, %v5572
    %v5577 = vsub.f32 %v5494, %v5573
    %v5578 = vsub.f32 %v5495, %v5572
    %v5579 = vsub.f32 %v5496, %v5573
    %v5580 = vsub.f32 %v5497, %v5572
    %v5581 = vsub.f32 %v5498, %v5573
    %v5582 = vsub.f32 %v5499, %v5572
    %v5583 = vsub.f32 %v5500, %v5573
    %v5584 = vsub.f32 %v5501, %v5572
    %v5585 = vsub.f32 %v5502, %v5573
    %v5586 = vsub.f32 %v5503, %v5572
    %v5587 = vsub.f32 %v5504, %v5573
    %v5588 = vsub.f32 %v5505, %v5572
    %v5589 = vsub.f32 %v5506, %v5573
    %v5590 = vsub.f32 %v5507, %v5572
    %v5591 = vsub.f32 %v5508, %v5573
    %v5592 = vsub.f32 %v5509, %v5572
    %v5593 = vsub.f32 %v5510, %v5573
    %v5594 = vsub.f32 %v5511, %v5572
    %v5595 = vsub.f32 %v5512, %v5573
    %v5596 = vsub.f32 %v5513, %v5572
    %v5597 = vsub.f32 %v5514, %v5573
    %v5598 = vsub.f32 %v5515, %v5572
    %v5599 = vsub.f32 %v5516, %v5573
    %v5600 = vsub.f32 %v5517, %v5572
    %v5601 = vsub.f32 %v5518, %v5573
    %v5602 = vsub.f32 %v5519, %v5572
    %v5603 = vsub.f32 %v5520, %v5573
    %v5604 = vsub.f32 %v5521, %v5572
    %v5605 = vsub.f32 %v5522, %v5573
    %v5606 = vmul.f32 %v5574, %v5574
    %v5607 = vmul.f32 %v5575, %v5575
    %v5608 = vmul.f32 %v5576, %v5576
    %v5609 = vmul.f32 %v5577, %v5577
    %v5610 = vmul.f32 %v5578, %v5578
    %v5611 = vmul.f32 %v5579, %v5579
    %v5612 = vmul.f32 %v5580, %v5580
    %v5613 = vmul.f32 %v5581, %v5581
    %v5614 = vmul.f32 %v5582, %v5582
    %v5615 = vmul.f32 %v5583, %v5583
    %v5616 = vmul.f32 %v5584, %v5584
    %v5617 = vmul.f32 %v5585, %v5585
    %v5618 = vmul.f32 %v5586, %v5586
    %v5619 = vmul.f32 %v5587, %v5587
    %v5620 = vmul.f32 %v5588, %v5588
    %v5621 = vmul.f32 %v5589, %v5589
    %v5622 = vmul.f32 %v5590, %v5590
    %v5623 = vmul.f32 %v5591, %v5591
    %v5624 = vmul.f32 %v5592, %v5592
    %v5625 = vmul.f32 %v5593, %v5593
    %v5626 = vmul.f32 %v5594, %v5594
    %v5627 = vmul.f32 %v5595, %v5595
    %v5628 = vmul.f32 %v5596, %v5596
    %v5629 = vmul.f32 %v5597, %v5597
    %v5630 = vmul.f32 %v5598, %v5598
    %v5631 = vmul.f32 %v5599, %v5599
    %v5632 = vmul.f32 %v5600, %v5600
    %v5633 = vmul.f32 %v5601, %v5601
    %v5634 = vmul.f32 %v5602, %v5602
    %v5635 = vmul.f32 %v5603, %v5603
    %v5636 = vmul.f32 %v5604, %v5604
    %v5637 = vmul.f32 %v5605, %v5605
    %v5638 = vadd.f32 %v5606, %v5608
    %v5639 = vadd.f32 %v5638, %v5610
    %v5640 = vadd.f32 %v5639, %v5612
    %v5641 = vadd.f32 %v5640, %v5614
    %v5642 = vadd.f32 %v5641, %v5616
    %v5643 = vadd.f32 %v5642, %v5618
    %v5644 = vadd.f32 %v5643, %v5620
    %v5645 = vadd.f32 %v5644, %v5622
    %v5646 = vadd.f32 %v5645, %v5624
    %v5647 = vadd.f32 %v5646, %v5626
    %v5648 = vadd.f32 %v5647, %v5628
    %v5649 = vadd.f32 %v5648, %v5630
    %v5650 = vadd.f32 %v5649, %v5632
    %v5651 = vadd.f32 %v5650, %v5634
    %v5652 = vadd.f32 %v5651, %v5636
    %v5653 = vrot.slane %v5652, 4
    %v5654 = vadd.f32 %v5652, %v5653
    %v5655 = vrot.slane %v5654, 2
    %v5656 = vadd.f32 %v5654, %v5655
    %v5657 = vrot.slane %v5656, 1
    %v5658 = vadd.f32 %v5656, %v5657
    %v5659 = vadd.f32 %v5607, %v5609
    %v5660 = vadd.f32 %v5659, %v5611
    %v5661 = vadd.f32 %v5660, %v5613
    %v5662 = vadd.f32 %v5661, %v5615
    %v5663 = vadd.f32 %v5662, %v5617
    %v5664 = vadd.f32 %v5663, %v5619
    %v5665 = vadd.f32 %v5664, %v5621
    %v5666 = vadd.f32 %v5665, %v5623
    %v5667 = vadd.f32 %v5666, %v5625
    %v5668 = vadd.f32 %v5667, %v5627
    %v5669 = vadd.f32 %v5668, %v5629
    %v5670 = vadd.f32 %v5669, %v5631
    %v5671 = vadd.f32 %v5670, %v5633
    %v5672 = vadd.f32 %v5671, %v5635
    %v5673 = vadd.f32 %v5672, %v5637
    %v5674 = vrot.slane %v5673, 4
    %v5675 = vadd.f32 %v5673, %v5674
    %v5676 = vrot.slane %v5675, 2
    %v5677 = vadd.f32 %v5675, %v5676
    %v5678 = vrot.slane %v5677, 1
    %v5679 = vadd.f32 %v5677, %v5678
    %v5680 = vmul.f32 %v5658, %v5571
    %v5681 = vmul.f32 %v5679, %v5571
    %v5682 = vadd.f32 %v5680, 1e-05
    %v5683 = vadd.f32 %v5681, 1e-05
    %v5684 = vrsqrt.pop %v5682
    %v5685 = vmul.f32 %v5684, %v5682
    %v5686 = vmul.f32 %v5685, %v5684
    %v5687 = vmul.f32 0.5, %v5686
    %v5688 = vsub.f32 1.5, %v5687
    %v5689 = vmul.f32 %v5684, %v5688
    %vm5690 = vweird.f32 %v5682
    %vm5691 = vweird.f32 %v5684
    %vm5692 = vmor %vm5690, %vm5691
    %v5693 = vsel %vm5692, %v5684, %v5689
    %v5694 = vrsqrt.pop %v5683
    %v5695 = vmul.f32 %v5694, %v5683
    %v5696 = vmul.f32 %v5695, %v5694
    %v5697 = vmul.f32 0.5, %v5696
    %v5698 = vsub.f32 1.5, %v5697
    %v5699 = vmul.f32 %v5694, %v5698
    %vm5700 = vweird.f32 %v5683
    %vm5701 = vweird.f32 %v5694
    %vm5702 = vmor %vm5700, %vm5701
    %v5703 = vsel %vm5702, %v5694, %v5699
    %v5704 = vmul.f32 %v5574, %v5693
    %v5705 = vmul.f32 %v5575, %v5703
    %v5706 = vmul.f32 %v5576, %v5693
    %v5707 = vmul.f32 %v5577, %v5703
    %v5708 = vmul.f32 %v5578, %v5693
    %v5709 = vmul.f32 %v5579, %v5703
    %v5710 = vmul.f32 %v5580, %v5693
    %v5711 = vmul.f32 %v5581, %v5703
    %v5712 = vmul.f32 %v5582, %v5693
    %v5713 = vmul.f32 %v5583, %v5703
    %v5714 = vmul.f32 %v5584, %v5693
    %v5715 = vmul.f32 %v5585, %v5703
    %v5716 = vmul.f32 %v5586, %v5693
    %v5717 = vmul.f32 %v5587, %v5703
    %v5718 = vmul.f32 %v5588, %v5693
    %v5719 = vmul.f32 %v5589, %v5703
    %v5720 = vmul.f32 %v5590, %v5693
    %v5721 = vmul.f32 %v5591, %v5703
    %v5722 = vmul.f32 %v5592, %v5693
    %v5723 = vmul.f32 %v5593, %v5703
    %v5724 = vmul.f32 %v5594, %v5693
    %v5725 = vmul.f32 %v5595, %v5703
    %v5726 = vmul.f32 %v5596, %v5693
    %v5727 = vmul.f32 %v5597, %v5703
    %v5728 = vmul.f32 %v5598, %v5693
    %v5729 = vmul.f32 %v5599, %v5703
    %v5730 = vmul.f32 %v5600, %v5693
    %v5731 = vmul.f32 %v5601, %v5703
    %v5732 = vmul.f32 %v5602, %v5693
    %v5733 = vmul.f32 %v5603, %v5703
    %v5734 = vmul.f32 %v5604, %v5693
    %v5735 = vmul.f32 %v5605, %v5703
    %v5737 = vperm.slane %v18, 0
    %v5738 = vperm.slane %v18, 4
    %v5741 = vperm.slane %v5737, 0
    %v5742 = vperm.slane %v5738, 0
    %v5743 = vmul.f32 %v5704, %v5741
    %v5744 = vmul.f32 %v5705, %v5742
    %v5745 = vmul.f32 %v5706, %v5741
    %v5746 = vmul.f32 %v5707, %v5742
    %v5747 = vmul.f32 %v5708, %v5741
    %v5748 = vmul.f32 %v5709, %v5742
    %v5749 = vmul.f32 %v5710, %v5741
    %v5750 = vmul.f32 %v5711, %v5742
    %v5751 = vmul.f32 %v5712, %v5741
    %v5752 = vmul.f32 %v5713, %v5742
    %v5753 = vmul.f32 %v5714, %v5741
    %v5754 = vmul.f32 %v5715, %v5742
    %v5755 = vmul.f32 %v5716, %v5741
    %v5756 = vmul.f32 %v5717, %v5742
    %v5757 = vmul.f32 %v5718, %v5741
    %v5758 = vmul.f32 %v5719, %v5742
    %v5759 = vmul.f32 %v5720, %v5741
    %v5760 = vmul.f32 %v5721, %v5742
    %v5761 = vmul.f32 %v5722, %v5741
    %v5762 = vmul.f32 %v5723, %v5742
    %v5763 = vmul.f32 %v5724, %v5741
    %v5764 = vmul.f32 %v5725, %v5742
    %v5765 = vmul.f32 %v5726, %v5741
    %v5766 = vmul.f32 %v5727, %v5742
    %v5767 = vmul.f32 %v5728, %v5741
    %v5768 = vmul.f32 %v5729, %v5742
    %v5769 = vmul.f32 %v5730, %v5741
    %v5770 = vmul.f32 %v5731, %v5742
    %v5771 = vmul.f32 %v5732, %v5741
    %v5772 = vmul.f32 %v5733, %v5742
    %v5773 = vmul.f32 %v5734, %v5741
    %v5774 = vmul.f32 %v5735, %v5742
    %v5775 = vperm.slane %v18, 1
    %v5776 = vperm.slane %v18, 5
    %v5779 = vperm.slane %v5775, 1
    %v5780 = vperm.slane %v5776, 1
    %v5781 = vadd.f32 %v5743, %v5779
    %v5782 = vadd.f32 %v5744, %v5780
    %v5783 = vadd.f32 %v5745, %v5779
    %v5784 = vadd.f32 %v5746, %v5780
    %v5785 = vadd.f32 %v5747, %v5779
    %v5786 = vadd.f32 %v5748, %v5780
    %v5787 = vadd.f32 %v5749, %v5779
    %v5788 = vadd.f32 %v5750, %v5780
    %v5789 = vadd.f32 %v5751, %v5779
    %v5790 = vadd.f32 %v5752, %v5780
    %v5791 = vadd.f32 %v5753, %v5779
    %v5792 = vadd.f32 %v5754, %v5780
    %v5793 = vadd.f32 %v5755, %v5779
    %v5794 = vadd.f32 %v5756, %v5780
    %v5795 = vadd.f32 %v5757, %v5779
    %v5796 = vadd.f32 %v5758, %v5780
    %v5797 = vadd.f32 %v5759, %v5779
    %v5798 = vadd.f32 %v5760, %v5780
    %v5799 = vadd.f32 %v5761, %v5779
    %v5800 = vadd.f32 %v5762, %v5780
    %v5801 = vadd.f32 %v5763, %v5779
    %v5802 = vadd.f32 %v5764, %v5780
    %v5803 = vadd.f32 %v5765, %v5779
    %v5804 = vadd.f32 %v5766, %v5780
    %v5805 = vadd.f32 %v5767, %v5779
    %v5806 = vadd.f32 %v5768, %v5780
    %v5807 = vadd.f32 %v5769, %v5779
    %v5808 = vadd.f32 %v5770, %v5780
    %v5809 = vadd.f32 %v5771, %v5779
    %v5810 = vadd.f32 %v5772, %v5780
    %v5811 = vadd.f32 %v5773, %v5779
    %v5812 = vadd.f32 %v5774, %v5780
    %v5813 = vmax.f32 %v5781, 0.0
    %v5814 = vmax.f32 %v5782, 0.0
    %v5815 = vmax.f32 %v5783, 0.0
    %v5816 = vmax.f32 %v5784, 0.0
    %v5817 = vmax.f32 %v5785, 0.0
    %v5818 = vmax.f32 %v5786, 0.0
    %v5819 = vmax.f32 %v5787, 0.0
    %v5820 = vmax.f32 %v5788, 0.0
    %v5821 = vmax.f32 %v5789, 0.0
    %v5822 = vmax.f32 %v5790, 0.0
    %v5823 = vmax.f32 %v5791, 0.0
    %v5824 = vmax.f32 %v5792, 0.0
    %v5825 = vmax.f32 %v5793, 0.0
    %v5826 = vmax.f32 %v5794, 0.0
    %v5827 = vmax.f32 %v5795, 0.0
    %v5828 = vmax.f32 %v5796, 0.0
    %v5829 = vmax.f32 %v5797, 0.0
    %v5830 = vmax.f32 %v5798, 0.0
    %v5831 = vmax.f32 %v5799, 0.0
    %v5832 = vmax.f32 %v5800, 0.0
    %v5833 = vmax.f32 %v5801, 0.0
    %v5834 = vmax.f32 %v5802, 0.0
    %v5835 = vmax.f32 %v5803, 0.0
    %v5836 = vmax.f32 %v5804, 0.0
    %v5837 = vmax.f32 %v5805, 0.0
    %v5838 = vmax.f32 %v5806, 0.0
    %v5839 = vmax.f32 %v5807, 0.0
    %v5840 = vmax.f32 %v5808, 0.0
    %v5841 = vmax.f32 %v5809, 0.0
    %v5842 = vmax.f32 %v5810, 0.0
    %v5843 = vmax.f32 %v5811, 0.0
    %v5844 = vmax.f32 %v5812, 0.0
    %v5877 = vrot.slane %v5813, 7
    %v5878 = vrot.slane %v5814, 7
    %v5879 = vrot.slane %v5815, 7
    %v5880 = vrot.slane %v5816, 7
    %v5881 = vrot.slane %v5817, 7
    %v5882 = vrot.slane %v5818, 7
    %v5883 = vrot.slane %v5819, 7
    %v5884 = vrot.slane %v5820, 7
    %v5885 = vrot.slane %v5821, 7
    %v5886 = vrot.slane %v5822, 7
    %v5887 = vrot.slane %v5823, 7
    %v5888 = vrot.slane %v5824, 7
    %v5889 = vrot.slane %v5825, 7
    %v5890 = vrot.slane %v5826, 7
    %v5891 = vrot.slane %v5827, 7
    %v5892 = vrot.slane %v5828, 7
    %v5893 = vrot.slane %v5829, 7
    %v5894 = vrot.slane %v5830, 7
    %v5895 = vrot.slane %v5831, 7
    %v5896 = vrot.slane %v5832, 7
    %v5897 = vrot.slane %v5833, 7
    %v5898 = vrot.slane %v5834, 7
    %v5899 = vrot.slane %v5835, 7
    %v5900 = vrot.slane %v5836, 7
    %v5901 = vrot.slane %v5837, 7
    %v5902 = vrot.slane %v5838, 7
    %v5903 = vrot.slane %v5839, 7
    %v5904 = vrot.slane %v5840, 7
    %v5905 = vrot.slane %v5841, 7
    %v5906 = vrot.slane %v5842, 7
    %v5907 = vrot.slane %v5843, 7
    %v5908 = vrot.slane %v5844, 7
    %s5941 = scalar_lea.vmem [#allocation2], 32
    %5942 = vst [vmem:[%s5941] sm:$0xfe] %v5877
    %5943 = vst [vmem:[%s5941 + $0x8] sm:$0xfe] %v5878
    %5944 = vst [vmem:[%s5941 + $0x10] sm:$0x1] %v5877
    %5945 = vst [vmem:[%s5941 + $0x18] sm:$0x1] %v5878
    %5946 = vst [vmem:[%s5941 + $0x20] sm:$0xfe] %v5879
    %5947 = vst [vmem:[%s5941 + $0x28] sm:$0xfe] %v5880
    %5948 = vst [vmem:[%s5941 + $0x30] sm:$0x1] %v5879
    %5949 = vst [vmem:[%s5941 + $0x38] sm:$0x1] %v5880
    %5950 = vst [vmem:[%s5941 + $0x40] sm:$0xfe] %v5881
    %5951 = vst [vmem:[%s5941 + $0x48] sm:$0xfe] %v5882
    %5952 = vst [vmem:[%s5941 + $0x50] sm:$0x1] %v5881
    %5953 = vst [vmem:[%s5941 + $0x58] sm:$0x1] %v5882
    %5954 = vst [vmem:[%s5941 + $0x60] sm:$0xfe] %v5883
    %5955 = vst [vmem:[%s5941 + $0x68] sm:$0xfe] %v5884
    %5956 = vst [vmem:[%s5941 + $0x70] sm:$0x1] %v5883
    %5957 = vst [vmem:[%s5941 + $0x78] sm:$0x1] %v5884
    %5958 = vst [vmem:[%s5941 + $0x80] sm:$0xfe] %v5885
    %5959 = vst [vmem:[%s5941 + $0x88] sm:$0xfe] %v5886
    %5960 = vst [vmem:[%s5941 + $0x90] sm:$0x1] %v5885
    %5961 = vst [vmem:[%s5941 + $0x98] sm:$0x1] %v5886
    %5962 = vst [vmem:[%s5941 + $0xa0] sm:$0xfe] %v5887
    %5963 = vst [vmem:[%s5941 + $0xa8] sm:$0xfe] %v5888
    %5964 = vst [vmem:[%s5941 + $0xb0] sm:$0x1] %v5887
    %5965 = vst [vmem:[%s5941 + $0xb8] sm:$0x1] %v5888
    %5966 = vst [vmem:[%s5941 + $0xc0] sm:$0xfe] %v5889
    %5967 = vst [vmem:[%s5941 + $0xc8] sm:$0xfe] %v5890
    %5968 = vst [vmem:[%s5941 + $0xd0] sm:$0x1] %v5889
    %5969 = vst [vmem:[%s5941 + $0xd8] sm:$0x1] %v5890
    %5970 = vst [vmem:[%s5941 + $0xe0] sm:$0xfe] %v5891
    %5971 = vst [vmem:[%s5941 + $0xe8] sm:$0xfe] %v5892
    %5972 = vst [vmem:[%s5941 + $0xf0] sm:$0x1] %v5891
    %5973 = vst [vmem:[%s5941 + $0xf8] sm:$0x1] %v5892
    %5974 = vst [vmem:[%s5941 + $0x140] sm:$0xfe] %v5893
    %5975 = vst [vmem:[%s5941 + $0x148] sm:$0xfe] %v5894
    %5976 = vst [vmem:[%s5941 + $0x150] sm:$0x1] %v5893
    %5977 = vst [vmem:[%s5941 + $0x158] sm:$0x1] %v5894
    %5978 = vst [vmem:[%s5941 + $0x160] sm:$0xfe] %v5895
    %5979 = vst [vmem:[%s5941 + $0x168] sm:$0xfe] %v5896
    %5980 = vst [vmem:[%s5941 + $0x170] sm:$0x1] %v5895
    %5981 = vst [vmem:[%s5941 + $0x178] sm:$0x1] %v5896
    %5982 = vst [vmem:[%s5941 + $0x180] sm:$0xfe] %v5897
    %5983 = vst [vmem:[%s5941 + $0x188] sm:$0xfe] %v5898
    %5984 = vst [vmem:[%s5941 + $0x190] sm:$0x1] %v5897
    %5985 = vst [vmem:[%s5941 + $0x198] sm:$0x1] %v5898
    %5986 = vst [vmem:[%s5941 + $0x1a0] sm:$0xfe] %v5899
    %5987 = vst [vmem:[%s5941 + $0x1a8] sm:$0xfe] %v5900
    %5988 = vst [vmem:[%s5941 + $0x1b0] sm:$0x1] %v5899
    %5989 = vst [vmem:[%s5941 + $0x1b8] sm:$0x1] %v5900
    %5990 = vst [vmem:[%s5941 + $0x1c0] sm:$0xfe] %v5901
    %5991 = vst [vmem:[%s5941 + $0x1c8] sm:$0xfe] %v5902
    %5992 = vst [vmem:[%s5941 + $0x1d0] sm:$0x1] %v5901
    %5993 = vst [vmem:[%s5941 + $0x1d8] sm:$0x1] %v5902
    %5994 = vst [vmem:[%s5941 + $0x1e0] sm:$0xfe] %v5903
    %5995 = vst [vmem:[%s5941 + $0x1e8] sm:$0xfe] %v5904
    %5996 = vst [vmem:[%s5941 + $0x1f0] sm:$0x1] %v5903
    %5997 = vst [vmem:[%s5941 + $0x1f8] sm:$0x1] %v5904
    %5998 = vst [vmem:[%s5941 + $0x200] sm:$0xfe] %v5905
    %5999 = vst [vmem:[%s5941 + $0x208] sm:$0xfe] %v5906
    %6000 = vst [vmem:[%s5941 + $0x210] sm:$0x1] %v5905
    %6001 = vst [vmem:[%s5941 + $0x218] sm:$0x1] %v5906
    %6002 = vst [vmem:[%s5941 + $0x220] sm:$0xfe] %v5907
    %6003 = vst [vmem:[%s5941 + $0x228] sm:$0xfe] %v5908
    %6004 = vst [vmem:[%s5941 + $0x230] sm:$0x1] %v5907
    %6005 = vst [vmem:[%s5941 + $0x238] sm:$0x1] %v5908
    %6006 = vst [vmem:[#allocation2] sm:$0xfe] %v5879
    %6007 = vst [vmem:[#allocation2 + $0x8] sm:$0xfe] %v5880
    %6008 = vst [vmem:[#allocation2 + $0x10] sm:$0x1] %v5879
    %6009 = vst [vmem:[#allocation2 + $0x18] sm:$0x1] %v5880
    %6010 = vst [vmem:[#allocation2 + $0x140] sm:$0xfe] %v5895
    %6011 = vst [vmem:[#allocation2 + $0x148] sm:$0xfe] %v5896
    %6012 = vst [vmem:[#allocation2 + $0x150] sm:$0x1] %v5895
    %6013 = vst [vmem:[#allocation2 + $0x158] sm:$0x1] %v5896
    %s6014 = scalar_lea.vmem [#allocation2], 288
    %6015 = vst [vmem:[%s6014] sm:$0xfe] %v5889
    %6016 = vst [vmem:[%s6014 + $0x8] sm:$0xfe] %v5890
    %6017 = vst [vmem:[%s6014 + $0x10] sm:$0x1] %v5889
    %6018 = vst [vmem:[%s6014 + $0x18] sm:$0x1] %v5890
    %6019 = vst [vmem:[%s6014 + $0x140] sm:$0xfe] %v5905
    %6020 = vst [vmem:[%s6014 + $0x148] sm:$0xfe] %v5906
    %6021 = vst [vmem:[%s6014 + $0x150] sm:$0x1] %v5905
    %6022 = vst [vmem:[%s6014 + $0x158] sm:$0x1] %v5906
    %s6023 = scalar_lea.vmem [#allocation2], 2
    %v6024 = vld [vmem:[%s6023] ss:$8 sm:$0x3]
    %s6025 = scalar_lea.vmem [#allocation2], 34
    %v6026 = vld [vmem:[%s6025] ss:$8 sm:$0x3]
    %s6027 = scalar_lea.vmem [#allocation2], 66
    %v6028 = vld [vmem:[%s6027] ss:$8 sm:$0x3]
    %s6029 = scalar_lea.vmem [#allocation2], 98
    %v6030 = vld [vmem:[%s6029] ss:$8 sm:$0x3]
    %s6031 = scalar_lea.vmem [#allocation2], 130
    %v6032 = vld [vmem:[%s6031] ss:$8 sm:$0x3]
    %s6033 = scalar_lea.vmem [#allocation2], 162
    %v6034 = vld [vmem:[%s6033] ss:$8 sm:$0x3]
    %s6035 = scalar_lea.vmem [#allocation2], 194
    %v6036 = vld [vmem:[%s6035] ss:$8 sm:$0x3]
    %s6037 = scalar_lea.vmem [#allocation2], 226
    %v6038 = vld [vmem:[%s6037] ss:$8 sm:$0x3]
    %s6039 = scalar_lea.vmem [#allocation2], 258
    %v6040 = vld [vmem:[%s6039] ss:$8 sm:$0x3]
    %s6041 = scalar_lea.vmem [#allocation2], 290
    %v6042 = vld [vmem:[%s6041] ss:$8 sm:$0x3]
    %s6043 = scalar_lea.vmem [#allocation2], 322
    %v6044 = vld [vmem:[%s6043] ss:$8 sm:$0x3]
    %s6045 = scalar_lea.vmem [#allocation2], 354
    %v6046 = vld [vmem:[%s6045] ss:$8 sm:$0x3]
    %s6047 = scalar_lea.vmem [#allocation2], 386
    %v6048 = vld [vmem:[%s6047] ss:$8 sm:$0x3]
    %s6049 = scalar_lea.vmem [#allocation2], 418
    %v6050 = vld [vmem:[%s6049] ss:$8 sm:$0x3]
    %s6051 = scalar_lea.vmem [#allocation2], 450
    %v6052 = vld [vmem:[%s6051] ss:$8 sm:$0x3]
    %s6053 = scalar_lea.vmem [#allocation2], 482
    %v6054 = vld [vmem:[%s6053] ss:$8 sm:$0x3]
    %s6055 = scalar_lea.vmem [#allocation2], 514
    %v6056 = vld [vmem:[%s6055] ss:$8 sm:$0x3]
    %s6057 = scalar_lea.vmem [#allocation2], 546
    %v6058 = vld [vmem:[%s6057] ss:$8 sm:$0x3]
    %s6059 = scalar_lea.vmem [#allocation2], 578
    %v6060 = vld [vmem:[%s6059] ss:$8 sm:$0x3]
    %s6061 = scalar_lea.vmem [#allocation2], 610
    %v6062 = vld [vmem:[%s6061] ss:$8 sm:$0x3]
    %v6063 = vlaneseq
    %vm6064 = vcmp.ge.s32.totalorder %v6063, 0
    %vm6065 = vcmp.lt.s32.totalorder %v6063, 256
    %vm6066 = vmand %vm6064, %vm6065
    %6067 = vst.msk [vmem:[#allocation2] ss:$8 sm:$0x3] %vm6066, %v6024
    %6068 = vst.msk [vmem:[#allocation2] ss:$8 sm:$0x0] %vm6066, %v6024
    %s6069 = scalar_lea.vmem [#allocation2], 32
    %6070 = vst.msk [vmem:[%s6069] ss:$8 sm:$0x3] %vm6066, %v6026
    %6071 = vst.msk [vmem:[%s6069] ss:$8 sm:$0x0] %vm6066, %v6026
    %s6072 = scalar_lea.vmem [#allocation2], 64
    %6073 = vst.msk [vmem:[%s6072] ss:$8 sm:$0x3] %vm6066, %v6028
    %6074 = vst.msk [vmem:[%s6072] ss:$8 sm:$0x0] %vm6066, %v6028
    %s6075 = scalar_lea.vmem [#allocation2], 96
    %6076 = vst.msk [vmem:[%s6075] ss:$8 sm:$0x3] %vm6066, %v6030
    %6077 = vst.msk [vmem:[%s6075] ss:$8 sm:$0x0] %vm6066, %v6030
    %s6078 = scalar_lea.vmem [#allocation2], 128
    %6079 = vst.msk [vmem:[%s6078] ss:$8 sm:$0x3] %vm6066, %v6032
    %6080 = vst.msk [vmem:[%s6078] ss:$8 sm:$0x0] %vm6066, %v6032
    %s6081 = scalar_lea.vmem [#allocation2], 160
    %6082 = vst.msk [vmem:[%s6081] ss:$8 sm:$0x3] %vm6066, %v6034
    %6083 = vst.msk [vmem:[%s6081] ss:$8 sm:$0x0] %vm6066, %v6034
    %s6084 = scalar_lea.vmem [#allocation2], 192
    %6085 = vst.msk [vmem:[%s6084] ss:$8 sm:$0x3] %vm6066, %v6036
    %6086 = vst.msk [vmem:[%s6084] ss:$8 sm:$0x0] %vm6066, %v6036
    %s6087 = scalar_lea.vmem [#allocation2], 224
    %6088 = vst.msk [vmem:[%s6087] ss:$8 sm:$0x3] %vm6066, %v6038
    %6089 = vst.msk [vmem:[%s6087] ss:$8 sm:$0x0] %vm6066, %v6038
    %s6090 = scalar_lea.vmem [#allocation2], 256
    %6091 = vst.msk [vmem:[%s6090] ss:$8 sm:$0x3] %vm6066, %v6040
    %6092 = vst.msk [vmem:[%s6090] ss:$8 sm:$0x0] %vm6066, %v6040
    %s6093 = scalar_lea.vmem [#allocation2], 288
    %6094 = vst.msk [vmem:[%s6093] ss:$8 sm:$0x3] %vm6066, %v6042
    %6095 = vst.msk [vmem:[%s6093] ss:$8 sm:$0x0] %vm6066, %v6042
    %s6096 = scalar_lea.vmem [#allocation2], 320
    %6097 = vst.msk [vmem:[%s6096] ss:$8 sm:$0x3] %vm6066, %v6044
    %6098 = vst.msk [vmem:[%s6096] ss:$8 sm:$0x0] %vm6066, %v6044
    %s6099 = scalar_lea.vmem [#allocation2], 352
    %6100 = vst.msk [vmem:[%s6099] ss:$8 sm:$0x3] %vm6066, %v6046
    %6101 = vst.msk [vmem:[%s6099] ss:$8 sm:$0x0] %vm6066, %v6046
    %s6102 = scalar_lea.vmem [#allocation2], 384
    %6103 = vst.msk [vmem:[%s6102] ss:$8 sm:$0x3] %vm6066, %v6048
    %6104 = vst.msk [vmem:[%s6102] ss:$8 sm:$0x0] %vm6066, %v6048
    %s6105 = scalar_lea.vmem [#allocation2], 416
    %6106 = vst.msk [vmem:[%s6105] ss:$8 sm:$0x3] %vm6066, %v6050
    %6107 = vst.msk [vmem:[%s6105] ss:$8 sm:$0x0] %vm6066, %v6050
    %s6108 = scalar_lea.vmem [#allocation2], 448
    %6109 = vst.msk [vmem:[%s6108] ss:$8 sm:$0x3] %vm6066, %v6052
    %6110 = vst.msk [vmem:[%s6108] ss:$8 sm:$0x0] %vm6066, %v6052
    %s6111 = scalar_lea.vmem [#allocation2], 480
    %6112 = vst.msk [vmem:[%s6111] ss:$8 sm:$0x3] %vm6066, %v6054
    %6113 = vst.msk [vmem:[%s6111] ss:$8 sm:$0x0] %vm6066, %v6054
    %s6114 = scalar_lea.vmem [#allocation2], 512
    %6115 = vst.msk [vmem:[%s6114] ss:$8 sm:$0x3] %vm6066, %v6056
    %6116 = vst.msk [vmem:[%s6114] ss:$8 sm:$0x0] %vm6066, %v6056
    %s6117 = scalar_lea.vmem [#allocation2], 544
    %6118 = vst.msk [vmem:[%s6117] ss:$8 sm:$0x3] %vm6066, %v6058
    %6119 = vst.msk [vmem:[%s6117] ss:$8 sm:$0x0] %vm6066, %v6058
    %s6120 = scalar_lea.vmem [#allocation2], 576
    %6121 = vst.msk [vmem:[%s6120] ss:$8 sm:$0x3] %vm6066, %v6060
    %6122 = vst.msk [vmem:[%s6120] ss:$8 sm:$0x0] %vm6066, %v6060
    %s6123 = scalar_lea.vmem [#allocation2], 608
    %6124 = vst.msk [vmem:[%s6123] ss:$8 sm:$0x3] %vm6066, %v6062
    %6125 = vst.msk [vmem:[%s6123] ss:$8 sm:$0x0] %vm6066, %v6062
    %s6126 = scalar_lea.vmem [#allocation2], 7
    %v6127 = vld [vmem:[%s6126] ss:$8 sm:$0x3]
    %s6128 = scalar_lea.vmem [#allocation2], 39
    %v6129 = vld [vmem:[%s6128] ss:$8 sm:$0x3]
    %s6130 = scalar_lea.vmem [#allocation2], 71
    %v6131 = vld [vmem:[%s6130] ss:$8 sm:$0x3]
    %s6132 = scalar_lea.vmem [#allocation2], 103
    %v6133 = vld [vmem:[%s6132] ss:$8 sm:$0x3]
    %s6134 = scalar_lea.vmem [#allocation2], 135
    %v6135 = vld [vmem:[%s6134] ss:$8 sm:$0x3]
    %s6136 = scalar_lea.vmem [#allocation2], 167
    %v6137 = vld [vmem:[%s6136] ss:$8 sm:$0x3]
    %s6138 = scalar_lea.vmem [#allocation2], 199
    %v6139 = vld [vmem:[%s6138] ss:$8 sm:$0x3]
    %s6140 = scalar_lea.vmem [#allocation2], 231
    %v6141 = vld [vmem:[%s6140] ss:$8 sm:$0x3]
    %s6142 = scalar_lea.vmem [#allocation2], 263
    %v6143 = vld [vmem:[%s6142] ss:$8 sm:$0x3]
    %s6144 = scalar_lea.vmem [#allocation2], 295
    %v6145 = vld [vmem:[%s6144] ss:$8 sm:$0x3]
    %s6146 = scalar_lea.vmem [#allocation2], 327
    %v6147 = vld [vmem:[%s6146] ss:$8 sm:$0x3]
    %s6148 = scalar_lea.vmem [#allocation2], 359
    %v6149 = vld [vmem:[%s6148] ss:$8 sm:$0x3]
    %s6150 = scalar_lea.vmem [#allocation2], 391
    %v6151 = vld [vmem:[%s6150] ss:$8 sm:$0x3]
    %s6152 = scalar_lea.vmem [#allocation2], 423
    %v6153 = vld [vmem:[%s6152] ss:$8 sm:$0x3]
    %s6154 = scalar_lea.vmem [#allocation2], 455
    %v6155 = vld [vmem:[%s6154] ss:$8 sm:$0x3]
    %s6156 = scalar_lea.vmem [#allocation2], 487
    %v6157 = vld [vmem:[%s6156] ss:$8 sm:$0x3]
    %s6158 = scalar_lea.vmem [#allocation2], 519
    %v6159 = vld [vmem:[%s6158] ss:$8 sm:$0x3]
    %s6160 = scalar_lea.vmem [#allocation2], 551
    %v6161 = vld [vmem:[%s6160] ss:$8 sm:$0x3]
    %s6162 = scalar_lea.vmem [#allocation2], 583
    %v6163 = vld [vmem:[%s6162] ss:$8 sm:$0x3]
    %s6164 = scalar_lea.vmem [#allocation2], 615
    %v6165 = vld [vmem:[%s6164] ss:$8 sm:$0x3]
    %s6166 = scalar_lea.vmem [#allocation2], 17
    %6167 = vst.msk [vmem:[%s6166] ss:$8 sm:$0x3] %vm6066, %v6127
    %6168 = vst.msk [vmem:[%s6166] ss:$8 sm:$0x0] %vm6066, %v6127
    %s6169 = scalar_lea.vmem [#allocation2], 49
    %6170 = vst.msk [vmem:[%s6169] ss:$8 sm:$0x3] %vm6066, %v6129
    %6171 = vst.msk [vmem:[%s6169] ss:$8 sm:$0x0] %vm6066, %v6129
    %s6172 = scalar_lea.vmem [#allocation2], 81
    %6173 = vst.msk [vmem:[%s6172] ss:$8 sm:$0x3] %vm6066, %v6131
    %6174 = vst.msk [vmem:[%s6172] ss:$8 sm:$0x0] %vm6066, %v6131
    %s6175 = scalar_lea.vmem [#allocation2], 113
    %6176 = vst.msk [vmem:[%s6175] ss:$8 sm:$0x3] %vm6066, %v6133
    %6177 = vst.msk [vmem:[%s6175] ss:$8 sm:$0x0] %vm6066, %v6133
    %s6178 = scalar_lea.vmem [#allocation2], 145
    %6179 = vst.msk [vmem:[%s6178] ss:$8 sm:$0x3] %vm6066, %v6135
    %6180 = vst.msk [vmem:[%s6178] ss:$8 sm:$0x0] %vm6066, %v6135
    %s6181 = scalar_lea.vmem [#allocation2], 177
    %6182 = vst.msk [vmem:[%s6181] ss:$8 sm:$0x3] %vm6066, %v6137
    %6183 = vst.msk [vmem:[%s6181] ss:$8 sm:$0x0] %vm6066, %v6137
    %s6184 = scalar_lea.vmem [#allocation2], 209
    %6185 = vst.msk [vmem:[%s6184] ss:$8 sm:$0x3] %vm6066, %v6139
    %6186 = vst.msk [vmem:[%s6184] ss:$8 sm:$0x0] %vm6066, %v6139
    %s6187 = scalar_lea.vmem [#allocation2], 241
    %6188 = vst.msk [vmem:[%s6187] ss:$8 sm:$0x3] %vm6066, %v6141
    %6189 = vst.msk [vmem:[%s6187] ss:$8 sm:$0x0] %vm6066, %v6141
    %s6190 = scalar_lea.vmem [#allocation2], 273
    %6191 = vst.msk [vmem:[%s6190] ss:$8 sm:$0x3] %vm6066, %v6143
    %6192 = vst.msk [vmem:[%s6190] ss:$8 sm:$0x0] %vm6066, %v6143
    %s6193 = scalar_lea.vmem [#allocation2], 305
    %6194 = vst.msk [vmem:[%s6193] ss:$8 sm:$0x3] %vm6066, %v6145
    %6195 = vst.msk [vmem:[%s6193] ss:$8 sm:$0x0] %vm6066, %v6145
    %s6196 = scalar_lea.vmem [#allocation2], 337
    %6197 = vst.msk [vmem:[%s6196] ss:$8 sm:$0x3] %vm6066, %v6147
    %6198 = vst.msk [vmem:[%s6196] ss:$8 sm:$0x0] %vm6066, %v6147
    %s6199 = scalar_lea.vmem [#allocation2], 369
    %6200 = vst.msk [vmem:[%s6199] ss:$8 sm:$0x3] %vm6066, %v6149
    %6201 = vst.msk [vmem:[%s6199] ss:$8 sm:$0x0] %vm6066, %v6149
    %s6202 = scalar_lea.vmem [#allocation2], 401
    %6203 = vst.msk [vmem:[%s6202] ss:$8 sm:$0x3] %vm6066, %v6151
    %6204 = vst.msk [vmem:[%s6202] ss:$8 sm:$0x0] %vm6066, %v6151
    %s6205 = scalar_lea.vmem [#allocation2], 433
    %6206 = vst.msk [vmem:[%s6205] ss:$8 sm:$0x3] %vm6066, %v6153
    %6207 = vst.msk [vmem:[%s6205] ss:$8 sm:$0x0] %vm6066, %v6153
    %s6208 = scalar_lea.vmem [#allocation2], 465
    %6209 = vst.msk [vmem:[%s6208] ss:$8 sm:$0x3] %vm6066, %v6155
    %6210 = vst.msk [vmem:[%s6208] ss:$8 sm:$0x0] %vm6066, %v6155
    %s6211 = scalar_lea.vmem [#allocation2], 497
    %6212 = vst.msk [vmem:[%s6211] ss:$8 sm:$0x3] %vm6066, %v6157
    %6213 = vst.msk [vmem:[%s6211] ss:$8 sm:$0x0] %vm6066, %v6157
    %s6214 = scalar_lea.vmem [#allocation2], 529
    %6215 = vst.msk [vmem:[%s6214] ss:$8 sm:$0x3] %vm6066, %v6159
    %6216 = vst.msk [vmem:[%s6214] ss:$8 sm:$0x0] %vm6066, %v6159
    %s6217 = scalar_lea.vmem [#allocation2], 561
    %6218 = vst.msk [vmem:[%s6217] ss:$8 sm:$0x3] %vm6066, %v6161
    %6219 = vst.msk [vmem:[%s6217] ss:$8 sm:$0x0] %vm6066, %v6161
    %s6220 = scalar_lea.vmem [#allocation2], 593
    %6221 = vst.msk [vmem:[%s6220] ss:$8 sm:$0x3] %vm6066, %v6163
    %6222 = vst.msk [vmem:[%s6220] ss:$8 sm:$0x0] %vm6066, %v6163
    %s6223 = scalar_lea.vmem [#allocation2], 625
    %6224 = vst.msk [vmem:[%s6223] ss:$8 sm:$0x3] %vm6066, %v6165
    %6225 = vst.msk [vmem:[%s6223] ss:$8 sm:$0x0] %vm6066, %v6165
    %v6226 = vld [vmem:[#allocation2] sm:$0xff]
    %v6227 = vld [vmem:[#allocation2 + $0x8] sm:$0xff]
    %v6228 = vld [vmem:[#allocation2 + $0x20] sm:$0xff]
    %v6229 = vld [vmem:[#allocation2 + $0x28] sm:$0xff]
    %v6230 = vld [vmem:[#allocation2 + $0x40] sm:$0xff]
    %v6231 = vld [vmem:[#allocation2 + $0x48] sm:$0xff]
    %v6232 = vld [vmem:[#allocation2 + $0x60] sm:$0xff]
    %v6233 = vld [vmem:[#allocation2 + $0x68] sm:$0xff]
    %v6234 = vld [vmem:[#allocation2 + $0x80] sm:$0xff]
    %v6235 = vld [vmem:[#allocation2 + $0x88] sm:$0xff]
    %v6236 = vld [vmem:[#allocation2 + $0xa0] sm:$0xff]
    %v6237 = vld [vmem:[#allocation2 + $0xa8] sm:$0xff]
    %v6238 = vld [vmem:[#allocation2 + $0xc0] sm:$0xff]
    %v6239 = vld [vmem:[#allocation2 + $0xc8] sm:$0xff]
    %v6240 = vld [vmem:[#allocation2 + $0xe0] sm:$0xff]
    %v6241 = vld [vmem:[#allocation2 + $0xe8] sm:$0xff]
    %v6242 = vld [vmem:[#allocation2 + $0x140] sm:$0xff]
    %v6243 = vld [vmem:[#allocation2 + $0x148] sm:$0xff]
    %v6244 = vld [vmem:[#allocation2 + $0x160] sm:$0xff]
    %v6245 = vld [vmem:[#allocation2 + $0x168] sm:$0xff]
    %v6246 = vld [vmem:[#allocation2 + $0x180] sm:$0xff]
    %v6247 = vld [vmem:[#allocation2 + $0x188] sm:$0xff]
    %v6248 = vld [vmem:[#allocation2 + $0x1a0] sm:$0xff]
    %v6249 = vld [vmem:[#allocation2 + $0x1a8] sm:$0xff]
    %v6250 = vld [vmem:[#allocation2 + $0x1c0] sm:$0xff]
    %v6251 = vld [vmem:[#allocation2 + $0x1c8] sm:$0xff]
    %v6252 = vld [vmem:[#allocation2 + $0x1e0] sm:$0xff]
    %v6253 = vld [vmem:[#allocation2 + $0x1e8] sm:$0xff]
    %v6254 = vld [vmem:[#allocation2 + $0x200] sm:$0xff]
    %v6255 = vld [vmem:[#allocation2 + $0x208] sm:$0xff]
    %v6256 = vld [vmem:[#allocation2 + $0x220] sm:$0xff]
    %v6257 = vld [vmem:[#allocation2 + $0x228] sm:$0xff]
    %v6258 = vpack.c.bf16 %v6228, %v6226
    %v6259 = vpack.c.bf16 %v6229, %v6227
    %v6260 = vpack.c.bf16 %v6232, %v6230
    %v6261 = vpack.c.bf16 %v6233, %v6231
    %v6262 = vpack.c.bf16 %v6236, %v6234
    %v6263 = vpack.c.bf16 %v6237, %v6235
    %v6264 = vpack.c.bf16 %v6240, %v6238
    %v6265 = vpack.c.bf16 %v6241, %v6239
    %v6266 = vpack.c.bf16 %v6244, %v6242
    %v6267 = vpack.c.bf16 %v6245, %v6243
    %v6268 = vpack.c.bf16 %v6248, %v6246
    %v6269 = vpack.c.bf16 %v6249, %v6247
    %v6270 = vpack.c.bf16 %v6252, %v6250
    %v6271 = vpack.c.bf16 %v6253, %v6251
    %v6272 = vpack.c.bf16 %v6256, %v6254
    %v6273 = vpack.c.bf16 %v6257, %v6255
    %v6274 = vld [vmem:[%s2] sm:$0xff]
    %v6275 = vld [vmem:[%s2 + $0x8] sm:$0xff]
    %v6276 = vld [vmem:[%s2 + $0x10] sm:$0xff]
    %v6277 = vld [vmem:[%s2 + $0x18] sm:$0xff]
    %v6278 = vld [vmem:[%s2 + $0x20] sm:$0xff]
    %v6279 = vld [vmem:[%s2 + $0x28] sm:$0xff]
    %v6280 = vld [vmem:[%s2 + $0x30] sm:$0xff]
    %v6281 = vld [vmem:[%s2 + $0x38] sm:$0xff]
    %v6282 = vld [vmem:[%s2 + $0x40] sm:$0xff]
    %v6283 = vld [vmem:[%s2 + $0x48] sm:$0xff]
    %v6284 = vld [vmem:[%s2 + $0x50] sm:$0xff]
    %v6285 = vld [vmem:[%s2 + $0x58] sm:$0xff]
    %v6286 = vld [vmem:[%s2 + $0x60] sm:$0xff]
    %v6287 = vld [vmem:[%s2 + $0x68] sm:$0xff]
    %v6288 = vld [vmem:[%s2 + $0x70] sm:$0xff]
    %v6289 = vld [vmem:[%s2 + $0x78] sm:$0xff]
    %v6290 = vld [vmem:[%s2 + $0x80] sm:$0xff]
    %v6291 = vld [vmem:[%s2 + $0x88] sm:$0xff]
    %v6292 = vld [vmem:[%s2 + $0x90] sm:$0xff]
    %v6293 = vld [vmem:[%s2 + $0x98] sm:$0xff]
    %v6294 = vld [vmem:[%s2 + $0xa0] sm:$0xff]
    %v6295 = vld [vmem:[%s2 + $0xa8] sm:$0xff]
    %v6296 = vld [vmem:[%s2 + $0xb0] sm:$0xff]
    %v6297 = vld [vmem:[%s2 + $0xb8] sm:$0xff]
    %v6298 = vld [vmem:[%s2 + $0xc0] sm:$0xff]
    %v6299 = vld [vmem:[%s2 + $0xc8] sm:$0xff]
    %v6300 = vld [vmem:[%s2 + $0xd0] sm:$0xff]
    %v6301 = vld [vmem:[%s2 + $0xd8] sm:$0xff]
    %v6302 = vld [vmem:[%s2 + $0xe0] sm:$0xff]
    %v6303 = vld [vmem:[%s2 + $0xe8] sm:$0xff]
    %v6304 = vld [vmem:[%s2 + $0xf0] sm:$0xff]
    %v6305 = vld [vmem:[%s2 + $0xf8] sm:$0xff]
    %v6306 = vld [vmem:[#allocation2] sm:$0xfe]
    %v6307 = vld [vmem:[#allocation2 + $0x8] sm:$0xfe]
    %v6308 = vld [vmem:[#allocation2 + $0x10] sm:$0x1]
    %v6309 = vld [vmem:[#allocation2 + $0x18] sm:$0x1]
    %v6310 = vld [vmem:[#allocation2 + $0x20] sm:$0xfe]
    %v6311 = vld [vmem:[#allocation2 + $0x28] sm:$0xfe]
    %v6312 = vld [vmem:[#allocation2 + $0x30] sm:$0x1]
    %v6313 = vld [vmem:[#allocation2 + $0x38] sm:$0x1]
    %v6314 = vld [vmem:[#allocation2 + $0x40] sm:$0xfe]
    %v6315 = vld [vmem:[#allocation2 + $0x48] sm:$0xfe]
    %v6316 = vld [vmem:[#allocation2 + $0x50] sm:$0x1]
    %v6317 = vld [vmem:[#allocation2 + $0x58] sm:$0x1]
    %v6318 = vld [vmem:[#allocation2 + $0x60] sm:$0xfe]
    %v6319 = vld [vmem:[#allocation2 + $0x68] sm:$0xfe]
    %v6320 = vld [vmem:[#allocation2 + $0x70] sm:$0x1]
    %v6321 = vld [vmem:[#allocation2 + $0x78] sm:$0x1]
    %v6322 = vld [vmem:[#allocation2 + $0x80] sm:$0xfe]
    %v6323 = vld [vmem:[#allocation2 + $0x88] sm:$0xfe]
    %v6324 = vld [vmem:[#allocation2 + $0x90] sm:$0x1]
    %v6325 = vld [vmem:[#allocation2 + $0x98] sm:$0x1]
    %v6326 = vld [vmem:[#allocation2 + $0xa0] sm:$0xfe]
    %v6327 = vld [vmem:[#allocation2 + $0xa8] sm:$0xfe]
    %v6328 = vld [vmem:[#allocation2 + $0xb0] sm:$0x1]
    %v6329 = vld [vmem:[#allocation2 + $0xb8] sm:$0x1]
    %v6330 = vld [vmem:[#allocation2 + $0xc0] sm:$0xfe]
    %v6331 = vld [vmem:[#allocation2 + $0xc8] sm:$0xfe]
    %v6332 = vld [vmem:[#allocation2 + $0xd0] sm:$0x1]
    %v6333 = vld [vmem:[#allocation2 + $0xd8] sm:$0x1]
    %v6334 = vld [vmem:[#allocation2 + $0xe0] sm:$0xfe]
    %v6335 = vld [vmem:[#allocation2 + $0xe8] sm:$0xfe]
    %v6336 = vld [vmem:[#allocation2 + $0xf0] sm:$0x1]
    %v6337 = vld [vmem:[#allocation2 + $0xf8] sm:$0x1]
    %v6338 = vld [vmem:[#allocation2 + $0x140] sm:$0xfe]
    %v6339 = vld [vmem:[#allocation2 + $0x148] sm:$0xfe]
    %v6340 = vld [vmem:[#allocation2 + $0x150] sm:$0x1]
    %v6341 = vld [vmem:[#allocation2 + $0x158] sm:$0x1]
    %v6342 = vld [vmem:[#allocation2 + $0x160] sm:$0xfe]
    %v6343 = vld [vmem:[#allocation2 + $0x168] sm:$0xfe]
    %v6344 = vld [vmem:[#allocation2 + $0x170] sm:$0x1]
    %v6345 = vld [vmem:[#allocation2 + $0x178] sm:$0x1]
    %v6346 = vld [vmem:[#allocation2 + $0x180] sm:$0xfe]
    %v6347 = vld [vmem:[#allocation2 + $0x188] sm:$0xfe]
    %v6348 = vld [vmem:[#allocation2 + $0x190] sm:$0x1]
    %v6349 = vld [vmem:[#allocation2 + $0x198] sm:$0x1]
    %v6350 = vld [vmem:[#allocation2 + $0x1a0] sm:$0xfe]
    %v6351 = vld [vmem:[#allocation2 + $0x1a8] sm:$0xfe]
    %v6352 = vld [vmem:[#allocation2 + $0x1b0] sm:$0x1]
    %v6353 = vld [vmem:[#allocation2 + $0x1b8] sm:$0x1]
    %v6354 = vld [vmem:[#allocation2 + $0x1c0] sm:$0xfe]
    %v6355 = vld [vmem:[#allocation2 + $0x1c8] sm:$0xfe]
    %v6356 = vld [vmem:[#allocation2 + $0x1d0] sm:$0x1]
    %v6357 = vld [vmem:[#allocation2 + $0x1d8] sm:$0x1]
    %v6358 = vld [vmem:[#allocation2 + $0x1e0] sm:$0xfe]
    %v6359 = vld [vmem:[#allocation2 + $0x1e8] sm:$0xfe]
    %v6360 = vld [vmem:[#allocation2 + $0x1f0] sm:$0x1]
    %v6361 = vld [vmem:[#allocation2 + $0x1f8] sm:$0x1]
    %v6362 = vld [vmem:[#allocation2 + $0x200] sm:$0xfe]
    %v6363 = vld [vmem:[#allocation2 + $0x208] sm:$0xfe]
    %v6364 = vld [vmem:[#allocation2 + $0x210] sm:$0x1]
    %v6365 = vld [vmem:[#allocation2 + $0x218] sm:$0x1]
    %v6366 = vld [vmem:[#allocation2 + $0x220] sm:$0xfe]
    %v6367 = vld [vmem:[#allocation2 + $0x228] sm:$0xfe]
    %v6368 = vld [vmem:[#allocation2 + $0x230] sm:$0x1]
    %v6369 = vld [vmem:[#allocation2 + $0x238] sm:$0x1]
    %v6434 = vrot.slane %v6306, 1
    %v6435 = vrot.slane %v6308, 1
    %v6436 = vsel %vm227, %v6434, %v6435
    %v6437 = vrot.slane %v6307, 1
    %v6438 = vrot.slane %v6309, 1
    %v6439 = vsel %vm227, %v6437, %v6438
    %v6440 = vrot.slane %v6310, 1
    %v6441 = vrot.slane %v6312, 1
    %v6442 = vsel %vm227, %v6440, %v6441
    %v6443 = vrot.slane %v6311, 1
    %v6444 = vrot.slane %v6313, 1
    %v6445 = vsel %vm227, %v6443, %v6444
    %v6446 = vrot.slane %v6314, 1
    %v6447 = vrot.slane %v6316, 1
    %v6448 = vsel %vm227, %v6446, %v6447
    %v6449 = vrot.slane %v6315, 1
    %v6450 = vrot.slane %v6317, 1
    %v6451 = vsel %vm227, %v6449, %v6450
    %v6452 = vrot.slane %v6318, 1
    %v6453 = vrot.slane %v6320, 1
    %v6454 = vsel %vm227, %v6452, %v6453
    %v6455 = vrot.slane %v6319, 1
    %v6456 = vrot.slane %v6321, 1
    %v6457 = vsel %vm227, %v6455, %v6456
    %v6458 = vrot.slane %v6322, 1
    %v6459 = vrot.slane %v6324, 1
    %v6460 = vsel %vm227, %v6458, %v6459
    %v6461 = vrot.slane %v6323, 1
    %v6462 = vrot.slane %v6325, 1
    %v6463 = vsel %vm227, %v6461, %v6462
    %v6464 = vrot.slane %v6326, 1
    %v6465 = vrot.slane %v6328, 1
    %v6466 = vsel %vm227, %v6464, %v6465
    %v6467 = vrot.slane %v6327, 1
    %v6468 = vrot.slane %v6329, 1
    %v6469 = vsel %vm227, %v6467, %v6468
    %v6470 = vrot.slane %v6330, 1
    %v6471 = vrot.slane %v6332, 1
    %v6472 = vsel %vm227, %v6470, %v6471
    %v6473 = vrot.slane %v6331, 1
    %v6474 = vrot.slane %v6333, 1
    %v6475 = vsel %vm227, %v6473, %v6474
    %v6476 = vrot.slane %v6334, 1
    %v6477 = vrot.slane %v6336, 1
    %v6478 = vsel %vm227, %v6476, %v6477
    %v6479 = vrot.slane %v6335, 1
    %v6480 = vrot.slane %v6337, 1
    %v6481 = vsel %vm227, %v6479, %v6480
    %v6482 = vrot.slane %v6338, 1
    %v6483 = vrot.slane %v6340, 1
    %v6484 = vsel %vm227, %v6482, %v6483
    %v6485 = vrot.slane %v6339, 1
    %v6486 = vrot.slane %v6341, 1
    %v6487 = vsel %vm227, %v6485, %v6486
    %v6488 = vrot.slane %v6342, 1
    %v6489 = vrot.slane %v6344, 1
    %v6490 = vsel %vm227, %v6488, %v6489
    %v6491 = vrot.slane %v6343, 1
    %v6492 = vrot.slane %v6345, 1
    %v6493 = vsel %vm227, %v6491, %v6492
    %v6494 = vrot.slane %v6346, 1
    %v6495 = vrot.slane %v6348, 1
    %v6496 = vsel %vm227, %v6494, %v6495
    %v6497 = vrot.slane %v6347, 1
    %v6498 = vrot.slane %v6349, 1
    %v6499 = vsel %vm227, %v6497, %v6498
    %v6500 = vrot.slane %v6350, 1
    %v6501 = vrot.slane %v6352, 1
    %v6502 = vsel %vm227, %v6500, %v6501
    %v6503 = vrot.slane %v6351, 1
    %v6504 = vrot.slane %v6353, 1
    %v6505 = vsel %vm227, %v6503, %v6504
    %v6506 = vrot.slane %v6354, 1
    %v6507 = vrot.slane %v6356, 1
    %v6508 = vsel %vm227, %v6506, %v6507
    %v6509 = vrot.slane %v6355, 1
    %v6510 = vrot.slane %v6357, 1
    %v6511 = vsel %vm227, %v6509, %v6510
    %v6512 = vrot.slane %v6358, 1
    %v6513 = vrot.slane %v6360, 1
    %v6514 = vsel %vm227, %v6512, %v6513
    %v6515 = vrot.slane %v6359, 1
    %v6516 = vrot.slane %v6361, 1
    %v6517 = vsel %vm227, %v6515, %v6516
    %v6518 = vrot.slane %v6362, 1
    %v6519 = vrot.slane %v6364, 1
    %v6520 = vsel %vm227, %v6518, %v6519
    %v6521 = vrot.slane %v6363, 1
    %v6522 = vrot.slane %v6365, 1
    %v6523 = vsel %vm227, %v6521, %v6522
    %v6524 = vrot.slane %v6366, 1
    %v6525 = vrot.slane %v6368, 1
    %v6526 = vsel %vm227, %v6524, %v6525
    %v6527 = vrot.slane %v6367, 1
    %v6528 = vrot.slane %v6369, 1
    %v6529 = vsel %vm227, %v6527, %v6528
    %v6562 = vpack.c.bf16 %v6442, %v6436
    %v6563 = vpack.c.bf16 %v6445, %v6439
    %v6564 = vpack.c.bf16 %v6454, %v6448
    %v6565 = vpack.c.bf16 %v6457, %v6451
    %v6566 = vpack.c.bf16 %v6466, %v6460
    %v6567 = vpack.c.bf16 %v6469, %v6463
    %v6568 = vpack.c.bf16 %v6478, %v6472
    %v6569 = vpack.c.bf16 %v6481, %v6475
    %v6570 = vpack.c.bf16 %v6490, %v6484
    %v6571 = vpack.c.bf16 %v6493, %v6487
    %v6572 = vpack.c.bf16 %v6502, %v6496
    %v6573 = vpack.c.bf16 %v6505, %v6499
    %v6574 = vpack.c.bf16 %v6514, %v6508
    %v6575 = vpack.c.bf16 %v6517, %v6511
    %v6576 = vpack.c.bf16 %v6526, %v6520
    %v6577 = vpack.c.bf16 %v6529, %v6523
    %s6578 = scalar_lea.vmem %s2, 256
    %v6579 = vld [vmem:[%s6578] sm:$0xff]
    %v6580 = vld [vmem:[%s6578 + $0x8] sm:$0xff]
    %v6581 = vld [vmem:[%s6578 + $0x10] sm:$0xff]
    %v6582 = vld [vmem:[%s6578 + $0x18] sm:$0xff]
    %v6583 = vld [vmem:[%s6578 + $0x20] sm:$0xff]
    %v6584 = vld [vmem:[%s6578 + $0x28] sm:$0xff]
    %v6585 = vld [vmem:[%s6578 + $0x30] sm:$0xff]
    %v6586 = vld [vmem:[%s6578 + $0x38] sm:$0xff]
    %v6587 = vld [vmem:[%s6578 + $0x40] sm:$0xff]
    %v6588 = vld [vmem:[%s6578 + $0x48] sm:$0xff]
    %v6589 = vld [vmem:[%s6578 + $0x50] sm:$0xff]
    %v6590 = vld [vmem:[%s6578 + $0x58] sm:$0xff]
    %v6591 = vld [vmem:[%s6578 + $0x60] sm:$0xff]
    %v6592 = vld [vmem:[%s6578 + $0x68] sm:$0xff]
    %v6593 = vld [vmem:[%s6578 + $0x70] sm:$0xff]
    %v6594 = vld [vmem:[%s6578 + $0x78] sm:$0xff]
    %v6595 = vld [vmem:[%s6578 + $0x80] sm:$0xff]
    %v6596 = vld [vmem:[%s6578 + $0x88] sm:$0xff]
    %v6597 = vld [vmem:[%s6578 + $0x90] sm:$0xff]
    %v6598 = vld [vmem:[%s6578 + $0x98] sm:$0xff]
    %v6599 = vld [vmem:[%s6578 + $0xa0] sm:$0xff]
    %v6600 = vld [vmem:[%s6578 + $0xa8] sm:$0xff]
    %v6601 = vld [vmem:[%s6578 + $0xb0] sm:$0xff]
    %v6602 = vld [vmem:[%s6578 + $0xb8] sm:$0xff]
    %v6603 = vld [vmem:[%s6578 + $0xc0] sm:$0xff]
    %v6604 = vld [vmem:[%s6578 + $0xc8] sm:$0xff]
    %v6605 = vld [vmem:[%s6578 + $0xd0] sm:$0xff]
    %v6606 = vld [vmem:[%s6578 + $0xd8] sm:$0xff]
    %v6607 = vld [vmem:[%s6578 + $0xe0] sm:$0xff]
    %v6608 = vld [vmem:[%s6578 + $0xe8] sm:$0xff]
    %v6609 = vld [vmem:[%s6578 + $0xf0] sm:$0xff]
    %v6610 = vld [vmem:[%s6578 + $0xf8] sm:$0xff]
    %v6643 = vunpack.c.l.b16 %v6579
    %v6644 = vunpack.c.h.b16 %v6579
    %v6645 = vunpack.c.l.b16 %v6580
    %v6646 = vunpack.c.h.b16 %v6580
    %v6647 = vunpack.c.l.b16 %v6581
    %v6648 = vunpack.c.h.b16 %v6581
    %v6649 = vunpack.c.l.b16 %v6582
    %v6650 = vunpack.c.h.b16 %v6582
    %v6651 = vunpack.c.l.b16 %v6583
    %v6652 = vunpack.c.h.b16 %v6583
    %v6653 = vunpack.c.l.b16 %v6584
    %v6654 = vunpack.c.h.b16 %v6584
    %v6655 = vunpack.c.l.b16 %v6585
    %v6656 = vunpack.c.h.b16 %v6585
    %v6657 = vunpack.c.l.b16 %v6586
    %v6658 = vunpack.c.h.b16 %v6586
    %v6659 = vunpack.c.l.b16 %v6587
    %v6660 = vunpack.c.h.b16 %v6587
    %v6661 = vunpack.c.l.b16 %v6588
    %v6662 = vunpack.c.h.b16 %v6588
    %v6663 = vunpack.c.l.b16 %v6589
    %v6664 = vunpack.c.h.b16 %v6589
    %v6665 = vunpack.c.l.b16 %v6590
    %v6666 = vunpack.c.h.b16 %v6590
    %v6667 = vunpack.c.l.b16 %v6591
    %v6668 = vunpack.c.h.b16 %v6591
    %v6669 = vunpack.c.l.b16 %v6592
    %v6670 = vunpack.c.h.b16 %v6592
    %v6671 = vunpack.c.l.b16 %v6593
    %v6672 = vunpack.c.h.b16 %v6593
    %v6673 = vunpack.c.l.b16 %v6594
    %v6674 = vunpack.c.h.b16 %v6594
    %v6675 = vunpack.c.l.b16 %v6595
    %v6676 = vunpack.c.h.b16 %v6595
    %v6677 = vunpack.c.l.b16 %v6596
    %v6678 = vunpack.c.h.b16 %v6596
    %v6679 = vunpack.c.l.b16 %v6597
    %v6680 = vunpack.c.h.b16 %v6597
    %v6681 = vunpack.c.l.b16 %v6598
    %v6682 = vunpack.c.h.b16 %v6598
    %v6683 = vunpack.c.l.b16 %v6599
    %v6684 = vunpack.c.h.b16 %v6599
    %v6685 = vunpack.c.l.b16 %v6600
    %v6686 = vunpack.c.h.b16 %v6600
    %v6687 = vunpack.c.l.b16 %v6601
    %v6688 = vunpack.c.h.b16 %v6601
    %v6689 = vunpack.c.l.b16 %v6602
    %v6690 = vunpack.c.h.b16 %v6602
    %v6691 = vunpack.c.l.b16 %v6603
    %v6692 = vunpack.c.h.b16 %v6603
    %v6693 = vunpack.c.l.b16 %v6604
    %v6694 = vunpack.c.h.b16 %v6604
    %v6695 = vunpack.c.l.b16 %v6605
    %v6696 = vunpack.c.h.b16 %v6605
    %v6697 = vunpack.c.l.b16 %v6606
    %v6698 = vunpack.c.h.b16 %v6606
    %v6699 = vunpack.c.l.b16 %v6607
    %v6700 = vunpack.c.h.b16 %v6607
    %v6701 = vunpack.c.l.b16 %v6608
    %v6702 = vunpack.c.h.b16 %v6608
    %v6703 = vunpack.c.l.b16 %v6609
    %v6704 = vunpack.c.h.b16 %v6609
    %v6705 = vunpack.c.l.b16 %v6610
    %v6706 = vunpack.c.h.b16 %v6610
    %v6707 = vpack.c.b16 %v6645, %v6643
    %v6708 = vpack.c.b16 %v6646, %v6644
    %v6709 = vpack.c.b16 %v6649, %v6647
    %v6710 = vpack.c.b16 %v6650, %v6648
    %v6711 = vpack.c.b16 %v6653, %v6651
    %v6712 = vpack.c.b16 %v6654, %v6652
    %v6713 = vpack.c.b16 %v6657, %v6655
    %v6714 = vpack.c.b16 %v6658, %v6656
    %v6715 = vpack.c.b16 %v6661, %v6659
    %v6716 = vpack.c.b16 %v6662, %v6660
    %v6717 = vpack.c.b16 %v6665, %v6663
    %v6718 = vpack.c.b16 %v6666, %v6664
    %v6719 = vpack.c.b16 %v6669, %v6667
    %v6720 = vpack.c.b16 %v6670, %v6668
    %v6721 = vpack.c.b16 %v6673, %v6671
    %v6722 = vpack.c.b16 %v6674, %v6672
    %v6723 = vpack.c.b16 %v6677, %v6675
    %v6724 = vpack.c.b16 %v6678, %v6676
    %v6725 = vpack.c.b16 %v6681, %v6679
    %v6726 = vpack.c.b16 %v6682, %v6680
    %v6727 = vpack.c.b16 %v6685, %v6683
    %v6728 = vpack.c.b16 %v6686, %v6684
    %v6729 = vpack.c.b16 %v6689, %v6687
    %v6730 = vpack.c.b16 %v6690, %v6688
    %v6731 = vpack.c.b16 %v6693, %v6691
    %v6732 = vpack.c.b16 %v6694, %v6692
    %v6733 = vpack.c.b16 %v6697, %v6695
    %v6734 = vpack.c.b16 %v6698, %v6696
    %v6735 = vpack.c.b16 %v6701, %v6699
    %v6736 = vpack.c.b16 %v6702, %v6700
    %v6737 = vpack.c.b16 %v6705, %v6703
    %v6738 = vpack.c.b16 %v6706, %v6704
    %6771 = vmatpush.bf16.msra.mxu0 %v6721
    %6772 = vmatpush.bf16.msra.mxu0 %v6719
    %6773 = vmatpush.bf16.msra.mxu0 %v6717
    %6774 = vmatpush.bf16.msra.mxu0 %v6715
    %6775 = vmatpush.bf16.msra.mxu0 %v6713
    %6776 = vmatpush.bf16.msra.mxu0 %v6711
    %6777 = vmatpush.bf16.msra.mxu0 %v6709
    %6778 = vmatpush.bf16.msra.mxu0 %v6707
    %6779 = vmatmul.bf16.gmra.mxu0 %v6562
    %v6780 = vpop.f32.mrf.mxu0
    %v6781 = vadd.f32 0.0, %v6780
    %v6782 = vpop.f32.mrf.mxu0
    %v6783 = vadd.f32 0.0, %v6782
    %6784 = vmatmul.bf16.gmra.mxu0 %v6564
    %v6785 = vpop.f32.mrf.mxu0
    %v6786 = vadd.f32 0.0, %v6785
    %v6787 = vpop.f32.mrf.mxu0
    %v6788 = vadd.f32 0.0, %v6787
    %6789 = vmatmul.bf16.gmra.mxu0 %v6566
    %v6790 = vpop.f32.mrf.mxu0
    %v6791 = vadd.f32 0.0, %v6790
    %v6792 = vpop.f32.mrf.mxu0
    %v6793 = vadd.f32 0.0, %v6792
    %6794 = vmatmul.bf16.gmra.mxu0 %v6568
    %v6795 = vpop.f32.mrf.mxu0
    %v6796 = vadd.f32 0.0, %v6795
    %v6797 = vpop.f32.mrf.mxu0
    %v6798 = vadd.f32 0.0, %v6797
    %6799 = vmatmul.bf16.gmra.mxu0 %v6570
    %v6800 = vpop.f32.mrf.mxu0
    %v6801 = vadd.f32 0.0, %v6800
    %v6802 = vpop.f32.mrf.mxu0
    %v6803 = vadd.f32 0.0, %v6802
    %6804 = vmatmul.bf16.gmra.mxu0 %v6572
    %v6805 = vpop.f32.mrf.mxu0
    %v6806 = vadd.f32 0.0, %v6805
    %v6807 = vpop.f32.mrf.mxu0
    %v6808 = vadd.f32 0.0, %v6807
    %6809 = vmatmul.bf16.gmra.mxu0 %v6574
    %v6810 = vpop.f32.mrf.mxu0
    %v6811 = vadd.f32 0.0, %v6810
    %v6812 = vpop.f32.mrf.mxu0
    %v6813 = vadd.f32 0.0, %v6812
    %6814 = vmatmul.bf16.gmra.mxu0 %v6576
    %v6815 = vpop.f32.mrf.mxu0
    %v6816 = vadd.f32 0.0, %v6815
    %v6817 = vpop.f32.mrf.mxu0
    %v6818 = vadd.f32 0.0, %v6817
    %6819 = vdwg.mxu0
    %6820 = vmatpush.bf16.msra.mxu0 %v6737
    %6821 = vmatpush.bf16.msra.mxu0 %v6735
    %6822 = vmatpush.bf16.msra.mxu0 %v6733
    %6823 = vmatpush.bf16.msra.mxu0 %v6731
    %6824 = vmatpush.bf16.msra.mxu0 %v6729
    %6825 = vmatpush.bf16.msra.mxu0 %v6727
    %6826 = vmatpush.bf16.msra.mxu0 %v6725
    %6827 = vmatpush.bf16.msra.mxu0 %v6723
    %6828 = vmatmul.bf16.gmra.mxu0 %v6563
    %v6829 = vpop.f32.mrf.mxu0
    %v6830 = vadd.f32 %v6781, %v6829
    %v6831 = vpop.f32.mrf.mxu0
    %v6832 = vadd.f32 %v6783, %v6831
    %6833 = vmatmul.bf16.gmra.mxu0 %v6565
    %v6834 = vpop.f32.mrf.mxu0
    %v6835 = vadd.f32 %v6786, %v6834
    %v6836 = vpop.f32.mrf.mxu0
    %v6837 = vadd.f32 %v6788, %v6836
    %6838 = vmatmul.bf16.gmra.mxu0 %v6567
    %v6839 = vpop.f32.mrf.mxu0
    %v6840 = vadd.f32 %v6791, %v6839
    %v6841 = vpop.f32.mrf.mxu0
    %v6842 = vadd.f32 %v6793, %v6841
    %6843 = vmatmul.bf16.gmra.mxu0 %v6569
    %v6844 = vpop.f32.mrf.mxu0
    %v6845 = vadd.f32 %v6796, %v6844
    %v6846 = vpop.f32.mrf.mxu0
    %v6847 = vadd.f32 %v6798, %v6846
    %6848 = vmatmul.bf16.gmra.mxu0 %v6571
    %v6849 = vpop.f32.mrf.mxu0
    %v6850 = vadd.f32 %v6801, %v6849
    %v6851 = vpop.f32.mrf.mxu0
    %v6852 = vadd.f32 %v6803, %v6851
    %6853 = vmatmul.bf16.gmra.mxu0 %v6573
    %v6854 = vpop.f32.mrf.mxu0
    %v6855 = vadd.f32 %v6806, %v6854
    %v6856 = vpop.f32.mrf.mxu0
    %v6857 = vadd.f32 %v6808, %v6856
    %6858 = vmatmul.bf16.gmra.mxu0 %v6575
    %v6859 = vpop.f32.mrf.mxu0
    %v6860 = vadd.f32 %v6811, %v6859
    %v6861 = vpop.f32.mrf.mxu0
    %v6862 = vadd.f32 %v6813, %v6861
    %6863 = vmatmul.bf16.gmra.mxu0 %v6577
    %v6864 = vpop.f32.mrf.mxu0
    %v6865 = vadd.f32 %v6816, %v6864
    %v6866 = vpop.f32.mrf.mxu0
    %v6867 = vadd.f32 %v6818, %v6866
    %6868 = vdwg.mxu0
    %6869 = vmatpush.bf16.msra.mxu0 %v6722
    %6870 = vmatpush.bf16.msra.mxu0 %v6720
    %6871 = vmatpush.bf16.msra.mxu0 %v6718
    %6872 = vmatpush.bf16.msra.mxu0 %v6716
    %6873 = vmatpush.bf16.msra.mxu0 %v6714
    %6874 = vmatpush.bf16.msra.mxu0 %v6712
    %6875 = vmatpush.bf16.msra.mxu0 %v6710
    %6876 = vmatpush.bf16.msra.mxu0 %v6708
    %6877 = vmatmul.bf16.gmra.mxu0 %v6562
    %v6878 = vpop.f32.mrf.mxu0
    %v6879 = vadd.f32 0.0, %v6878
    %v6880 = vpop.f32.mrf.mxu0
    %v6881 = vadd.f32 0.0, %v6880
    %6882 = vmatmul.bf16.gmra.mxu0 %v6564
    %v6883 = vpop.f32.mrf.mxu0
    %v6884 = vadd.f32 0.0, %v6883
    %v6885 = vpop.f32.mrf.mxu0
    %v6886 = vadd.f32 0.0, %v6885
    %6887 = vmatmul.bf16.gmra.mxu0 %v6566
    %v6888 = vpop.f32.mrf.mxu0
    %v6889 = vadd.f32 0.0, %v6888
    %v6890 = vpop.f32.mrf.mxu0
    %v6891 = vadd.f32 0.0, %v6890
    %6892 = vmatmul.bf16.gmra.mxu0 %v6568
    %v6893 = vpop.f32.mrf.mxu0
    %v6894 = vadd.f32 0.0, %v6893
    %v6895 = vpop.f32.mrf.mxu0
    %v6896 = vadd.f32 0.0, %v6895
    %6897 = vmatmul.bf16.gmra.mxu0 %v6570
    %v6898 = vpop.f32.mrf.mxu0
    %v6899 = vadd.f32 0.0, %v6898
    %v6900 = vpop.f32.mrf.mxu0
    %v6901 = vadd.f32 0.0, %v6900
    %6902 = vmatmul.bf16.gmra.mxu0 %v6572
    %v6903 = vpop.f32.mrf.mxu0
    %v6904 = vadd.f32 0.0, %v6903
    %v6905 = vpop.f32.mrf.mxu0
    %v6906 = vadd.f32 0.0, %v6905
    %6907 = vmatmul.bf16.gmra.mxu0 %v6574
    %v6908 = vpop.f32.mrf.mxu0
    %v6909 = vadd.f32 0.0, %v6908
    %v6910 = vpop.f32.mrf.mxu0
    %v6911 = vadd.f32 0.0, %v6910
    %6912 = vmatmul.bf16.gmra.mxu0 %v6576
    %v6913 = vpop.f32.mrf.mxu0
    %v6914 = vadd.f32 0.0, %v6913
    %v6915 = vpop.f32.mrf.mxu0
    %v6916 = vadd.f32 0.0, %v6915
    %6917 = vdwg.mxu0
    %6918 = vmatpush.bf16.msra.mxu0 %v6738
    %6919 = vmatpush.bf16.msra.mxu0 %v6736
    %6920 = vmatpush.bf16.msra.mxu0 %v6734
    %6921 = vmatpush.bf16.msra.mxu0 %v6732
    %6922 = vmatpush.bf16.msra.mxu0 %v6730
    %6923 = vmatpush.bf16.msra.mxu0 %v6728
    %6924 = vmatpush.bf16.msra.mxu0 %v6726
    %6925 = vmatpush.bf16.msra.mxu0 %v6724
    %6926 = vmatmul.bf16.gmra.mxu0 %v6563
    %v6927 = vpop.f32.mrf.mxu0
    %v6928 = vadd.f32 %v6879, %v6927
    %v6929 = vpop.f32.mrf.mxu0
    %v6930 = vadd.f32 %v6881, %v6929
    %6931 = vmatmul.bf16.gmra.mxu0 %v6565
    %v6932 = vpop.f32.mrf.mxu0
    %v6933 = vadd.f32 %v6884, %v6932
    %v6934 = vpop.f32.mrf.mxu0
    %v6935 = vadd.f32 %v6886, %v6934
    %6936 = vmatmul.bf16.gmra.mxu0 %v6567
    %v6937 = vpop.f32.mrf.mxu0
    %v6938 = vadd.f32 %v6889, %v6937
    %v6939 = vpop.f32.mrf.mxu0
    %v6940 = vadd.f32 %v6891, %v6939
    %6941 = vmatmul.bf16.gmra.mxu0 %v6569
    %v6942 = vpop.f32.mrf.mxu0
    %v6943 = vadd.f32 %v6894, %v6942
    %v6944 = vpop.f32.mrf.mxu0
    %v6945 = vadd.f32 %v6896, %v6944
    %6946 = vmatmul.bf16.gmra.mxu0 %v6571
    %v6947 = vpop.f32.mrf.mxu0
    %v6948 = vadd.f32 %v6899, %v6947
    %v6949 = vpop.f32.mrf.mxu0
    %v6950 = vadd.f32 %v6901, %v6949
    %6951 = vmatmul.bf16.gmra.mxu0 %v6573
    %v6952 = vpop.f32.mrf.mxu0
    %v6953 = vadd.f32 %v6904, %v6952
    %v6954 = vpop.f32.mrf.mxu0
    %v6955 = vadd.f32 %v6906, %v6954
    %6956 = vmatmul.bf16.gmra.mxu0 %v6575
    %v6957 = vpop.f32.mrf.mxu0
    %v6958 = vadd.f32 %v6909, %v6957
    %v6959 = vpop.f32.mrf.mxu0
    %v6960 = vadd.f32 %v6911, %v6959
    %6961 = vmatmul.bf16.gmra.mxu0 %v6577
    %v6962 = vpop.f32.mrf.mxu0
    %v6963 = vadd.f32 %v6914, %v6962
    %v6964 = vpop.f32.mrf.mxu0
    %v6965 = vadd.f32 %v6916, %v6964
    %6966 = vdwg.mxu0
    %v6999 = vunpack.c.l.b16 %v6274
    %v7000 = vunpack.c.h.b16 %v6274
    %v7001 = vunpack.c.l.b16 %v6275
    %v7002 = vunpack.c.h.b16 %v6275
    %v7003 = vunpack.c.l.b16 %v6276
    %v7004 = vunpack.c.h.b16 %v6276
    %v7005 = vunpack.c.l.b16 %v6277
    %v7006 = vunpack.c.h.b16 %v6277
    %v7007 = vunpack.c.l.b16 %v6278
    %v7008 = vunpack.c.h.b16 %v6278
    %v7009 = vunpack.c.l.b16 %v6279
    %v7010 = vunpack.c.h.b16 %v6279
    %v7011 = vunpack.c.l.b16 %v6280
    %v7012 = vunpack.c.h.b16 %v6280
    %v7013 = vunpack.c.l.b16 %v6281
    %v7014 = vunpack.c.h.b16 %v6281
    %v7015 = vunpack.c.l.b16 %v6282
    %v7016 = vunpack.c.h.b16 %v6282
    %v7017 = vunpack.c.l.b16 %v6283
    %v7018 = vunpack.c.h.b16 %v6283
    %v7019 = vunpack.c.l.b16 %v6284
    %v7020 = vunpack.c.h.b16 %v6284
    %v7021 = vunpack.c.l.b16 %v6285
    %v7022 = vunpack.c.h.b16 %v6285
    %v7023 = vunpack.c.l.b16 %v6286
    %v7024 = vunpack.c.h.b16 %v6286
    %v7025 = vunpack.c.l.b16 %v6287
    %v7026 = vunpack.c.h.b16 %v6287
    %v7027 = vunpack.c.l.b16 %v6288
    %v7028 = vunpack.c.h.b16 %v6288
    %v7029 = vunpack.c.l.b16 %v6289
    %v7030 = vunpack.c.h.b16 %v6289
    %v7031 = vunpack.c.l.b16 %v6290
    %v7032 = vunpack.c.h.b16 %v6290
    %v7033 = vunpack.c.l.b16 %v6291
    %v7034 = vunpack.c.h.b16 %v6291
    %v7035 = vunpack.c.l.b16 %v6292
    %v7036 = vunpack.c.h.b16 %v6292
    %v7037 = vunpack.c.l.b16 %v6293
    %v7038 = vunpack.c.h.b16 %v6293
    %v7039 = vunpack.c.l.b16 %v6294
    %v7040 = vunpack.c.h.b16 %v6294
    %v7041 = vunpack.c.l.b16 %v6295
    %v7042 = vunpack.c.h.b16 %v6295
    %v7043 = vunpack.c.l.b16 %v6296
    %v7044 = vunpack.c.h.b16 %v6296
    %v7045 = vunpack.c.l.b16 %v6297
    %v7046 = vunpack.c.h.b16 %v6297
    %v7047 = vunpack.c.l.b16 %v6298
    %v7048 = vunpack.c.h.b16 %v6298
    %v7049 = vunpack.c.l.b16 %v6299
    %v7050 = vunpack.c.h.b16 %v6299
    %v7051 = vunpack.c.l.b16 %v6300
    %v7052 = vunpack.c.h.b16 %v6300
    %v7053 = vunpack.c.l.b16 %v6301
    %v7054 = vunpack.c.h.b16 %v6301
    %v7055 = vunpack.c.l.b16 %v6302
    %v7056 = vunpack.c.h.b16 %v6302
    %v7057 = vunpack.c.l.b16 %v6303
    %v7058 = vunpack.c.h.b16 %v6303
    %v7059 = vunpack.c.l.b16 %v6304
    %v7060 = vunpack.c.h.b16 %v6304
    %v7061 = vunpack.c.l.b16 %v6305
    %v7062 = vunpack.c.h.b16 %v6305
    %v7063 = vpack.c.b16 %v7001, %v6999
    %v7064 = vpack.c.b16 %v7002, %v7000
    %v7065 = vpack.c.b16 %v7005, %v7003
    %v7066 = vpack.c.b16 %v7006, %v7004
    %v7067 = vpack.c.b16 %v7009, %v7007
    %v7068 = vpack.c.b16 %v7010, %v7008
    %v7069 = vpack.c.b16 %v7013, %v7011
    %v7070 = vpack.c.b16 %v7014, %v7012
    %v7071 = vpack.c.b16 %v7017, %v7015
    %v7072 = vpack.c.b16 %v7018, %v7016
    %v7073 = vpack.c.b16 %v7021, %v7019
    %v7074 = vpack.c.b16 %v7022, %v7020
    %v7075 = vpack.c.b16 %v7025, %v7023
    %v7076 = vpack.c.b16 %v7026, %v7024
    %v7077 = vpack.c.b16 %v7029, %v7027
    %v7078 = vpack.c.b16 %v7030, %v7028
    %v7079 = vpack.c.b16 %v7033, %v7031
    %v7080 = vpack.c.b16 %v7034, %v7032
    %v7081 = vpack.c.b16 %v7037, %v7035
    %v7082 = vpack.c.b16 %v7038, %v7036
    %v7083 = vpack.c.b16 %v7041, %v7039
    %v7084 = vpack.c.b16 %v7042, %v7040
    %v7085 = vpack.c.b16 %v7045, %v7043
    %v7086 = vpack.c.b16 %v7046, %v7044
    %v7087 = vpack.c.b16 %v7049, %v7047
    %v7088 = vpack.c.b16 %v7050, %v7048
    %v7089 = vpack.c.b16 %v7053, %v7051
    %v7090 = vpack.c.b16 %v7054, %v7052
    %v7091 = vpack.c.b16 %v7057, %v7055
    %v7092 = vpack.c.b16 %v7058, %v7056
    %v7093 = vpack.c.b16 %v7061, %v7059
    %v7094 = vpack.c.b16 %v7062, %v7060
    %7127 = vmatpush.bf16.msra.mxu0 %v7077
    %7128 = vmatpush.bf16.msra.mxu0 %v7075
    %7129 = vmatpush.bf16.msra.mxu0 %v7073
    %7130 = vmatpush.bf16.msra.mxu0 %v7071
    %7131 = vmatpush.bf16.msra.mxu0 %v7069
    %7132 = vmatpush.bf16.msra.mxu0 %v7067
    %7133 = vmatpush.bf16.msra.mxu0 %v7065
    %7134 = vmatpush.bf16.msra.mxu0 %v7063
    %7135 = vmatmul.bf16.gmra.mxu0 %v6258
    %v7136 = vpop.f32.mrf.mxu0
    %v7137 = vadd.f32 %v6830, %v7136
    %v7138 = vpop.f32.mrf.mxu0
    %v7139 = vadd.f32 %v6832, %v7138
    %7140 = vmatmul.bf16.gmra.mxu0 %v6260
    %v7141 = vpop.f32.mrf.mxu0
    %v7142 = vadd.f32 %v6835, %v7141
    %v7143 = vpop.f32.mrf.mxu0
    %v7144 = vadd.f32 %v6837, %v7143
    %7145 = vmatmul.bf16.gmra.mxu0 %v6262
    %v7146 = vpop.f32.mrf.mxu0
    %v7147 = vadd.f32 %v6840, %v7146
    %v7148 = vpop.f32.mrf.mxu0
    %v7149 = vadd.f32 %v6842, %v7148
    %7150 = vmatmul.bf16.gmra.mxu0 %v6264
    %v7151 = vpop.f32.mrf.mxu0
    %v7152 = vadd.f32 %v6845, %v7151
    %v7153 = vpop.f32.mrf.mxu0
    %v7154 = vadd.f32 %v6847, %v7153
    %7155 = vmatmul.bf16.gmra.mxu0 %v6266
    %v7156 = vpop.f32.mrf.mxu0
    %v7157 = vadd.f32 %v6850, %v7156
    %v7158 = vpop.f32.mrf.mxu0
    %v7159 = vadd.f32 %v6852, %v7158
    %7160 = vmatmul.bf16.gmra.mxu0 %v6268
    %v7161 = vpop.f32.mrf.mxu0
    %v7162 = vadd.f32 %v6855, %v7161
    %v7163 = vpop.f32.mrf.mxu0
    %v7164 = vadd.f32 %v6857, %v7163
    %7165 = vmatmul.bf16.gmra.mxu0 %v6270
    %v7166 = vpop.f32.mrf.mxu0
    %v7167 = vadd.f32 %v6860, %v7166
    %v7168 = vpop.f32.mrf.mxu0
    %v7169 = vadd.f32 %v6862, %v7168
    %7170 = vmatmul.bf16.gmra.mxu0 %v6272
    %v7171 = vpop.f32.mrf.mxu0
    %v7172 = vadd.f32 %v6865, %v7171
    %v7173 = vpop.f32.mrf.mxu0
    %v7174 = vadd.f32 %v6867, %v7173
    %7175 = vdwg.mxu0
    %7176 = vmatpush.bf16.msra.mxu0 %v7093
    %7177 = vmatpush.bf16.msra.mxu0 %v7091
    %7178 = vmatpush.bf16.msra.mxu0 %v7089
    %7179 = vmatpush.bf16.msra.mxu0 %v7087
    %7180 = vmatpush.bf16.msra.mxu0 %v7085
    %7181 = vmatpush.bf16.msra.mxu0 %v7083
    %7182 = vmatpush.bf16.msra.mxu0 %v7081
    %7183 = vmatpush.bf16.msra.mxu0 %v7079
    %7184 = vmatmul.bf16.gmra.mxu0 %v6259
    %v7185 = vpop.f32.mrf.mxu0
    %v7186 = vadd.f32 %v7137, %v7185
    %v7187 = vpop.f32.mrf.mxu0
    %v7188 = vadd.f32 %v7139, %v7187
    %7189 = vmatmul.bf16.gmra.mxu0 %v6261
    %v7190 = vpop.f32.mrf.mxu0
    %v7191 = vadd.f32 %v7142, %v7190
    %v7192 = vpop.f32.mrf.mxu0
    %v7193 = vadd.f32 %v7144, %v7192
    %7194 = vmatmul.bf16.gmra.mxu0 %v6263
    %v7195 = vpop.f32.mrf.mxu0
    %v7196 = vadd.f32 %v7147, %v7195
    %v7197 = vpop.f32.mrf.mxu0
    %v7198 = vadd.f32 %v7149, %v7197
    %7199 = vmatmul.bf16.gmra.mxu0 %v6265
    %v7200 = vpop.f32.mrf.mxu0
    %v7201 = vadd.f32 %v7152, %v7200
    %v7202 = vpop.f32.mrf.mxu0
    %v7203 = vadd.f32 %v7154, %v7202
    %7204 = vmatmul.bf16.gmra.mxu0 %v6267
    %v7205 = vpop.f32.mrf.mxu0
    %v7206 = vadd.f32 %v7157, %v7205
    %v7207 = vpop.f32.mrf.mxu0
    %v7208 = vadd.f32 %v7159, %v7207
    %7209 = vmatmul.bf16.gmra.mxu0 %v6269
    %v7210 = vpop.f32.mrf.mxu0
    %v7211 = vadd.f32 %v7162, %v7210
    %v7212 = vpop.f32.mrf.mxu0
    %v7213 = vadd.f32 %v7164, %v7212
    %7214 = vmatmul.bf16.gmra.mxu0 %v6271
    %v7215 = vpop.f32.mrf.mxu0
    %v7216 = vadd.f32 %v7167, %v7215
    %v7217 = vpop.f32.mrf.mxu0
    %v7218 = vadd.f32 %v7169, %v7217
    %7219 = vmatmul.bf16.gmra.mxu0 %v6273
    %v7220 = vpop.f32.mrf.mxu0
    %v7221 = vadd.f32 %v7172, %v7220
    %v7222 = vpop.f32.mrf.mxu0
    %v7223 = vadd.f32 %v7174, %v7222
    %7224 = vdwg.mxu0
    %7225 = vmatpush.bf16.msra.mxu0 %v7078
    %7226 = vmatpush.bf16.msra.mxu0 %v7076
    %7227 = vmatpush.bf16.msra.mxu0 %v7074
    %7228 = vmatpush.bf16.msra.mxu0 %v7072
    %7229 = vmatpush.bf16.msra.mxu0 %v7070
    %7230 = vmatpush.bf16.msra.mxu0 %v7068
    %7231 = vmatpush.bf16.msra.mxu0 %v7066
    %7232 = vmatpush.bf16.msra.mxu0 %v7064
    %7233 = vmatmul.bf16.gmra.mxu0 %v6258
    %v7234 = vpop.f32.mrf.mxu0
    %v7235 = vadd.f32 %v6928, %v7234
    %v7236 = vpop.f32.mrf.mxu0
    %v7237 = vadd.f32 %v6930, %v7236
    %7238 = vmatmul.bf16.gmra.mxu0 %v6260
    %v7239 = vpop.f32.mrf.mxu0
    %v7240 = vadd.f32 %v6933, %v7239
    %v7241 = vpop.f32.mrf.mxu0
    %v7242 = vadd.f32 %v6935, %v7241
    %7243 = vmatmul.bf16.gmra.mxu0 %v6262
    %v7244 = vpop.f32.mrf.mxu0
    %v7245 = vadd.f32 %v6938, %v7244
    %v7246 = vpop.f32.mrf.mxu0
    %v7247 = vadd.f32 %v6940, %v7246
    %7248 = vmatmul.bf16.gmra.mxu0 %v6264
    %v7249 = vpop.f32.mrf.mxu0
    %v7250 = vadd.f32 %v6943, %v7249
    %v7251 = vpop.f32.mrf.mxu0
    %v7252 = vadd.f32 %v6945, %v7251
    %7253 = vmatmul.bf16.gmra.mxu0 %v6266
    %v7254 = vpop.f32.mrf.mxu0
    %v7255 = vadd.f32 %v6948, %v7254
    %v7256 = vpop.f32.mrf.mxu0
    %v7257 = vadd.f32 %v6950, %v7256
    %7258 = vmatmul.bf16.gmra.mxu0 %v6268
    %v7259 = vpop.f32.mrf.mxu0
    %v7260 = vadd.f32 %v6953, %v7259
    %v7261 = vpop.f32.mrf.mxu0
    %v7262 = vadd.f32 %v6955, %v7261
    %7263 = vmatmul.bf16.gmra.mxu0 %v6270
    %v7264 = vpop.f32.mrf.mxu0
    %v7265 = vadd.f32 %v6958, %v7264
    %v7266 = vpop.f32.mrf.mxu0
    %v7267 = vadd.f32 %v6960, %v7266
    %7268 = vmatmul.bf16.gmra.mxu0 %v6272
    %v7269 = vpop.f32.mrf.mxu0
    %v7270 = vadd.f32 %v6963, %v7269
    %v7271 = vpop.f32.mrf.mxu0
    %v7272 = vadd.f32 %v6965, %v7271
    %7273 = vdwg.mxu0
    %7274 = vmatpush.bf16.msra.mxu0 %v7094
    %7275 = vmatpush.bf16.msra.mxu0 %v7092
    %7276 = vmatpush.bf16.msra.mxu0 %v7090
    %7277 = vmatpush.bf16.msra.mxu0 %v7088
    %7278 = vmatpush.bf16.msra.mxu0 %v7086
    %7279 = vmatpush.bf16.msra.mxu0 %v7084
    %7280 = vmatpush.bf16.msra.mxu0 %v7082
    %7281 = vmatpush.bf16.msra.mxu0 %v7080
    %7282 = vmatmul.bf16.gmra.mxu0 %v6259
    %v7283 = vpop.f32.mrf.mxu0
    %v7284 = vadd.f32 %v7235, %v7283
    %v7285 = vpop.f32.mrf.mxu0
    %v7286 = vadd.f32 %v7237, %v7285
    %7287 = vmatmul.bf16.gmra.mxu0 %v6261
    %v7288 = vpop.f32.mrf.mxu0
    %v7289 = vadd.f32 %v7240, %v7288
    %v7290 = vpop.f32.mrf.mxu0
    %v7291 = vadd.f32 %v7242, %v7290
    %7292 = vmatmul.bf16.gmra.mxu0 %v6263
    %v7293 = vpop.f32.mrf.mxu0
    %v7294 = vadd.f32 %v7245, %v7293
    %v7295 = vpop.f32.mrf.mxu0
    %v7296 = vadd.f32 %v7247, %v7295
    %7297 = vmatmul.bf16.gmra.mxu0 %v6265
    %v7298 = vpop.f32.mrf.mxu0
    %v7299 = vadd.f32 %v7250, %v7298
    %v7300 = vpop.f32.mrf.mxu0
    %v7301 = vadd.f32 %v7252, %v7300
    %7302 = vmatmul.bf16.gmra.mxu0 %v6267
    %v7303 = vpop.f32.mrf.mxu0
    %v7304 = vadd.f32 %v7255, %v7303
    %v7305 = vpop.f32.mrf.mxu0
    %v7306 = vadd.f32 %v7257, %v7305
    %7307 = vmatmul.bf16.gmra.mxu0 %v6269
    %v7308 = vpop.f32.mrf.mxu0
    %v7309 = vadd.f32 %v7260, %v7308
    %v7310 = vpop.f32.mrf.mxu0
    %v7311 = vadd.f32 %v7262, %v7310
    %7312 = vmatmul.bf16.gmra.mxu0 %v6271
    %v7313 = vpop.f32.mrf.mxu0
    %v7314 = vadd.f32 %v7265, %v7313
    %v7315 = vpop.f32.mrf.mxu0
    %v7316 = vadd.f32 %v7267, %v7315
    %7317 = vmatmul.bf16.gmra.mxu0 %v6273
    %v7318 = vpop.f32.mrf.mxu0
    %v7319 = vadd.f32 %v7270, %v7318
    %v7320 = vpop.f32.mrf.mxu0
    %v7321 = vadd.f32 %v7272, %v7320
    %7322 = vdwg.mxu0
    %v7323 = vld [vmem:[#allocation2] sm:$0xfc]
    %v7324 = vld [vmem:[#allocation2 + $0x8] sm:$0xfc]
    %v7325 = vld [vmem:[#allocation2 + $0x10] sm:$0x3]
    %v7326 = vld [vmem:[#allocation2 + $0x18] sm:$0x3]
    %v7327 = vld [vmem:[#allocation2 + $0x20] sm:$0xfc]
    %v7328 = vld [vmem:[#allocation2 + $0x28] sm:$0xfc]
    %v7329 = vld [vmem:[#allocation2 + $0x30] sm:$0x3]
    %v7330 = vld [vmem:[#allocation2 + $0x38] sm:$0x3]
    %v7331 = vld [vmem:[#allocation2 + $0x40] sm:$0xfc]
    %v7332 = vld [vmem:[#allocation2 + $0x48] sm:$0xfc]
    %v7333 = vld [vmem:[#allocation2 + $0x50] sm:$0x3]
    %v7334 = vld [vmem:[#allocation2 + $0x58] sm:$0x3]
    %v7335 = vld [vmem:[#allocation2 + $0x60] sm:$0xfc]
    %v7336 = vld [vmem:[#allocation2 + $0x68] sm:$0xfc]
    %v7337 = vld [vmem:[#allocation2 + $0x70] sm:$0x3]
    %v7338 = vld [vmem:[#allocation2 + $0x78] sm:$0x3]
    %v7339 = vld [vmem:[#allocation2 + $0x80] sm:$0xfc]
    %v7340 = vld [vmem:[#allocation2 + $0x88] sm:$0xfc]
    %v7341 = vld [vmem:[#allocation2 + $0x90] sm:$0x3]
    %v7342 = vld [vmem:[#allocation2 + $0x98] sm:$0x3]
    %v7343 = vld [vmem:[#allocation2 + $0xa0] sm:$0xfc]
    %v7344 = vld [vmem:[#allocation2 + $0xa8] sm:$0xfc]
    %v7345 = vld [vmem:[#allocation2 + $0xb0] sm:$0x3]
    %v7346 = vld [vmem:[#allocation2 + $0xb8] sm:$0x3]
    %v7347 = vld [vmem:[#allocation2 + $0xc0] sm:$0xfc]
    %v7348 = vld [vmem:[#allocation2 + $0xc8] sm:$0xfc]
    %v7349 = vld [vmem:[#allocation2 + $0xd0] sm:$0x3]
    %v7350 = vld [vmem:[#allocation2 + $0xd8] sm:$0x3]
    %v7351 = vld [vmem:[#allocation2 + $0xe0] sm:$0xfc]
    %v7352 = vld [vmem:[#allocation2 + $0xe8] sm:$0xfc]
    %v7353 = vld [vmem:[#allocation2 + $0xf0] sm:$0x3]
    %v7354 = vld [vmem:[#allocation2 + $0xf8] sm:$0x3]
    %v7355 = vld [vmem:[#allocation2 + $0x140] sm:$0xfc]
    %v7356 = vld [vmem:[#allocation2 + $0x148] sm:$0xfc]
    %v7357 = vld [vmem:[#allocation2 + $0x150] sm:$0x3]
    %v7358 = vld [vmem:[#allocation2 + $0x158] sm:$0x3]
    %v7359 = vld [vmem:[#allocation2 + $0x160] sm:$0xfc]
    %v7360 = vld [vmem:[#allocation2 + $0x168] sm:$0xfc]
    %v7361 = vld [vmem:[#allocation2 + $0x170] sm:$0x3]
    %v7362 = vld [vmem:[#allocation2 + $0x178] sm:$0x3]
    %v7363 = vld [vmem:[#allocation2 + $0x180] sm:$0xfc]
    %v7364 = vld [vmem:[#allocation2 + $0x188] sm:$0xfc]
    %v7365 = vld [vmem:[#allocation2 + $0x190] sm:$0x3]
    %v7366 = vld [vmem:[#allocation2 + $0x198] sm:$0x3]
    %v7367 = vld [vmem:[#allocation2 + $0x1a0] sm:$0xfc]
    %v7368 = vld [vmem:[#allocation2 + $0x1a8] sm:$0xfc]
    %v7369 = vld [vmem:[#allocation2 + $0x1b0] sm:$0x3]
    %v7370 = vld [vmem:[#allocation2 + $0x1b8] sm:$0x3]
    %v7371 = vld [vmem:[#allocation2 + $0x1c0] sm:$0xfc]
    %v7372 = vld [vmem:[#allocation2 + $0x1c8] sm:$0xfc]
    %v7373 = vld [vmem:[#allocation2 + $0x1d0] sm:$0x3]
    %v7374 = vld [vmem:[#allocation2 + $0x1d8] sm:$0x3]
    %v7375 = vld [vmem:[#allocation2 + $0x1e0] sm:$0xfc]
    %v7376 = vld [vmem:[#allocation2 + $0x1e8] sm:$0xfc]
    %v7377 = vld [vmem:[#allocation2 + $0x1f0] sm:$0x3]
    %v7378 = vld [vmem:[#allocation2 + $0x1f8] sm:$0x3]
    %v7379 = vld [vmem:[#allocation2 + $0x200] sm:$0xfc]
    %v7380 = vld [vmem:[#allocation2 + $0x208] sm:$0xfc]
    %v7381 = vld [vmem:[#allocation2 + $0x210] sm:$0x3]
    %v7382 = vld [vmem:[#allocation2 + $0x218] sm:$0x3]
    %v7383 = vld [vmem:[#allocation2 + $0x220] sm:$0xfc]
    %v7384 = vld [vmem:[#allocation2 + $0x228] sm:$0xfc]
    %v7385 = vld [vmem:[#allocation2 + $0x230] sm:$0x3]
    %v7386 = vld [vmem:[#allocation2 + $0x238] sm:$0x3]
    %v7451 = vrot.slane %v7323, 2
    %v7452 = vrot.slane %v7325, 2
    %v7453 = vsel %vm1245, %v7451, %v7452
    %v7454 = vrot.slane %v7324, 2
    %v7455 = vrot.slane %v7326, 2
    %v7456 = vsel %vm1245, %v7454, %v7455
    %v7457 = vrot.slane %v7327, 2
    %v7458 = vrot.slane %v7329, 2
    %v7459 = vsel %vm1245, %v7457, %v7458
    %v7460 = vrot.slane %v7328, 2
    %v7461 = vrot.slane %v7330, 2
    %v7462 = vsel %vm1245, %v7460, %v7461
    %v7463 = vrot.slane %v7331, 2
    %v7464 = vrot.slane %v7333, 2
    %v7465 = vsel %vm1245, %v7463, %v7464
    %v7466 = vrot.slane %v7332, 2
    %v7467 = vrot.slane %v7334, 2
    %v7468 = vsel %vm1245, %v7466, %v7467
    %v7469 = vrot.slane %v7335, 2
    %v7470 = vrot.slane %v7337, 2
    %v7471 = vsel %vm1245, %v7469, %v7470
    %v7472 = vrot.slane %v7336, 2
    %v7473 = vrot.slane %v7338, 2
    %v7474 = vsel %vm1245, %v7472, %v7473
    %v7475 = vrot.slane %v7339, 2
    %v7476 = vrot.slane %v7341, 2
    %v7477 = vsel %vm1245, %v7475, %v7476
    %v7478 = vrot.slane %v7340, 2
    %v7479 = vrot.slane %v7342, 2
    %v7480 = vsel %vm1245, %v7478, %v7479
    %v7481 = vrot.slane %v7343, 2
    %v7482 = vrot.slane %v7345, 2
    %v7483 = vsel %vm1245, %v7481, %v7482
    %v7484 = vrot.slane %v7344, 2
    %v7485 = vrot.slane %v7346, 2
    %v7486 = vsel %vm1245, %v7484, %v7485
    %v7487 = vrot.slane %v7347, 2
    %v7488 = vrot.slane %v7349, 2
    %v7489 = vsel %vm1245, %v7487, %v7488
    %v7490 = vrot.slane %v7348, 2
    %v7491 = vrot.slane %v7350, 2
    %v7492 = vsel %vm1245, %v7490, %v7491
    %v7493 = vrot.slane %v7351, 2
    %v7494 = vrot.slane %v7353, 2
    %v7495 = vsel %vm1245, %v7493, %v7494
    %v7496 = vrot.slane %v7352, 2
    %v7497 = vrot.slane %v7354, 2
    %v7498 = vsel %vm1245, %v7496, %v7497
    %v7499 = vrot.slane %v7355, 2
    %v7500 = vrot.slane %v7357, 2
    %v7501 = vsel %vm1245, %v7499, %v7500
    %v7502 = vrot.slane %v7356, 2
    %v7503 = vrot.slane %v7358, 2
    %v7504 = vsel %vm1245, %v7502, %v7503
    %v7505 = vrot.slane %v7359, 2
    %v7506 = vrot.slane %v7361, 2
    %v7507 = vsel %vm1245, %v7505, %v7506
    %v7508 = vrot.slane %v7360, 2
    %v7509 = vrot.slane %v7362, 2
    %v7510 = vsel %vm1245, %v7508, %v7509
    %v7511 = vrot.slane %v7363, 2
    %v7512 = vrot.slane %v7365, 2
    %v7513 = vsel %vm1245, %v7511, %v7512
    %v7514 = vrot.slane %v7364, 2
    %v7515 = vrot.slane %v7366, 2
    %v7516 = vsel %vm1245, %v7514, %v7515
    %v7517 = vrot.slane %v7367, 2
    %v7518 = vrot.slane %v7369, 2
    %v7519 = vsel %vm1245, %v7517, %v7518
    %v7520 = vrot.slane %v7368, 2
    %v7521 = vrot.slane %v7370, 2
    %v7522 = vsel %vm1245, %v7520, %v7521
    %v7523 = vrot.slane %v7371, 2
    %v7524 = vrot.slane %v7373, 2
    %v7525 = vsel %vm1245, %v7523, %v7524
    %v7526 = vrot.slane %v7372, 2
    %v7527 = vrot.slane %v7374, 2
    %v7528 = vsel %vm1245, %v7526, %v7527
    %v7529 = vrot.slane %v7375, 2
    %v7530 = vrot.slane %v7377, 2
    %v7531 = vsel %vm1245, %v7529, %v7530
    %v7532 = vrot.slane %v7376, 2
    %v7533 = vrot.slane %v7378, 2
    %v7534 = vsel %vm1245, %v7532, %v7533
    %v7535 = vrot.slane %v7379, 2
    %v7536 = vrot.slane %v7381, 2
    %v7537 = vsel %vm1245, %v7535, %v7536
    %v7538 = vrot.slane %v7380, 2
    %v7539 = vrot.slane %v7382, 2
    %v7540 = vsel %vm1245, %v7538, %v7539
    %v7541 = vrot.slane %v7383, 2
    %v7542 = vrot.slane %v7385, 2
    %v7543 = vsel %vm1245, %v7541, %v7542
    %v7544 = vrot.slane %v7384, 2
    %v7545 = vrot.slane %v7386, 2
    %v7546 = vsel %vm1245, %v7544, %v7545
    %v7579 = vpack.c.bf16 %v7459, %v7453
    %v7580 = vpack.c.bf16 %v7462, %v7456
    %v7581 = vpack.c.bf16 %v7471, %v7465
    %v7582 = vpack.c.bf16 %v7474, %v7468
    %v7583 = vpack.c.bf16 %v7483, %v7477
    %v7584 = vpack.c.bf16 %v7486, %v7480
    %v7585 = vpack.c.bf16 %v7495, %v7489
    %v7586 = vpack.c.bf16 %v7498, %v7492
    %v7587 = vpack.c.bf16 %v7507, %v7501
    %v7588 = vpack.c.bf16 %v7510, %v7504
    %v7589 = vpack.c.bf16 %v7519, %v7513
    %v7590 = vpack.c.bf16 %v7522, %v7516
    %v7591 = vpack.c.bf16 %v7531, %v7525
    %v7592 = vpack.c.bf16 %v7534, %v7528
    %v7593 = vpack.c.bf16 %v7543, %v7537
    %v7594 = vpack.c.bf16 %v7546, %v7540
    %s7595 = scalar_lea.vmem %s2, 512
    %v7596 = vld [vmem:[%s7595] sm:$0xff]
    %v7597 = vld [vmem:[%s7595 + $0x8] sm:$0xff]
    %v7598 = vld [vmem:[%s7595 + $0x10] sm:$0xff]
    %v7599 = vld [vmem:[%s7595 + $0x18] sm:$0xff]
    %v7600 = vld [vmem:[%s7595 + $0x20] sm:$0xff]
    %v7601 = vld [vmem:[%s7595 + $0x28] sm:$0xff]
    %v7602 = vld [vmem:[%s7595 + $0x30] sm:$0xff]
    %v7603 = vld [vmem:[%s7595 + $0x38] sm:$0xff]
    %v7604 = vld [vmem:[%s7595 + $0x40] sm:$0xff]
    %v7605 = vld [vmem:[%s7595 + $0x48] sm:$0xff]
    %v7606 = vld [vmem:[%s7595 + $0x50] sm:$0xff]
    %v7607 = vld [vmem:[%s7595 + $0x58] sm:$0xff]
    %v7608 = vld [vmem:[%s7595 + $0x60] sm:$0xff]
    %v7609 = vld [vmem:[%s7595 + $0x68] sm:$0xff]
    %v7610 = vld [vmem:[%s7595 + $0x70] sm:$0xff]
    %v7611 = vld [vmem:[%s7595 + $0x78] sm:$0xff]
    %v7612 = vld [vmem:[%s7595 + $0x80] sm:$0xff]
    %v7613 = vld [vmem:[%s7595 + $0x88] sm:$0xff]
    %v7614 = vld [vmem:[%s7595 + $0x90] sm:$0xff]
    %v7615 = vld [vmem:[%s7595 + $0x98] sm:$0xff]
    %v7616 = vld [vmem:[%s7595 + $0xa0] sm:$0xff]
    %v7617 = vld [vmem:[%s7595 + $0xa8] sm:$0xff]
    %v7618 = vld [vmem:[%s7595 + $0xb0] sm:$0xff]
    %v7619 = vld [vmem:[%s7595 + $0xb8] sm:$0xff]
    %v7620 = vld [vmem:[%s7595 + $0xc0] sm:$0xff]
    %v7621 = vld [vmem:[%s7595 + $0xc8] sm:$0xff]
    %v7622 = vld [vmem:[%s7595 + $0xd0] sm:$0xff]
    %v7623 = vld [vmem:[%s7595 + $0xd8] sm:$0xff]
    %v7624 = vld [vmem:[%s7595 + $0xe0] sm:$0xff]
    %v7625 = vld [vmem:[%s7595 + $0xe8] sm:$0xff]
    %v7626 = vld [vmem:[%s7595 + $0xf0] sm:$0xff]
    %v7627 = vld [vmem:[%s7595 + $0xf8] sm:$0xff]
    %v7660 = vunpack.c.l.b16 %v7596
    %v7661 = vunpack.c.h.b16 %v7596
    %v7662 = vunpack.c.l.b16 %v7597
    %v7663 = vunpack.c.h.b16 %v7597
    %v7664 = vunpack.c.l.b16 %v7598
    %v7665 = vunpack.c.h.b16 %v7598
    %v7666 = vunpack.c.l.b16 %v7599
    %v7667 = vunpack.c.h.b16 %v7599
    %v7668 = vunpack.c.l.b16 %v7600
    %v7669 = vunpack.c.h.b16 %v7600
    %v7670 = vunpack.c.l.b16 %v7601
    %v7671 = vunpack.c.h.b16 %v7601
    %v7672 = vunpack.c.l.b16 %v7602
    %v7673 = vunpack.c.h.b16 %v7602
    %v7674 = vunpack.c.l.b16 %v7603
    %v7675 = vunpack.c.h.b16 %v7603
    %v7676 = vunpack.c.l.b16 %v7604
    %v7677 = vunpack.c.h.b16 %v7604
    %v7678 = vunpack.c.l.b16 %v7605
    %v7679 = vunpack.c.h.b16 %v7605
    %v7680 = vunpack.c.l.b16 %v7606
    %v7681 = vunpack.c.h.b16 %v7606
    %v7682 = vunpack.c.l.b16 %v7607
    %v7683 = vunpack.c.h.b16 %v7607
    %v7684 = vunpack.c.l.b16 %v7608
    %v7685 = vunpack.c.h.b16 %v7608
    %v7686 = vunpack.c.l.b16 %v7609
    %v7687 = vunpack.c.h.b16 %v7609
    %v7688 = vunpack.c.l.b16 %v7610
    %v7689 = vunpack.c.h.b16 %v7610
    %v7690 = vunpack.c.l.b16 %v7611
    %v7691 = vunpack.c.h.b16 %v7611
    %v7692 = vunpack.c.l.b16 %v7612
    %v7693 = vunpack.c.h.b16 %v7612
    %v7694 = vunpack.c.l.b16 %v7613
    %v7695 = vunpack.c.h.b16 %v7613
    %v7696 = vunpack.c.l.b16 %v7614
    %v7697 = vunpack.c.h.b16 %v7614
    %v7698 = vunpack.c.l.b16 %v7615
    %v7699 = vunpack.c.h.b16 %v7615
    %v7700 = vunpack.c.l.b16 %v7616
    %v7701 = vunpack.c.h.b16 %v7616
    %v7702 = vunpack.c.l.b16 %v7617
    %v7703 = vunpack.c.h.b16 %v7617
    %v7704 = vunpack.c.l.b16 %v7618
    %v7705 = vunpack.c.h.b16 %v7618
    %v7706 = vunpack.c.l.b16 %v7619
    %v7707 = vunpack.c.h.b16 %v7619
    %v7708 = vunpack.c.l.b16 %v7620
    %v7709 = vunpack.c.h.b16 %v7620
    %v7710 = vunpack.c.l.b16 %v7621
    %v7711 = vunpack.c.h.b16 %v7621
    %v7712 = vunpack.c.l.b16 %v7622
    %v7713 = vunpack.c.h.b16 %v7622
    %v7714 = vunpack.c.l.b16 %v7623
    %v7715 = vunpack.c.h.b16 %v7623
    %v7716 = vunpack.c.l.b16 %v7624
    %v7717 = vunpack.c.h.b16 %v7624
    %v7718 = vunpack.c.l.b16 %v7625
    %v7719 = vunpack.c.h.b16 %v7625
    %v7720 = vunpack.c.l.b16 %v7626
    %v7721 = vunpack.c.h.b16 %v7626
    %v7722 = vunpack.c.l.b16 %v7627
    %v7723 = vunpack.c.h.b16 %v7627
    %v7724 = vpack.c.b16 %v7662, %v7660
    %v7725 = vpack.c.b16 %v7663, %v7661
    %v7726 = vpack.c.b16 %v7666, %v7664
    %v7727 = vpack.c.b16 %v7667, %v7665
    %v7728 = vpack.c.b16 %v7670, %v7668
    %v7729 = vpack.c.b16 %v7671, %v7669
    %v7730 = vpack.c.b16 %v7674, %v7672
    %v7731 = vpack.c.b16 %v7675, %v7673
    %v7732 = vpack.c.b16 %v7678, %v7676
    %v7733 = vpack.c.b16 %v7679, %v7677
    %v7734 = vpack.c.b16 %v7682, %v7680
    %v7735 = vpack.c.b16 %v7683, %v7681
    %v7736 = vpack.c.b16 %v7686, %v7684
    %v7737 = vpack.c.b16 %v7687, %v7685
    %v7738 = vpack.c.b16 %v7690, %v7688
    %v7739 = vpack.c.b16 %v7691, %v7689
    %v7740 = vpack.c.b16 %v7694, %v7692
    %v7741 = vpack.c.b16 %v7695, %v7693
    %v7742 = vpack.c.b16 %v7698, %v7696
    %v7743 = vpack.c.b16 %v7699, %v7697
    %v7744 = vpack.c.b16 %v7702, %v7700
    %v7745 = vpack.c.b16 %v7703, %v7701
    %v7746 = vpack.c.b16 %v7706, %v7704
    %v7747 = vpack.c.b16 %v7707, %v7705
    %v7748 = vpack.c.b16 %v7710, %v7708
    %v7749 = vpack.c.b16 %v7711, %v7709
    %v7750 = vpack.c.b16 %v7714, %v7712
    %v7751 = vpack.c.b16 %v7715, %v7713
    %v7752 = vpack.c.b16 %v7718, %v7716
    %v7753 = vpack.c.b16 %v7719, %v7717
    %v7754 = vpack.c.b16 %v7722, %v7720
    %v7755 = vpack.c.b16 %v7723, %v7721
    %7788 = vmatpush.bf16.msra.mxu0 %v7738
    %7789 = vmatpush.bf16.msra.mxu0 %v7736
    %7790 = vmatpush.bf16.msra.mxu0 %v7734
    %7791 = vmatpush.bf16.msra.mxu0 %v7732
    %7792 = vmatpush.bf16.msra.mxu0 %v7730
    %7793 = vmatpush.bf16.msra.mxu0 %v7728
    %7794 = vmatpush.bf16.msra.mxu0 %v7726
    %7795 = vmatpush.bf16.msra.mxu0 %v7724
    %7796 = vmatmul.bf16.gmra.mxu0 %v7579
    %v7797 = vpop.f32.mrf.mxu0
    %v7798 = vadd.f32 0.0, %v7797
    %v7799 = vpop.f32.mrf.mxu0
    %v7800 = vadd.f32 0.0, %v7799
    %7801 = vmatmul.bf16.gmra.mxu0 %v7581
    %v7802 = vpop.f32.mrf.mxu0
    %v7803 = vadd.f32 0.0, %v7802
    %v7804 = vpop.f32.mrf.mxu0
    %v7805 = vadd.f32 0.0, %v7804
    %7806 = vmatmul.bf16.gmra.mxu0 %v7583
    %v7807 = vpop.f32.mrf.mxu0
    %v7808 = vadd.f32 0.0, %v7807
    %v7809 = vpop.f32.mrf.mxu0
    %v7810 = vadd.f32 0.0, %v7809
    %7811 = vmatmul.bf16.gmra.mxu0 %v7585
    %v7812 = vpop.f32.mrf.mxu0
    %v7813 = vadd.f32 0.0, %v7812
    %v7814 = vpop.f32.mrf.mxu0
    %v7815 = vadd.f32 0.0, %v7814
    %7816 = vmatmul.bf16.gmra.mxu0 %v7587
    %v7817 = vpop.f32.mrf.mxu0
    %v7818 = vadd.f32 0.0, %v7817
    %v7819 = vpop.f32.mrf.mxu0
    %v7820 = vadd.f32 0.0, %v7819
    %7821 = vmatmul.bf16.gmra.mxu0 %v7589
    %v7822 = vpop.f32.mrf.mxu0
    %v7823 = vadd.f32 0.0, %v7822
    %v7824 = vpop.f32.mrf.mxu0
    %v7825 = vadd.f32 0.0, %v7824
    %7826 = vmatmul.bf16.gmra.mxu0 %v7591
    %v7827 = vpop.f32.mrf.mxu0
    %v7828 = vadd.f32 0.0, %v7827
    %v7829 = vpop.f32.mrf.mxu0
    %v7830 = vadd.f32 0.0, %v7829
    %7831 = vmatmul.bf16.gmra.mxu0 %v7593
    %v7832 = vpop.f32.mrf.mxu0
    %v7833 = vadd.f32 0.0, %v7832
    %v7834 = vpop.f32.mrf.mxu0
    %v7835 = vadd.f32 0.0, %v7834
    %7836 = vdwg.mxu0
    %7837 = vmatpush.bf16.msra.mxu0 %v7754
    %7838 = vmatpush.bf16.msra.mxu0 %v7752
    %7839 = vmatpush.bf16.msra.mxu0 %v7750
    %7840 = vmatpush.bf16.msra.mxu0 %v7748
    %7841 = vmatpush.bf16.msra.mxu0 %v7746
    %7842 = vmatpush.bf16.msra.mxu0 %v7744
    %7843 = vmatpush.bf16.msra.mxu0 %v7742
    %7844 = vmatpush.bf16.msra.mxu0 %v7740
    %7845 = vmatmul.bf16.gmra.mxu0 %v7580
    %v7846 = vpop.f32.mrf.mxu0
    %v7847 = vadd.f32 %v7798, %v7846
    %v7848 = vpop.f32.mrf.mxu0
    %v7849 = vadd.f32 %v7800, %v7848
    %7850 = vmatmul.bf16.gmra.mxu0 %v7582
    %v7851 = vpop.f32.mrf.mxu0
    %v7852 = vadd.f32 %v7803, %v7851
    %v7853 = vpop.f32.mrf.mxu0
    %v7854 = vadd.f32 %v7805, %v7853
    %7855 = vmatmul.bf16.gmra.mxu0 %v7584
    %v7856 = vpop.f32.mrf.mxu0
    %v7857 = vadd.f32 %v7808, %v7856
    %v7858 = vpop.f32.mrf.mxu0
    %v7859 = vadd.f32 %v7810, %v7858
    %7860 = vmatmul.bf16.gmra.mxu0 %v7586
    %v7861 = vpop.f32.mrf.mxu0
    %v7862 = vadd.f32 %v7813, %v7861
    %v7863 = vpop.f32.mrf.mxu0
    %v7864 = vadd.f32 %v7815, %v7863
    %7865 = vmatmul.bf16.gmra.mxu0 %v7588
    %v7866 = vpop.f32.mrf.mxu0
    %v7867 = vadd.f32 %v7818, %v7866
    %v7868 = vpop.f32.mrf.mxu0
    %v7869 = vadd.f32 %v7820, %v7868
    %7870 = vmatmul.bf16.gmra.mxu0 %v7590
    %v7871 = vpop.f32.mrf.mxu0
    %v7872 = vadd.f32 %v7823, %v7871
    %v7873 = vpop.f32.mrf.mxu0
    %v7874 = vadd.f32 %v7825, %v7873
    %7875 = vmatmul.bf16.gmra.mxu0 %v7592
    %v7876 = vpop.f32.mrf.mxu0
    %v7877 = vadd.f32 %v7828, %v7876
    %v7878 = vpop.f32.mrf.mxu0
    %v7879 = vadd.f32 %v7830, %v7878
    %7880 = vmatmul.bf16.gmra.mxu0 %v7594
    %v7881 = vpop.f32.mrf.mxu0
    %v7882 = vadd.f32 %v7833, %v7881
    %v7883 = vpop.f32.mrf.mxu0
    %v7884 = vadd.f32 %v7835, %v7883
    %7885 = vdwg.mxu0
    %7886 = vmatpush.bf16.msra.mxu0 %v7739
    %7887 = vmatpush.bf16.msra.mxu0 %v7737
    %7888 = vmatpush.bf16.msra.mxu0 %v7735
    %7889 = vmatpush.bf16.msra.mxu0 %v7733
    %7890 = vmatpush.bf16.msra.mxu0 %v7731
    %7891 = vmatpush.bf16.msra.mxu0 %v7729
    %7892 = vmatpush.bf16.msra.mxu0 %v7727
    %7893 = vmatpush.bf16.msra.mxu0 %v7725
    %7894 = vmatmul.bf16.gmra.mxu0 %v7579
    %v7895 = vpop.f32.mrf.mxu0
    %v7896 = vadd.f32 0.0, %v7895
    %v7897 = vpop.f32.mrf.mxu0
    %v7898 = vadd.f32 0.0, %v7897
    %7899 = vmatmul.bf16.gmra.mxu0 %v7581
    %v7900 = vpop.f32.mrf.mxu0
    %v7901 = vadd.f32 0.0, %v7900
    %v7902 = vpop.f32.mrf.mxu0
    %v7903 = vadd.f32 0.0, %v7902
    %7904 = vmatmul.bf16.gmra.mxu0 %v7583
    %v7905 = vpop.f32.mrf.mxu0
    %v7906 = vadd.f32 0.0, %v7905
    %v7907 = vpop.f32.mrf.mxu0
    %v7908 = vadd.f32 0.0, %v7907
    %7909 = vmatmul.bf16.gmra.mxu0 %v7585
    %v7910 = vpop.f32.mrf.mxu0
    %v7911 = vadd.f32 0.0, %v7910
    %v7912 = vpop.f32.mrf.mxu0
    %v7913 = vadd.f32 0.0, %v7912
    %7914 = vmatmul.bf16.gmra.mxu0 %v7587
    %v7915 = vpop.f32.mrf.mxu0
    %v7916 = vadd.f32 0.0, %v7915
    %v7917 = vpop.f32.mrf.mxu0
    %v7918 = vadd.f32 0.0, %v7917
    %7919 = vmatmul.bf16.gmra.mxu0 %v7589
    %v7920 = vpop.f32.mrf.mxu0
    %v7921 = vadd.f32 0.0, %v7920
    %v7922 = vpop.f32.mrf.mxu0
    %v7923 = vadd.f32 0.0, %v7922
    %7924 = vmatmul.bf16.gmra.mxu0 %v7591
    %v7925 = vpop.f32.mrf.mxu0
    %v7926 = vadd.f32 0.0, %v7925
    %v7927 = vpop.f32.mrf.mxu0
    %v7928 = vadd.f32 0.0, %v7927
    %7929 = vmatmul.bf16.gmra.mxu0 %v7593
    %v7930 = vpop.f32.mrf.mxu0
    %v7931 = vadd.f32 0.0, %v7930
    %v7932 = vpop.f32.mrf.mxu0
    %v7933 = vadd.f32 0.0, %v7932
    %7934 = vdwg.mxu0
    %7935 = vmatpush.bf16.msra.mxu0 %v7755
    %7936 = vmatpush.bf16.msra.mxu0 %v7753
    %7937 = vmatpush.bf16.msra.mxu0 %v7751
    %7938 = vmatpush.bf16.msra.mxu0 %v7749
    %7939 = vmatpush.bf16.msra.mxu0 %v7747
    %7940 = vmatpush.bf16.msra.mxu0 %v7745
    %7941 = vmatpush.bf16.msra.mxu0 %v7743
    %7942 = vmatpush.bf16.msra.mxu0 %v7741
    %7943 = vmatmul.bf16.gmra.mxu0 %v7580
    %v7944 = vpop.f32.mrf.mxu0
    %v7945 = vadd.f32 %v7896, %v7944
    %v7946 = vpop.f32.mrf.mxu0
    %v7947 = vadd.f32 %v7898, %v7946
    %7948 = vmatmul.bf16.gmra.mxu0 %v7582
    %v7949 = vpop.f32.mrf.mxu0
    %v7950 = vadd.f32 %v7901, %v7949
    %v7951 = vpop.f32.mrf.mxu0
    %v7952 = vadd.f32 %v7903, %v7951
    %7953 = vmatmul.bf16.gmra.mxu0 %v7584
    %v7954 = vpop.f32.mrf.mxu0
    %v7955 = vadd.f32 %v7906, %v7954
    %v7956 = vpop.f32.mrf.mxu0
    %v7957 = vadd.f32 %v7908, %v7956
    %7958 = vmatmul.bf16.gmra.mxu0 %v7586
    %v7959 = vpop.f32.mrf.mxu0
    %v7960 = vadd.f32 %v7911, %v7959
    %v7961 = vpop.f32.mrf.mxu0
    %v7962 = vadd.f32 %v7913, %v7961
    %7963 = vmatmul.bf16.gmra.mxu0 %v7588
    %v7964 = vpop.f32.mrf.mxu0
    %v7965 = vadd.f32 %v7916, %v7964
    %v7966 = vpop.f32.mrf.mxu0
    %v7967 = vadd.f32 %v7918, %v7966
    %7968 = vmatmul.bf16.gmra.mxu0 %v7590
    %v7969 = vpop.f32.mrf.mxu0
    %v7970 = vadd.f32 %v7921, %v7969
    %v7971 = vpop.f32.mrf.mxu0
    %v7972 = vadd.f32 %v7923, %v7971
    %7973 = vmatmul.bf16.gmra.mxu0 %v7592
    %v7974 = vpop.f32.mrf.mxu0
    %v7975 = vadd.f32 %v7926, %v7974
    %v7976 = vpop.f32.mrf.mxu0
    %v7977 = vadd.f32 %v7928, %v7976
    %7978 = vmatmul.bf16.gmra.mxu0 %v7594
    %v7979 = vpop.f32.mrf.mxu0
    %v7980 = vadd.f32 %v7931, %v7979
    %v7981 = vpop.f32.mrf.mxu0
    %v7982 = vadd.f32 %v7933, %v7981
    %7983 = vdwg.mxu0
    %v7984 = vadd.f32 %v7186, %v7847
    %v7985 = vadd.f32 %v7284, %v7945
    %v7986 = vadd.f32 %v7188, %v7849
    %v7987 = vadd.f32 %v7286, %v7947
    %v7988 = vadd.f32 %v7191, %v7852
    %v7989 = vadd.f32 %v7289, %v7950
    %v7990 = vadd.f32 %v7193, %v7854
    %v7991 = vadd.f32 %v7291, %v7952
    %v7992 = vadd.f32 %v7196, %v7857
    %v7993 = vadd.f32 %v7294, %v7955
    %v7994 = vadd.f32 %v7198, %v7859
    %v7995 = vadd.f32 %v7296, %v7957
    %v7996 = vadd.f32 %v7201, %v7862
    %v7997 = vadd.f32 %v7299, %v7960
    %v7998 = vadd.f32 %v7203, %v7864
    %v7999 = vadd.f32 %v7301, %v7962
    %v8000 = vadd.f32 %v7206, %v7867
    %v8001 = vadd.f32 %v7304, %v7965
    %v8002 = vadd.f32 %v7208, %v7869
    %v8003 = vadd.f32 %v7306, %v7967
    %v8004 = vadd.f32 %v7211, %v7872
    %v8005 = vadd.f32 %v7309, %v7970
    %v8006 = vadd.f32 %v7213, %v7874
    %v8007 = vadd.f32 %v7311, %v7972
    %v8008 = vadd.f32 %v7216, %v7877
    %v8009 = vadd.f32 %v7314, %v7975
    %v8010 = vadd.f32 %v7218, %v7879
    %v8011 = vadd.f32 %v7316, %v7977
    %v8012 = vadd.f32 %v7221, %v7882
    %v8013 = vadd.f32 %v7319, %v7980
    %v8014 = vadd.f32 %v7223, %v7884
    %v8015 = vadd.f32 %v7321, %v7982
    %v8016 = vld [vmem:[%s5941] sm:$0xff]
    %v8017 = vld [vmem:[%s5941 + $0x8] sm:$0xff]
    %v8018 = vld [vmem:[%s5941 + $0x20] sm:$0xff]
    %v8019 = vld [vmem:[%s5941 + $0x28] sm:$0xff]
    %v8020 = vld [vmem:[%s5941 + $0x40] sm:$0xff]
    %v8021 = vld [vmem:[%s5941 + $0x48] sm:$0xff]
    %v8022 = vld [vmem:[%s5941 + $0x60] sm:$0xff]
    %v8023 = vld [vmem:[%s5941 + $0x68] sm:$0xff]
    %v8024 = vld [vmem:[%s5941 + $0x80] sm:$0xff]
    %v8025 = vld [vmem:[%s5941 + $0x88] sm:$0xff]
    %v8026 = vld [vmem:[%s5941 + $0xa0] sm:$0xff]
    %v8027 = vld [vmem:[%s5941 + $0xa8] sm:$0xff]
    %v8028 = vld [vmem:[%s5941 + $0xc0] sm:$0xff]
    %v8029 = vld [vmem:[%s5941 + $0xc8] sm:$0xff]
    %v8030 = vld [vmem:[%s5941 + $0xe0] sm:$0xff]
    %v8031 = vld [vmem:[%s5941 + $0xe8] sm:$0xff]
    %v8032 = vld [vmem:[%s5941 + $0x140] sm:$0xff]
    %v8033 = vld [vmem:[%s5941 + $0x148] sm:$0xff]
    %v8034 = vld [vmem:[%s5941 + $0x160] sm:$0xff]
    %v8035 = vld [vmem:[%s5941 + $0x168] sm:$0xff]
    %v8036 = vld [vmem:[%s5941 + $0x180] sm:$0xff]
    %v8037 = vld [vmem:[%s5941 + $0x188] sm:$0xff]
    %v8038 = vld [vmem:[%s5941 + $0x1a0] sm:$0xff]
    %v8039 = vld [vmem:[%s5941 + $0x1a8] sm:$0xff]
    %v8040 = vld [vmem:[%s5941 + $0x1c0] sm:$0xff]
    %v8041 = vld [vmem:[%s5941 + $0x1c8] sm:$0xff]
    %v8042 = vld [vmem:[%s5941 + $0x1e0] sm:$0xff]
    %v8043 = vld [vmem:[%s5941 + $0x1e8] sm:$0xff]
    %v8044 = vld [vmem:[%s5941 + $0x200] sm:$0xff]
    %v8045 = vld [vmem:[%s5941 + $0x208] sm:$0xff]
    %v8046 = vld [vmem:[%s5941 + $0x220] sm:$0xff]
    %v8047 = vld [vmem:[%s5941 + $0x228] sm:$0xff]
    %v8048 = vpack.c.bf16 %v8018, %v8016
    %v8049 = vpack.c.bf16 %v8019, %v8017
    %v8050 = vpack.c.bf16 %v8022, %v8020
    %v8051 = vpack.c.bf16 %v8023, %v8021
    %v8052 = vpack.c.bf16 %v8026, %v8024
    %v8053 = vpack.c.bf16 %v8027, %v8025
    %v8054 = vpack.c.bf16 %v8030, %v8028
    %v8055 = vpack.c.bf16 %v8031, %v8029
    %v8056 = vpack.c.bf16 %v8034, %v8032
    %v8057 = vpack.c.bf16 %v8035, %v8033
    %v8058 = vpack.c.bf16 %v8038, %v8036
    %v8059 = vpack.c.bf16 %v8039, %v8037
    %v8060 = vpack.c.bf16 %v8042, %v8040
    %v8061 = vpack.c.bf16 %v8043, %v8041
    %v8062 = vpack.c.bf16 %v8046, %v8044
    %v8063 = vpack.c.bf16 %v8047, %v8045
    %s8064 = scalar_lea.vmem %s2, 768
    %v8065 = vld [vmem:[%s8064] sm:$0xff]
    %v8066 = vld [vmem:[%s8064 + $0x8] sm:$0xff]
    %v8067 = vld [vmem:[%s8064 + $0x10] sm:$0xff]
    %v8068 = vld [vmem:[%s8064 + $0x18] sm:$0xff]
    %v8069 = vld [vmem:[%s8064 + $0x20] sm:$0xff]
    %v8070 = vld [vmem:[%s8064 + $0x28] sm:$0xff]
    %v8071 = vld [vmem:[%s8064 + $0x30] sm:$0xff]
    %v8072 = vld [vmem:[%s8064 + $0x38] sm:$0xff]
    %v8073 = vld [vmem:[%s8064 + $0x40] sm:$0xff]
    %v8074 = vld [vmem:[%s8064 + $0x48] sm:$0xff]
    %v8075 = vld [vmem:[%s8064 + $0x50] sm:$0xff]
    %v8076 = vld [vmem:[%s8064 + $0x58] sm:$0xff]
    %v8077 = vld [vmem:[%s8064 + $0x60] sm:$0xff]
    %v8078 = vld [vmem:[%s8064 + $0x68] sm:$0xff]
    %v8079 = vld [vmem:[%s8064 + $0x70] sm:$0xff]
    %v8080 = vld [vmem:[%s8064 + $0x78] sm:$0xff]
    %v8081 = vld [vmem:[%s8064 + $0x80] sm:$0xff]
    %v8082 = vld [vmem:[%s8064 + $0x88] sm:$0xff]
    %v8083 = vld [vmem:[%s8064 + $0x90] sm:$0xff]
    %v8084 = vld [vmem:[%s8064 + $0x98] sm:$0xff]
    %v8085 = vld [vmem:[%s8064 + $0xa0] sm:$0xff]
    %v8086 = vld [vmem:[%s8064 + $0xa8] sm:$0xff]
    %v8087 = vld [vmem:[%s8064 + $0xb0] sm:$0xff]
    %v8088 = vld [vmem:[%s8064 + $0xb8] sm:$0xff]
    %v8089 = vld [vmem:[%s8064 + $0xc0] sm:$0xff]
    %v8090 = vld [vmem:[%s8064 + $0xc8] sm:$0xff]
    %v8091 = vld [vmem:[%s8064 + $0xd0] sm:$0xff]
    %v8092 = vld [vmem:[%s8064 + $0xd8] sm:$0xff]
    %v8093 = vld [vmem:[%s8064 + $0xe0] sm:$0xff]
    %v8094 = vld [vmem:[%s8064 + $0xe8] sm:$0xff]
    %v8095 = vld [vmem:[%s8064 + $0xf0] sm:$0xff]
    %v8096 = vld [vmem:[%s8064 + $0xf8] sm:$0xff]
    %v8129 = vunpack.c.l.b16 %v8065
    %v8130 = vunpack.c.h.b16 %v8065
    %v8131 = vunpack.c.l.b16 %v8066
    %v8132 = vunpack.c.h.b16 %v8066
    %v8133 = vunpack.c.l.b16 %v8067
    %v8134 = vunpack.c.h.b16 %v8067
    %v8135 = vunpack.c.l.b16 %v8068
    %v8136 = vunpack.c.h.b16 %v8068
    %v8137 = vunpack.c.l.b16 %v8069
    %v8138 = vunpack.c.h.b16 %v8069
    %v8139 = vunpack.c.l.b16 %v8070
    %v8140 = vunpack.c.h.b16 %v8070
    %v8141 = vunpack.c.l.b16 %v8071
    %v8142 = vunpack.c.h.b16 %v8071
    %v8143 = vunpack.c.l.b16 %v8072
    %v8144 = vunpack.c.h.b16 %v8072
    %v8145 = vunpack.c.l.b16 %v8073
    %v8146 = vunpack.c.h.b16 %v8073
    %v8147 = vunpack.c.l.b16 %v8074
    %v8148 = vunpack.c.h.b16 %v8074
    %v8149 = vunpack.c.l.b16 %v8075
    %v8150 = vunpack.c.h.b16 %v8075
    %v8151 = vunpack.c.l.b16 %v8076
    %v8152 = vunpack.c.h.b16 %v8076
    %v8153 = vunpack.c.l.b16 %v8077
    %v8154 = vunpack.c.h.b16 %v8077
    %v8155 = vunpack.c.l.b16 %v8078
    %v8156 = vunpack.c.h.b16 %v8078
    %v8157 = vunpack.c.l.b16 %v8079
    %v8158 = vunpack.c.h.b16 %v8079
    %v8159 = vunpack.c.l.b16 %v8080
    %v8160 = vunpack.c.h.b16 %v8080
    %v8161 = vunpack.c.l.b16 %v8081
    %v8162 = vunpack.c.h.b16 %v8081
    %v8163 = vunpack.c.l.b16 %v8082
    %v8164 = vunpack.c.h.b16 %v8082
    %v8165 = vunpack.c.l.b16 %v8083
    %v8166 = vunpack.c.h.b16 %v8083
    %v8167 = vunpack.c.l.b16 %v8084
    %v8168 = vunpack.c.h.b16 %v8084
    %v8169 = vunpack.c.l.b16 %v8085
    %v8170 = vunpack.c.h.b16 %v8085
    %v8171 = vunpack.c.l.b16 %v8086
    %v8172 = vunpack.c.h.b16 %v8086
    %v8173 = vunpack.c.l.b16 %v8087
    %v8174 = vunpack.c.h.b16 %v8087
    %v8175 = vunpack.c.l.b16 %v8088
    %v8176 = vunpack.c.h.b16 %v8088
    %v8177 = vunpack.c.l.b16 %v8089
    %v8178 = vunpack.c.h.b16 %v8089
    %v8179 = vunpack.c.l.b16 %v8090
    %v8180 = vunpack.c.h.b16 %v8090
    %v8181 = vunpack.c.l.b16 %v8091
    %v8182 = vunpack.c.h.b16 %v8091
    %v8183 = vunpack.c.l.b16 %v8092
    %v8184 = vunpack.c.h.b16 %v8092
    %v8185 = vunpack.c.l.b16 %v8093
    %v8186 = vunpack.c.h.b16 %v8093
    %v8187 = vunpack.c.l.b16 %v8094
    %v8188 = vunpack.c.h.b16 %v8094
    %v8189 = vunpack.c.l.b16 %v8095
    %v8190 = vunpack.c.h.b16 %v8095
    %v8191 = vunpack.c.l.b16 %v8096
    %v8192 = vunpack.c.h.b16 %v8096
    %v8193 = vpack.c.b16 %v8131, %v8129
    %v8194 = vpack.c.b16 %v8132, %v8130
    %v8195 = vpack.c.b16 %v8135, %v8133
    %v8196 = vpack.c.b16 %v8136, %v8134
    %v8197 = vpack.c.b16 %v8139, %v8137
    %v8198 = vpack.c.b16 %v8140, %v8138
    %v8199 = vpack.c.b16 %v8143, %v8141
    %v8200 = vpack.c.b16 %v8144, %v8142
    %v8201 = vpack.c.b16 %v8147, %v8145
    %v8202 = vpack.c.b16 %v8148, %v8146
    %v8203 = vpack.c.b16 %v8151, %v8149
    %v8204 = vpack.c.b16 %v8152, %v8150
    %v8205 = vpack.c.b16 %v8155, %v8153
    %v8206 = vpack.c.b16 %v8156, %v8154
    %v8207 = vpack.c.b16 %v8159, %v8157
    %v8208 = vpack.c.b16 %v8160, %v8158
    %v8209 = vpack.c.b16 %v8163, %v8161
    %v8210 = vpack.c.b16 %v8164, %v8162
    %v8211 = vpack.c.b16 %v8167, %v8165
    %v8212 = vpack.c.b16 %v8168, %v8166
    %v8213 = vpack.c.b16 %v8171, %v8169
    %v8214 = vpack.c.b16 %v8172, %v8170
    %v8215 = vpack.c.b16 %v8175, %v8173
    %v8216 = vpack.c.b16 %v8176, %v8174
    %v8217 = vpack.c.b16 %v8179, %v8177
    %v8218 = vpack.c.b16 %v8180, %v8178
    %v8219 = vpack.c.b16 %v8183, %v8181
    %v8220 = vpack.c.b16 %v8184, %v8182
    %v8221 = vpack.c.b16 %v8187, %v8185
    %v8222 = vpack.c.b16 %v8188, %v8186
    %v8223 = vpack.c.b16 %v8191, %v8189
    %v8224 = vpack.c.b16 %v8192, %v8190
    %8257 = vmatpush.bf16.msra.mxu0 %v8207
    %8258 = vmatpush.bf16.msra.mxu0 %v8205
    %8259 = vmatpush.bf16.msra.mxu0 %v8203
    %8260 = vmatpush.bf16.msra.mxu0 %v8201
    %8261 = vmatpush.bf16.msra.mxu0 %v8199
    %8262 = vmatpush.bf16.msra.mxu0 %v8197
    %8263 = vmatpush.bf16.msra.mxu0 %v8195
    %8264 = vmatpush.bf16.msra.mxu0 %v8193
    %8265 = vmatmul.bf16.gmra.mxu0 %v8048
    %v8266 = vpop.f32.mrf.mxu0
    %v8267 = vadd.f32 0.0, %v8266
    %v8268 = vpop.f32.mrf.mxu0
    %v8269 = vadd.f32 0.0, %v8268
    %8270 = vmatmul.bf16.gmra.mxu0 %v8050
    %v8271 = vpop.f32.mrf.mxu0
    %v8272 = vadd.f32 0.0, %v8271
    %v8273 = vpop.f32.mrf.mxu0
    %v8274 = vadd.f32 0.0, %v8273
    %8275 = vmatmul.bf16.gmra.mxu0 %v8052
    %v8276 = vpop.f32.mrf.mxu0
    %v8277 = vadd.f32 0.0, %v8276
    %v8278 = vpop.f32.mrf.mxu0
    %v8279 = vadd.f32 0.0, %v8278
    %8280 = vmatmul.bf16.gmra.mxu0 %v8054
    %v8281 = vpop.f32.mrf.mxu0
    %v8282 = vadd.f32 0.0, %v8281
    %v8283 = vpop.f32.mrf.mxu0
    %v8284 = vadd.f32 0.0, %v8283
    %8285 = vmatmul.bf16.gmra.mxu0 %v8056
    %v8286 = vpop.f32.mrf.mxu0
    %v8287 = vadd.f32 0.0, %v8286
    %v8288 = vpop.f32.mrf.mxu0
    %v8289 = vadd.f32 0.0, %v8288
    %8290 = vmatmul.bf16.gmra.mxu0 %v8058
    %v8291 = vpop.f32.mrf.mxu0
    %v8292 = vadd.f32 0.0, %v8291
    %v8293 = vpop.f32.mrf.mxu0
    %v8294 = vadd.f32 0.0, %v8293
    %8295 = vmatmul.bf16.gmra.mxu0 %v8060
    %v8296 = vpop.f32.mrf.mxu0
    %v8297 = vadd.f32 0.0, %v8296
    %v8298 = vpop.f32.mrf.mxu0
    %v8299 = vadd.f32 0.0, %v8298
    %8300 = vmatmul.bf16.gmra.mxu0 %v8062
    %v8301 = vpop.f32.mrf.mxu0
    %v8302 = vadd.f32 0.0, %v8301
    %v8303 = vpop.f32.mrf.mxu0
    %v8304 = vadd.f32 0.0, %v8303
    %8305 = vdwg.mxu0
    %8306 = vmatpush.bf16.msra.mxu0 %v8223
    %8307 = vmatpush.bf16.msra.mxu0 %v8221
    %8308 = vmatpush.bf16.msra.mxu0 %v8219
    %8309 = vmatpush.bf16.msra.mxu0 %v8217
    %8310 = vmatpush.bf16.msra.mxu0 %v8215
    %8311 = vmatpush.bf16.msra.mxu0 %v8213
    %8312 = vmatpush.bf16.msra.mxu0 %v8211
    %8313 = vmatpush.bf16.msra.mxu0 %v8209
    %8314 = vmatmul.bf16.gmra.mxu0 %v8049
    %v8315 = vpop.f32.mrf.mxu0
    %v8316 = vadd.f32 %v8267, %v8315
    %v8317 = vpop.f32.mrf.mxu0
    %v8318 = vadd.f32 %v8269, %v8317
    %8319 = vmatmul.bf16.gmra.mxu0 %v8051
    %v8320 = vpop.f32.mrf.mxu0
    %v8321 = vadd.f32 %v8272, %v8320
    %v8322 = vpop.f32.mrf.mxu0
    %v8323 = vadd.f32 %v8274, %v8322
    %8324 = vmatmul.bf16.gmra.mxu0 %v8053
    %v8325 = vpop.f32.mrf.mxu0
    %v8326 = vadd.f32 %v8277, %v8325
    %v8327 = vpop.f32.mrf.mxu0
    %v8328 = vadd.f32 %v8279, %v8327
    %8329 = vmatmul.bf16.gmra.mxu0 %v8055
    %v8330 = vpop.f32.mrf.mxu0
    %v8331 = vadd.f32 %v8282, %v8330
    %v8332 = vpop.f32.mrf.mxu0
    %v8333 = vadd.f32 %v8284, %v8332
    %8334 = vmatmul.bf16.gmra.mxu0 %v8057
    %v8335 = vpop.f32.mrf.mxu0
    %v8336 = vadd.f32 %v8287, %v8335
    %v8337 = vpop.f32.mrf.mxu0
    %v8338 = vadd.f32 %v8289, %v8337
    %8339 = vmatmul.bf16.gmra.mxu0 %v8059
    %v8340 = vpop.f32.mrf.mxu0
    %v8341 = vadd.f32 %v8292, %v8340
    %v8342 = vpop.f32.mrf.mxu0
    %v8343 = vadd.f32 %v8294, %v8342
    %8344 = vmatmul.bf16.gmra.mxu0 %v8061
    %v8345 = vpop.f32.mrf.mxu0
    %v8346 = vadd.f32 %v8297, %v8345
    %v8347 = vpop.f32.mrf.mxu0
    %v8348 = vadd.f32 %v8299, %v8347
    %8349 = vmatmul.bf16.gmra.mxu0 %v8063
    %v8350 = vpop.f32.mrf.mxu0
    %v8351 = vadd.f32 %v8302, %v8350
    %v8352 = vpop.f32.mrf.mxu0
    %v8353 = vadd.f32 %v8304, %v8352
    %8354 = vdwg.mxu0
    %8355 = vmatpush.bf16.msra.mxu0 %v8208
    %8356 = vmatpush.bf16.msra.mxu0 %v8206
    %8357 = vmatpush.bf16.msra.mxu0 %v8204
    %8358 = vmatpush.bf16.msra.mxu0 %v8202
    %8359 = vmatpush.bf16.msra.mxu0 %v8200
    %8360 = vmatpush.bf16.msra.mxu0 %v8198
    %8361 = vmatpush.bf16.msra.mxu0 %v8196
    %8362 = vmatpush.bf16.msra.mxu0 %v8194
    %8363 = vmatmul.bf16.gmra.mxu0 %v8048
    %v8364 = vpop.f32.mrf.mxu0
    %v8365 = vadd.f32 0.0, %v8364
    %v8366 = vpop.f32.mrf.mxu0
    %v8367 = vadd.f32 0.0, %v8366
    %8368 = vmatmul.bf16.gmra.mxu0 %v8050
    %v8369 = vpop.f32.mrf.mxu0
    %v8370 = vadd.f32 0.0, %v8369
    %v8371 = vpop.f32.mrf.mxu0
    %v8372 = vadd.f32 0.0, %v8371
    %8373 = vmatmul.bf16.gmra.mxu0 %v8052
    %v8374 = vpop.f32.mrf.mxu0
    %v8375 = vadd.f32 0.0, %v8374
    %v8376 = vpop.f32.mrf.mxu0
    %v8377 = vadd.f32 0.0, %v8376
    %8378 = vmatmul.bf16.gmra.mxu0 %v8054
    %v8379 = vpop.f32.mrf.mxu0
    %v8380 = vadd.f32 0.0, %v8379
    %v8381 = vpop.f32.mrf.mxu0
    %v8382 = vadd.f32 0.0, %v8381
    %8383 = vmatmul.bf16.gmra.mxu0 %v8056
    %v8384 = vpop.f32.mrf.mxu0
    %v8385 = vadd.f32 0.0, %v8384
    %v8386 = vpop.f32.mrf.mxu0
    %v8387 = vadd.f32 0.0, %v8386
    %8388 = vmatmul.bf16.gmra.mxu0 %v8058
    %v8389 = vpop.f32.mrf.mxu0
    %v8390 = vadd.f32 0.0, %v8389
    %v8391 = vpop.f32.mrf.mxu0
    %v8392 = vadd.f32 0.0, %v8391
    %8393 = vmatmul.bf16.gmra.mxu0 %v8060
    %v8394 = vpop.f32.mrf.mxu0
    %v8395 = vadd.f32 0.0, %v8394
    %v8396 = vpop.f32.mrf.mxu0
    %v8397 = vadd.f32 0.0, %v8396
    %8398 = vmatmul.bf16.gmra.mxu0 %v8062
    %v8399 = vpop.f32.mrf.mxu0
    %v8400 = vadd.f32 0.0, %v8399
    %v8401 = vpop.f32.mrf.mxu0
    %v8402 = vadd.f32 0.0, %v8401
    %8403 = vdwg.mxu0
    %8404 = vmatpush.bf16.msra.mxu0 %v8224
    %8405 = vmatpush.bf16.msra.mxu0 %v8222
    %8406 = vmatpush.bf16.msra.mxu0 %v8220
    %8407 = vmatpush.bf16.msra.mxu0 %v8218
    %8408 = vmatpush.bf16.msra.mxu0 %v8216
    %8409 = vmatpush.bf16.msra.mxu0 %v8214
    %8410 = vmatpush.bf16.msra.mxu0 %v8212
    %8411 = vmatpush.bf16.msra.mxu0 %v8210
    %8412 = vmatmul.bf16.gmra.mxu0 %v8049
    %v8413 = vpop.f32.mrf.mxu0
    %v8414 = vadd.f32 %v8365, %v8413
    %v8415 = vpop.f32.mrf.mxu0
    %v8416 = vadd.f32 %v8367, %v8415
    %8417 = vmatmul.bf16.gmra.mxu0 %v8051
    %v8418 = vpop.f32.mrf.mxu0
    %v8419 = vadd.f32 %v8370, %v8418
    %v8420 = vpop.f32.mrf.mxu0
    %v8421 = vadd.f32 %v8372, %v8420
    %8422 = vmatmul.bf16.gmra.mxu0 %v8053
    %v8423 = vpop.f32.mrf.mxu0
    %v8424 = vadd.f32 %v8375, %v8423
    %v8425 = vpop.f32.mrf.mxu0
    %v8426 = vadd.f32 %v8377, %v8425
    %8427 = vmatmul.bf16.gmra.mxu0 %v8055
    %v8428 = vpop.f32.mrf.mxu0
    %v8429 = vadd.f32 %v8380, %v8428
    %v8430 = vpop.f32.mrf.mxu0
    %v8431 = vadd.f32 %v8382, %v8430
    %8432 = vmatmul.bf16.gmra.mxu0 %v8057
    %v8433 = vpop.f32.mrf.mxu0
    %v8434 = vadd.f32 %v8385, %v8433
    %v8435 = vpop.f32.mrf.mxu0
    %v8436 = vadd.f32 %v8387, %v8435
    %8437 = vmatmul.bf16.gmra.mxu0 %v8059
    %v8438 = vpop.f32.mrf.mxu0
    %v8439 = vadd.f32 %v8390, %v8438
    %v8440 = vpop.f32.mrf.mxu0
    %v8441 = vadd.f32 %v8392, %v8440
    %8442 = vmatmul.bf16.gmra.mxu0 %v8061
    %v8443 = vpop.f32.mrf.mxu0
    %v8444 = vadd.f32 %v8395, %v8443
    %v8445 = vpop.f32.mrf.mxu0
    %v8446 = vadd.f32 %v8397, %v8445
    %8447 = vmatmul.bf16.gmra.mxu0 %v8063
    %v8448 = vpop.f32.mrf.mxu0
    %v8449 = vadd.f32 %v8400, %v8448
    %v8450 = vpop.f32.mrf.mxu0
    %v8451 = vadd.f32 %v8402, %v8450
    %8452 = vdwg.mxu0
    %v8453 = vadd.f32 %v7984, %v8316
    %v8454 = vadd.f32 %v7985, %v8414
    %v8455 = vadd.f32 %v7986, %v8318
    %v8456 = vadd.f32 %v7987, %v8416
    %v8457 = vadd.f32 %v7988, %v8321
    %v8458 = vadd.f32 %v7989, %v8419
    %v8459 = vadd.f32 %v7990, %v8323
    %v8460 = vadd.f32 %v7991, %v8421
    %v8461 = vadd.f32 %v7992, %v8326
    %v8462 = vadd.f32 %v7993, %v8424
    %v8463 = vadd.f32 %v7994, %v8328
    %v8464 = vadd.f32 %v7995, %v8426
    %v8465 = vadd.f32 %v7996, %v8331
    %v8466 = vadd.f32 %v7997, %v8429
    %v8467 = vadd.f32 %v7998, %v8333
    %v8468 = vadd.f32 %v7999, %v8431
    %v8469 = vadd.f32 %v8000, %v8336
    %v8470 = vadd.f32 %v8001, %v8434
    %v8471 = vadd.f32 %v8002, %v8338
    %v8472 = vadd.f32 %v8003, %v8436
    %v8473 = vadd.f32 %v8004, %v8341
    %v8474 = vadd.f32 %v8005, %v8439
    %v8475 = vadd.f32 %v8006, %v8343
    %v8476 = vadd.f32 %v8007, %v8441
    %v8477 = vadd.f32 %v8008, %v8346
    %v8478 = vadd.f32 %v8009, %v8444
    %v8479 = vadd.f32 %v8010, %v8348
    %v8480 = vadd.f32 %v8011, %v8446
    %v8481 = vadd.f32 %v8012, %v8351
    %v8482 = vadd.f32 %v8013, %v8449
    %v8483 = vadd.f32 %v8014, %v8353
    %v8484 = vadd.f32 %v8015, %v8451
    %v8485 = vld [vmem:[%s5941] sm:$0xfe]
    %v8486 = vld [vmem:[%s5941 + $0x8] sm:$0xfe]
    %v8487 = vld [vmem:[%s5941 + $0x10] sm:$0x1]
    %v8488 = vld [vmem:[%s5941 + $0x18] sm:$0x1]
    %v8489 = vld [vmem:[%s5941 + $0x20] sm:$0xfe]
    %v8490 = vld [vmem:[%s5941 + $0x28] sm:$0xfe]
    %v8491 = vld [vmem:[%s5941 + $0x30] sm:$0x1]
    %v8492 = vld [vmem:[%s5941 + $0x38] sm:$0x1]
    %v8493 = vld [vmem:[%s5941 + $0x40] sm:$0xfe]
    %v8494 = vld [vmem:[%s5941 + $0x48] sm:$0xfe]
    %v8495 = vld [vmem:[%s5941 + $0x50] sm:$0x1]
    %v8496 = vld [vmem:[%s5941 + $0x58] sm:$0x1]
    %v8497 = vld [vmem:[%s5941 + $0x60] sm:$0xfe]
    %v8498 = vld [vmem:[%s5941 + $0x68] sm:$0xfe]
    %v8499 = vld [vmem:[%s5941 + $0x70] sm:$0x1]
    %v8500 = vld [vmem:[%s5941 + $0x78] sm:$0x1]
    %v8501 = vld [vmem:[%s5941 + $0x80] sm:$0xfe]
    %v8502 = vld [vmem:[%s5941 + $0x88] sm:$0xfe]
    %v8503 = vld [vmem:[%s5941 + $0x90] sm:$0x1]
    %v8504 = vld [vmem:[%s5941 + $0x98] sm:$0x1]
    %v8505 = vld [vmem:[%s5941 + $0xa0] sm:$0xfe]
    %v8506 = vld [vmem:[%s5941 + $0xa8] sm:$0xfe]
    %v8507 = vld [vmem:[%s5941 + $0xb0] sm:$0x1]
    %v8508 = vld [vmem:[%s5941 + $0xb8] sm:$0x1]
    %v8509 = vld [vmem:[%s5941 + $0xc0] sm:$0xfe]
    %v8510 = vld [vmem:[%s5941 + $0xc8] sm:$0xfe]
    %v8511 = vld [vmem:[%s5941 + $0xd0] sm:$0x1]
    %v8512 = vld [vmem:[%s5941 + $0xd8] sm:$0x1]
    %v8513 = vld [vmem:[%s5941 + $0xe0] sm:$0xfe]
    %v8514 = vld [vmem:[%s5941 + $0xe8] sm:$0xfe]
    %v8515 = vld [vmem:[%s5941 + $0xf0] sm:$0x1]
    %v8516 = vld [vmem:[%s5941 + $0xf8] sm:$0x1]
    %v8517 = vld [vmem:[%s5941 + $0x140] sm:$0xfe]
    %v8518 = vld [vmem:[%s5941 + $0x148] sm:$0xfe]
    %v8519 = vld [vmem:[%s5941 + $0x150] sm:$0x1]
    %v8520 = vld [vmem:[%s5941 + $0x158] sm:$0x1]
    %v8521 = vld [vmem:[%s5941 + $0x160] sm:$0xfe]
    %v8522 = vld [vmem:[%s5941 + $0x168] sm:$0xfe]
    %v8523 = vld [vmem:[%s5941 + $0x170] sm:$0x1]
    %v8524 = vld [vmem:[%s5941 + $0x178] sm:$0x1]
    %v8525 = vld [vmem:[%s5941 + $0x180] sm:$0xfe]
    %v8526 = vld [vmem:[%s5941 + $0x188] sm:$0xfe]
    %v8527 = vld [vmem:[%s5941 + $0x190] sm:$0x1]
    %v8528 = vld [vmem:[%s5941 + $0x198] sm:$0x1]
    %v8529 = vld [vmem:[%s5941 + $0x1a0] sm:$0xfe]
    %v8530 = vld [vmem:[%s5941 + $0x1a8] sm:$0xfe]
    %v8531 = vld [vmem:[%s5941 + $0x1b0] sm:$0x1]
    %v8532 = vld [vmem:[%s5941 + $0x1b8] sm:$0x1]
    %v8533 = vld [vmem:[%s5941 + $0x1c0] sm:$0xfe]
    %v8534 = vld [vmem:[%s5941 + $0x1c8] sm:$0xfe]
    %v8535 = vld [vmem:[%s5941 + $0x1d0] sm:$0x1]
    %v8536 = vld [vmem:[%s5941 + $0x1d8] sm:$0x1]
    %v8537 = vld [vmem:[%s5941 + $0x1e0] sm:$0xfe]
    %v8538 = vld [vmem:[%s5941 + $0x1e8] sm:$0xfe]
    %v8539 = vld [vmem:[%s5941 + $0x1f0] sm:$0x1]
    %v8540 = vld [vmem:[%s5941 + $0x1f8] sm:$0x1]
    %v8541 = vld [vmem:[%s5941 + $0x200] sm:$0xfe]
    %v8542 = vld [vmem:[%s5941 + $0x208] sm:$0xfe]
    %v8543 = vld [vmem:[%s5941 + $0x210] sm:$0x1]
    %v8544 = vld [vmem:[%s5941 + $0x218] sm:$0x1]
    %v8545 = vld [vmem:[%s5941 + $0x220] sm:$0xfe]
    %v8546 = vld [vmem:[%s5941 + $0x228] sm:$0xfe]
    %v8547 = vld [vmem:[%s5941 + $0x230] sm:$0x1]
    %v8548 = vld [vmem:[%s5941 + $0x238] sm:$0x1]
    %v8613 = vrot.slane %v8485, 1
    %v8614 = vrot.slane %v8487, 1
    %v8615 = vsel %vm227, %v8613, %v8614
    %v8616 = vrot.slane %v8486, 1
    %v8617 = vrot.slane %v8488, 1
    %v8618 = vsel %vm227, %v8616, %v8617
    %v8619 = vrot.slane %v8489, 1
    %v8620 = vrot.slane %v8491, 1
    %v8621 = vsel %vm227, %v8619, %v8620
    %v8622 = vrot.slane %v8490, 1
    %v8623 = vrot.slane %v8492, 1
    %v8624 = vsel %vm227, %v8622, %v8623
    %v8625 = vrot.slane %v8493, 1
    %v8626 = vrot.slane %v8495, 1
    %v8627 = vsel %vm227, %v8625, %v8626
    %v8628 = vrot.slane %v8494, 1
    %v8629 = vrot.slane %v8496, 1
    %v8630 = vsel %vm227, %v8628, %v8629
    %v8631 = vrot.slane %v8497, 1
    %v8632 = vrot.slane %v8499, 1
    %v8633 = vsel %vm227, %v8631, %v8632
    %v8634 = vrot.slane %v8498, 1
    %v8635 = vrot.slane %v8500, 1
    %v8636 = vsel %vm227, %v8634, %v8635
    %v8637 = vrot.slane %v8501, 1
    %v8638 = vrot.slane %v8503, 1
    %v8639 = vsel %vm227, %v8637, %v8638
    %v8640 = vrot.slane %v8502, 1
    %v8641 = vrot.slane %v8504, 1
    %v8642 = vsel %vm227, %v8640, %v8641
    %v8643 = vrot.slane %v8505, 1
    %v8644 = vrot.slane %v8507, 1
    %v8645 = vsel %vm227, %v8643, %v8644
    %v8646 = vrot.slane %v8506, 1
    %v8647 = vrot.slane %v8508, 1
    %v8648 = vsel %vm227, %v8646, %v8647
    %v8649 = vrot.slane %v8509, 1
    %v8650 = vrot.slane %v8511, 1
    %v8651 = vsel %vm227, %v8649, %v8650
    %v8652 = vrot.slane %v8510, 1
    %v8653 = vrot.slane %v8512, 1
    %v8654 = vsel %vm227, %v8652, %v8653
    %v8655 = vrot.slane %v8513, 1
    %v8656 = vrot.slane %v8515, 1
    %v8657 = vsel %vm227, %v8655, %v8656
    %v8658 = vrot.slane %v8514, 1
    %v8659 = vrot.slane %v8516, 1
    %v8660 = vsel %vm227, %v8658, %v8659
    %v8661 = vrot.slane %v8517, 1
    %v8662 = vrot.slane %v8519, 1
    %v8663 = vsel %vm227, %v8661, %v8662
    %v8664 = vrot.slane %v8518, 1
    %v8665 = vrot.slane %v8520, 1
    %v8666 = vsel %vm227, %v8664, %v8665
    %v8667 = vrot.slane %v8521, 1
    %v8668 = vrot.slane %v8523, 1
    %v8669 = vsel %vm227, %v8667, %v8668
    %v8670 = vrot.slane %v8522, 1
    %v8671 = vrot.slane %v8524, 1
    %v8672 = vsel %vm227, %v8670, %v8671
    %v8673 = vrot.slane %v8525, 1
    %v8674 = vrot.slane %v8527, 1
    %v8675 = vsel %vm227, %v8673, %v8674
    %v8676 = vrot.slane %v8526, 1
    %v8677 = vrot.slane %v8528, 1
    %v8678 = vsel %vm227, %v8676, %v8677
    %v8679 = vrot.slane %v8529, 1
    %v8680 = vrot.slane %v8531, 1
    %v8681 = vsel %vm227, %v8679, %v8680
    %v8682 = vrot.slane %v8530, 1
    %v8683 = vrot.slane %v8532, 1
    %v8684 = vsel %vm227, %v8682, %v8683
    %v8685 = vrot.slane %v8533, 1
    %v8686 = vrot.slane %v8535, 1
    %v8687 = vsel %vm227, %v8685, %v8686
    %v8688 = vrot.slane %v8534, 1
    %v8689 = vrot.slane %v8536, 1
    %v8690 = vsel %vm227, %v8688, %v8689
    %v8691 = vrot.slane %v8537, 1
    %v8692 = vrot.slane %v8539, 1
    %v8693 = vsel %vm227, %v8691, %v8692
    %v8694 = vrot.slane %v8538, 1
    %v8695 = vrot.slane %v8540, 1
    %v8696 = vsel %vm227, %v8694, %v8695
    %v8697 = vrot.slane %v8541, 1
    %v8698 = vrot.slane %v8543, 1
    %v8699 = vsel %vm227, %v8697, %v8698
    %v8700 = vrot.slane %v8542, 1
    %v8701 = vrot.slane %v8544, 1
    %v8702 = vsel %vm227, %v8700, %v8701
    %v8703 = vrot.slane %v8545, 1
    %v8704 = vrot.slane %v8547, 1
    %v8705 = vsel %vm227, %v8703, %v8704
    %v8706 = vrot.slane %v8546, 1
    %v8707 = vrot.slane %v8548, 1
    %v8708 = vsel %vm227, %v8706, %v8707
    %v8741 = vpack.c.bf16 %v8621, %v8615
    %v8742 = vpack.c.bf16 %v8624, %v8618
    %v8743 = vpack.c.bf16 %v8633, %v8627
    %v8744 = vpack.c.bf16 %v8636, %v8630
    %v8745 = vpack.c.bf16 %v8645, %v8639
    %v8746 = vpack.c.bf16 %v8648, %v8642
    %v8747 = vpack.c.bf16 %v8657, %v8651
    %v8748 = vpack.c.bf16 %v8660, %v8654
    %v8749 = vpack.c.bf16 %v8669, %v8663
    %v8750 = vpack.c.bf16 %v8672, %v8666
    %v8751 = vpack.c.bf16 %v8681, %v8675
    %v8752 = vpack.c.bf16 %v8684, %v8678
    %v8753 = vpack.c.bf16 %v8693, %v8687
    %v8754 = vpack.c.bf16 %v8696, %v8690
    %v8755 = vpack.c.bf16 %v8705, %v8699
    %v8756 = vpack.c.bf16 %v8708, %v8702
    %s8757 = scalar_lea.vmem %s2, 1024
    %v8758 = vld [vmem:[%s8757] sm:$0xff]
    %v8759 = vld [vmem:[%s8757 + $0x8] sm:$0xff]
    %v8760 = vld [vmem:[%s8757 + $0x10] sm:$0xff]
    %v8761 = vld [vmem:[%s8757 + $0x18] sm:$0xff]
    %v8762 = vld [vmem:[%s8757 + $0x20] sm:$0xff]
    %v8763 = vld [vmem:[%s8757 + $0x28] sm:$0xff]
    %v8764 = vld [vmem:[%s8757 + $0x30] sm:$0xff]
    %v8765 = vld [vmem:[%s8757 + $0x38] sm:$0xff]
    %v8766 = vld [vmem:[%s8757 + $0x40] sm:$0xff]
    %v8767 = vld [vmem:[%s8757 + $0x48] sm:$0xff]
    %v8768 = vld [vmem:[%s8757 + $0x50] sm:$0xff]
    %v8769 = vld [vmem:[%s8757 + $0x58] sm:$0xff]
    %v8770 = vld [vmem:[%s8757 + $0x60] sm:$0xff]
    %v8771 = vld [vmem:[%s8757 + $0x68] sm:$0xff]
    %v8772 = vld [vmem:[%s8757 + $0x70] sm:$0xff]
    %v8773 = vld [vmem:[%s8757 + $0x78] sm:$0xff]
    %v8774 = vld [vmem:[%s8757 + $0x80] sm:$0xff]
    %v8775 = vld [vmem:[%s8757 + $0x88] sm:$0xff]
    %v8776 = vld [vmem:[%s8757 + $0x90] sm:$0xff]
    %v8777 = vld [vmem:[%s8757 + $0x98] sm:$0xff]
    %v8778 = vld [vmem:[%s8757 + $0xa0] sm:$0xff]
    %v8779 = vld [vmem:[%s8757 + $0xa8] sm:$0xff]
    %v8780 = vld [vmem:[%s8757 + $0xb0] sm:$0xff]
    %v8781 = vld [vmem:[%s8757 + $0xb8] sm:$0xff]
    %v8782 = vld [vmem:[%s8757 + $0xc0] sm:$0xff]
    %v8783 = vld [vmem:[%s8757 + $0xc8] sm:$0xff]
    %v8784 = vld [vmem:[%s8757 + $0xd0] sm:$0xff]
    %v8785 = vld [vmem:[%s8757 + $0xd8] sm:$0xff]
    %v8786 = vld [vmem:[%s8757 + $0xe0] sm:$0xff]
    %v8787 = vld [vmem:[%s8757 + $0xe8] sm:$0xff]
    %v8788 = vld [vmem:[%s8757 + $0xf0] sm:$0xff]
    %v8789 = vld [vmem:[%s8757 + $0xf8] sm:$0xff]
    %v8822 = vunpack.c.l.b16 %v8758
    %v8823 = vunpack.c.h.b16 %v8758
    %v8824 = vunpack.c.l.b16 %v8759
    %v8825 = vunpack.c.h.b16 %v8759
    %v8826 = vunpack.c.l.b16 %v8760
    %v8827 = vunpack.c.h.b16 %v8760
    %v8828 = vunpack.c.l.b16 %v8761
    %v8829 = vunpack.c.h.b16 %v8761
    %v8830 = vunpack.c.l.b16 %v8762
    %v8831 = vunpack.c.h.b16 %v8762
    %v8832 = vunpack.c.l.b16 %v8763
    %v8833 = vunpack.c.h.b16 %v8763
    %v8834 = vunpack.c.l.b16 %v8764
    %v8835 = vunpack.c.h.b16 %v8764
    %v8836 = vunpack.c.l.b16 %v8765
    %v8837 = vunpack.c.h.b16 %v8765
    %v8838 = vunpack.c.l.b16 %v8766
    %v8839 = vunpack.c.h.b16 %v8766
    %v8840 = vunpack.c.l.b16 %v8767
    %v8841 = vunpack.c.h.b16 %v8767
    %v8842 = vunpack.c.l.b16 %v8768
    %v8843 = vunpack.c.h.b16 %v8768
    %v8844 = vunpack.c.l.b16 %v8769
    %v8845 = vunpack.c.h.b16 %v8769
    %v8846 = vunpack.c.l.b16 %v8770
    %v8847 = vunpack.c.h.b16 %v8770
    %v8848 = vunpack.c.l.b16 %v8771
    %v8849 = vunpack.c.h.b16 %v8771
    %v8850 = vunpack.c.l.b16 %v8772
    %v8851 = vunpack.c.h.b16 %v8772
    %v8852 = vunpack.c.l.b16 %v8773
    %v8853 = vunpack.c.h.b16 %v8773
    %v8854 = vunpack.c.l.b16 %v8774
    %v8855 = vunpack.c.h.b16 %v8774
    %v8856 = vunpack.c.l.b16 %v8775
    %v8857 = vunpack.c.h.b16 %v8775
    %v8858 = vunpack.c.l.b16 %v8776
    %v8859 = vunpack.c.h.b16 %v8776
    %v8860 = vunpack.c.l.b16 %v8777
    %v8861 = vunpack.c.h.b16 %v8777
    %v8862 = vunpack.c.l.b16 %v8778
    %v8863 = vunpack.c.h.b16 %v8778
    %v8864 = vunpack.c.l.b16 %v8779
    %v8865 = vunpack.c.h.b16 %v8779
    %v8866 = vunpack.c.l.b16 %v8780
    %v8867 = vunpack.c.h.b16 %v8780
    %v8868 = vunpack.c.l.b16 %v8781
    %v8869 = vunpack.c.h.b16 %v8781
    %v8870 = vunpack.c.l.b16 %v8782
    %v8871 = vunpack.c.h.b16 %v8782
    %v8872 = vunpack.c.l.b16 %v8783
    %v8873 = vunpack.c.h.b16 %v8783
    %v8874 = vunpack.c.l.b16 %v8784
    %v8875 = vunpack.c.h.b16 %v8784
    %v8876 = vunpack.c.l.b16 %v8785
    %v8877 = vunpack.c.h.b16 %v8785
    %v8878 = vunpack.c.l.b16 %v8786
    %v8879 = vunpack.c.h.b16 %v8786
    %v8880 = vunpack.c.l.b16 %v8787
    %v8881 = vunpack.c.h.b16 %v8787
    %v8882 = vunpack.c.l.b16 %v8788
    %v8883 = vunpack.c.h.b16 %v8788
    %v8884 = vunpack.c.l.b16 %v8789
    %v8885 = vunpack.c.h.b16 %v8789
    %v8886 = vpack.c.b16 %v8824, %v8822
    %v8887 = vpack.c.b16 %v8825, %v8823
    %v8888 = vpack.c.b16 %v8828, %v8826
    %v8889 = vpack.c.b16 %v8829, %v8827
    %v8890 = vpack.c.b16 %v8832, %v8830
    %v8891 = vpack.c.b16 %v8833, %v8831
    %v8892 = vpack.c.b16 %v8836, %v8834
    %v8893 = vpack.c.b16 %v8837, %v8835
    %v8894 = vpack.c.b16 %v8840, %v8838
    %v8895 = vpack.c.b16 %v8841, %v8839
    %v8896 = vpack.c.b16 %v8844, %v8842
    %v8897 = vpack.c.b16 %v8845, %v8843
    %v8898 = vpack.c.b16 %v8848, %v8846
    %v8899 = vpack.c.b16 %v8849, %v8847
    %v8900 = vpack.c.b16 %v8852, %v8850
    %v8901 = vpack.c.b16 %v8853, %v8851
    %v8902 = vpack.c.b16 %v8856, %v8854
    %v8903 = vpack.c.b16 %v8857, %v8855
    %v8904 = vpack.c.b16 %v8860, %v8858
    %v8905 = vpack.c.b16 %v8861, %v8859
    %v8906 = vpack.c.b16 %v8864, %v8862
    %v8907 = vpack.c.b16 %v8865, %v8863
    %v8908 = vpack.c.b16 %v8868, %v8866
    %v8909 = vpack.c.b16 %v8869, %v8867
    %v8910 = vpack.c.b16 %v8872, %v8870
    %v8911 = vpack.c.b16 %v8873, %v8871
    %v8912 = vpack.c.b16 %v8876, %v8874
    %v8913 = vpack.c.b16 %v8877, %v8875
    %v8914 = vpack.c.b16 %v8880, %v8878
    %v8915 = vpack.c.b16 %v8881, %v8879
    %v8916 = vpack.c.b16 %v8884, %v8882
    %v8917 = vpack.c.b16 %v8885, %v8883
    %8950 = vmatpush.bf16.msra.mxu0 %v8900
    %8951 = vmatpush.bf16.msra.mxu0 %v8898
    %8952 = vmatpush.bf16.msra.mxu0 %v8896
    %8953 = vmatpush.bf16.msra.mxu0 %v8894
    %8954 = vmatpush.bf16.msra.mxu0 %v8892
    %8955 = vmatpush.bf16.msra.mxu0 %v8890
    %8956 = vmatpush.bf16.msra.mxu0 %v8888
    %8957 = vmatpush.bf16.msra.mxu0 %v8886
    %8958 = vmatmul.bf16.gmra.mxu0 %v8741
    %v8959 = vpop.f32.mrf.mxu0
    %v8960 = vadd.f32 0.0, %v8959
    %v8961 = vpop.f32.mrf.mxu0
    %v8962 = vadd.f32 0.0, %v8961
    %8963 = vmatmul.bf16.gmra.mxu0 %v8743
    %v8964 = vpop.f32.mrf.mxu0
    %v8965 = vadd.f32 0.0, %v8964
    %v8966 = vpop.f32.mrf.mxu0
    %v8967 = vadd.f32 0.0, %v8966
    %8968 = vmatmul.bf16.gmra.mxu0 %v8745
    %v8969 = vpop.f32.mrf.mxu0
    %v8970 = vadd.f32 0.0, %v8969
    %v8971 = vpop.f32.mrf.mxu0
    %v8972 = vadd.f32 0.0, %v8971
    %8973 = vmatmul.bf16.gmra.mxu0 %v8747
    %v8974 = vpop.f32.mrf.mxu0
    %v8975 = vadd.f32 0.0, %v8974
    %v8976 = vpop.f32.mrf.mxu0
    %v8977 = vadd.f32 0.0, %v8976
    %8978 = vmatmul.bf16.gmra.mxu0 %v8749
    %v8979 = vpop.f32.mrf.mxu0
    %v8980 = vadd.f32 0.0, %v8979
    %v8981 = vpop.f32.mrf.mxu0
    %v8982 = vadd.f32 0.0, %v8981
    %8983 = vmatmul.bf16.gmra.mxu0 %v8751
    %v8984 = vpop.f32.mrf.mxu0
    %v8985 = vadd.f32 0.0, %v8984
    %v8986 = vpop.f32.mrf.mxu0
    %v8987 = vadd.f32 0.0, %v8986
    %8988 = vmatmul.bf16.gmra.mxu0 %v8753
    %v8989 = vpop.f32.mrf.mxu0
    %v8990 = vadd.f32 0.0, %v8989
    %v8991 = vpop.f32.mrf.mxu0
    %v8992 = vadd.f32 0.0, %v8991
    %8993 = vmatmul.bf16.gmra.mxu0 %v8755
    %v8994 = vpop.f32.mrf.mxu0
    %v8995 = vadd.f32 0.0, %v8994
    %v8996 = vpop.f32.mrf.mxu0
    %v8997 = vadd.f32 0.0, %v8996
    %8998 = vdwg.mxu0
    %8999 = vmatpush.bf16.msra.mxu0 %v8916
    %9000 = vmatpush.bf16.msra.mxu0 %v8914
    %9001 = vmatpush.bf16.msra.mxu0 %v8912
    %9002 = vmatpush.bf16.msra.mxu0 %v8910
    %9003 = vmatpush.bf16.msra.mxu0 %v8908
    %9004 = vmatpush.bf16.msra.mxu0 %v8906
    %9005 = vmatpush.bf16.msra.mxu0 %v8904
    %9006 = vmatpush.bf16.msra.mxu0 %v8902
    %9007 = vmatmul.bf16.gmra.mxu0 %v8742
    %v9008 = vpop.f32.mrf.mxu0
    %v9009 = vadd.f32 %v8960, %v9008
    %v9010 = vpop.f32.mrf.mxu0
    %v9011 = vadd.f32 %v8962, %v9010
    %9012 = vmatmul.bf16.gmra.mxu0 %v8744
    %v9013 = vpop.f32.mrf.mxu0
    %v9014 = vadd.f32 %v8965, %v9013
    %v9015 = vpop.f32.mrf.mxu0
    %v9016 = vadd.f32 %v8967, %v9015
    %9017 = vmatmul.bf16.gmra.mxu0 %v8746
    %v9018 = vpop.f32.mrf.mxu0
    %v9019 = vadd.f32 %v8970, %v9018
    %v9020 = vpop.f32.mrf.mxu0
    %v9021 = vadd.f32 %v8972, %v9020
    %9022 = vmatmul.bf16.gmra.mxu0 %v8748
    %v9023 = vpop.f32.mrf.mxu0
    %v9024 = vadd.f32 %v8975, %v9023
    %v9025 = vpop.f32.mrf.mxu0
    %v9026 = vadd.f32 %v8977, %v9025
    %9027 = vmatmul.bf16.gmra.mxu0 %v8750
    %v9028 = vpop.f32.mrf.mxu0
    %v9029 = vadd.f32 %v8980, %v9028
    %v9030 = vpop.f32.mrf.mxu0
    %v9031 = vadd.f32 %v8982, %v9030
    %9032 = vmatmul.bf16.gmra.mxu0 %v8752
    %v9033 = vpop.f32.mrf.mxu0
    %v9034 = vadd.f32 %v8985, %v9033
    %v9035 = vpop.f32.mrf.mxu0
    %v9036 = vadd.f32 %v8987, %v9035
    %9037 = vmatmul.bf16.gmra.mxu0 %v8754
    %v9038 = vpop.f32.mrf.mxu0
    %v9039 = vadd.f32 %v8990, %v9038
    %v9040 = vpop.f32.mrf.mxu0
    %v9041 = vadd.f32 %v8992, %v9040
    %9042 = vmatmul.bf16.gmra.mxu0 %v8756
    %v9043 = vpop.f32.mrf.mxu0
    %v9044 = vadd.f32 %v8995, %v9043
    %v9045 = vpop.f32.mrf.mxu0
    %v9046 = vadd.f32 %v8997, %v9045
    %9047 = vdwg.mxu0
    %9048 = vmatpush.bf16.msra.mxu0 %v8901
    %9049 = vmatpush.bf16.msra.mxu0 %v8899
    %9050 = vmatpush.bf16.msra.mxu0 %v8897
    %9051 = vmatpush.bf16.msra.mxu0 %v8895
    %9052 = vmatpush.bf16.msra.mxu0 %v8893
    %9053 = vmatpush.bf16.msra.mxu0 %v8891
    %9054 = vmatpush.bf16.msra.mxu0 %v8889
    %9055 = vmatpush.bf16.msra.mxu0 %v8887
    %9056 = vmatmul.bf16.gmra.mxu0 %v8741
    %v9057 = vpop.f32.mrf.mxu0
    %v9058 = vadd.f32 0.0, %v9057
    %v9059 = vpop.f32.mrf.mxu0
    %v9060 = vadd.f32 0.0, %v9059
    %9061 = vmatmul.bf16.gmra.mxu0 %v8743
    %v9062 = vpop.f32.mrf.mxu0
    %v9063 = vadd.f32 0.0, %v9062
    %v9064 = vpop.f32.mrf.mxu0
    %v9065 = vadd.f32 0.0, %v9064
    %9066 = vmatmul.bf16.gmra.mxu0 %v8745
    %v9067 = vpop.f32.mrf.mxu0
    %v9068 = vadd.f32 0.0, %v9067
    %v9069 = vpop.f32.mrf.mxu0
    %v9070 = vadd.f32 0.0, %v9069
    %9071 = vmatmul.bf16.gmra.mxu0 %v8747
    %v9072 = vpop.f32.mrf.mxu0
    %v9073 = vadd.f32 0.0, %v9072
    %v9074 = vpop.f32.mrf.mxu0
    %v9075 = vadd.f32 0.0, %v9074
    %9076 = vmatmul.bf16.gmra.mxu0 %v8749
    %v9077 = vpop.f32.mrf.mxu0
    %v9078 = vadd.f32 0.0, %v9077
    %v9079 = vpop.f32.mrf.mxu0
    %v9080 = vadd.f32 0.0, %v9079
    %9081 = vmatmul.bf16.gmra.mxu0 %v8751
    %v9082 = vpop.f32.mrf.mxu0
    %v9083 = vadd.f32 0.0, %v9082
    %v9084 = vpop.f32.mrf.mxu0
    %v9085 = vadd.f32 0.0, %v9084
    %9086 = vmatmul.bf16.gmra.mxu0 %v8753
    %v9087 = vpop.f32.mrf.mxu0
    %v9088 = vadd.f32 0.0, %v9087
    %v9089 = vpop.f32.mrf.mxu0
    %v9090 = vadd.f32 0.0, %v9089
    %9091 = vmatmul.bf16.gmra.mxu0 %v8755
    %v9092 = vpop.f32.mrf.mxu0
    %v9093 = vadd.f32 0.0, %v9092
    %v9094 = vpop.f32.mrf.mxu0
    %v9095 = vadd.f32 0.0, %v9094
    %9096 = vdwg.mxu0
    %9097 = vmatpush.bf16.msra.mxu0 %v8917
    %9098 = vmatpush.bf16.msra.mxu0 %v8915
    %9099 = vmatpush.bf16.msra.mxu0 %v8913
    %9100 = vmatpush.bf16.msra.mxu0 %v8911
    %9101 = vmatpush.bf16.msra.mxu0 %v8909
    %9102 = vmatpush.bf16.msra.mxu0 %v8907
    %9103 = vmatpush.bf16.msra.mxu0 %v8905
    %9104 = vmatpush.bf16.msra.mxu0 %v8903
    %9105 = vmatmul.bf16.gmra.mxu0 %v8742
    %v9106 = vpop.f32.mrf.mxu0
    %v9107 = vadd.f32 %v9058, %v9106
    %v9108 = vpop.f32.mrf.mxu0
    %v9109 = vadd.f32 %v9060, %v9108
    %9110 = vmatmul.bf16.gmra.mxu0 %v8744
    %v9111 = vpop.f32.mrf.mxu0
    %v9112 = vadd.f32 %v9063, %v9111
    %v9113 = vpop.f32.mrf.mxu0
    %v9114 = vadd.f32 %v9065, %v9113
    %9115 = vmatmul.bf16.gmra.mxu0 %v8746
    %v9116 = vpop.f32.mrf.mxu0
    %v9117 = vadd.f32 %v9068, %v9116
    %v9118 = vpop.f32.mrf.mxu0
    %v9119 = vadd.f32 %v9070, %v9118
    %9120 = vmatmul.bf16.gmra.mxu0 %v8748
    %v9121 = vpop.f32.mrf.mxu0
    %v9122 = vadd.f32 %v9073, %v9121
    %v9123 = vpop.f32.mrf.mxu0
    %v9124 = vadd.f32 %v9075, %v9123
    %9125 = vmatmul.bf16.gmra.mxu0 %v8750
    %v9126 = vpop.f32.mrf.mxu0
    %v9127 = vadd.f32 %v9078, %v9126
    %v9128 = vpop.f32.mrf.mxu0
    %v9129 = vadd.f32 %v9080, %v9128
    %9130 = vmatmul.bf16.gmra.mxu0 %v8752
    %v9131 = vpop.f32.mrf.mxu0
    %v9132 = vadd.f32 %v9083, %v9131
    %v9133 = vpop.f32.mrf.mxu0
    %v9134 = vadd.f32 %v9085, %v9133
    %9135 = vmatmul.bf16.gmra.mxu0 %v8754
    %v9136 = vpop.f32.mrf.mxu0
    %v9137 = vadd.f32 %v9088, %v9136
    %v9138 = vpop.f32.mrf.mxu0
    %v9139 = vadd.f32 %v9090, %v9138
    %9140 = vmatmul.bf16.gmra.mxu0 %v8756
    %v9141 = vpop.f32.mrf.mxu0
    %v9142 = vadd.f32 %v9093, %v9141
    %v9143 = vpop.f32.mrf.mxu0
    %v9144 = vadd.f32 %v9095, %v9143
    %9145 = vdwg.mxu0
    %v9146 = vadd.f32 %v8453, %v9009
    %v9147 = vadd.f32 %v8454, %v9107
    %v9148 = vadd.f32 %v8455, %v9011
    %v9149 = vadd.f32 %v8456, %v9109
    %v9150 = vadd.f32 %v8457, %v9014
    %v9151 = vadd.f32 %v8458, %v9112
    %v9152 = vadd.f32 %v8459, %v9016
    %v9153 = vadd.f32 %v8460, %v9114
    %v9154 = vadd.f32 %v8461, %v9019
    %v9155 = vadd.f32 %v8462, %v9117
    %v9156 = vadd.f32 %v8463, %v9021
    %v9157 = vadd.f32 %v8464, %v9119
    %v9158 = vadd.f32 %v8465, %v9024
    %v9159 = vadd.f32 %v8466, %v9122
    %v9160 = vadd.f32 %v8467, %v9026
    %v9161 = vadd.f32 %v8468, %v9124
    %v9162 = vadd.f32 %v8469, %v9029
    %v9163 = vadd.f32 %v8470, %v9127
    %v9164 = vadd.f32 %v8471, %v9031
    %v9165 = vadd.f32 %v8472, %v9129
    %v9166 = vadd.f32 %v8473, %v9034
    %v9167 = vadd.f32 %v8474, %v9132
    %v9168 = vadd.f32 %v8475, %v9036
    %v9169 = vadd.f32 %v8476, %v9134
    %v9170 = vadd.f32 %v8477, %v9039
    %v9171 = vadd.f32 %v8478, %v9137
    %v9172 = vadd.f32 %v8479, %v9041
    %v9173 = vadd.f32 %v8480, %v9139
    %v9174 = vadd.f32 %v8481, %v9044
    %v9175 = vadd.f32 %v8482, %v9142
    %v9176 = vadd.f32 %v8483, %v9046
    %v9177 = vadd.f32 %v8484, %v9144
    %v9178 = vld [vmem:[%s5941] sm:$0xfc]
    %v9179 = vld [vmem:[%s5941 + $0x8] sm:$0xfc]
    %v9180 = vld [vmem:[%s5941 + $0x10] sm:$0x3]
    %v9181 = vld [vmem:[%s5941 + $0x18] sm:$0x3]
    %v9182 = vld [vmem:[%s5941 + $0x20] sm:$0xfc]
    %v9183 = vld [vmem:[%s5941 + $0x28] sm:$0xfc]
    %v9184 = vld [vmem:[%s5941 + $0x30] sm:$0x3]
    %v9185 = vld [vmem:[%s5941 + $0x38] sm:$0x3]
    %v9186 = vld [vmem:[%s5941 + $0x40] sm:$0xfc]
    %v9187 = vld [vmem:[%s5941 + $0x48] sm:$0xfc]
    %v9188 = vld [vmem:[%s5941 + $0x50] sm:$0x3]
    %v9189 = vld [vmem:[%s5941 + $0x58] sm:$0x3]
    %v9190 = vld [vmem:[%s5941 + $0x60] sm:$0xfc]
    %v9191 = vld [vmem:[%s5941 + $0x68] sm:$0xfc]
    %v9192 = vld [vmem:[%s5941 + $0x70] sm:$0x3]
    %v9193 = vld [vmem:[%s5941 + $0x78] sm:$0x3]
    %v9194 = vld [vmem:[%s5941 + $0x80] sm:$0xfc]
    %v9195 = vld [vmem:[%s5941 + $0x88] sm:$0xfc]
    %v9196 = vld [vmem:[%s5941 + $0x90] sm:$0x3]
    %v9197 = vld [vmem:[%s5941 + $0x98] sm:$0x3]
    %v9198 = vld [vmem:[%s5941 + $0xa0] sm:$0xfc]
    %v9199 = vld [vmem:[%s5941 + $0xa8] sm:$0xfc]
    %v9200 = vld [vmem:[%s5941 + $0xb0] sm:$0x3]
    %v9201 = vld [vmem:[%s5941 + $0xb8] sm:$0x3]
    %v9202 = vld [vmem:[%s5941 + $0xc0] sm:$0xfc]
    %v9203 = vld [vmem:[%s5941 + $0xc8] sm:$0xfc]
    %v9204 = vld [vmem:[%s5941 + $0xd0] sm:$0x3]
    %v9205 = vld [vmem:[%s5941 + $0xd8] sm:$0x3]
    %v9206 = vld [vmem:[%s5941 + $0xe0] sm:$0xfc]
    %v9207 = vld [vmem:[%s5941 + $0xe8] sm:$0xfc]
    %v9208 = vld [vmem:[%s5941 + $0xf0] sm:$0x3]
    %v9209 = vld [vmem:[%s5941 + $0xf8] sm:$0x3]
    %v9210 = vld [vmem:[%s5941 + $0x140] sm:$0xfc]
    %v9211 = vld [vmem:[%s5941 + $0x148] sm:$0xfc]
    %v9212 = vld [vmem:[%s5941 + $0x150] sm:$0x3]
    %v9213 = vld [vmem:[%s5941 + $0x158] sm:$0x3]
    %v9214 = vld [vmem:[%s5941 + $0x160] sm:$0xfc]
    %v9215 = vld [vmem:[%s5941 + $0x168] sm:$0xfc]
    %v9216 = vld [vmem:[%s5941 + $0x170] sm:$0x3]
    %v9217 = vld [vmem:[%s5941 + $0x178] sm:$0x3]
    %v9218 = vld [vmem:[%s5941 + $0x180] sm:$0xfc]
    %v9219 = vld [vmem:[%s5941 + $0x188] sm:$0xfc]
    %v9220 = vld [vmem:[%s5941 + $0x190] sm:$0x3]
    %v9221 = vld [vmem:[%s5941 + $0x198] sm:$0x3]
    %v9222 = vld [vmem:[%s5941 + $0x1a0] sm:$0xfc]
    %v9223 = vld [vmem:[%s5941 + $0x1a8] sm:$0xfc]
    %v9224 = vld [vmem:[%s5941 + $0x1b0] sm:$0x3]
    %v9225 = vld [vmem:[%s5941 + $0x1b8] sm:$0x3]
    %v9226 = vld [vmem:[%s5941 + $0x1c0] sm:$0xfc]
    %v9227 = vld [vmem:[%s5941 + $0x1c8] sm:$0xfc]
    %v9228 = vld [vmem:[%s5941 + $0x1d0] sm:$0x3]
    %v9229 = vld [vmem:[%s5941 + $0x1d8] sm:$0x3]
    %v9230 = vld [vmem:[%s5941 + $0x1e0] sm:$0xfc]
    %v9231 = vld [vmem:[%s5941 + $0x1e8] sm:$0xfc]
    %v9232 = vld [vmem:[%s5941 + $0x1f0] sm:$0x3]
    %v9233 = vld [vmem:[%s5941 + $0x1f8] sm:$0x3]
    %v9234 = vld [vmem:[%s5941 + $0x200] sm:$0xfc]
    %v9235 = vld [vmem:[%s5941 + $0x208] sm:$0xfc]
    %v9236 = vld [vmem:[%s5941 + $0x210] sm:$0x3]
    %v9237 = vld [vmem:[%s5941 + $0x218] sm:$0x3]
    %v9238 = vld [vmem:[%s5941 + $0x220] sm:$0xfc]
    %v9239 = vld [vmem:[%s5941 + $0x228] sm:$0xfc]
    %v9240 = vld [vmem:[%s5941 + $0x230] sm:$0x3]
    %v9241 = vld [vmem:[%s5941 + $0x238] sm:$0x3]
    %v9306 = vrot.slane %v9178, 2
    %v9307 = vrot.slane %v9180, 2
    %v9308 = vsel %vm1245, %v9306, %v9307
    %v9309 = vrot.slane %v9179, 2
    %v9310 = vrot.slane %v9181, 2
    %v9311 = vsel %vm1245, %v9309, %v9310
    %v9312 = vrot.slane %v9182, 2
    %v9313 = vrot.slane %v9184, 2
    %v9314 = vsel %vm1245, %v9312, %v9313
    %v9315 = vrot.slane %v9183, 2
    %v9316 = vrot.slane %v9185, 2
    %v9317 = vsel %vm1245, %v9315, %v9316
    %v9318 = vrot.slane %v9186, 2
    %v9319 = vrot.slane %v9188, 2
    %v9320 = vsel %vm1245, %v9318, %v9319
    %v9321 = vrot.slane %v9187, 2
    %v9322 = vrot.slane %v9189, 2
    %v9323 = vsel %vm1245, %v9321, %v9322
    %v9324 = vrot.slane %v9190, 2
    %v9325 = vrot.slane %v9192, 2
    %v9326 = vsel %vm1245, %v9324, %v9325
    %v9327 = vrot.slane %v9191, 2
    %v9328 = vrot.slane %v9193, 2
    %v9329 = vsel %vm1245, %v9327, %v9328
    %v9330 = vrot.slane %v9194, 2
    %v9331 = vrot.slane %v9196, 2
    %v9332 = vsel %vm1245, %v9330, %v9331
    %v9333 = vrot.slane %v9195, 2
    %v9334 = vrot.slane %v9197, 2
    %v9335 = vsel %vm1245, %v9333, %v9334
    %v9336 = vrot.slane %v9198, 2
    %v9337 = vrot.slane %v9200, 2
    %v9338 = vsel %vm1245, %v9336, %v9337
    %v9339 = vrot.slane %v9199, 2
    %v9340 = vrot.slane %v9201, 2
    %v9341 = vsel %vm1245, %v9339, %v9340
    %v9342 = vrot.slane %v9202, 2
    %v9343 = vrot.slane %v9204, 2
    %v9344 = vsel %vm1245, %v9342, %v9343
    %v9345 = vrot.slane %v9203, 2
    %v9346 = vrot.slane %v9205, 2
    %v9347 = vsel %vm1245, %v9345, %v9346
    %v9348 = vrot.slane %v9206, 2
    %v9349 = vrot.slane %v9208, 2
    %v9350 = vsel %vm1245, %v9348, %v9349
    %v9351 = vrot.slane %v9207, 2
    %v9352 = vrot.slane %v9209, 2
    %v9353 = vsel %vm1245, %v9351, %v9352
    %v9354 = vrot.slane %v9210, 2
    %v9355 = vrot.slane %v9212, 2
    %v9356 = vsel %vm1245, %v9354, %v9355
    %v9357 = vrot.slane %v9211, 2
    %v9358 = vrot.slane %v9213, 2
    %v9359 = vsel %vm1245, %v9357, %v9358
    %v9360 = vrot.slane %v9214, 2
    %v9361 = vrot.slane %v9216, 2
    %v9362 = vsel %vm1245, %v9360, %v9361
    %v9363 = vrot.slane %v9215, 2
    %v9364 = vrot.slane %v9217, 2
    %v9365 = vsel %vm1245, %v9363, %v9364
    %v9366 = vrot.slane %v9218, 2
    %v9367 = vrot.slane %v9220, 2
    %v9368 = vsel %vm1245, %v9366, %v9367
    %v9369 = vrot.slane %v9219, 2
    %v9370 = vrot.slane %v9221, 2
    %v9371 = vsel %vm1245, %v9369, %v9370
    %v9372 = vrot.slane %v9222, 2
    %v9373 = vrot.slane %v9224, 2
    %v9374 = vsel %vm1245, %v9372, %v9373
    %v9375 = vrot.slane %v9223, 2
    %v9376 = vrot.slane %v9225, 2
    %v9377 = vsel %vm1245, %v9375, %v9376
    %v9378 = vrot.slane %v9226, 2
    %v9379 = vrot.slane %v9228, 2
    %v9380 = vsel %vm1245, %v9378, %v9379
    %v9381 = vrot.slane %v9227, 2
    %v9382 = vrot.slane %v9229, 2
    %v9383 = vsel %vm1245, %v9381, %v9382
    %v9384 = vrot.slane %v9230, 2
    %v9385 = vrot.slane %v9232, 2
    %v9386 = vsel %vm1245, %v9384, %v9385
    %v9387 = vrot.slane %v9231, 2
    %v9388 = vrot.slane %v9233, 2
    %v9389 = vsel %vm1245, %v9387, %v9388
    %v9390 = vrot.slane %v9234, 2
    %v9391 = vrot.slane %v9236, 2
    %v9392 = vsel %vm1245, %v9390, %v9391
    %v9393 = vrot.slane %v9235, 2
    %v9394 = vrot.slane %v9237, 2
    %v9395 = vsel %vm1245, %v9393, %v9394
    %v9396 = vrot.slane %v9238, 2
    %v9397 = vrot.slane %v9240, 2
    %v9398 = vsel %vm1245, %v9396, %v9397
    %v9399 = vrot.slane %v9239, 2
    %v9400 = vrot.slane %v9241, 2
    %v9401 = vsel %vm1245, %v9399, %v9400
    %v9434 = vpack.c.bf16 %v9314, %v9308
    %v9435 = vpack.c.bf16 %v9317, %v9311
    %v9436 = vpack.c.bf16 %v9326, %v9320
    %v9437 = vpack.c.bf16 %v9329, %v9323
    %v9438 = vpack.c.bf16 %v9338, %v9332
    %v9439 = vpack.c.bf16 %v9341, %v9335
    %v9440 = vpack.c.bf16 %v9350, %v9344
    %v9441 = vpack.c.bf16 %v9353, %v9347
    %v9442 = vpack.c.bf16 %v9362, %v9356
    %v9443 = vpack.c.bf16 %v9365, %v9359
    %v9444 = vpack.c.bf16 %v9374, %v9368
    %v9445 = vpack.c.bf16 %v9377, %v9371
    %v9446 = vpack.c.bf16 %v9386, %v9380
    %v9447 = vpack.c.bf16 %v9389, %v9383
    %v9448 = vpack.c.bf16 %v9398, %v9392
    %v9449 = vpack.c.bf16 %v9401, %v9395
    %s9450 = scalar_lea.vmem %s2, 1280
    %v9451 = vld [vmem:[%s9450] sm:$0xff]
    %v9452 = vld [vmem:[%s9450 + $0x8] sm:$0xff]
    %v9453 = vld [vmem:[%s9450 + $0x10] sm:$0xff]
    %v9454 = vld [vmem:[%s9450 + $0x18] sm:$0xff]
    %v9455 = vld [vmem:[%s9450 + $0x20] sm:$0xff]
    %v9456 = vld [vmem:[%s9450 + $0x28] sm:$0xff]
    %v9457 = vld [vmem:[%s9450 + $0x30] sm:$0xff]
    %v9458 = vld [vmem:[%s9450 + $0x38] sm:$0xff]
    %v9459 = vld [vmem:[%s9450 + $0x40] sm:$0xff]
    %v9460 = vld [vmem:[%s9450 + $0x48] sm:$0xff]
    %v9461 = vld [vmem:[%s9450 + $0x50] sm:$0xff]
    %v9462 = vld [vmem:[%s9450 + $0x58] sm:$0xff]
    %v9463 = vld [vmem:[%s9450 + $0x60] sm:$0xff]
    %v9464 = vld [vmem:[%s9450 + $0x68] sm:$0xff]
    %v9465 = vld [vmem:[%s9450 + $0x70] sm:$0xff]
    %v9466 = vld [vmem:[%s9450 + $0x78] sm:$0xff]
    %v9467 = vld [vmem:[%s9450 + $0x80] sm:$0xff]
    %v9468 = vld [vmem:[%s9450 + $0x88] sm:$0xff]
    %v9469 = vld [vmem:[%s9450 + $0x90] sm:$0xff]
    %v9470 = vld [vmem:[%s9450 + $0x98] sm:$0xff]
    %v9471 = vld [vmem:[%s9450 + $0xa0] sm:$0xff]
    %v9472 = vld [vmem:[%s9450 + $0xa8] sm:$0xff]
    %v9473 = vld [vmem:[%s9450 + $0xb0] sm:$0xff]
    %v9474 = vld [vmem:[%s9450 + $0xb8] sm:$0xff]
    %v9475 = vld [vmem:[%s9450 + $0xc0] sm:$0xff]
    %v9476 = vld [vmem:[%s9450 + $0xc8] sm:$0xff]
    %v9477 = vld [vmem:[%s9450 + $0xd0] sm:$0xff]
    %v9478 = vld [vmem:[%s9450 + $0xd8] sm:$0xff]
    %v9479 = vld [vmem:[%s9450 + $0xe0] sm:$0xff]
    %v9480 = vld [vmem:[%s9450 + $0xe8] sm:$0xff]
    %v9481 = vld [vmem:[%s9450 + $0xf0] sm:$0xff]
    %v9482 = vld [vmem:[%s9450 + $0xf8] sm:$0xff]
    %v9515 = vunpack.c.l.b16 %v9451
    %v9516 = vunpack.c.h.b16 %v9451
    %v9517 = vunpack.c.l.b16 %v9452
    %v9518 = vunpack.c.h.b16 %v9452
    %v9519 = vunpack.c.l.b16 %v9453
    %v9520 = vunpack.c.h.b16 %v9453
    %v9521 = vunpack.c.l.b16 %v9454
    %v9522 = vunpack.c.h.b16 %v9454
    %v9523 = vunpack.c.l.b16 %v9455
    %v9524 = vunpack.c.h.b16 %v9455
    %v9525 = vunpack.c.l.b16 %v9456
    %v9526 = vunpack.c.h.b16 %v9456
    %v9527 = vunpack.c.l.b16 %v9457
    %v9528 = vunpack.c.h.b16 %v9457
    %v9529 = vunpack.c.l.b16 %v9458
    %v9530 = vunpack.c.h.b16 %v9458
    %v9531 = vunpack.c.l.b16 %v9459
    %v9532 = vunpack.c.h.b16 %v9459
    %v9533 = vunpack.c.l.b16 %v9460
    %v9534 = vunpack.c.h.b16 %v9460
    %v9535 = vunpack.c.l.b16 %v9461
    %v9536 = vunpack.c.h.b16 %v9461
    %v9537 = vunpack.c.l.b16 %v9462
    %v9538 = vunpack.c.h.b16 %v9462
    %v9539 = vunpack.c.l.b16 %v9463
    %v9540 = vunpack.c.h.b16 %v9463
    %v9541 = vunpack.c.l.b16 %v9464
    %v9542 = vunpack.c.h.b16 %v9464
    %v9543 = vunpack.c.l.b16 %v9465
    %v9544 = vunpack.c.h.b16 %v9465
    %v9545 = vunpack.c.l.b16 %v9466
    %v9546 = vunpack.c.h.b16 %v9466
    %v9547 = vunpack.c.l.b16 %v9467
    %v9548 = vunpack.c.h.b16 %v9467
    %v9549 = vunpack.c.l.b16 %v9468
    %v9550 = vunpack.c.h.b16 %v9468
    %v9551 = vunpack.c.l.b16 %v9469
    %v9552 = vunpack.c.h.b16 %v9469
    %v9553 = vunpack.c.l.b16 %v9470
    %v9554 = vunpack.c.h.b16 %v9470
    %v9555 = vunpack.c.l.b16 %v9471
    %v9556 = vunpack.c.h.b16 %v9471
    %v9557 = vunpack.c.l.b16 %v9472
    %v9558 = vunpack.c.h.b16 %v9472
    %v9559 = vunpack.c.l.b16 %v9473
    %v9560 = vunpack.c.h.b16 %v9473
    %v9561 = vunpack.c.l.b16 %v9474
    %v9562 = vunpack.c.h.b16 %v9474
    %v9563 = vunpack.c.l.b16 %v9475
    %v9564 = vunpack.c.h.b16 %v9475
    %v9565 = vunpack.c.l.b16 %v9476
    %v9566 = vunpack.c.h.b16 %v9476
    %v9567 = vunpack.c.l.b16 %v9477
    %v9568 = vunpack.c.h.b16 %v9477
    %v9569 = vunpack.c.l.b16 %v9478
    %v9570 = vunpack.c.h.b16 %v9478
    %v9571 = vunpack.c.l.b16 %v9479
    %v9572 = vunpack.c.h.b16 %v9479
    %v9573 = vunpack.c.l.b16 %v9480
    %v9574 = vunpack.c.h.b16 %v9480
    %v9575 = vunpack.c.l.b16 %v9481
    %v9576 = vunpack.c.h.b16 %v9481
    %v9577 = vunpack.c.l.b16 %v9482
    %v9578 = vunpack.c.h.b16 %v9482
    %v9579 = vpack.c.b16 %v9517, %v9515
    %v9580 = vpack.c.b16 %v9518, %v9516
    %v9581 = vpack.c.b16 %v9521, %v9519
    %v9582 = vpack.c.b16 %v9522, %v9520
    %v9583 = vpack.c.b16 %v9525, %v9523
    %v9584 = vpack.c.b16 %v9526, %v9524
    %v9585 = vpack.c.b16 %v9529, %v9527
    %v9586 = vpack.c.b16 %v9530, %v9528
    %v9587 = vpack.c.b16 %v9533, %v9531
    %v9588 = vpack.c.b16 %v9534, %v9532
    %v9589 = vpack.c.b16 %v9537, %v9535
    %v9590 = vpack.c.b16 %v9538, %v9536
    %v9591 = vpack.c.b16 %v9541, %v9539
    %v9592 = vpack.c.b16 %v9542, %v9540
    %v9593 = vpack.c.b16 %v9545, %v9543
    %v9594 = vpack.c.b16 %v9546, %v9544
    %v9595 = vpack.c.b16 %v9549, %v9547
    %v9596 = vpack.c.b16 %v9550, %v9548
    %v9597 = vpack.c.b16 %v9553, %v9551
    %v9598 = vpack.c.b16 %v9554, %v9552
    %v9599 = vpack.c.b16 %v9557, %v9555
    %v9600 = vpack.c.b16 %v9558, %v9556
    %v9601 = vpack.c.b16 %v9561, %v9559
    %v9602 = vpack.c.b16 %v9562, %v9560
    %v9603 = vpack.c.b16 %v9565, %v9563
    %v9604 = vpack.c.b16 %v9566, %v9564
    %v9605 = vpack.c.b16 %v9569, %v9567
    %v9606 = vpack.c.b16 %v9570, %v9568
    %v9607 = vpack.c.b16 %v9573, %v9571
    %v9608 = vpack.c.b16 %v9574, %v9572
    %v9609 = vpack.c.b16 %v9577, %v9575
    %v9610 = vpack.c.b16 %v9578, %v9576
    %9643 = vmatpush.bf16.msra.mxu0 %v9593
    %9644 = vmatpush.bf16.msra.mxu0 %v9591
    %9645 = vmatpush.bf16.msra.mxu0 %v9589
    %9646 = vmatpush.bf16.msra.mxu0 %v9587
    %9647 = vmatpush.bf16.msra.mxu0 %v9585
    %9648 = vmatpush.bf16.msra.mxu0 %v9583
    %9649 = vmatpush.bf16.msra.mxu0 %v9581
    %9650 = vmatpush.bf16.msra.mxu0 %v9579
    %9651 = vmatmul.bf16.gmra.mxu0 %v9434
    %v9652 = vpop.f32.mrf.mxu0
    %v9653 = vadd.f32 0.0, %v9652
    %v9654 = vpop.f32.mrf.mxu0
    %v9655 = vadd.f32 0.0, %v9654
    %9656 = vmatmul.bf16.gmra.mxu0 %v9436
    %v9657 = vpop.f32.mrf.mxu0
    %v9658 = vadd.f32 0.0, %v9657
    %v9659 = vpop.f32.mrf.mxu0
    %v9660 = vadd.f32 0.0, %v9659
    %9661 = vmatmul.bf16.gmra.mxu0 %v9438
    %v9662 = vpop.f32.mrf.mxu0
    %v9663 = vadd.f32 0.0, %v9662
    %v9664 = vpop.f32.mrf.mxu0
    %v9665 = vadd.f32 0.0, %v9664
    %9666 = vmatmul.bf16.gmra.mxu0 %v9440
    %v9667 = vpop.f32.mrf.mxu0
    %v9668 = vadd.f32 0.0, %v9667
    %v9669 = vpop.f32.mrf.mxu0
    %v9670 = vadd.f32 0.0, %v9669
    %9671 = vmatmul.bf16.gmra.mxu0 %v9442
    %v9672 = vpop.f32.mrf.mxu0
    %v9673 = vadd.f32 0.0, %v9672
    %v9674 = vpop.f32.mrf.mxu0
    %v9675 = vadd.f32 0.0, %v9674
    %9676 = vmatmul.bf16.gmra.mxu0 %v9444
    %v9677 = vpop.f32.mrf.mxu0
    %v9678 = vadd.f32 0.0, %v9677
    %v9679 = vpop.f32.mrf.mxu0
    %v9680 = vadd.f32 0.0, %v9679
    %9681 = vmatmul.bf16.gmra.mxu0 %v9446
    %v9682 = vpop.f32.mrf.mxu0
    %v9683 = vadd.f32 0.0, %v9682
    %v9684 = vpop.f32.mrf.mxu0
    %v9685 = vadd.f32 0.0, %v9684
    %9686 = vmatmul.bf16.gmra.mxu0 %v9448
    %v9687 = vpop.f32.mrf.mxu0
    %v9688 = vadd.f32 0.0, %v9687
    %v9689 = vpop.f32.mrf.mxu0
    %v9690 = vadd.f32 0.0, %v9689
    %9691 = vdwg.mxu0
    %9692 = vmatpush.bf16.msra.mxu0 %v9609
    %9693 = vmatpush.bf16.msra.mxu0 %v9607
    %9694 = vmatpush.bf16.msra.mxu0 %v9605
    %9695 = vmatpush.bf16.msra.mxu0 %v9603
    %9696 = vmatpush.bf16.msra.mxu0 %v9601
    %9697 = vmatpush.bf16.msra.mxu0 %v9599
    %9698 = vmatpush.bf16.msra.mxu0 %v9597
    %9699 = vmatpush.bf16.msra.mxu0 %v9595
    %9700 = vmatmul.bf16.gmra.mxu0 %v9435
    %v9701 = vpop.f32.mrf.mxu0
    %v9702 = vadd.f32 %v9653, %v9701
    %v9703 = vpop.f32.mrf.mxu0
    %v9704 = vadd.f32 %v9655, %v9703
    %9705 = vmatmul.bf16.gmra.mxu0 %v9437
    %v9706 = vpop.f32.mrf.mxu0
    %v9707 = vadd.f32 %v9658, %v9706
    %v9708 = vpop.f32.mrf.mxu0
    %v9709 = vadd.f32 %v9660, %v9708
    %9710 = vmatmul.bf16.gmra.mxu0 %v9439
    %v9711 = vpop.f32.mrf.mxu0
    %v9712 = vadd.f32 %v9663, %v9711
    %v9713 = vpop.f32.mrf.mxu0
    %v9714 = vadd.f32 %v9665, %v9713
    %9715 = vmatmul.bf16.gmra.mxu0 %v9441
    %v9716 = vpop.f32.mrf.mxu0
    %v9717 = vadd.f32 %v9668, %v9716
    %v9718 = vpop.f32.mrf.mxu0
    %v9719 = vadd.f32 %v9670, %v9718
    %9720 = vmatmul.bf16.gmra.mxu0 %v9443
    %v9721 = vpop.f32.mrf.mxu0
    %v9722 = vadd.f32 %v9673, %v9721
    %v9723 = vpop.f32.mrf.mxu0
    %v9724 = vadd.f32 %v9675, %v9723
    %9725 = vmatmul.bf16.gmra.mxu0 %v9445
    %v9726 = vpop.f32.mrf.mxu0
    %v9727 = vadd.f32 %v9678, %v9726
    %v9728 = vpop.f32.mrf.mxu0
    %v9729 = vadd.f32 %v9680, %v9728
    %9730 = vmatmul.bf16.gmra.mxu0 %v9447
    %v9731 = vpop.f32.mrf.mxu0
    %v9732 = vadd.f32 %v9683, %v9731
    %v9733 = vpop.f32.mrf.mxu0
    %v9734 = vadd.f32 %v9685, %v9733
    %9735 = vmatmul.bf16.gmra.mxu0 %v9449
    %v9736 = vpop.f32.mrf.mxu0
    %v9737 = vadd.f32 %v9688, %v9736
    %v9738 = vpop.f32.mrf.mxu0
    %v9739 = vadd.f32 %v9690, %v9738
    %9740 = vdwg.mxu0
    %9741 = vmatpush.bf16.msra.mxu0 %v9594
    %9742 = vmatpush.bf16.msra.mxu0 %v9592
    %9743 = vmatpush.bf16.msra.mxu0 %v9590
    %9744 = vmatpush.bf16.msra.mxu0 %v9588
    %9745 = vmatpush.bf16.msra.mxu0 %v9586
    %9746 = vmatpush.bf16.msra.mxu0 %v9584
    %9747 = vmatpush.bf16.msra.mxu0 %v9582
    %9748 = vmatpush.bf16.msra.mxu0 %v9580
    %9749 = vmatmul.bf16.gmra.mxu0 %v9434
    %v9750 = vpop.f32.mrf.mxu0
    %v9751 = vadd.f32 0.0, %v9750
    %v9752 = vpop.f32.mrf.mxu0
    %v9753 = vadd.f32 0.0, %v9752
    %9754 = vmatmul.bf16.gmra.mxu0 %v9436
    %v9755 = vpop.f32.mrf.mxu0
    %v9756 = vadd.f32 0.0, %v9755
    %v9757 = vpop.f32.mrf.mxu0
    %v9758 = vadd.f32 0.0, %v9757
    %9759 = vmatmul.bf16.gmra.mxu0 %v9438
    %v9760 = vpop.f32.mrf.mxu0
    %v9761 = vadd.f32 0.0, %v9760
    %v9762 = vpop.f32.mrf.mxu0
    %v9763 = vadd.f32 0.0, %v9762
    %9764 = vmatmul.bf16.gmra.mxu0 %v9440
    %v9765 = vpop.f32.mrf.mxu0
    %v9766 = vadd.f32 0.0, %v9765
    %v9767 = vpop.f32.mrf.mxu0
    %v9768 = vadd.f32 0.0, %v9767
    %9769 = vmatmul.bf16.gmra.mxu0 %v9442
    %v9770 = vpop.f32.mrf.mxu0
    %v9771 = vadd.f32 0.0, %v9770
    %v9772 = vpop.f32.mrf.mxu0
    %v9773 = vadd.f32 0.0, %v9772
    %9774 = vmatmul.bf16.gmra.mxu0 %v9444
    %v9775 = vpop.f32.mrf.mxu0
    %v9776 = vadd.f32 0.0, %v9775
    %v9777 = vpop.f32.mrf.mxu0
    %v9778 = vadd.f32 0.0, %v9777
    %9779 = vmatmul.bf16.gmra.mxu0 %v9446
    %v9780 = vpop.f32.mrf.mxu0
    %v9781 = vadd.f32 0.0, %v9780
    %v9782 = vpop.f32.mrf.mxu0
    %v9783 = vadd.f32 0.0, %v9782
    %9784 = vmatmul.bf16.gmra.mxu0 %v9448
    %v9785 = vpop.f32.mrf.mxu0
    %v9786 = vadd.f32 0.0, %v9785
    %v9787 = vpop.f32.mrf.mxu0
    %v9788 = vadd.f32 0.0, %v9787
    %9789 = vdwg.mxu0
    %9790 = vmatpush.bf16.msra.mxu0 %v9610
    %9791 = vmatpush.bf16.msra.mxu0 %v9608
    %9792 = vmatpush.bf16.msra.mxu0 %v9606
    %9793 = vmatpush.bf16.msra.mxu0 %v9604
    %9794 = vmatpush.bf16.msra.mxu0 %v9602
    %9795 = vmatpush.bf16.msra.mxu0 %v9600
    %9796 = vmatpush.bf16.msra.mxu0 %v9598
    %9797 = vmatpush.bf16.msra.mxu0 %v9596
    %9798 = vmatmul.bf16.gmra.mxu0 %v9435
    %v9799 = vpop.f32.mrf.mxu0
    %v9800 = vadd.f32 %v9751, %v9799
    %v9801 = vpop.f32.mrf.mxu0
    %v9802 = vadd.f32 %v9753, %v9801
    %9803 = vmatmul.bf16.gmra.mxu0 %v9437
    %v9804 = vpop.f32.mrf.mxu0
    %v9805 = vadd.f32 %v9756, %v9804
    %v9806 = vpop.f32.mrf.mxu0
    %v9807 = vadd.f32 %v9758, %v9806
    %9808 = vmatmul.bf16.gmra.mxu0 %v9439
    %v9809 = vpop.f32.mrf.mxu0
    %v9810 = vadd.f32 %v9761, %v9809
    %v9811 = vpop.f32.mrf.mxu0
    %v9812 = vadd.f32 %v9763, %v9811
    %9813 = vmatmul.bf16.gmra.mxu0 %v9441
    %v9814 = vpop.f32.mrf.mxu0
    %v9815 = vadd.f32 %v9766, %v9814
    %v9816 = vpop.f32.mrf.mxu0
    %v9817 = vadd.f32 %v9768, %v9816
    %9818 = vmatmul.bf16.gmra.mxu0 %v9443
    %v9819 = vpop.f32.mrf.mxu0
    %v9820 = vadd.f32 %v9771, %v9819
    %v9821 = vpop.f32.mrf.mxu0
    %v9822 = vadd.f32 %v9773, %v9821
    %9823 = vmatmul.bf16.gmra.mxu0 %v9445
    %v9824 = vpop.f32.mrf.mxu0
    %v9825 = vadd.f32 %v9776, %v9824
    %v9826 = vpop.f32.mrf.mxu0
    %v9827 = vadd.f32 %v9778, %v9826
    %9828 = vmatmul.bf16.gmra.mxu0 %v9447
    %v9829 = vpop.f32.mrf.mxu0
    %v9830 = vadd.f32 %v9781, %v9829
    %v9831 = vpop.f32.mrf.mxu0
    %v9832 = vadd.f32 %v9783, %v9831
    %9833 = vmatmul.bf16.gmra.mxu0 %v9449
    %v9834 = vpop.f32.mrf.mxu0
    %v9835 = vadd.f32 %v9786, %v9834
    %v9836 = vpop.f32.mrf.mxu0
    %v9837 = vadd.f32 %v9788, %v9836
    %9838 = vdwg.mxu0
    %v9839 = vadd.f32 %v9146, %v9702
    %v9840 = vadd.f32 %v9147, %v9800
    %v9841 = vadd.f32 %v9148, %v9704
    %v9842 = vadd.f32 %v9149, %v9802
    %v9843 = vadd.f32 %v9150, %v9707
    %v9844 = vadd.f32 %v9151, %v9805
    %v9845 = vadd.f32 %v9152, %v9709
    %v9846 = vadd.f32 %v9153, %v9807
    %v9847 = vadd.f32 %v9154, %v9712
    %v9848 = vadd.f32 %v9155, %v9810
    %v9849 = vadd.f32 %v9156, %v9714
    %v9850 = vadd.f32 %v9157, %v9812
    %v9851 = vadd.f32 %v9158, %v9717
    %v9852 = vadd.f32 %v9159, %v9815
    %v9853 = vadd.f32 %v9160, %v9719
    %v9854 = vadd.f32 %v9161, %v9817
    %v9855 = vadd.f32 %v9162, %v9722
    %v9856 = vadd.f32 %v9163, %v9820
    %v9857 = vadd.f32 %v9164, %v9724
    %v9858 = vadd.f32 %v9165, %v9822
    %v9859 = vadd.f32 %v9166, %v9727
    %v9860 = vadd.f32 %v9167, %v9825
    %v9861 = vadd.f32 %v9168, %v9729
    %v9862 = vadd.f32 %v9169, %v9827
    %v9863 = vadd.f32 %v9170, %v9732
    %v9864 = vadd.f32 %v9171, %v9830
    %v9865 = vadd.f32 %v9172, %v9734
    %v9866 = vadd.f32 %v9173, %v9832
    %v9867 = vadd.f32 %v9174, %v9737
    %v9868 = vadd.f32 %v9175, %v9835
    %v9869 = vadd.f32 %v9176, %v9739
    %v9870 = vadd.f32 %v9177, %v9837
    %s9871 = scalar_lea.vmem [#allocation2], 64
    %v9872 = vld [vmem:[%s9871] sm:$0xff]
    %v9873 = vld [vmem:[%s9871 + $0x8] sm:$0xff]
    %v9874 = vld [vmem:[%s9871 + $0x20] sm:$0xff]
    %v9875 = vld [vmem:[%s9871 + $0x28] sm:$0xff]
    %v9876 = vld [vmem:[%s9871 + $0x40] sm:$0xff]
    %v9877 = vld [vmem:[%s9871 + $0x48] sm:$0xff]
    %v9878 = vld [vmem:[%s9871 + $0x60] sm:$0xff]
    %v9879 = vld [vmem:[%s9871 + $0x68] sm:$0xff]
    %v9880 = vld [vmem:[%s9871 + $0x80] sm:$0xff]
    %v9881 = vld [vmem:[%s9871 + $0x88] sm:$0xff]
    %v9882 = vld [vmem:[%s9871 + $0xa0] sm:$0xff]
    %v9883 = vld [vmem:[%s9871 + $0xa8] sm:$0xff]
    %v9884 = vld [vmem:[%s9871 + $0xc0] sm:$0xff]
    %v9885 = vld [vmem:[%s9871 + $0xc8] sm:$0xff]
    %v9886 = vld [vmem:[%s9871 + $0xe0] sm:$0xff]
    %v9887 = vld [vmem:[%s9871 + $0xe8] sm:$0xff]
    %v9888 = vld [vmem:[%s9871 + $0x140] sm:$0xff]
    %v9889 = vld [vmem:[%s9871 + $0x148] sm:$0xff]
    %v9890 = vld [vmem:[%s9871 + $0x160] sm:$0xff]
    %v9891 = vld [vmem:[%s9871 + $0x168] sm:$0xff]
    %v9892 = vld [vmem:[%s9871 + $0x180] sm:$0xff]
    %v9893 = vld [vmem:[%s9871 + $0x188] sm:$0xff]
    %v9894 = vld [vmem:[%s9871 + $0x1a0] sm:$0xff]
    %v9895 = vld [vmem:[%s9871 + $0x1a8] sm:$0xff]
    %v9896 = vld [vmem:[%s9871 + $0x1c0] sm:$0xff]
    %v9897 = vld [vmem:[%s9871 + $0x1c8] sm:$0xff]
    %v9898 = vld [vmem:[%s9871 + $0x1e0] sm:$0xff]
    %v9899 = vld [vmem:[%s9871 + $0x1e8] sm:$0xff]
    %v9900 = vld [vmem:[%s9871 + $0x200] sm:$0xff]
    %v9901 = vld [vmem:[%s9871 + $0x208] sm:$0xff]
    %v9902 = vld [vmem:[%s9871 + $0x220] sm:$0xff]
    %v9903 = vld [vmem:[%s9871 + $0x228] sm:$0xff]
    %v9904 = vpack.c.bf16 %v9874, %v9872
    %v9905 = vpack.c.bf16 %v9875, %v9873
    %v9906 = vpack.c.bf16 %v9878, %v9876
    %v9907 = vpack.c.bf16 %v9879, %v9877
    %v9908 = vpack.c.bf16 %v9882, %v9880
    %v9909 = vpack.c.bf16 %v9883, %v9881
    %v9910 = vpack.c.bf16 %v9886, %v9884
    %v9911 = vpack.c.bf16 %v9887, %v9885
    %v9912 = vpack.c.bf16 %v9890, %v9888
    %v9913 = vpack.c.bf16 %v9891, %v9889
    %v9914 = vpack.c.bf16 %v9894, %v9892
    %v9915 = vpack.c.bf16 %v9895, %v9893
    %v9916 = vpack.c.bf16 %v9898, %v9896
    %v9917 = vpack.c.bf16 %v9899, %v9897
    %v9918 = vpack.c.bf16 %v9902, %v9900
    %v9919 = vpack.c.bf16 %v9903, %v9901
    %s9920 = scalar_lea.vmem %s2, 1536
    %v9921 = vld [vmem:[%s9920] sm:$0xff]
    %v9922 = vld [vmem:[%s9920 + $0x8] sm:$0xff]
    %v9923 = vld [vmem:[%s9920 + $0x10] sm:$0xff]
    %v9924 = vld [vmem:[%s9920 + $0x18] sm:$0xff]
    %v9925 = vld [vmem:[%s9920 + $0x20] sm:$0xff]
    %v9926 = vld [vmem:[%s9920 + $0x28] sm:$0xff]
    %v9927 = vld [vmem:[%s9920 + $0x30] sm:$0xff]
    %v9928 = vld [vmem:[%s9920 + $0x38] sm:$0xff]
    %v9929 = vld [vmem:[%s9920 + $0x40] sm:$0xff]
    %v9930 = vld [vmem:[%s9920 + $0x48] sm:$0xff]
    %v9931 = vld [vmem:[%s9920 + $0x50] sm:$0xff]
    %v9932 = vld [vmem:[%s9920 + $0x58] sm:$0xff]
    %v9933 = vld [vmem:[%s9920 + $0x60] sm:$0xff]
    %v9934 = vld [vmem:[%s9920 + $0x68] sm:$0xff]
    %v9935 = vld [vmem:[%s9920 + $0x70] sm:$0xff]
    %v9936 = vld [vmem:[%s9920 + $0x78] sm:$0xff]
    %v9937 = vld [vmem:[%s9920 + $0x80] sm:$0xff]
    %v9938 = vld [vmem:[%s9920 + $0x88] sm:$0xff]
    %v9939 = vld [vmem:[%s9920 + $0x90] sm:$0xff]
    %v9940 = vld [vmem:[%s9920 + $0x98] sm:$0xff]
    %v9941 = vld [vmem:[%s9920 + $0xa0] sm:$0xff]
    %v9942 = vld [vmem:[%s9920 + $0xa8] sm:$0xff]
    %v9943 = vld [vmem:[%s9920 + $0xb0] sm:$0xff]
    %v9944 = vld [vmem:[%s9920 + $0xb8] sm:$0xff]
    %v9945 = vld [vmem:[%s9920 + $0xc0] sm:$0xff]
    %v9946 = vld [vmem:[%s9920 + $0xc8] sm:$0xff]
    %v9947 = vld [vmem:[%s9920 + $0xd0] sm:$0xff]
    %v9948 = vld [vmem:[%s9920 + $0xd8] sm:$0xff]
    %v9949 = vld [vmem:[%s9920 + $0xe0] sm:$0xff]
    %v9950 = vld [vmem:[%s9920 + $0xe8] sm:$0xff]
    %v9951 = vld [vmem:[%s9920 + $0xf0] sm:$0xff]
    %v9952 = vld [vmem:[%s9920 + $0xf8] sm:$0xff]
    %v9985 = vunpack.c.l.b16 %v9921
    %v9986 = vunpack.c.h.b16 %v9921
    %v9987 = vunpack.c.l.b16 %v9922
    %v9988 = vunpack.c.h.b16 %v9922
    %v9989 = vunpack.c.l.b16 %v9923
    %v9990 = vunpack.c.h.b16 %v9923
    %v9991 = vunpack.c.l.b16 %v9924
    %v9992 = vunpack.c.h.b16 %v9924
    %v9993 = vunpack.c.l.b16 %v9925
    %v9994 = vunpack.c.h.b16 %v9925
    %v9995 = vunpack.c.l.b16 %v9926
    %v9996 = vunpack.c.h.b16 %v9926
    %v9997 = vunpack.c.l.b16 %v9927
    %v9998 = vunpack.c.h.b16 %v9927
    %v9999 = vunpack.c.l.b16 %v9928
    %v10000 = vunpack.c.h.b16 %v9928
    %v10001 = vunpack.c.l.b16 %v9929
    %v10002 = vunpack.c.h.b16 %v9929
    %v10003 = vunpack.c.l.b16 %v9930
    %v10004 = vunpack.c.h.b16 %v9930
    %v10005 = vunpack.c.l.b16 %v9931
    %v10006 = vunpack.c.h.b16 %v9931
    %v10007 = vunpack.c.l.b16 %v9932
    %v10008 = vunpack.c.h.b16 %v9932
    %v10009 = vunpack.c.l.b16 %v9933
    %v10010 = vunpack.c.h.b16 %v9933
    %v10011 = vunpack.c.l.b16 %v9934
    %v10012 = vunpack.c.h.b16 %v9934
    %v10013 = vunpack.c.l.b16 %v9935
    %v10014 = vunpack.c.h.b16 %v9935
    %v10015 = vunpack.c.l.b16 %v9936
    %v10016 = vunpack.c.h.b16 %v9936
    %v10017 = vunpack.c.l.b16 %v9937
    %v10018 = vunpack.c.h.b16 %v9937
    %v10019 = vunpack.c.l.b16 %v9938
    %v10020 = vunpack.c.h.b16 %v9938
    %v10021 = vunpack.c.l.b16 %v9939
    %v10022 = vunpack.c.h.b16 %v9939
    %v10023 = vunpack.c.l.b16 %v9940
    %v10024 = vunpack.c.h.b16 %v9940
    %v10025 = vunpack.c.l.b16 %v9941
    %v10026 = vunpack.c.h.b16 %v9941
    %v10027 = vunpack.c.l.b16 %v9942
    %v10028 = vunpack.c.h.b16 %v9942
    %v10029 = vunpack.c.l.b16 %v9943
    %v10030 = vunpack.c.h.b16 %v9943
    %v10031 = vunpack.c.l.b16 %v9944
    %v10032 = vunpack.c.h.b16 %v9944
    %v10033 = vunpack.c.l.b16 %v9945
    %v10034 = vunpack.c.h.b16 %v9945
    %v10035 = vunpack.c.l.b16 %v9946
    %v10036 = vunpack.c.h.b16 %v9946
    %v10037 = vunpack.c.l.b16 %v9947
    %v10038 = vunpack.c.h.b16 %v9947
    %v10039 = vunpack.c.l.b16 %v9948
    %v10040 = vunpack.c.h.b16 %v9948
    %v10041 = vunpack.c.l.b16 %v9949
    %v10042 = vunpack.c.h.b16 %v9949
    %v10043 = vunpack.c.l.b16 %v9950
    %v10044 = vunpack.c.h.b16 %v9950
    %v10045 = vunpack.c.l.b16 %v9951
    %v10046 = vunpack.c.h.b16 %v9951
    %v10047 = vunpack.c.l.b16 %v9952
    %v10048 = vunpack.c.h.b16 %v9952
    %v10049 = vpack.c.b16 %v9987, %v9985
    %v10050 = vpack.c.b16 %v9988, %v9986
    %v10051 = vpack.c.b16 %v9991, %v9989
    %v10052 = vpack.c.b16 %v9992, %v9990
    %v10053 = vpack.c.b16 %v9995, %v9993
    %v10054 = vpack.c.b16 %v9996, %v9994
    %v10055 = vpack.c.b16 %v9999, %v9997
    %v10056 = vpack.c.b16 %v10000, %v9998
    %v10057 = vpack.c.b16 %v10003, %v10001
    %v10058 = vpack.c.b16 %v10004, %v10002
    %v10059 = vpack.c.b16 %v10007, %v10005
    %v10060 = vpack.c.b16 %v10008, %v10006
    %v10061 = vpack.c.b16 %v10011, %v10009
    %v10062 = vpack.c.b16 %v10012, %v10010
    %v10063 = vpack.c.b16 %v10015, %v10013
    %v10064 = vpack.c.b16 %v10016, %v10014
    %v10065 = vpack.c.b16 %v10019, %v10017
    %v10066 = vpack.c.b16 %v10020, %v10018
    %v10067 = vpack.c.b16 %v10023, %v10021
    %v10068 = vpack.c.b16 %v10024, %v10022
    %v10069 = vpack.c.b16 %v10027, %v10025
    %v10070 = vpack.c.b16 %v10028, %v10026
    %v10071 = vpack.c.b16 %v10031, %v10029
    %v10072 = vpack.c.b16 %v10032, %v10030
    %v10073 = vpack.c.b16 %v10035, %v10033
    %v10074 = vpack.c.b16 %v10036, %v10034
    %v10075 = vpack.c.b16 %v10039, %v10037
    %v10076 = vpack.c.b16 %v10040, %v10038
    %v10077 = vpack.c.b16 %v10043, %v10041
    %v10078 = vpack.c.b16 %v10044, %v10042
    %v10079 = vpack.c.b16 %v10047, %v10045
    %v10080 = vpack.c.b16 %v10048, %v10046
    %10113 = vmatpush.bf16.msra.mxu0 %v10063
    %10114 = vmatpush.bf16.msra.mxu0 %v10061
    %10115 = vmatpush.bf16.msra.mxu0 %v10059
    %10116 = vmatpush.bf16.msra.mxu0 %v10057
    %10117 = vmatpush.bf16.msra.mxu0 %v10055
    %10118 = vmatpush.bf16.msra.mxu0 %v10053
    %10119 = vmatpush.bf16.msra.mxu0 %v10051
    %10120 = vmatpush.bf16.msra.mxu0 %v10049
    %10121 = vmatmul.bf16.gmra.mxu0 %v9904
    %v10122 = vpop.f32.mrf.mxu0
    %v10123 = vadd.f32 0.0, %v10122
    %v10124 = vpop.f32.mrf.mxu0
    %v10125 = vadd.f32 0.0, %v10124
    %10126 = vmatmul.bf16.gmra.mxu0 %v9906
    %v10127 = vpop.f32.mrf.mxu0
    %v10128 = vadd.f32 0.0, %v10127
    %v10129 = vpop.f32.mrf.mxu0
    %v10130 = vadd.f32 0.0, %v10129
    %10131 = vmatmul.bf16.gmra.mxu0 %v9908
    %v10132 = vpop.f32.mrf.mxu0
    %v10133 = vadd.f32 0.0, %v10132
    %v10134 = vpop.f32.mrf.mxu0
    %v10135 = vadd.f32 0.0, %v10134
    %10136 = vmatmul.bf16.gmra.mxu0 %v9910
    %v10137 = vpop.f32.mrf.mxu0
    %v10138 = vadd.f32 0.0, %v10137
    %v10139 = vpop.f32.mrf.mxu0
    %v10140 = vadd.f32 0.0, %v10139
    %10141 = vmatmul.bf16.gmra.mxu0 %v9912
    %v10142 = vpop.f32.mrf.mxu0
    %v10143 = vadd.f32 0.0, %v10142
    %v10144 = vpop.f32.mrf.mxu0
    %v10145 = vadd.f32 0.0, %v10144
    %10146 = vmatmul.bf16.gmra.mxu0 %v9914
    %v10147 = vpop.f32.mrf.mxu0
    %v10148 = vadd.f32 0.0, %v10147
    %v10149 = vpop.f32.mrf.mxu0
    %v10150 = vadd.f32 0.0, %v10149
    %10151 = vmatmul.bf16.gmra.mxu0 %v9916
    %v10152 = vpop.f32.mrf.mxu0
    %v10153 = vadd.f32 0.0, %v10152
    %v10154 = vpop.f32.mrf.mxu0
    %v10155 = vadd.f32 0.0, %v10154
    %10156 = vmatmul.bf16.gmra.mxu0 %v9918
    %v10157 = vpop.f32.mrf.mxu0
    %v10158 = vadd.f32 0.0, %v10157
    %v10159 = vpop.f32.mrf.mxu0
    %v10160 = vadd.f32 0.0, %v10159
    %10161 = vdwg.mxu0
    %10162 = vmatpush.bf16.msra.mxu0 %v10079
    %10163 = vmatpush.bf16.msra.mxu0 %v10077
    %10164 = vmatpush.bf16.msra.mxu0 %v10075
    %10165 = vmatpush.bf16.msra.mxu0 %v10073
    %10166 = vmatpush.bf16.msra.mxu0 %v10071
    %10167 = vmatpush.bf16.msra.mxu0 %v10069
    %10168 = vmatpush.bf16.msra.mxu0 %v10067
    %10169 = vmatpush.bf16.msra.mxu0 %v10065
    %10170 = vmatmul.bf16.gmra.mxu0 %v9905
    %v10171 = vpop.f32.mrf.mxu0
    %v10172 = vadd.f32 %v10123, %v10171
    %v10173 = vpop.f32.mrf.mxu0
    %v10174 = vadd.f32 %v10125, %v10173
    %10175 = vmatmul.bf16.gmra.mxu0 %v9907
    %v10176 = vpop.f32.mrf.mxu0
    %v10177 = vadd.f32 %v10128, %v10176
    %v10178 = vpop.f32.mrf.mxu0
    %v10179 = vadd.f32 %v10130, %v10178
    %10180 = vmatmul.bf16.gmra.mxu0 %v9909
    %v10181 = vpop.f32.mrf.mxu0
    %v10182 = vadd.f32 %v10133, %v10181
    %v10183 = vpop.f32.mrf.mxu0
    %v10184 = vadd.f32 %v10135, %v10183
    %10185 = vmatmul.bf16.gmra.mxu0 %v9911
    %v10186 = vpop.f32.mrf.mxu0
    %v10187 = vadd.f32 %v10138, %v10186
    %v10188 = vpop.f32.mrf.mxu0
    %v10189 = vadd.f32 %v10140, %v10188
    %10190 = vmatmul.bf16.gmra.mxu0 %v9913
    %v10191 = vpop.f32.mrf.mxu0
    %v10192 = vadd.f32 %v10143, %v10191
    %v10193 = vpop.f32.mrf.mxu0
    %v10194 = vadd.f32 %v10145, %v10193
    %10195 = vmatmul.bf16.gmra.mxu0 %v9915
    %v10196 = vpop.f32.mrf.mxu0
    %v10197 = vadd.f32 %v10148, %v10196
    %v10198 = vpop.f32.mrf.mxu0
    %v10199 = vadd.f32 %v10150, %v10198
    %10200 = vmatmul.bf16.gmra.mxu0 %v9917
    %v10201 = vpop.f32.mrf.mxu0
    %v10202 = vadd.f32 %v10153, %v10201
    %v10203 = vpop.f32.mrf.mxu0
    %v10204 = vadd.f32 %v10155, %v10203
    %10205 = vmatmul.bf16.gmra.mxu0 %v9919
    %v10206 = vpop.f32.mrf.mxu0
    %v10207 = vadd.f32 %v10158, %v10206
    %v10208 = vpop.f32.mrf.mxu0
    %v10209 = vadd.f32 %v10160, %v10208
    %10210 = vdwg.mxu0
    %10211 = vmatpush.bf16.msra.mxu0 %v10064
    %10212 = vmatpush.bf16.msra.mxu0 %v10062
    %10213 = vmatpush.bf16.msra.mxu0 %v10060
    %10214 = vmatpush.bf16.msra.mxu0 %v10058
    %10215 = vmatpush.bf16.msra.mxu0 %v10056
    %10216 = vmatpush.bf16.msra.mxu0 %v10054
    %10217 = vmatpush.bf16.msra.mxu0 %v10052
    %10218 = vmatpush.bf16.msra.mxu0 %v10050
    %10219 = vmatmul.bf16.gmra.mxu0 %v9904
    %v10220 = vpop.f32.mrf.mxu0
    %v10221 = vadd.f32 0.0, %v10220
    %v10222 = vpop.f32.mrf.mxu0
    %v10223 = vadd.f32 0.0, %v10222
    %10224 = vmatmul.bf16.gmra.mxu0 %v9906
    %v10225 = vpop.f32.mrf.mxu0
    %v10226 = vadd.f32 0.0, %v10225
    %v10227 = vpop.f32.mrf.mxu0
    %v10228 = vadd.f32 0.0, %v10227
    %10229 = vmatmul.bf16.gmra.mxu0 %v9908
    %v10230 = vpop.f32.mrf.mxu0
    %v10231 = vadd.f32 0.0, %v10230
    %v10232 = vpop.f32.mrf.mxu0
    %v10233 = vadd.f32 0.0, %v10232
    %10234 = vmatmul.bf16.gmra.mxu0 %v9910
    %v10235 = vpop.f32.mrf.mxu0
    %v10236 = vadd.f32 0.0, %v10235
    %v10237 = vpop.f32.mrf.mxu0
    %v10238 = vadd.f32 0.0, %v10237
    %10239 = vmatmul.bf16.gmra.mxu0 %v9912
    %v10240 = vpop.f32.mrf.mxu0
    %v10241 = vadd.f32 0.0, %v10240
    %v10242 = vpop.f32.mrf.mxu0
    %v10243 = vadd.f32 0.0, %v10242
    %10244 = vmatmul.bf16.gmra.mxu0 %v9914
    %v10245 = vpop.f32.mrf.mxu0
    %v10246 = vadd.f32 0.0, %v10245
    %v10247 = vpop.f32.mrf.mxu0
    %v10248 = vadd.f32 0.0, %v10247
    %10249 = vmatmul.bf16.gmra.mxu0 %v9916
    %v10250 = vpop.f32.mrf.mxu0
    %v10251 = vadd.f32 0.0, %v10250
    %v10252 = vpop.f32.mrf.mxu0
    %v10253 = vadd.f32 0.0, %v10252
    %10254 = vmatmul.bf16.gmra.mxu0 %v9918
    %v10255 = vpop.f32.mrf.mxu0
    %v10256 = vadd.f32 0.0, %v10255
    %v10257 = vpop.f32.mrf.mxu0
    %v10258 = vadd.f32 0.0, %v10257
    %10259 = vdwg.mxu0
    %10260 = vmatpush.bf16.msra.mxu0 %v10080
    %10261 = vmatpush.bf16.msra.mxu0 %v10078
    %10262 = vmatpush.bf16.msra.mxu0 %v10076
    %10263 = vmatpush.bf16.msra.mxu0 %v10074
    %10264 = vmatpush.bf16.msra.mxu0 %v10072
    %10265 = vmatpush.bf16.msra.mxu0 %v10070
    %10266 = vmatpush.bf16.msra.mxu0 %v10068
    %10267 = vmatpush.bf16.msra.mxu0 %v10066
    %10268 = vmatmul.bf16.gmra.mxu0 %v9905
    %v10269 = vpop.f32.mrf.mxu0
    %v10270 = vadd.f32 %v10221, %v10269
    %v10271 = vpop.f32.mrf.mxu0
    %v10272 = vadd.f32 %v10223, %v10271
    %10273 = vmatmul.bf16.gmra.mxu0 %v9907
    %v10274 = vpop.f32.mrf.mxu0
    %v10275 = vadd.f32 %v10226, %v10274
    %v10276 = vpop.f32.mrf.mxu0
    %v10277 = vadd.f32 %v10228, %v10276
    %10278 = vmatmul.bf16.gmra.mxu0 %v9909
    %v10279 = vpop.f32.mrf.mxu0
    %v10280 = vadd.f32 %v10231, %v10279
    %v10281 = vpop.f32.mrf.mxu0
    %v10282 = vadd.f32 %v10233, %v10281
    %10283 = vmatmul.bf16.gmra.mxu0 %v9911
    %v10284 = vpop.f32.mrf.mxu0
    %v10285 = vadd.f32 %v10236, %v10284
    %v10286 = vpop.f32.mrf.mxu0
    %v10287 = vadd.f32 %v10238, %v10286
    %10288 = vmatmul.bf16.gmra.mxu0 %v9913
    %v10289 = vpop.f32.mrf.mxu0
    %v10290 = vadd.f32 %v10241, %v10289
    %v10291 = vpop.f32.mrf.mxu0
    %v10292 = vadd.f32 %v10243, %v10291
    %10293 = vmatmul.bf16.gmra.mxu0 %v9915
    %v10294 = vpop.f32.mrf.mxu0
    %v10295 = vadd.f32 %v10246, %v10294
    %v10296 = vpop.f32.mrf.mxu0
    %v10297 = vadd.f32 %v10248, %v10296
    %10298 = vmatmul.bf16.gmra.mxu0 %v9917
    %v10299 = vpop.f32.mrf.mxu0
    %v10300 = vadd.f32 %v10251, %v10299
    %v10301 = vpop.f32.mrf.mxu0
    %v10302 = vadd.f32 %v10253, %v10301
    %10303 = vmatmul.bf16.gmra.mxu0 %v9919
    %v10304 = vpop.f32.mrf.mxu0
    %v10305 = vadd.f32 %v10256, %v10304
    %v10306 = vpop.f32.mrf.mxu0
    %v10307 = vadd.f32 %v10258, %v10306
    %10308 = vdwg.mxu0
    %v10309 = vadd.f32 %v9839, %v10172
    %v10310 = vadd.f32 %v9840, %v10270
    %v10311 = vadd.f32 %v9841, %v10174
    %v10312 = vadd.f32 %v9842, %v10272
    %v10313 = vadd.f32 %v9843, %v10177
    %v10314 = vadd.f32 %v9844, %v10275
    %v10315 = vadd.f32 %v9845, %v10179
    %v10316 = vadd.f32 %v9846, %v10277
    %v10317 = vadd.f32 %v9847, %v10182
    %v10318 = vadd.f32 %v9848, %v10280
    %v10319 = vadd.f32 %v9849, %v10184
    %v10320 = vadd.f32 %v9850, %v10282
    %v10321 = vadd.f32 %v9851, %v10187
    %v10322 = vadd.f32 %v9852, %v10285
    %v10323 = vadd.f32 %v9853, %v10189
    %v10324 = vadd.f32 %v9854, %v10287
    %v10325 = vadd.f32 %v9855, %v10192
    %v10326 = vadd.f32 %v9856, %v10290
    %v10327 = vadd.f32 %v9857, %v10194
    %v10328 = vadd.f32 %v9858, %v10292
    %v10329 = vadd.f32 %v9859, %v10197
    %v10330 = vadd.f32 %v9860, %v10295
    %v10331 = vadd.f32 %v9861, %v10199
    %v10332 = vadd.f32 %v9862, %v10297
    %v10333 = vadd.f32 %v9863, %v10202
    %v10334 = vadd.f32 %v9864, %v10300
    %v10335 = vadd.f32 %v9865, %v10204
    %v10336 = vadd.f32 %v9866, %v10302
    %v10337 = vadd.f32 %v9867, %v10207
    %v10338 = vadd.f32 %v9868, %v10305
    %v10339 = vadd.f32 %v9869, %v10209
    %v10340 = vadd.f32 %v9870, %v10307
    %v10341 = vld [vmem:[%s9871] sm:$0xfe]
    %v10342 = vld [vmem:[%s9871 + $0x8] sm:$0xfe]
    %v10343 = vld [vmem:[%s9871 + $0x10] sm:$0x1]
    %v10344 = vld [vmem:[%s9871 + $0x18] sm:$0x1]
    %v10345 = vld [vmem:[%s9871 + $0x20] sm:$0xfe]
    %v10346 = vld [vmem:[%s9871 + $0x28] sm:$0xfe]
    %v10347 = vld [vmem:[%s9871 + $0x30] sm:$0x1]
    %v10348 = vld [vmem:[%s9871 + $0x38] sm:$0x1]
    %v10349 = vld [vmem:[%s9871 + $0x40] sm:$0xfe]
    %v10350 = vld [vmem:[%s9871 + $0x48] sm:$0xfe]
    %v10351 = vld [vmem:[%s9871 + $0x50] sm:$0x1]
    %v10352 = vld [vmem:[%s9871 + $0x58] sm:$0x1]
    %v10353 = vld [vmem:[%s9871 + $0x60] sm:$0xfe]
    %v10354 = vld [vmem:[%s9871 + $0x68] sm:$0xfe]
    %v10355 = vld [vmem:[%s9871 + $0x70] sm:$0x1]
    %v10356 = vld [vmem:[%s9871 + $0x78] sm:$0x1]
    %v10357 = vld [vmem:[%s9871 + $0x80] sm:$0xfe]
    %v10358 = vld [vmem:[%s9871 + $0x88] sm:$0xfe]
    %v10359 = vld [vmem:[%s9871 + $0x90] sm:$0x1]
    %v10360 = vld [vmem:[%s9871 + $0x98] sm:$0x1]
    %v10361 = vld [vmem:[%s9871 + $0xa0] sm:$0xfe]
    %v10362 = vld [vmem:[%s9871 + $0xa8] sm:$0xfe]
    %v10363 = vld [vmem:[%s9871 + $0xb0] sm:$0x1]
    %v10364 = vld [vmem:[%s9871 + $0xb8] sm:$0x1]
    %v10365 = vld [vmem:[%s9871 + $0xc0] sm:$0xfe]
    %v10366 = vld [vmem:[%s9871 + $0xc8] sm:$0xfe]
    %v10367 = vld [vmem:[%s9871 + $0xd0] sm:$0x1]
    %v10368 = vld [vmem:[%s9871 + $0xd8] sm:$0x1]
    %v10369 = vld [vmem:[%s9871 + $0xe0] sm:$0xfe]
    %v10370 = vld [vmem:[%s9871 + $0xe8] sm:$0xfe]
    %v10371 = vld [vmem:[%s9871 + $0xf0] sm:$0x1]
    %v10372 = vld [vmem:[%s9871 + $0xf8] sm:$0x1]
    %v10373 = vld [vmem:[%s9871 + $0x140] sm:$0xfe]
    %v10374 = vld [vmem:[%s9871 + $0x148] sm:$0xfe]
    %v10375 = vld [vmem:[%s9871 + $0x150] sm:$0x1]
    %v10376 = vld [vmem:[%s9871 + $0x158] sm:$0x1]
    %v10377 = vld [vmem:[%s9871 + $0x160] sm:$0xfe]
    %v10378 = vld [vmem:[%s9871 + $0x168] sm:$0xfe]
    %v10379 = vld [vmem:[%s9871 + $0x170] sm:$0x1]
    %v10380 = vld [vmem:[%s9871 + $0x178] sm:$0x1]
    %v10381 = vld [vmem:[%s9871 + $0x180] sm:$0xfe]
    %v10382 = vld [vmem:[%s9871 + $0x188] sm:$0xfe]
    %v10383 = vld [vmem:[%s9871 + $0x190] sm:$0x1]
    %v10384 = vld [vmem:[%s9871 + $0x198] sm:$0x1]
    %v10385 = vld [vmem:[%s9871 + $0x1a0] sm:$0xfe]
    %v10386 = vld [vmem:[%s9871 + $0x1a8] sm:$0xfe]
    %v10387 = vld [vmem:[%s9871 + $0x1b0] sm:$0x1]
    %v10388 = vld [vmem:[%s9871 + $0x1b8] sm:$0x1]
    %v10389 = vld [vmem:[%s9871 + $0x1c0] sm:$0xfe]
    %v10390 = vld [vmem:[%s9871 + $0x1c8] sm:$0xfe]
    %v10391 = vld [vmem:[%s9871 + $0x1d0] sm:$0x1]
    %v10392 = vld [vmem:[%s9871 + $0x1d8] sm:$0x1]
    %v10393 = vld [vmem:[%s9871 + $0x1e0] sm:$0xfe]
    %v10394 = vld [vmem:[%s9871 + $0x1e8] sm:$0xfe]
    %v10395 = vld [vmem:[%s9871 + $0x1f0] sm:$0x1]
    %v10396 = vld [vmem:[%s9871 + $0x1f8] sm:$0x1]
    %v10397 = vld [vmem:[%s9871 + $0x200] sm:$0xfe]
    %v10398 = vld [vmem:[%s9871 + $0x208] sm:$0xfe]
    %v10399 = vld [vmem:[%s9871 + $0x210] sm:$0x1]
    %v10400 = vld [vmem:[%s9871 + $0x218] sm:$0x1]
    %v10401 = vld [vmem:[%s9871 + $0x220] sm:$0xfe]
    %v10402 = vld [vmem:[%s9871 + $0x228] sm:$0xfe]
    %v10403 = vld [vmem:[%s9871 + $0x230] sm:$0x1]
    %v10404 = vld [vmem:[%s9871 + $0x238] sm:$0x1]
    %v10469 = vrot.slane %v10341, 1
    %v10470 = vrot.slane %v10343, 1
    %v10471 = vsel %vm227, %v10469, %v10470
    %v10472 = vrot.slane %v10342, 1
    %v10473 = vrot.slane %v10344, 1
    %v10474 = vsel %vm227, %v10472, %v10473
    %v10475 = vrot.slane %v10345, 1
    %v10476 = vrot.slane %v10347, 1
    %v10477 = vsel %vm227, %v10475, %v10476
    %v10478 = vrot.slane %v10346, 1
    %v10479 = vrot.slane %v10348, 1
    %v10480 = vsel %vm227, %v10478, %v10479
    %v10481 = vrot.slane %v10349, 1
    %v10482 = vrot.slane %v10351, 1
    %v10483 = vsel %vm227, %v10481, %v10482
    %v10484 = vrot.slane %v10350, 1
    %v10485 = vrot.slane %v10352, 1
    %v10486 = vsel %vm227, %v10484, %v10485
    %v10487 = vrot.slane %v10353, 1
    %v10488 = vrot.slane %v10355, 1
    %v10489 = vsel %vm227, %v10487, %v10488
    %v10490 = vrot.slane %v10354, 1
    %v10491 = vrot.slane %v10356, 1
    %v10492 = vsel %vm227, %v10490, %v10491
    %v10493 = vrot.slane %v10357, 1
    %v10494 = vrot.slane %v10359, 1
    %v10495 = vsel %vm227, %v10493, %v10494
    %v10496 = vrot.slane %v10358, 1
    %v10497 = vrot.slane %v10360, 1
    %v10498 = vsel %vm227, %v10496, %v10497
    %v10499 = vrot.slane %v10361, 1
    %v10500 = vrot.slane %v10363, 1
    %v10501 = vsel %vm227, %v10499, %v10500
    %v10502 = vrot.slane %v10362, 1
    %v10503 = vrot.slane %v10364, 1
    %v10504 = vsel %vm227, %v10502, %v10503
    %v10505 = vrot.slane %v10365, 1
    %v10506 = vrot.slane %v10367, 1
    %v10507 = vsel %vm227, %v10505, %v10506
    %v10508 = vrot.slane %v10366, 1
    %v10509 = vrot.slane %v10368, 1
    %v10510 = vsel %vm227, %v10508, %v10509
    %v10511 = vrot.slane %v10369, 1
    %v10512 = vrot.slane %v10371, 1
    %v10513 = vsel %vm227, %v10511, %v10512
    %v10514 = vrot.slane %v10370, 1
    %v10515 = vrot.slane %v10372, 1
    %v10516 = vsel %vm227, %v10514, %v10515
    %v10517 = vrot.slane %v10373, 1
    %v10518 = vrot.slane %v10375, 1
    %v10519 = vsel %vm227, %v10517, %v10518
    %v10520 = vrot.slane %v10374, 1
    %v10521 = vrot.slane %v10376, 1
    %v10522 = vsel %vm227, %v10520, %v10521
    %v10523 = vrot.slane %v10377, 1
    %v10524 = vrot.slane %v10379, 1
    %v10525 = vsel %vm227, %v10523, %v10524
    %v10526 = vrot.slane %v10378, 1
    %v10527 = vrot.slane %v10380, 1
    %v10528 = vsel %vm227, %v10526, %v10527
    %v10529 = vrot.slane %v10381, 1
    %v10530 = vrot.slane %v10383, 1
    %v10531 = vsel %vm227, %v10529, %v10530
    %v10532 = vrot.slane %v10382, 1
    %v10533 = vrot.slane %v10384, 1
    %v10534 = vsel %vm227, %v10532, %v10533
    %v10535 = vrot.slane %v10385, 1
    %v10536 = vrot.slane %v10387, 1
    %v10537 = vsel %vm227, %v10535, %v10536
    %v10538 = vrot.slane %v10386, 1
    %v10539 = vrot.slane %v10388, 1
    %v10540 = vsel %vm227, %v10538, %v10539
    %v10541 = vrot.slane %v10389, 1
    %v10542 = vrot.slane %v10391, 1
    %v10543 = vsel %vm227, %v10541, %v10542
    %v10544 = vrot.slane %v10390, 1
    %v10545 = vrot.slane %v10392, 1
    %v10546 = vsel %vm227, %v10544, %v10545
    %v10547 = vrot.slane %v10393, 1
    %v10548 = vrot.slane %v10395, 1
    %v10549 = vsel %vm227, %v10547, %v10548
    %v10550 = vrot.slane %v10394, 1
    %v10551 = vrot.slane %v10396, 1
    %v10552 = vsel %vm227, %v10550, %v10551
    %v10553 = vrot.slane %v10397, 1
    %v10554 = vrot.slane %v10399, 1
    %v10555 = vsel %vm227, %v10553, %v10554
    %v10556 = vrot.slane %v10398, 1
    %v10557 = vrot.slane %v10400, 1
    %v10558 = vsel %vm227, %v10556, %v10557
    %v10559 = vrot.slane %v10401, 1
    %v10560 = vrot.slane %v10403, 1
    %v10561 = vsel %vm227, %v10559, %v10560
    %v10562 = vrot.slane %v10402, 1
    %v10563 = vrot.slane %v10404, 1
    %v10564 = vsel %vm227, %v10562, %v10563
    %v10597 = vpack.c.bf16 %v10477, %v10471
    %v10598 = vpack.c.bf16 %v10480, %v10474
    %v10599 = vpack.c.bf16 %v10489, %v10483
    %v10600 = vpack.c.bf16 %v10492, %v10486
    %v10601 = vpack.c.bf16 %v10501, %v10495
    %v10602 = vpack.c.bf16 %v10504, %v10498
    %v10603 = vpack.c.bf16 %v10513, %v10507
    %v10604 = vpack.c.bf16 %v10516, %v10510
    %v10605 = vpack.c.bf16 %v10525, %v10519
    %v10606 = vpack.c.bf16 %v10528, %v10522
    %v10607 = vpack.c.bf16 %v10537, %v10531
    %v10608 = vpack.c.bf16 %v10540, %v10534
    %v10609 = vpack.c.bf16 %v10549, %v10543
    %v10610 = vpack.c.bf16 %v10552, %v10546
    %v10611 = vpack.c.bf16 %v10561, %v10555
    %v10612 = vpack.c.bf16 %v10564, %v10558
    %s10613 = scalar_lea.vmem %s2, 1792
    %v10614 = vld [vmem:[%s10613] sm:$0xff]
    %v10615 = vld [vmem:[%s10613 + $0x8] sm:$0xff]
    %v10616 = vld [vmem:[%s10613 + $0x10] sm:$0xff]
    %v10617 = vld [vmem:[%s10613 + $0x18] sm:$0xff]
    %v10618 = vld [vmem:[%s10613 + $0x20] sm:$0xff]
    %v10619 = vld [vmem:[%s10613 + $0x28] sm:$0xff]
    %v10620 = vld [vmem:[%s10613 + $0x30] sm:$0xff]
    %v10621 = vld [vmem:[%s10613 + $0x38] sm:$0xff]
    %v10622 = vld [vmem:[%s10613 + $0x40] sm:$0xff]
    %v10623 = vld [vmem:[%s10613 + $0x48] sm:$0xff]
    %v10624 = vld [vmem:[%s10613 + $0x50] sm:$0xff]
    %v10625 = vld [vmem:[%s10613 + $0x58] sm:$0xff]
    %v10626 = vld [vmem:[%s10613 + $0x60] sm:$0xff]
    %v10627 = vld [vmem:[%s10613 + $0x68] sm:$0xff]
    %v10628 = vld [vmem:[%s10613 + $0x70] sm:$0xff]
    %v10629 = vld [vmem:[%s10613 + $0x78] sm:$0xff]
    %v10630 = vld [vmem:[%s10613 + $0x80] sm:$0xff]
    %v10631 = vld [vmem:[%s10613 + $0x88] sm:$0xff]
    %v10632 = vld [vmem:[%s10613 + $0x90] sm:$0xff]
    %v10633 = vld [vmem:[%s10613 + $0x98] sm:$0xff]
    %v10634 = vld [vmem:[%s10613 + $0xa0] sm:$0xff]
    %v10635 = vld [vmem:[%s10613 + $0xa8] sm:$0xff]
    %v10636 = vld [vmem:[%s10613 + $0xb0] sm:$0xff]
    %v10637 = vld [vmem:[%s10613 + $0xb8] sm:$0xff]
    %v10638 = vld [vmem:[%s10613 + $0xc0] sm:$0xff]
    %v10639 = vld [vmem:[%s10613 + $0xc8] sm:$0xff]
    %v10640 = vld [vmem:[%s10613 + $0xd0] sm:$0xff]
    %v10641 = vld [vmem:[%s10613 + $0xd8] sm:$0xff]
    %v10642 = vld [vmem:[%s10613 + $0xe0] sm:$0xff]
    %v10643 = vld [vmem:[%s10613 + $0xe8] sm:$0xff]
    %v10644 = vld [vmem:[%s10613 + $0xf0] sm:$0xff]
    %v10645 = vld [vmem:[%s10613 + $0xf8] sm:$0xff]
    %v10678 = vunpack.c.l.b16 %v10614
    %v10679 = vunpack.c.h.b16 %v10614
    %v10680 = vunpack.c.l.b16 %v10615
    %v10681 = vunpack.c.h.b16 %v10615
    %v10682 = vunpack.c.l.b16 %v10616
    %v10683 = vunpack.c.h.b16 %v10616
    %v10684 = vunpack.c.l.b16 %v10617
    %v10685 = vunpack.c.h.b16 %v10617
    %v10686 = vunpack.c.l.b16 %v10618
    %v10687 = vunpack.c.h.b16 %v10618
    %v10688 = vunpack.c.l.b16 %v10619
    %v10689 = vunpack.c.h.b16 %v10619
    %v10690 = vunpack.c.l.b16 %v10620
    %v10691 = vunpack.c.h.b16 %v10620
    %v10692 = vunpack.c.l.b16 %v10621
    %v10693 = vunpack.c.h.b16 %v10621
    %v10694 = vunpack.c.l.b16 %v10622
    %v10695 = vunpack.c.h.b16 %v10622
    %v10696 = vunpack.c.l.b16 %v10623
    %v10697 = vunpack.c.h.b16 %v10623
    %v10698 = vunpack.c.l.b16 %v10624
    %v10699 = vunpack.c.h.b16 %v10624
    %v10700 = vunpack.c.l.b16 %v10625
    %v10701 = vunpack.c.h.b16 %v10625
    %v10702 = vunpack.c.l.b16 %v10626
    %v10703 = vunpack.c.h.b16 %v10626
    %v10704 = vunpack.c.l.b16 %v10627
    %v10705 = vunpack.c.h.b16 %v10627
    %v10706 = vunpack.c.l.b16 %v10628
    %v10707 = vunpack.c.h.b16 %v10628
    %v10708 = vunpack.c.l.b16 %v10629
    %v10709 = vunpack.c.h.b16 %v10629
    %v10710 = vunpack.c.l.b16 %v10630
    %v10711 = vunpack.c.h.b16 %v10630
    %v10712 = vunpack.c.l.b16 %v10631
    %v10713 = vunpack.c.h.b16 %v10631
    %v10714 = vunpack.c.l.b16 %v10632
    %v10715 = vunpack.c.h.b16 %v10632
    %v10716 = vunpack.c.l.b16 %v10633
    %v10717 = vunpack.c.h.b16 %v10633
    %v10718 = vunpack.c.l.b16 %v10634
    %v10719 = vunpack.c.h.b16 %v10634
    %v10720 = vunpack.c.l.b16 %v10635
    %v10721 = vunpack.c.h.b16 %v10635
    %v10722 = vunpack.c.l.b16 %v10636
    %v10723 = vunpack.c.h.b16 %v10636
    %v10724 = vunpack.c.l.b16 %v10637
    %v10725 = vunpack.c.h.b16 %v10637
    %v10726 = vunpack.c.l.b16 %v10638
    %v10727 = vunpack.c.h.b16 %v10638
    %v10728 = vunpack.c.l.b16 %v10639
    %v10729 = vunpack.c.h.b16 %v10639
    %v10730 = vunpack.c.l.b16 %v10640
    %v10731 = vunpack.c.h.b16 %v10640
    %v10732 = vunpack.c.l.b16 %v10641
    %v10733 = vunpack.c.h.b16 %v10641
    %v10734 = vunpack.c.l.b16 %v10642
    %v10735 = vunpack.c.h.b16 %v10642
    %v10736 = vunpack.c.l.b16 %v10643
    %v10737 = vunpack.c.h.b16 %v10643
    %v10738 = vunpack.c.l.b16 %v10644
    %v10739 = vunpack.c.h.b16 %v10644
    %v10740 = vunpack.c.l.b16 %v10645
    %v10741 = vunpack.c.h.b16 %v10645
    %v10742 = vpack.c.b16 %v10680, %v10678
    %v10743 = vpack.c.b16 %v10681, %v10679
    %v10744 = vpack.c.b16 %v10684, %v10682
    %v10745 = vpack.c.b16 %v10685, %v10683
    %v10746 = vpack.c.b16 %v10688, %v10686
    %v10747 = vpack.c.b16 %v10689, %v10687
    %v10748 = vpack.c.b16 %v10692, %v10690
    %v10749 = vpack.c.b16 %v10693, %v10691
    %v10750 = vpack.c.b16 %v10696, %v10694
    %v10751 = vpack.c.b16 %v10697, %v10695
    %v10752 = vpack.c.b16 %v10700, %v10698
    %v10753 = vpack.c.b16 %v10701, %v10699
    %v10754 = vpack.c.b16 %v10704, %v10702
    %v10755 = vpack.c.b16 %v10705, %v10703
    %v10756 = vpack.c.b16 %v10708, %v10706
    %v10757 = vpack.c.b16 %v10709, %v10707
    %v10758 = vpack.c.b16 %v10712, %v10710
    %v10759 = vpack.c.b16 %v10713, %v10711
    %v10760 = vpack.c.b16 %v10716, %v10714
    %v10761 = vpack.c.b16 %v10717, %v10715
    %v10762 = vpack.c.b16 %v10720, %v10718
    %v10763 = vpack.c.b16 %v10721, %v10719
    %v10764 = vpack.c.b16 %v10724, %v10722
    %v10765 = vpack.c.b16 %v10725, %v10723
    %v10766 = vpack.c.b16 %v10728, %v10726
    %v10767 = vpack.c.b16 %v10729, %v10727
    %v10768 = vpack.c.b16 %v10732, %v10730
    %v10769 = vpack.c.b16 %v10733, %v10731
    %v10770 = vpack.c.b16 %v10736, %v10734
    %v10771 = vpack.c.b16 %v10737, %v10735
    %v10772 = vpack.c.b16 %v10740, %v10738
    %v10773 = vpack.c.b16 %v10741, %v10739
    %10806 = vmatpush.bf16.msra.mxu0 %v10756
    %10807 = vmatpush.bf16.msra.mxu0 %v10754
    %10808 = vmatpush.bf16.msra.mxu0 %v10752
    %10809 = vmatpush.bf16.msra.mxu0 %v10750
    %10810 = vmatpush.bf16.msra.mxu0 %v10748
    %10811 = vmatpush.bf16.msra.mxu0 %v10746
    %10812 = vmatpush.bf16.msra.mxu0 %v10744
    %10813 = vmatpush.bf16.msra.mxu0 %v10742
    %10814 = vmatmul.bf16.gmra.mxu0 %v10597
    %v10815 = vpop.f32.mrf.mxu0
    %v10816 = vadd.f32 0.0, %v10815
    %v10817 = vpop.f32.mrf.mxu0
    %v10818 = vadd.f32 0.0, %v10817
    %10819 = vmatmul.bf16.gmra.mxu0 %v10599
    %v10820 = vpop.f32.mrf.mxu0
    %v10821 = vadd.f32 0.0, %v10820
    %v10822 = vpop.f32.mrf.mxu0
    %v10823 = vadd.f32 0.0, %v10822
    %10824 = vmatmul.bf16.gmra.mxu0 %v10601
    %v10825 = vpop.f32.mrf.mxu0
    %v10826 = vadd.f32 0.0, %v10825
    %v10827 = vpop.f32.mrf.mxu0
    %v10828 = vadd.f32 0.0, %v10827
    %10829 = vmatmul.bf16.gmra.mxu0 %v10603
    %v10830 = vpop.f32.mrf.mxu0
    %v10831 = vadd.f32 0.0, %v10830
    %v10832 = vpop.f32.mrf.mxu0
    %v10833 = vadd.f32 0.0, %v10832
    %10834 = vmatmul.bf16.gmra.mxu0 %v10605
    %v10835 = vpop.f32.mrf.mxu0
    %v10836 = vadd.f32 0.0, %v10835
    %v10837 = vpop.f32.mrf.mxu0
    %v10838 = vadd.f32 0.0, %v10837
    %10839 = vmatmul.bf16.gmra.mxu0 %v10607
    %v10840 = vpop.f32.mrf.mxu0
    %v10841 = vadd.f32 0.0, %v10840
    %v10842 = vpop.f32.mrf.mxu0
    %v10843 = vadd.f32 0.0, %v10842
    %10844 = vmatmul.bf16.gmra.mxu0 %v10609
    %v10845 = vpop.f32.mrf.mxu0
    %v10846 = vadd.f32 0.0, %v10845
    %v10847 = vpop.f32.mrf.mxu0
    %v10848 = vadd.f32 0.0, %v10847
    %10849 = vmatmul.bf16.gmra.mxu0 %v10611
    %v10850 = vpop.f32.mrf.mxu0
    %v10851 = vadd.f32 0.0, %v10850
    %v10852 = vpop.f32.mrf.mxu0
    %v10853 = vadd.f32 0.0, %v10852
    %10854 = vdwg.mxu0
    %10855 = vmatpush.bf16.msra.mxu0 %v10772
    %10856 = vmatpush.bf16.msra.mxu0 %v10770
    %10857 = vmatpush.bf16.msra.mxu0 %v10768
    %10858 = vmatpush.bf16.msra.mxu0 %v10766
    %10859 = vmatpush.bf16.msra.mxu0 %v10764
    %10860 = vmatpush.bf16.msra.mxu0 %v10762
    %10861 = vmatpush.bf16.msra.mxu0 %v10760
    %10862 = vmatpush.bf16.msra.mxu0 %v10758
    %10863 = vmatmul.bf16.gmra.mxu0 %v10598
    %v10864 = vpop.f32.mrf.mxu0
    %v10865 = vadd.f32 %v10816, %v10864
    %v10866 = vpop.f32.mrf.mxu0
    %v10867 = vadd.f32 %v10818, %v10866
    %10868 = vmatmul.bf16.gmra.mxu0 %v10600
    %v10869 = vpop.f32.mrf.mxu0
    %v10870 = vadd.f32 %v10821, %v10869
    %v10871 = vpop.f32.mrf.mxu0
    %v10872 = vadd.f32 %v10823, %v10871
    %10873 = vmatmul.bf16.gmra.mxu0 %v10602
    %v10874 = vpop.f32.mrf.mxu0
    %v10875 = vadd.f32 %v10826, %v10874
    %v10876 = vpop.f32.mrf.mxu0
    %v10877 = vadd.f32 %v10828, %v10876
    %10878 = vmatmul.bf16.gmra.mxu0 %v10604
    %v10879 = vpop.f32.mrf.mxu0
    %v10880 = vadd.f32 %v10831, %v10879
    %v10881 = vpop.f32.mrf.mxu0
    %v10882 = vadd.f32 %v10833, %v10881
    %10883 = vmatmul.bf16.gmra.mxu0 %v10606
    %v10884 = vpop.f32.mrf.mxu0
    %v10885 = vadd.f32 %v10836, %v10884
    %v10886 = vpop.f32.mrf.mxu0
    %v10887 = vadd.f32 %v10838, %v10886
    %10888 = vmatmul.bf16.gmra.mxu0 %v10608
    %v10889 = vpop.f32.mrf.mxu0
    %v10890 = vadd.f32 %v10841, %v10889
    %v10891 = vpop.f32.mrf.mxu0
    %v10892 = vadd.f32 %v10843, %v10891
    %10893 = vmatmul.bf16.gmra.mxu0 %v10610
    %v10894 = vpop.f32.mrf.mxu0
    %v10895 = vadd.f32 %v10846, %v10894
    %v10896 = vpop.f32.mrf.mxu0
    %v10897 = vadd.f32 %v10848, %v10896
    %10898 = vmatmul.bf16.gmra.mxu0 %v10612
    %v10899 = vpop.f32.mrf.mxu0
    %v10900 = vadd.f32 %v10851, %v10899
    %v10901 = vpop.f32.mrf.mxu0
    %v10902 = vadd.f32 %v10853, %v10901
    %10903 = vdwg.mxu0
    %10904 = vmatpush.bf16.msra.mxu0 %v10757
    %10905 = vmatpush.bf16.msra.mxu0 %v10755
    %10906 = vmatpush.bf16.msra.mxu0 %v10753
    %10907 = vmatpush.bf16.msra.mxu0 %v10751
    %10908 = vmatpush.bf16.msra.mxu0 %v10749
    %10909 = vmatpush.bf16.msra.mxu0 %v10747
    %10910 = vmatpush.bf16.msra.mxu0 %v10745
    %10911 = vmatpush.bf16.msra.mxu0 %v10743
    %10912 = vmatmul.bf16.gmra.mxu0 %v10597
    %v10913 = vpop.f32.mrf.mxu0
    %v10914 = vadd.f32 0.0, %v10913
    %v10915 = vpop.f32.mrf.mxu0
    %v10916 = vadd.f32 0.0, %v10915
    %10917 = vmatmul.bf16.gmra.mxu0 %v10599
    %v10918 = vpop.f32.mrf.mxu0
    %v10919 = vadd.f32 0.0, %v10918
    %v10920 = vpop.f32.mrf.mxu0
    %v10921 = vadd.f32 0.0, %v10920
    %10922 = vmatmul.bf16.gmra.mxu0 %v10601
    %v10923 = vpop.f32.mrf.mxu0
    %v10924 = vadd.f32 0.0, %v10923
    %v10925 = vpop.f32.mrf.mxu0
    %v10926 = vadd.f32 0.0, %v10925
    %10927 = vmatmul.bf16.gmra.mxu0 %v10603
    %v10928 = vpop.f32.mrf.mxu0
    %v10929 = vadd.f32 0.0, %v10928
    %v10930 = vpop.f32.mrf.mxu0
    %v10931 = vadd.f32 0.0, %v10930
    %10932 = vmatmul.bf16.gmra.mxu0 %v10605
    %v10933 = vpop.f32.mrf.mxu0
    %v10934 = vadd.f32 0.0, %v10933
    %v10935 = vpop.f32.mrf.mxu0
    %v10936 = vadd.f32 0.0, %v10935
    %10937 = vmatmul.bf16.gmra.mxu0 %v10607
    %v10938 = vpop.f32.mrf.mxu0
    %v10939 = vadd.f32 0.0, %v10938
    %v10940 = vpop.f32.mrf.mxu0
    %v10941 = vadd.f32 0.0, %v10940
    %10942 = vmatmul.bf16.gmra.mxu0 %v10609
    %v10943 = vpop.f32.mrf.mxu0
    %v10944 = vadd.f32 0.0, %v10943
    %v10945 = vpop.f32.mrf.mxu0
    %v10946 = vadd.f32 0.0, %v10945
    %10947 = vmatmul.bf16.gmra.mxu0 %v10611
    %v10948 = vpop.f32.mrf.mxu0
    %v10949 = vadd.f32 0.0, %v10948
    %v10950 = vpop.f32.mrf.mxu0
    %v10951 = vadd.f32 0.0, %v10950
    %10952 = vdwg.mxu0
    %10953 = vmatpush.bf16.msra.mxu0 %v10773
    %10954 = vmatpush.bf16.msra.mxu0 %v10771
    %10955 = vmatpush.bf16.msra.mxu0 %v10769
    %10956 = vmatpush.bf16.msra.mxu0 %v10767
    %10957 = vmatpush.bf16.msra.mxu0 %v10765
    %10958 = vmatpush.bf16.msra.mxu0 %v10763
    %10959 = vmatpush.bf16.msra.mxu0 %v10761
    %10960 = vmatpush.bf16.msra.mxu0 %v10759
    %10961 = vmatmul.bf16.gmra.mxu0 %v10598
    %v10962 = vpop.f32.mrf.mxu0
    %v10963 = vadd.f32 %v10914, %v10962
    %v10964 = vpop.f32.mrf.mxu0
    %v10965 = vadd.f32 %v10916, %v10964
    %10966 = vmatmul.bf16.gmra.mxu0 %v10600
    %v10967 = vpop.f32.mrf.mxu0
    %v10968 = vadd.f32 %v10919, %v10967
    %v10969 = vpop.f32.mrf.mxu0
    %v10970 = vadd.f32 %v10921, %v10969
    %10971 = vmatmul.bf16.gmra.mxu0 %v10602
    %v10972 = vpop.f32.mrf.mxu0
    %v10973 = vadd.f32 %v10924, %v10972
    %v10974 = vpop.f32.mrf.mxu0
    %v10975 = vadd.f32 %v10926, %v10974
    %10976 = vmatmul.bf16.gmra.mxu0 %v10604
    %v10977 = vpop.f32.mrf.mxu0
    %v10978 = vadd.f32 %v10929, %v10977
    %v10979 = vpop.f32.mrf.mxu0
    %v10980 = vadd.f32 %v10931, %v10979
    %10981 = vmatmul.bf16.gmra.mxu0 %v10606
    %v10982 = vpop.f32.mrf.mxu0
    %v10983 = vadd.f32 %v10934, %v10982
    %v10984 = vpop.f32.mrf.mxu0
    %v10985 = vadd.f32 %v10936, %v10984
    %10986 = vmatmul.bf16.gmra.mxu0 %v10608
    %v10987 = vpop.f32.mrf.mxu0
    %v10988 = vadd.f32 %v10939, %v10987
    %v10989 = vpop.f32.mrf.mxu0
    %v10990 = vadd.f32 %v10941, %v10989
    %10991 = vmatmul.bf16.gmra.mxu0 %v10610
    %v10992 = vpop.f32.mrf.mxu0
    %v10993 = vadd.f32 %v10944, %v10992
    %v10994 = vpop.f32.mrf.mxu0
    %v10995 = vadd.f32 %v10946, %v10994
    %10996 = vmatmul.bf16.gmra.mxu0 %v10612
    %v10997 = vpop.f32.mrf.mxu0
    %v10998 = vadd.f32 %v10949, %v10997
    %v10999 = vpop.f32.mrf.mxu0
    %v11000 = vadd.f32 %v10951, %v10999
    %11001 = vdwg.mxu0
    %v11002 = vadd.f32 %v10309, %v10865
    %v11003 = vadd.f32 %v10310, %v10963
    %v11004 = vadd.f32 %v10311, %v10867
    %v11005 = vadd.f32 %v10312, %v10965
    %v11006 = vadd.f32 %v10313, %v10870
    %v11007 = vadd.f32 %v10314, %v10968
    %v11008 = vadd.f32 %v10315, %v10872
    %v11009 = vadd.f32 %v10316, %v10970
    %v11010 = vadd.f32 %v10317, %v10875
    %v11011 = vadd.f32 %v10318, %v10973
    %v11012 = vadd.f32 %v10319, %v10877
    %v11013 = vadd.f32 %v10320, %v10975
    %v11014 = vadd.f32 %v10321, %v10880
    %v11015 = vadd.f32 %v10322, %v10978
    %v11016 = vadd.f32 %v10323, %v10882
    %v11017 = vadd.f32 %v10324, %v10980
    %v11018 = vadd.f32 %v10325, %v10885
    %v11019 = vadd.f32 %v10326, %v10983
    %v11020 = vadd.f32 %v10327, %v10887
    %v11021 = vadd.f32 %v10328, %v10985
    %v11022 = vadd.f32 %v10329, %v10890
    %v11023 = vadd.f32 %v10330, %v10988
    %v11024 = vadd.f32 %v10331, %v10892
    %v11025 = vadd.f32 %v10332, %v10990
    %v11026 = vadd.f32 %v10333, %v10895
    %v11027 = vadd.f32 %v10334, %v10993
    %v11028 = vadd.f32 %v10335, %v10897
    %v11029 = vadd.f32 %v10336, %v10995
    %v11030 = vadd.f32 %v10337, %v10900
    %v11031 = vadd.f32 %v10338, %v10998
    %v11032 = vadd.f32 %v10339, %v10902
    %v11033 = vadd.f32 %v10340, %v11000
    %v11034 = vld [vmem:[%s9871] sm:$0xfc]
    %v11035 = vld [vmem:[%s9871 + $0x8] sm:$0xfc]
    %v11036 = vld [vmem:[%s9871 + $0x10] sm:$0x3]
    %v11037 = vld [vmem:[%s9871 + $0x18] sm:$0x3]
    %v11038 = vld [vmem:[%s9871 + $0x20] sm:$0xfc]
    %v11039 = vld [vmem:[%s9871 + $0x28] sm:$0xfc]
    %v11040 = vld [vmem:[%s9871 + $0x30] sm:$0x3]
    %v11041 = vld [vmem:[%s9871 + $0x38] sm:$0x3]
    %v11042 = vld [vmem:[%s9871 + $0x40] sm:$0xfc]
    %v11043 = vld [vmem:[%s9871 + $0x48] sm:$0xfc]
    %v11044 = vld [vmem:[%s9871 + $0x50] sm:$0x3]
    %v11045 = vld [vmem:[%s9871 + $0x58] sm:$0x3]
    %v11046 = vld [vmem:[%s9871 + $0x60] sm:$0xfc]
    %v11047 = vld [vmem:[%s9871 + $0x68] sm:$0xfc]
    %v11048 = vld [vmem:[%s9871 + $0x70] sm:$0x3]
    %v11049 = vld [vmem:[%s9871 + $0x78] sm:$0x3]
    %v11050 = vld [vmem:[%s9871 + $0x80] sm:$0xfc]
    %v11051 = vld [vmem:[%s9871 + $0x88] sm:$0xfc]
    %v11052 = vld [vmem:[%s9871 + $0x90] sm:$0x3]
    %v11053 = vld [vmem:[%s9871 + $0x98] sm:$0x3]
    %v11054 = vld [vmem:[%s9871 + $0xa0] sm:$0xfc]
    %v11055 = vld [vmem:[%s9871 + $0xa8] sm:$0xfc]
    %v11056 = vld [vmem:[%s9871 + $0xb0] sm:$0x3]
    %v11057 = vld [vmem:[%s9871 + $0xb8] sm:$0x3]
    %v11058 = vld [vmem:[%s9871 + $0xc0] sm:$0xfc]
    %v11059 = vld [vmem:[%s9871 + $0xc8] sm:$0xfc]
    %v11060 = vld [vmem:[%s9871 + $0xd0] sm:$0x3]
    %v11061 = vld [vmem:[%s9871 + $0xd8] sm:$0x3]
    %v11062 = vld [vmem:[%s9871 + $0xe0] sm:$0xfc]
    %v11063 = vld [vmem:[%s9871 + $0xe8] sm:$0xfc]
    %v11064 = vld [vmem:[%s9871 + $0xf0] sm:$0x3]
    %v11065 = vld [vmem:[%s9871 + $0xf8] sm:$0x3]
    %v11066 = vld [vmem:[%s9871 + $0x140] sm:$0xfc]
    %v11067 = vld [vmem:[%s9871 + $0x148] sm:$0xfc]
    %v11068 = vld [vmem:[%s9871 + $0x150] sm:$0x3]
    %v11069 = vld [vmem:[%s9871 + $0x158] sm:$0x3]
    %v11070 = vld [vmem:[%s9871 + $0x160] sm:$0xfc]
    %v11071 = vld [vmem:[%s9871 + $0x168] sm:$0xfc]
    %v11072 = vld [vmem:[%s9871 + $0x170] sm:$0x3]
    %v11073 = vld [vmem:[%s9871 + $0x178] sm:$0x3]
    %v11074 = vld [vmem:[%s9871 + $0x180] sm:$0xfc]
    %v11075 = vld [vmem:[%s9871 + $0x188] sm:$0xfc]
    %v11076 = vld [vmem:[%s9871 + $0x190] sm:$0x3]
    %v11077 = vld [vmem:[%s9871 + $0x198] sm:$0x3]
    %v11078 = vld [vmem:[%s9871 + $0x1a0] sm:$0xfc]
    %v11079 = vld [vmem:[%s9871 + $0x1a8] sm:$0xfc]
    %v11080 = vld [vmem:[%s9871 + $0x1b0] sm:$0x3]
    %v11081 = vld [vmem:[%s9871 + $0x1b8] sm:$0x3]
    %v11082 = vld [vmem:[%s9871 + $0x1c0] sm:$0xfc]
    %v11083 = vld [vmem:[%s9871 + $0x1c8] sm:$0xfc]
    %v11084 = vld [vmem:[%s9871 + $0x1d0] sm:$0x3]
    %v11085 = vld [vmem:[%s9871 + $0x1d8] sm:$0x3]
    %v11086 = vld [vmem:[%s9871 + $0x1e0] sm:$0xfc]
    %v11087 = vld [vmem:[%s9871 + $0x1e8] sm:$0xfc]
    %v11088 = vld [vmem:[%s9871 + $0x1f0] sm:$0x3]
    %v11089 = vld [vmem:[%s9871 + $0x1f8] sm:$0x3]
    %v11090 = vld [vmem:[%s9871 + $0x200] sm:$0xfc]
    %v11091 = vld [vmem:[%s9871 + $0x208] sm:$0xfc]
    %v11092 = vld [vmem:[%s9871 + $0x210] sm:$0x3]
    %v11093 = vld [vmem:[%s9871 + $0x218] sm:$0x3]
    %v11094 = vld [vmem:[%s9871 + $0x220] sm:$0xfc]
    %v11095 = vld [vmem:[%s9871 + $0x228] sm:$0xfc]
    %v11096 = vld [vmem:[%s9871 + $0x230] sm:$0x3]
    %v11097 = vld [vmem:[%s9871 + $0x238] sm:$0x3]
    %v11162 = vrot.slane %v11034, 2
    %v11163 = vrot.slane %v11036, 2
    %v11164 = vsel %vm1245, %v11162, %v11163
    %v11165 = vrot.slane %v11035, 2
    %v11166 = vrot.slane %v11037, 2
    %v11167 = vsel %vm1245, %v11165, %v11166
    %v11168 = vrot.slane %v11038, 2
    %v11169 = vrot.slane %v11040, 2
    %v11170 = vsel %vm1245, %v11168, %v11169
    %v11171 = vrot.slane %v11039, 2
    %v11172 = vrot.slane %v11041, 2
    %v11173 = vsel %vm1245, %v11171, %v11172
    %v11174 = vrot.slane %v11042, 2
    %v11175 = vrot.slane %v11044, 2
    %v11176 = vsel %vm1245, %v11174, %v11175
    %v11177 = vrot.slane %v11043, 2
    %v11178 = vrot.slane %v11045, 2
    %v11179 = vsel %vm1245, %v11177, %v11178
    %v11180 = vrot.slane %v11046, 2
    %v11181 = vrot.slane %v11048, 2
    %v11182 = vsel %vm1245, %v11180, %v11181
    %v11183 = vrot.slane %v11047, 2
    %v11184 = vrot.slane %v11049, 2
    %v11185 = vsel %vm1245, %v11183, %v11184
    %v11186 = vrot.slane %v11050, 2
    %v11187 = vrot.slane %v11052, 2
    %v11188 = vsel %vm1245, %v11186, %v11187
    %v11189 = vrot.slane %v11051, 2
    %v11190 = vrot.slane %v11053, 2
    %v11191 = vsel %vm1245, %v11189, %v11190
    %v11192 = vrot.slane %v11054, 2
    %v11193 = vrot.slane %v11056, 2
    %v11194 = vsel %vm1245, %v11192, %v11193
    %v11195 = vrot.slane %v11055, 2
    %v11196 = vrot.slane %v11057, 2
    %v11197 = vsel %vm1245, %v11195, %v11196
    %v11198 = vrot.slane %v11058, 2
    %v11199 = vrot.slane %v11060, 2
    %v11200 = vsel %vm1245, %v11198, %v11199
    %v11201 = vrot.slane %v11059, 2
    %v11202 = vrot.slane %v11061, 2
    %v11203 = vsel %vm1245, %v11201, %v11202
    %v11204 = vrot.slane %v11062, 2
    %v11205 = vrot.slane %v11064, 2
    %v11206 = vsel %vm1245, %v11204, %v11205
    %v11207 = vrot.slane %v11063, 2
    %v11208 = vrot.slane %v11065, 2
    %v11209 = vsel %vm1245, %v11207, %v11208
    %v11210 = vrot.slane %v11066, 2
    %v11211 = vrot.slane %v11068, 2
    %v11212 = vsel %vm1245, %v11210, %v11211
    %v11213 = vrot.slane %v11067, 2
    %v11214 = vrot.slane %v11069, 2
    %v11215 = vsel %vm1245, %v11213, %v11214
    %v11216 = vrot.slane %v11070, 2
    %v11217 = vrot.slane %v11072, 2
    %v11218 = vsel %vm1245, %v11216, %v11217
    %v11219 = vrot.slane %v11071, 2
    %v11220 = vrot.slane %v11073, 2
    %v11221 = vsel %vm1245, %v11219, %v11220
    %v11222 = vrot.slane %v11074, 2
    %v11223 = vrot.slane %v11076, 2
    %v11224 = vsel %vm1245, %v11222, %v11223
    %v11225 = vrot.slane %v11075, 2
    %v11226 = vrot.slane %v11077, 2
    %v11227 = vsel %vm1245, %v11225, %v11226
    %v11228 = vrot.slane %v11078, 2
    %v11229 = vrot.slane %v11080, 2
    %v11230 = vsel %vm1245, %v11228, %v11229
    %v11231 = vrot.slane %v11079, 2
    %v11232 = vrot.slane %v11081, 2
    %v11233 = vsel %vm1245, %v11231, %v11232
    %v11234 = vrot.slane %v11082, 2
    %v11235 = vrot.slane %v11084, 2
    %v11236 = vsel %vm1245, %v11234, %v11235
    %v11237 = vrot.slane %v11083, 2
    %v11238 = vrot.slane %v11085, 2
    %v11239 = vsel %vm1245, %v11237, %v11238
    %v11240 = vrot.slane %v11086, 2
    %v11241 = vrot.slane %v11088, 2
    %v11242 = vsel %vm1245, %v11240, %v11241
    %v11243 = vrot.slane %v11087, 2
    %v11244 = vrot.slane %v11089, 2
    %v11245 = vsel %vm1245, %v11243, %v11244
    %v11246 = vrot.slane %v11090, 2
    %v11247 = vrot.slane %v11092, 2
    %v11248 = vsel %vm1245, %v11246, %v11247
    %v11249 = vrot.slane %v11091, 2
    %v11250 = vrot.slane %v11093, 2
    %v11251 = vsel %vm1245, %v11249, %v11250
    %v11252 = vrot.slane %v11094, 2
    %v11253 = vrot.slane %v11096, 2
    %v11254 = vsel %vm1245, %v11252, %v11253
    %v11255 = vrot.slane %v11095, 2
    %v11256 = vrot.slane %v11097, 2
    %v11257 = vsel %vm1245, %v11255, %v11256
    %v11290 = vpack.c.bf16 %v11170, %v11164
    %v11291 = vpack.c.bf16 %v11173, %v11167
    %v11292 = vpack.c.bf16 %v11182, %v11176
    %v11293 = vpack.c.bf16 %v11185, %v11179
    %v11294 = vpack.c.bf16 %v11194, %v11188
    %v11295 = vpack.c.bf16 %v11197, %v11191
    %v11296 = vpack.c.bf16 %v11206, %v11200
    %v11297 = vpack.c.bf16 %v11209, %v11203
    %v11298 = vpack.c.bf16 %v11218, %v11212
    %v11299 = vpack.c.bf16 %v11221, %v11215
    %v11300 = vpack.c.bf16 %v11230, %v11224
    %v11301 = vpack.c.bf16 %v11233, %v11227
    %v11302 = vpack.c.bf16 %v11242, %v11236
    %v11303 = vpack.c.bf16 %v11245, %v11239
    %v11304 = vpack.c.bf16 %v11254, %v11248
    %v11305 = vpack.c.bf16 %v11257, %v11251
    %s11306 = scalar_lea.vmem %s2, 2048
    %v11307 = vld [vmem:[%s11306] sm:$0xff]
    %v11308 = vld [vmem:[%s11306 + $0x8] sm:$0xff]
    %v11309 = vld [vmem:[%s11306 + $0x10] sm:$0xff]
    %v11310 = vld [vmem:[%s11306 + $0x18] sm:$0xff]
    %v11311 = vld [vmem:[%s11306 + $0x20] sm:$0xff]
    %v11312 = vld [vmem:[%s11306 + $0x28] sm:$0xff]
    %v11313 = vld [vmem:[%s11306 + $0x30] sm:$0xff]
    %v11314 = vld [vmem:[%s11306 + $0x38] sm:$0xff]
    %v11315 = vld [vmem:[%s11306 + $0x40] sm:$0xff]
    %v11316 = vld [vmem:[%s11306 + $0x48] sm:$0xff]
    %v11317 = vld [vmem:[%s11306 + $0x50] sm:$0xff]
    %v11318 = vld [vmem:[%s11306 + $0x58] sm:$0xff]
    %v11319 = vld [vmem:[%s11306 + $0x60] sm:$0xff]
    %v11320 = vld [vmem:[%s11306 + $0x68] sm:$0xff]
    %v11321 = vld [vmem:[%s11306 + $0x70] sm:$0xff]
    %v11322 = vld [vmem:[%s11306 + $0x78] sm:$0xff]
    %v11323 = vld [vmem:[%s11306 + $0x80] sm:$0xff]
    %v11324 = vld [vmem:[%s11306 + $0x88] sm:$0xff]
    %v11325 = vld [vmem:[%s11306 + $0x90] sm:$0xff]
    %v11326 = vld [vmem:[%s11306 + $0x98] sm:$0xff]
    %v11327 = vld [vmem:[%s11306 + $0xa0] sm:$0xff]
    %v11328 = vld [vmem:[%s11306 + $0xa8] sm:$0xff]
    %v11329 = vld [vmem:[%s11306 + $0xb0] sm:$0xff]
    %v11330 = vld [vmem:[%s11306 + $0xb8] sm:$0xff]
    %v11331 = vld [vmem:[%s11306 + $0xc0] sm:$0xff]
    %v11332 = vld [vmem:[%s11306 + $0xc8] sm:$0xff]
    %v11333 = vld [vmem:[%s11306 + $0xd0] sm:$0xff]
    %v11334 = vld [vmem:[%s11306 + $0xd8] sm:$0xff]
    %v11335 = vld [vmem:[%s11306 + $0xe0] sm:$0xff]
    %v11336 = vld [vmem:[%s11306 + $0xe8] sm:$0xff]
    %v11337 = vld [vmem:[%s11306 + $0xf0] sm:$0xff]
    %v11338 = vld [vmem:[%s11306 + $0xf8] sm:$0xff]
    %v11371 = vunpack.c.l.b16 %v11307
    %v11372 = vunpack.c.h.b16 %v11307
    %v11373 = vunpack.c.l.b16 %v11308
    %v11374 = vunpack.c.h.b16 %v11308
    %v11375 = vunpack.c.l.b16 %v11309
    %v11376 = vunpack.c.h.b16 %v11309
    %v11377 = vunpack.c.l.b16 %v11310
    %v11378 = vunpack.c.h.b16 %v11310
    %v11379 = vunpack.c.l.b16 %v11311
    %v11380 = vunpack.c.h.b16 %v11311
    %v11381 = vunpack.c.l.b16 %v11312
    %v11382 = vunpack.c.h.b16 %v11312
    %v11383 = vunpack.c.l.b16 %v11313
    %v11384 = vunpack.c.h.b16 %v11313
    %v11385 = vunpack.c.l.b16 %v11314
    %v11386 = vunpack.c.h.b16 %v11314
    %v11387 = vunpack.c.l.b16 %v11315
    %v11388 = vunpack.c.h.b16 %v11315
    %v11389 = vunpack.c.l.b16 %v11316
    %v11390 = vunpack.c.h.b16 %v11316
    %v11391 = vunpack.c.l.b16 %v11317
    %v11392 = vunpack.c.h.b16 %v11317
    %v11393 = vunpack.c.l.b16 %v11318
    %v11394 = vunpack.c.h.b16 %v11318
    %v11395 = vunpack.c.l.b16 %v11319
    %v11396 = vunpack.c.h.b16 %v11319
    %v11397 = vunpack.c.l.b16 %v11320
    %v11398 = vunpack.c.h.b16 %v11320
    %v11399 = vunpack.c.l.b16 %v11321
    %v11400 = vunpack.c.h.b16 %v11321
    %v11401 = vunpack.c.l.b16 %v11322
    %v11402 = vunpack.c.h.b16 %v11322
    %v11403 = vunpack.c.l.b16 %v11323
    %v11404 = vunpack.c.h.b16 %v11323
    %v11405 = vunpack.c.l.b16 %v11324
    %v11406 = vunpack.c.h.b16 %v11324
    %v11407 = vunpack.c.l.b16 %v11325
    %v11408 = vunpack.c.h.b16 %v11325
    %v11409 = vunpack.c.l.b16 %v11326
    %v11410 = vunpack.c.h.b16 %v11326
    %v11411 = vunpack.c.l.b16 %v11327
    %v11412 = vunpack.c.h.b16 %v11327
    %v11413 = vunpack.c.l.b16 %v11328
    %v11414 = vunpack.c.h.b16 %v11328
    %v11415 = vunpack.c.l.b16 %v11329
    %v11416 = vunpack.c.h.b16 %v11329
    %v11417 = vunpack.c.l.b16 %v11330
    %v11418 = vunpack.c.h.b16 %v11330
    %v11419 = vunpack.c.l.b16 %v11331
    %v11420 = vunpack.c.h.b16 %v11331
    %v11421 = vunpack.c.l.b16 %v11332
    %v11422 = vunpack.c.h.b16 %v11332
    %v11423 = vunpack.c.l.b16 %v11333
    %v11424 = vunpack.c.h.b16 %v11333
    %v11425 = vunpack.c.l.b16 %v11334
    %v11426 = vunpack.c.h.b16 %v11334
    %v11427 = vunpack.c.l.b16 %v11335
    %v11428 = vunpack.c.h.b16 %v11335
    %v11429 = vunpack.c.l.b16 %v11336
    %v11430 = vunpack.c.h.b16 %v11336
    %v11431 = vunpack.c.l.b16 %v11337
    %v11432 = vunpack.c.h.b16 %v11337
    %v11433 = vunpack.c.l.b16 %v11338
    %v11434 = vunpack.c.h.b16 %v11338
    %v11435 = vpack.c.b16 %v11373, %v11371
    %v11436 = vpack.c.b16 %v11374, %v11372
    %v11437 = vpack.c.b16 %v11377, %v11375
    %v11438 = vpack.c.b16 %v11378, %v11376
    %v11439 = vpack.c.b16 %v11381, %v11379
    %v11440 = vpack.c.b16 %v11382, %v11380
    %v11441 = vpack.c.b16 %v11385, %v11383
    %v11442 = vpack.c.b16 %v11386, %v11384
    %v11443 = vpack.c.b16 %v11389, %v11387
    %v11444 = vpack.c.b16 %v11390, %v11388
    %v11445 = vpack.c.b16 %v11393, %v11391
    %v11446 = vpack.c.b16 %v11394, %v11392
    %v11447 = vpack.c.b16 %v11397, %v11395
    %v11448 = vpack.c.b16 %v11398, %v11396
    %v11449 = vpack.c.b16 %v11401, %v11399
    %v11450 = vpack.c.b16 %v11402, %v11400
    %v11451 = vpack.c.b16 %v11405, %v11403
    %v11452 = vpack.c.b16 %v11406, %v11404
    %v11453 = vpack.c.b16 %v11409, %v11407
    %v11454 = vpack.c.b16 %v11410, %v11408
    %v11455 = vpack.c.b16 %v11413, %v11411
    %v11456 = vpack.c.b16 %v11414, %v11412
    %v11457 = vpack.c.b16 %v11417, %v11415
    %v11458 = vpack.c.b16 %v11418, %v11416
    %v11459 = vpack.c.b16 %v11421, %v11419
    %v11460 = vpack.c.b16 %v11422, %v11420
    %v11461 = vpack.c.b16 %v11425, %v11423
    %v11462 = vpack.c.b16 %v11426, %v11424
    %v11463 = vpack.c.b16 %v11429, %v11427
    %v11464 = vpack.c.b16 %v11430, %v11428
    %v11465 = vpack.c.b16 %v11433, %v11431
    %v11466 = vpack.c.b16 %v11434, %v11432
    %11499 = vmatpush.bf16.msra.mxu0 %v11449
    %11500 = vmatpush.bf16.msra.mxu0 %v11447
    %11501 = vmatpush.bf16.msra.mxu0 %v11445
    %11502 = vmatpush.bf16.msra.mxu0 %v11443
    %11503 = vmatpush.bf16.msra.mxu0 %v11441
    %11504 = vmatpush.bf16.msra.mxu0 %v11439
    %11505 = vmatpush.bf16.msra.mxu0 %v11437
    %11506 = vmatpush.bf16.msra.mxu0 %v11435
    %11507 = vmatmul.bf16.gmra.mxu0 %v11290
    %v11508 = vpop.f32.mrf.mxu0
    %v11509 = vadd.f32 0.0, %v11508
    %v11510 = vpop.f32.mrf.mxu0
    %v11511 = vadd.f32 0.0, %v11510
    %11512 = vmatmul.bf16.gmra.mxu0 %v11292
    %v11513 = vpop.f32.mrf.mxu0
    %v11514 = vadd.f32 0.0, %v11513
    %v11515 = vpop.f32.mrf.mxu0
    %v11516 = vadd.f32 0.0, %v11515
    %11517 = vmatmul.bf16.gmra.mxu0 %v11294
    %v11518 = vpop.f32.mrf.mxu0
    %v11519 = vadd.f32 0.0, %v11518
    %v11520 = vpop.f32.mrf.mxu0
    %v11521 = vadd.f32 0.0, %v11520
    %11522 = vmatmul.bf16.gmra.mxu0 %v11296
    %v11523 = vpop.f32.mrf.mxu0
    %v11524 = vadd.f32 0.0, %v11523
    %v11525 = vpop.f32.mrf.mxu0
    %v11526 = vadd.f32 0.0, %v11525
    %11527 = vmatmul.bf16.gmra.mxu0 %v11298
    %v11528 = vpop.f32.mrf.mxu0
    %v11529 = vadd.f32 0.0, %v11528
    %v11530 = vpop.f32.mrf.mxu0
    %v11531 = vadd.f32 0.0, %v11530
    %11532 = vmatmul.bf16.gmra.mxu0 %v11300
    %v11533 = vpop.f32.mrf.mxu0
    %v11534 = vadd.f32 0.0, %v11533
    %v11535 = vpop.f32.mrf.mxu0
    %v11536 = vadd.f32 0.0, %v11535
    %11537 = vmatmul.bf16.gmra.mxu0 %v11302
    %v11538 = vpop.f32.mrf.mxu0
    %v11539 = vadd.f32 0.0, %v11538
    %v11540 = vpop.f32.mrf.mxu0
    %v11541 = vadd.f32 0.0, %v11540
    %11542 = vmatmul.bf16.gmra.mxu0 %v11304
    %v11543 = vpop.f32.mrf.mxu0
    %v11544 = vadd.f32 0.0, %v11543
    %v11545 = vpop.f32.mrf.mxu0
    %v11546 = vadd.f32 0.0, %v11545
    %11547 = vdwg.mxu0
    %11548 = vmatpush.bf16.msra.mxu0 %v11465
    %11549 = vmatpush.bf16.msra.mxu0 %v11463
    %11550 = vmatpush.bf16.msra.mxu0 %v11461
    %11551 = vmatpush.bf16.msra.mxu0 %v11459
    %11552 = vmatpush.bf16.msra.mxu0 %v11457
    %11553 = vmatpush.bf16.msra.mxu0 %v11455
    %11554 = vmatpush.bf16.msra.mxu0 %v11453
    %11555 = vmatpush.bf16.msra.mxu0 %v11451
    %11556 = vmatmul.bf16.gmra.mxu0 %v11291
    %v11557 = vpop.f32.mrf.mxu0
    %v11558 = vadd.f32 %v11509, %v11557
    %v11559 = vpop.f32.mrf.mxu0
    %v11560 = vadd.f32 %v11511, %v11559
    %11561 = vmatmul.bf16.gmra.mxu0 %v11293
    %v11562 = vpop.f32.mrf.mxu0
    %v11563 = vadd.f32 %v11514, %v11562
    %v11564 = vpop.f32.mrf.mxu0
    %v11565 = vadd.f32 %v11516, %v11564
    %11566 = vmatmul.bf16.gmra.mxu0 %v11295
    %v11567 = vpop.f32.mrf.mxu0
    %v11568 = vadd.f32 %v11519, %v11567
    %v11569 = vpop.f32.mrf.mxu0
    %v11570 = vadd.f32 %v11521, %v11569
    %11571 = vmatmul.bf16.gmra.mxu0 %v11297
    %v11572 = vpop.f32.mrf.mxu0
    %v11573 = vadd.f32 %v11524, %v11572
    %v11574 = vpop.f32.mrf.mxu0
    %v11575 = vadd.f32 %v11526, %v11574
    %11576 = vmatmul.bf16.gmra.mxu0 %v11299
    %v11577 = vpop.f32.mrf.mxu0
    %v11578 = vadd.f32 %v11529, %v11577
    %v11579 = vpop.f32.mrf.mxu0
    %v11580 = vadd.f32 %v11531, %v11579
    %11581 = vmatmul.bf16.gmra.mxu0 %v11301
    %v11582 = vpop.f32.mrf.mxu0
    %v11583 = vadd.f32 %v11534, %v11582
    %v11584 = vpop.f32.mrf.mxu0
    %v11585 = vadd.f32 %v11536, %v11584
    %11586 = vmatmul.bf16.gmra.mxu0 %v11303
    %v11587 = vpop.f32.mrf.mxu0
    %v11588 = vadd.f32 %v11539, %v11587
    %v11589 = vpop.f32.mrf.mxu0
    %v11590 = vadd.f32 %v11541, %v11589
    %11591 = vmatmul.bf16.gmra.mxu0 %v11305
    %v11592 = vpop.f32.mrf.mxu0
    %v11593 = vadd.f32 %v11544, %v11592
    %v11594 = vpop.f32.mrf.mxu0
    %v11595 = vadd.f32 %v11546, %v11594
    %11596 = vdwg.mxu0
    %11597 = vmatpush.bf16.msra.mxu0 %v11450
    %11598 = vmatpush.bf16.msra.mxu0 %v11448
    %11599 = vmatpush.bf16.msra.mxu0 %v11446
    %11600 = vmatpush.bf16.msra.mxu0 %v11444
    %11601 = vmatpush.bf16.msra.mxu0 %v11442
    %11602 = vmatpush.bf16.msra.mxu0 %v11440
    %11603 = vmatpush.bf16.msra.mxu0 %v11438
    %11604 = vmatpush.bf16.msra.mxu0 %v11436
    %11605 = vmatmul.bf16.gmra.mxu0 %v11290
    %v11606 = vpop.f32.mrf.mxu0
    %v11607 = vadd.f32 0.0, %v11606
    %v11608 = vpop.f32.mrf.mxu0
    %v11609 = vadd.f32 0.0, %v11608
    %11610 = vmatmul.bf16.gmra.mxu0 %v11292
    %v11611 = vpop.f32.mrf.mxu0
    %v11612 = vadd.f32 0.0, %v11611
    %v11613 = vpop.f32.mrf.mxu0
    %v11614 = vadd.f32 0.0, %v11613
    %11615 = vmatmul.bf16.gmra.mxu0 %v11294
    %v11616 = vpop.f32.mrf.mxu0
    %v11617 = vadd.f32 0.0, %v11616
    %v11618 = vpop.f32.mrf.mxu0
    %v11619 = vadd.f32 0.0, %v11618
    %11620 = vmatmul.bf16.gmra.mxu0 %v11296
    %v11621 = vpop.f32.mrf.mxu0
    %v11622 = vadd.f32 0.0, %v11621
    %v11623 = vpop.f32.mrf.mxu0
    %v11624 = vadd.f32 0.0, %v11623
    %11625 = vmatmul.bf16.gmra.mxu0 %v11298
    %v11626 = vpop.f32.mrf.mxu0
    %v11627 = vadd.f32 0.0, %v11626
    %v11628 = vpop.f32.mrf.mxu0
    %v11629 = vadd.f32 0.0, %v11628
    %11630 = vmatmul.bf16.gmra.mxu0 %v11300
    %v11631 = vpop.f32.mrf.mxu0
    %v11632 = vadd.f32 0.0, %v11631
    %v11633 = vpop.f32.mrf.mxu0
    %v11634 = vadd.f32 0.0, %v11633
    %11635 = vmatmul.bf16.gmra.mxu0 %v11302
    %v11636 = vpop.f32.mrf.mxu0
    %v11637 = vadd.f32 0.0, %v11636
    %v11638 = vpop.f32.mrf.mxu0
    %v11639 = vadd.f32 0.0, %v11638
    %11640 = vmatmul.bf16.gmra.mxu0 %v11304
    %v11641 = vpop.f32.mrf.mxu0
    %v11642 = vadd.f32 0.0, %v11641
    %v11643 = vpop.f32.mrf.mxu0
    %v11644 = vadd.f32 0.0, %v11643
    %11645 = vdwg.mxu0
    %11646 = vmatpush.bf16.msra.mxu0 %v11466
    %11647 = vmatpush.bf16.msra.mxu0 %v11464
    %11648 = vmatpush.bf16.msra.mxu0 %v11462
    %11649 = vmatpush.bf16.msra.mxu0 %v11460
    %11650 = vmatpush.bf16.msra.mxu0 %v11458
    %11651 = vmatpush.bf16.msra.mxu0 %v11456
    %11652 = vmatpush.bf16.msra.mxu0 %v11454
    %11653 = vmatpush.bf16.msra.mxu0 %v11452
    %11654 = vmatmul.bf16.gmra.mxu0 %v11291
    %v11655 = vpop.f32.mrf.mxu0
    %v11656 = vadd.f32 %v11607, %v11655
    %v11657 = vpop.f32.mrf.mxu0
    %v11658 = vadd.f32 %v11609, %v11657
    %11659 = vmatmul.bf16.gmra.mxu0 %v11293
    %v11660 = vpop.f32.mrf.mxu0
    %v11661 = vadd.f32 %v11612, %v11660
    %v11662 = vpop.f32.mrf.mxu0
    %v11663 = vadd.f32 %v11614, %v11662
    %11664 = vmatmul.bf16.gmra.mxu0 %v11295
    %v11665 = vpop.f32.mrf.mxu0
    %v11666 = vadd.f32 %v11617, %v11665
    %v11667 = vpop.f32.mrf.mxu0
    %v11668 = vadd.f32 %v11619, %v11667
    %11669 = vmatmul.bf16.gmra.mxu0 %v11297
    %v11670 = vpop.f32.mrf.mxu0
    %v11671 = vadd.f32 %v11622, %v11670
    %v11672 = vpop.f32.mrf.mxu0
    %v11673 = vadd.f32 %v11624, %v11672
    %11674 = vmatmul.bf16.gmra.mxu0 %v11299
    %v11675 = vpop.f32.mrf.mxu0
    %v11676 = vadd.f32 %v11627, %v11675
    %v11677 = vpop.f32.mrf.mxu0
    %v11678 = vadd.f32 %v11629, %v11677
    %11679 = vmatmul.bf16.gmra.mxu0 %v11301
    %v11680 = vpop.f32.mrf.mxu0
    %v11681 = vadd.f32 %v11632, %v11680
    %v11682 = vpop.f32.mrf.mxu0
    %v11683 = vadd.f32 %v11634, %v11682
    %11684 = vmatmul.bf16.gmra.mxu0 %v11303
    %v11685 = vpop.f32.mrf.mxu0
    %v11686 = vadd.f32 %v11637, %v11685
    %v11687 = vpop.f32.mrf.mxu0
    %v11688 = vadd.f32 %v11639, %v11687
    %11689 = vmatmul.bf16.gmra.mxu0 %v11305
    %v11690 = vpop.f32.mrf.mxu0
    %v11691 = vadd.f32 %v11642, %v11690
    %v11692 = vpop.f32.mrf.mxu0
    %v11693 = vadd.f32 %v11644, %v11692
    %11694 = vdwg.mxu0
    %v11695 = vadd.f32 %v11002, %v11558
    %v11696 = vadd.f32 %v11003, %v11656
    %v11697 = vadd.f32 %v11004, %v11560
    %v11698 = vadd.f32 %v11005, %v11658
    %v11699 = vadd.f32 %v11006, %v11563
    %v11700 = vadd.f32 %v11007, %v11661
    %v11701 = vadd.f32 %v11008, %v11565
    %v11702 = vadd.f32 %v11009, %v11663
    %v11703 = vadd.f32 %v11010, %v11568
    %v11704 = vadd.f32 %v11011, %v11666
    %v11705 = vadd.f32 %v11012, %v11570
    %v11706 = vadd.f32 %v11013, %v11668
    %v11707 = vadd.f32 %v11014, %v11573
    %v11708 = vadd.f32 %v11015, %v11671
    %v11709 = vadd.f32 %v11016, %v11575
    %v11710 = vadd.f32 %v11017, %v11673
    %v11711 = vadd.f32 %v11018, %v11578
    %v11712 = vadd.f32 %v11019, %v11676
    %v11713 = vadd.f32 %v11020, %v11580
    %v11714 = vadd.f32 %v11021, %v11678
    %v11715 = vadd.f32 %v11022, %v11583
    %v11716 = vadd.f32 %v11023, %v11681
    %v11717 = vadd.f32 %v11024, %v11585
    %v11718 = vadd.f32 %v11025, %v11683
    %v11719 = vadd.f32 %v11026, %v11588
    %v11720 = vadd.f32 %v11027, %v11686
    %v11721 = vadd.f32 %v11028, %v11590
    %v11722 = vadd.f32 %v11029, %v11688
    %v11723 = vadd.f32 %v11030, %v11593
    %v11724 = vadd.f32 %v11031, %v11691
    %v11725 = vadd.f32 %v11032, %v11595
    %v11726 = vadd.f32 %v11033, %v11693
    %v11727 = vadd.f32 %v11695, %v11697
    %v11728 = vadd.f32 %v11727, %v11699
    %v11729 = vadd.f32 %v11728, %v11701
    %v11730 = vadd.f32 %v11729, %v11703
    %v11731 = vadd.f32 %v11730, %v11705
    %v11732 = vadd.f32 %v11731, %v11707
    %v11733 = vadd.f32 %v11732, %v11709
    %v11734 = vadd.f32 %v11733, %v11711
    %v11735 = vadd.f32 %v11734, %v11713
    %v11736 = vadd.f32 %v11735, %v11715
    %v11737 = vadd.f32 %v11736, %v11717
    %v11738 = vadd.f32 %v11737, %v11719
    %v11739 = vadd.f32 %v11738, %v11721
    %v11740 = vadd.f32 %v11739, %v11723
    %v11741 = vadd.f32 %v11740, %v11725
    %v11742 = vrot.slane %v11741, 4
    %v11743 = vadd.f32 %v11741, %v11742
    %v11744 = vrot.slane %v11743, 2
    %v11745 = vadd.f32 %v11743, %v11744
    %v11746 = vrot.slane %v11745, 1
    %v11747 = vadd.f32 %v11745, %v11746
    %v11748 = vadd.f32 %v11696, %v11698
    %v11749 = vadd.f32 %v11748, %v11700
    %v11750 = vadd.f32 %v11749, %v11702
    %v11751 = vadd.f32 %v11750, %v11704
    %v11752 = vadd.f32 %v11751, %v11706
    %v11753 = vadd.f32 %v11752, %v11708
    %v11754 = vadd.f32 %v11753, %v11710
    %v11755 = vadd.f32 %v11754, %v11712
    %v11756 = vadd.f32 %v11755, %v11714
    %v11757 = vadd.f32 %v11756, %v11716
    %v11758 = vadd.f32 %v11757, %v11718
    %v11759 = vadd.f32 %v11758, %v11720
    %v11760 = vadd.f32 %v11759, %v11722
    %v11761 = vadd.f32 %v11760, %v11724
    %v11762 = vadd.f32 %v11761, %v11726
    %v11763 = vrot.slane %v11762, 4
    %v11764 = vadd.f32 %v11762, %v11763
    %v11765 = vrot.slane %v11764, 2
    %v11766 = vadd.f32 %v11764, %v11765
    %v11767 = vrot.slane %v11766, 1
    %v11768 = vadd.f32 %v11766, %v11767
    %v11769 = vmul.f32 %v11747, %v5571
    %v11770 = vmul.f32 %v11768, %v5571
    %v11771 = vsub.f32 %v11695, %v11769
    %v11772 = vsub.f32 %v11696, %v11770
    %v11773 = vsub.f32 %v11697, %v11769
    %v11774 = vsub.f32 %v11698, %v11770
    %v11775 = vsub.f32 %v11699, %v11769
    %v11776 = vsub.f32 %v11700, %v11770
    %v11777 = vsub.f32 %v11701, %v11769
    %v11778 = vsub.f32 %v11702, %v11770
    %v11779 = vsub.f32 %v11703, %v11769
    %v11780 = vsub.f32 %v11704, %v11770
    %v11781 = vsub.f32 %v11705, %v11769
    %v11782 = vsub.f32 %v11706, %v11770
    %v11783 = vsub.f32 %v11707, %v11769
    %v11784 = vsub.f32 %v11708, %v11770
    %v11785 = vsub.f32 %v11709, %v11769
    %v11786 = vsub.f32 %v11710, %v11770
    %v11787 = vsub.f32 %v11711, %v11769
    %v11788 = vsub.f32 %v11712, %v11770
    %v11789 = vsub.f32 %v11713, %v11769
    %v11790 = vsub.f32 %v11714, %v11770
    %v11791 = vsub.f32 %v11715, %v11769
    %v11792 = vsub.f32 %v11716, %v11770
    %v11793 = vsub.f32 %v11717, %v11769
    %v11794 = vsub.f32 %v11718, %v11770
    %v11795 = vsub.f32 %v11719, %v11769
    %v11796 = vsub.f32 %v11720, %v11770
    %v11797 = vsub.f32 %v11721, %v11769
    %v11798 = vsub.f32 %v11722, %v11770
    %v11799 = vsub.f32 %v11723, %v11769
    %v11800 = vsub.f32 %v11724, %v11770
    %v11801 = vsub.f32 %v11725, %v11769
    %v11802 = vsub.f32 %v11726, %v11770
    %v11803 = vmul.f32 %v11771, %v11771
    %v11804 = vmul.f32 %v11772, %v11772
    %v11805 = vmul.f32 %v11773, %v11773
    %v11806 = vmul.f32 %v11774, %v11774
    %v11807 = vmul.f32 %v11775, %v11775
    %v11808 = vmul.f32 %v11776, %v11776
    %v11809 = vmul.f32 %v11777, %v11777
    %v11810 = vmul.f32 %v11778, %v11778
    %v11811 = vmul.f32 %v11779, %v11779
    %v11812 = vmul.f32 %v11780, %v11780
    %v11813 = vmul.f32 %v11781, %v11781
    %v11814 = vmul.f32 %v11782, %v11782
    %v11815 = vmul.f32 %v11783, %v11783
    %v11816 = vmul.f32 %v11784, %v11784
    %v11817 = vmul.f32 %v11785, %v11785
    %v11818 = vmul.f32 %v11786, %v11786
    %v11819 = vmul.f32 %v11787, %v11787
    %v11820 = vmul.f32 %v11788, %v11788
    %v11821 = vmul.f32 %v11789, %v11789
    %v11822 = vmul.f32 %v11790, %v11790
    %v11823 = vmul.f32 %v11791, %v11791
    %v11824 = vmul.f32 %v11792, %v11792
    %v11825 = vmul.f32 %v11793, %v11793
    %v11826 = vmul.f32 %v11794, %v11794
    %v11827 = vmul.f32 %v11795, %v11795
    %v11828 = vmul.f32 %v11796, %v11796
    %v11829 = vmul.f32 %v11797, %v11797
    %v11830 = vmul.f32 %v11798, %v11798
    %v11831 = vmul.f32 %v11799, %v11799
    %v11832 = vmul.f32 %v11800, %v11800
    %v11833 = vmul.f32 %v11801, %v11801
    %v11834 = vmul.f32 %v11802, %v11802
    %v11835 = vadd.f32 %v11803, %v11805
    %v11836 = vadd.f32 %v11835, %v11807
    %v11837 = vadd.f32 %v11836, %v11809
    %v11838 = vadd.f32 %v11837, %v11811
    %v11839 = vadd.f32 %v11838, %v11813
    %v11840 = vadd.f32 %v11839, %v11815
    %v11841 = vadd.f32 %v11840, %v11817
    %v11842 = vadd.f32 %v11841, %v11819
    %v11843 = vadd.f32 %v11842, %v11821
    %v11844 = vadd.f32 %v11843, %v11823
    %v11845 = vadd.f32 %v11844, %v11825
    %v11846 = vadd.f32 %v11845, %v11827
    %v11847 = vadd.f32 %v11846, %v11829
    %v11848 = vadd.f32 %v11847, %v11831
    %v11849 = vadd.f32 %v11848, %v11833
    %v11850 = vrot.slane %v11849, 4
    %v11851 = vadd.f32 %v11849, %v11850
    %v11852 = vrot.slane %v11851, 2
    %v11853 = vadd.f32 %v11851, %v11852
    %v11854 = vrot.slane %v11853, 1
    %v11855 = vadd.f32 %v11853, %v11854
    %v11856 = vadd.f32 %v11804, %v11806
    %v11857 = vadd.f32 %v11856, %v11808
    %v11858 = vadd.f32 %v11857, %v11810
    %v11859 = vadd.f32 %v11858, %v11812
    %v11860 = vadd.f32 %v11859, %v11814
    %v11861 = vadd.f32 %v11860, %v11816
    %v11862 = vadd.f32 %v11861, %v11818
    %v11863 = vadd.f32 %v11862, %v11820
    %v11864 = vadd.f32 %v11863, %v11822
    %v11865 = vadd.f32 %v11864, %v11824
    %v11866 = vadd.f32 %v11865, %v11826
    %v11867 = vadd.f32 %v11866, %v11828
    %v11868 = vadd.f32 %v11867, %v11830
    %v11869 = vadd.f32 %v11868, %v11832
    %v11870 = vadd.f32 %v11869, %v11834
    %v11871 = vrot.slane %v11870, 4
    %v11872 = vadd.f32 %v11870, %v11871
    %v11873 = vrot.slane %v11872, 2
    %v11874 = vadd.f32 %v11872, %v11873
    %v11875 = vrot.slane %v11874, 1
    %v11876 = vadd.f32 %v11874, %v11875
    %v11877 = vmul.f32 %v11855, %v5571
    %v11878 = vmul.f32 %v11876, %v5571
    %v11879 = vadd.f32 %v11877, 1e-05
    %v11880 = vadd.f32 %v11878, 1e-05
    %v11881 = vrsqrt.pop %v11879
    %v11882 = vmul.f32 %v11881, %v11879
    %v11883 = vmul.f32 %v11882, %v11881
    %v11884 = vmul.f32 0.5, %v11883
    %v11885 = vsub.f32 1.5, %v11884
    %v11886 = vmul.f32 %v11881, %v11885
    %vm11887 = vweird.f32 %v11879
    %vm11888 = vweird.f32 %v11881
    %vm11889 = vmor %vm11887, %vm11888
    %v11890 = vsel %vm11889, %v11881, %v11886
    %v11891 = vrsqrt.pop %v11880
    %v11892 = vmul.f32 %v11891, %v11880
    %v11893 = vmul.f32 %v11892, %v11891
    %v11894 = vmul.f32 0.5, %v11893
    %v11895 = vsub.f32 1.5, %v11894
    %v11896 = vmul.f32 %v11891, %v11895
    %vm11897 = vweird.f32 %v11880
    %vm11898 = vweird.f32 %v11891
    %vm11899 = vmor %vm11897, %vm11898
    %v11900 = vsel %vm11899, %v11891, %v11896
    %v11901 = vmul.f32 %v11771, %v11890
    %v11902 = vmul.f32 %v11772, %v11900
    %v11903 = vmul.f32 %v11773, %v11890
    %v11904 = vmul.f32 %v11774, %v11900
    %v11905 = vmul.f32 %v11775, %v11890
    %v11906 = vmul.f32 %v11776, %v11900
    %v11907 = vmul.f32 %v11777, %v11890
    %v11908 = vmul.f32 %v11778, %v11900
    %v11909 = vmul.f32 %v11779, %v11890
    %v11910 = vmul.f32 %v11780, %v11900
    %v11911 = vmul.f32 %v11781, %v11890
    %v11912 = vmul.f32 %v11782, %v11900
    %v11913 = vmul.f32 %v11783, %v11890
    %v11914 = vmul.f32 %v11784, %v11900
    %v11915 = vmul.f32 %v11785, %v11890
    %v11916 = vmul.f32 %v11786, %v11900
    %v11917 = vmul.f32 %v11787, %v11890
    %v11918 = vmul.f32 %v11788, %v11900
    %v11919 = vmul.f32 %v11789, %v11890
    %v11920 = vmul.f32 %v11790, %v11900
    %v11921 = vmul.f32 %v11791, %v11890
    %v11922 = vmul.f32 %v11792, %v11900
    %v11923 = vmul.f32 %v11793, %v11890
    %v11924 = vmul.f32 %v11794, %v11900
    %v11925 = vmul.f32 %v11795, %v11890
    %v11926 = vmul.f32 %v11796, %v11900
    %v11927 = vmul.f32 %v11797, %v11890
    %v11928 = vmul.f32 %v11798, %v11900
    %v11929 = vmul.f32 %v11799, %v11890
    %v11930 = vmul.f32 %v11800, %v11900
    %v11931 = vmul.f32 %v11801, %v11890
    %v11932 = vmul.f32 %v11802, %v11900
    %v11933 = vperm.slane %v18, 2
    %v11934 = vperm.slane %v18, 6
    %v11937 = vperm.slane %v11933, 2
    %v11938 = vperm.slane %v11934, 2
    %v11939 = vmul.f32 %v11901, %v11937
    %v11940 = vmul.f32 %v11902, %v11938
    %v11941 = vmul.f32 %v11903, %v11937
    %v11942 = vmul.f32 %v11904, %v11938
    %v11943 = vmul.f32 %v11905, %v11937
    %v11944 = vmul.f32 %v11906, %v11938
    %v11945 = vmul.f32 %v11907, %v11937
    %v11946 = vmul.f32 %v11908, %v11938
    %v11947 = vmul.f32 %v11909, %v11937
    %v11948 = vmul.f32 %v11910, %v11938
    %v11949 = vmul.f32 %v11911, %v11937
    %v11950 = vmul.f32 %v11912, %v11938
    %v11951 = vmul.f32 %v11913, %v11937
    %v11952 = vmul.f32 %v11914, %v11938
    %v11953 = vmul.f32 %v11915, %v11937
    %v11954 = vmul.f32 %v11916, %v11938
    %v11955 = vmul.f32 %v11917, %v11937
    %v11956 = vmul.f32 %v11918, %v11938
    %v11957 = vmul.f32 %v11919, %v11937
    %v11958 = vmul.f32 %v11920, %v11938
    %v11959 = vmul.f32 %v11921, %v11937
    %v11960 = vmul.f32 %v11922, %v11938
    %v11961 = vmul.f32 %v11923, %v11937
    %v11962 = vmul.f32 %v11924, %v11938
    %v11963 = vmul.f32 %v11925, %v11937
    %v11964 = vmul.f32 %v11926, %v11938
    %v11965 = vmul.f32 %v11927, %v11937
    %v11966 = vmul.f32 %v11928, %v11938
    %v11967 = vmul.f32 %v11929, %v11937
    %v11968 = vmul.f32 %v11930, %v11938
    %v11969 = vmul.f32 %v11931, %v11937
    %v11970 = vmul.f32 %v11932, %v11938
    %v11971 = vperm.slane %v18, 3
    %v11972 = vperm.slane %v18, 7
    %v11975 = vperm.slane %v11971, 3
    %v11976 = vperm.slane %v11972, 3
    %v11977 = vadd.f32 %v11939, %v11975
    %v11978 = vadd.f32 %v11940, %v11976
    %v11979 = vadd.f32 %v11941, %v11975
    %v11980 = vadd.f32 %v11942, %v11976
    %v11981 = vadd.f32 %v11943, %v11975
    %v11982 = vadd.f32 %v11944, %v11976
    %v11983 = vadd.f32 %v11945, %v11975
    %v11984 = vadd.f32 %v11946, %v11976
    %v11985 = vadd.f32 %v11947, %v11975
    %v11986 = vadd.f32 %v11948, %v11976
    %v11987 = vadd.f32 %v11949, %v11975
    %v11988 = vadd.f32 %v11950, %v11976
    %v11989 = vadd.f32 %v11951, %v11975
    %v11990 = vadd.f32 %v11952, %v11976
    %v11991 = vadd.f32 %v11953, %v11975
    %v11992 = vadd.f32 %v11954, %v11976
    %v11993 = vadd.f32 %v11955, %v11975
    %v11994 = vadd.f32 %v11956, %v11976
    %v11995 = vadd.f32 %v11957, %v11975
    %v11996 = vadd.f32 %v11958, %v11976
    %v11997 = vadd.f32 %v11959, %v11975
    %v11998 = vadd.f32 %v11960, %v11976
    %v11999 = vadd.f32 %v11961, %v11975
    %v12000 = vadd.f32 %v11962, %v11976
    %v12001 = vadd.f32 %v11963, %v11975
    %v12002 = vadd.f32 %v11964, %v11976
    %v12003 = vadd.f32 %v11965, %v11975
    %v12004 = vadd.f32 %v11966, %v11976
    %v12005 = vadd.f32 %v11967, %v11975
    %v12006 = vadd.f32 %v11968, %v11976
    %v12007 = vadd.f32 %v11969, %v11975
    %v12008 = vadd.f32 %v11970, %v11976
    %v12009 = vld [vmem:[%s1811] sm:$0xfe]
    %v12010 = vld [vmem:[%s1811 + $0x8] sm:$0xfe]
    %v12011 = vld [vmem:[%s1811 + $0x10] sm:$0x1]
    %v12012 = vld [vmem:[%s1811 + $0x18] sm:$0x1]
    %v12013 = vld [vmem:[%s1811 + $0x20] sm:$0xfe]
    %v12014 = vld [vmem:[%s1811 + $0x28] sm:$0xfe]
    %v12015 = vld [vmem:[%s1811 + $0x30] sm:$0x1]
    %v12016 = vld [vmem:[%s1811 + $0x38] sm:$0x1]
    %v12017 = vld [vmem:[%s1811 + $0x40] sm:$0xfe]
    %v12018 = vld [vmem:[%s1811 + $0x48] sm:$0xfe]
    %v12019 = vld [vmem:[%s1811 + $0x50] sm:$0x1]
    %v12020 = vld [vmem:[%s1811 + $0x58] sm:$0x1]
    %v12021 = vld [vmem:[%s1811 + $0x60] sm:$0xfe]
    %v12022 = vld [vmem:[%s1811 + $0x68] sm:$0xfe]
    %v12023 = vld [vmem:[%s1811 + $0x70] sm:$0x1]
    %v12024 = vld [vmem:[%s1811 + $0x78] sm:$0x1]
    %v12025 = vld [vmem:[%s1811 + $0x80] sm:$0xfe]
    %v12026 = vld [vmem:[%s1811 + $0x88] sm:$0xfe]
    %v12027 = vld [vmem:[%s1811 + $0x90] sm:$0x1]
    %v12028 = vld [vmem:[%s1811 + $0x98] sm:$0x1]
    %v12029 = vld [vmem:[%s1811 + $0xa0] sm:$0xfe]
    %v12030 = vld [vmem:[%s1811 + $0xa8] sm:$0xfe]
    %v12031 = vld [vmem:[%s1811 + $0xb0] sm:$0x1]
    %v12032 = vld [vmem:[%s1811 + $0xb8] sm:$0x1]
    %v12033 = vld [vmem:[%s1811 + $0xc0] sm:$0xfe]
    %v12034 = vld [vmem:[%s1811 + $0xc8] sm:$0xfe]
    %v12035 = vld [vmem:[%s1811 + $0xd0] sm:$0x1]
    %v12036 = vld [vmem:[%s1811 + $0xd8] sm:$0x1]
    %v12037 = vld [vmem:[%s1811 + $0xe0] sm:$0xfe]
    %v12038 = vld [vmem:[%s1811 + $0xe8] sm:$0xfe]
    %v12039 = vld [vmem:[%s1811 + $0xf0] sm:$0x1]
    %v12040 = vld [vmem:[%s1811 + $0xf8] sm:$0x1]
    %v12041 = vld [vmem:[%s1811 + $0x140] sm:$0xfe]
    %v12042 = vld [vmem:[%s1811 + $0x148] sm:$0xfe]
    %v12043 = vld [vmem:[%s1811 + $0x150] sm:$0x1]
    %v12044 = vld [vmem:[%s1811 + $0x158] sm:$0x1]
    %v12045 = vld [vmem:[%s1811 + $0x160] sm:$0xfe]
    %v12046 = vld [vmem:[%s1811 + $0x168] sm:$0xfe]
    %v12047 = vld [vmem:[%s1811 + $0x170] sm:$0x1]
    %v12048 = vld [vmem:[%s1811 + $0x178] sm:$0x1]
    %v12049 = vld [vmem:[%s1811 + $0x180] sm:$0xfe]
    %v12050 = vld [vmem:[%s1811 + $0x188] sm:$0xfe]
    %v12051 = vld [vmem:[%s1811 + $0x190] sm:$0x1]
    %v12052 = vld [vmem:[%s1811 + $0x198] sm:$0x1]
    %v12053 = vld [vmem:[%s1811 + $0x1a0] sm:$0xfe]
    %v12054 = vld [vmem:[%s1811 + $0x1a8] sm:$0xfe]
    %v12055 = vld [vmem:[%s1811 + $0x1b0] sm:$0x1]
    %v12056 = vld [vmem:[%s1811 + $0x1b8] sm:$0x1]
    %v12057 = vld [vmem:[%s1811 + $0x1c0] sm:$0xfe]
    %v12058 = vld [vmem:[%s1811 + $0x1c8] sm:$0xfe]
    %v12059 = vld [vmem:[%s1811 + $0x1d0] sm:$0x1]
    %v12060 = vld [vmem:[%s1811 + $0x1d8] sm:$0x1]
    %v12061 = vld [vmem:[%s1811 + $0x1e0] sm:$0xfe]
    %v12062 = vld [vmem:[%s1811 + $0x1e8] sm:$0xfe]
    %v12063 = vld [vmem:[%s1811 + $0x1f0] sm:$0x1]
    %v12064 = vld [vmem:[%s1811 + $0x1f8] sm:$0x1]
    %v12065 = vld [vmem:[%s1811 + $0x200] sm:$0xfe]
    %v12066 = vld [vmem:[%s1811 + $0x208] sm:$0xfe]
    %v12067 = vld [vmem:[%s1811 + $0x210] sm:$0x1]
    %v12068 = vld [vmem:[%s1811 + $0x218] sm:$0x1]
    %v12069 = vld [vmem:[%s1811 + $0x220] sm:$0xfe]
    %v12070 = vld [vmem:[%s1811 + $0x228] sm:$0xfe]
    %v12071 = vld [vmem:[%s1811 + $0x230] sm:$0x1]
    %v12072 = vld [vmem:[%s1811 + $0x238] sm:$0x1]
    %v12137 = vrot.slane %v12009, 1
    %v12138 = vrot.slane %v12011, 1
    %v12139 = vsel %vm227, %v12137, %v12138
    %v12140 = vrot.slane %v12010, 1
    %v12141 = vrot.slane %v12012, 1
    %v12142 = vsel %vm227, %v12140, %v12141
    %v12143 = vrot.slane %v12013, 1
    %v12144 = vrot.slane %v12015, 1
    %v12145 = vsel %vm227, %v12143, %v12144
    %v12146 = vrot.slane %v12014, 1
    %v12147 = vrot.slane %v12016, 1
    %v12148 = vsel %vm227, %v12146, %v12147
    %v12149 = vrot.slane %v12017, 1
    %v12150 = vrot.slane %v12019, 1
    %v12151 = vsel %vm227, %v12149, %v12150
    %v12152 = vrot.slane %v12018, 1
    %v12153 = vrot.slane %v12020, 1
    %v12154 = vsel %vm227, %v12152, %v12153
    %v12155 = vrot.slane %v12021, 1
    %v12156 = vrot.slane %v12023, 1
    %v12157 = vsel %vm227, %v12155, %v12156
    %v12158 = vrot.slane %v12022, 1
    %v12159 = vrot.slane %v12024, 1
    %v12160 = vsel %vm227, %v12158, %v12159
    %v12161 = vrot.slane %v12025, 1
    %v12162 = vrot.slane %v12027, 1
    %v12163 = vsel %vm227, %v12161, %v12162
    %v12164 = vrot.slane %v12026, 1
    %v12165 = vrot.slane %v12028, 1
    %v12166 = vsel %vm227, %v12164, %v12165
    %v12167 = vrot.slane %v12029, 1
    %v12168 = vrot.slane %v12031, 1
    %v12169 = vsel %vm227, %v12167, %v12168
    %v12170 = vrot.slane %v12030, 1
    %v12171 = vrot.slane %v12032, 1
    %v12172 = vsel %vm227, %v12170, %v12171
    %v12173 = vrot.slane %v12033, 1
    %v12174 = vrot.slane %v12035, 1
    %v12175 = vsel %vm227, %v12173, %v12174
    %v12176 = vrot.slane %v12034, 1
    %v12177 = vrot.slane %v12036, 1
    %v12178 = vsel %vm227, %v12176, %v12177
    %v12179 = vrot.slane %v12037, 1
    %v12180 = vrot.slane %v12039, 1
    %v12181 = vsel %vm227, %v12179, %v12180
    %v12182 = vrot.slane %v12038, 1
    %v12183 = vrot.slane %v12040, 1
    %v12184 = vsel %vm227, %v12182, %v12183
    %v12185 = vrot.slane %v12041, 1
    %v12186 = vrot.slane %v12043, 1
    %v12187 = vsel %vm227, %v12185, %v12186
    %v12188 = vrot.slane %v12042, 1
    %v12189 = vrot.slane %v12044, 1
    %v12190 = vsel %vm227, %v12188, %v12189
    %v12191 = vrot.slane %v12045, 1
    %v12192 = vrot.slane %v12047, 1
    %v12193 = vsel %vm227, %v12191, %v12192
    %v12194 = vrot.slane %v12046, 1
    %v12195 = vrot.slane %v12048, 1
    %v12196 = vsel %vm227, %v12194, %v12195
    %v12197 = vrot.slane %v12049, 1
    %v12198 = vrot.slane %v12051, 1
    %v12199 = vsel %vm227, %v12197, %v12198
    %v12200 = vrot.slane %v12050, 1
    %v12201 = vrot.slane %v12052, 1
    %v12202 = vsel %vm227, %v12200, %v12201
    %v12203 = vrot.slane %v12053, 1
    %v12204 = vrot.slane %v12055, 1
    %v12205 = vsel %vm227, %v12203, %v12204
    %v12206 = vrot.slane %v12054, 1
    %v12207 = vrot.slane %v12056, 1
    %v12208 = vsel %vm227, %v12206, %v12207
    %v12209 = vrot.slane %v12057, 1
    %v12210 = vrot.slane %v12059, 1
    %v12211 = vsel %vm227, %v12209, %v12210
    %v12212 = vrot.slane %v12058, 1
    %v12213 = vrot.slane %v12060, 1
    %v12214 = vsel %vm227, %v12212, %v12213
    %v12215 = vrot.slane %v12061, 1
    %v12216 = vrot.slane %v12063, 1
    %v12217 = vsel %vm227, %v12215, %v12216
    %v12218 = vrot.slane %v12062, 1
    %v12219 = vrot.slane %v12064, 1
    %v12220 = vsel %vm227, %v12218, %v12219
    %v12221 = vrot.slane %v12065, 1
    %v12222 = vrot.slane %v12067, 1
    %v12223 = vsel %vm227, %v12221, %v12222
    %v12224 = vrot.slane %v12066, 1
    %v12225 = vrot.slane %v12068, 1
    %v12226 = vsel %vm227, %v12224, %v12225
    %v12227 = vrot.slane %v12069, 1
    %v12228 = vrot.slane %v12071, 1
    %v12229 = vsel %vm227, %v12227, %v12228
    %v12230 = vrot.slane %v12070, 1
    %v12231 = vrot.slane %v12072, 1
    %v12232 = vsel %vm227, %v12230, %v12231
    %v12265 = vadd.f32 %v12139, %v11977
    %v12266 = vadd.f32 %v12142, %v11978
    %v12267 = vadd.f32 %v12145, %v11979
    %v12268 = vadd.f32 %v12148, %v11980
    %v12269 = vadd.f32 %v12151, %v11981
    %v12270 = vadd.f32 %v12154, %v11982
    %v12271 = vadd.f32 %v12157, %v11983
    %v12272 = vadd.f32 %v12160, %v11984
    %v12273 = vadd.f32 %v12163, %v11985
    %v12274 = vadd.f32 %v12166, %v11986
    %v12275 = vadd.f32 %v12169, %v11987
    %v12276 = vadd.f32 %v12172, %v11988
    %v12277 = vadd.f32 %v12175, %v11989
    %v12278 = vadd.f32 %v12178, %v11990
    %v12279 = vadd.f32 %v12181, %v11991
    %v12280 = vadd.f32 %v12184, %v11992
    %v12281 = vadd.f32 %v12187, %v11993
    %v12282 = vadd.f32 %v12190, %v11994
    %v12283 = vadd.f32 %v12193, %v11995
    %v12284 = vadd.f32 %v12196, %v11996
    %v12285 = vadd.f32 %v12199, %v11997
    %v12286 = vadd.f32 %v12202, %v11998
    %v12287 = vadd.f32 %v12205, %v11999
    %v12288 = vadd.f32 %v12208, %v12000
    %v12289 = vadd.f32 %v12211, %v12001
    %v12290 = vadd.f32 %v12214, %v12002
    %v12291 = vadd.f32 %v12217, %v12003
    %v12292 = vadd.f32 %v12220, %v12004
    %v12293 = vadd.f32 %v12223, %v12005
    %v12294 = vadd.f32 %v12226, %v12006
    %v12295 = vadd.f32 %v12229, %v12007
    %v12296 = vadd.f32 %v12232, %v12008
    %12297 = vst [vmem:[#allocation3] sm:$0xff] %v12265
    %12298 = vst [vmem:[#allocation3 + $0x8] sm:$0xff] %v12266
    %12299 = vst [vmem:[#allocation3 + $0x10] sm:$0xff] %v12267
    %12300 = vst [vmem:[#allocation3 + $0x18] sm:$0xff] %v12268
    %12301 = vst [vmem:[#allocation3 + $0x20] sm:$0xff] %v12269
    %12302 = vst [vmem:[#allocation3 + $0x28] sm:$0xff] %v12270
    %12303 = vst [vmem:[#allocation3 + $0x30] sm:$0xff] %v12271
    %12304 = vst [vmem:[#allocation3 + $0x38] sm:$0xff] %v12272
    %12305 = vst [vmem:[#allocation3 + $0x40] sm:$0xff] %v12273
    %12306 = vst [vmem:[#allocation3 + $0x48] sm:$0xff] %v12274
    %12307 = vst [vmem:[#allocation3 + $0x50] sm:$0xff] %v12275
    %12308 = vst [vmem:[#allocation3 + $0x58] sm:$0xff] %v12276
    %12309 = vst [vmem:[#allocation3 + $0x60] sm:$0xff] %v12277
    %12310 = vst [vmem:[#allocation3 + $0x68] sm:$0xff] %v12278
    %12311 = vst [vmem:[#allocation3 + $0x70] sm:$0xff] %v12279
    %12312 = vst [vmem:[#allocation3 + $0x78] sm:$0xff] %v12280
    %12313 = vst [vmem:[#allocation3 + $0x80] sm:$0xff] %v12281
    %12314 = vst [vmem:[#allocation3 + $0x88] sm:$0xff] %v12282
    %12315 = vst [vmem:[#allocation3 + $0x90] sm:$0xff] %v12283
    %12316 = vst [vmem:[#allocation3 + $0x98] sm:$0xff] %v12284
    %12317 = vst [vmem:[#allocation3 + $0xa0] sm:$0xff] %v12285
    %12318 = vst [vmem:[#allocation3 + $0xa8] sm:$0xff] %v12286
    %12319 = vst [vmem:[#allocation3 + $0xb0] sm:$0xff] %v12287
    %12320 = vst [vmem:[#allocation3 + $0xb8] sm:$0xff] %v12288
    %12321 = vst [vmem:[#allocation3 + $0xc0] sm:$0xff] %v12289
    %12322 = vst [vmem:[#allocation3 + $0xc8] sm:$0xff] %v12290
    %12323 = vst [vmem:[#allocation3 + $0xd0] sm:$0xff] %v12291
    %12324 = vst [vmem:[#allocation3 + $0xd8] sm:$0xff] %v12292
    %12325 = vst [vmem:[#allocation3 + $0xe0] sm:$0xff] %v12293
    %12326 = vst [vmem:[#allocation3 + $0xe8] sm:$0xff] %v12294
    %12327 = vst [vmem:[#allocation3 + $0xf0] sm:$0xff] %v12295
    %12328 = vst [vmem:[#allocation3 + $0xf8] sm:$0xff] %v12296
    // Predicated region
    $region18: #{resnet_block.1} parent=1 // pred_check
      _
    $region19: #{resnet_block.1} parent=1 // pred_check_branch
      %12330 = sbr.rel (0) target = $region21
    $region20: #{resnet_block.1} parent=1 // pred_region
      %12332 = vsyncadd [#allocation4], 0
      %s12333 = sshll.u32 [#allocation3], 4
      %s12334 = int_to_ptr.vmem [resolvable:$true] %s12333
      %s12335 = sshll.u32 %s4, 4
      %s12336 = int_to_ptr.hbm [resolvable:$true] %s12335
      %12341 = dma.vmem_to_hbm [thread:$0]  %s12334, 4096, %s12336, [#allocation4], 256, 256, 16
    $region21: #{resnet_block.1} parent=1 // pred_fallthru
      _
    // Predicated region
    $region22: #{resnet_block.1} parent=1 // pred_check
      _
    $region23: #{resnet_block.1} parent=1 // pred_check_branch
      %12343 = sbr.rel (0) target = $region25
    $region24: #{resnet_block.1} parent=1 // pred_region
      %12345 = dma.done [#allocation4], 4096
    $region25: #{resnet_block.1} parent=1 // pred_fallthru
      _
    %12346 = vsyncpa [#allocation4], 1

</llo_original>
